<compile_context>
chip_gen: v7x
topology: tpu7x:2x2x1
jax: 0.10.0
libtpu: 0.0.40
codegen_flags: <defaults>
</compile_context>

<pallas_src>
import functools

import jax
import jax.numpy as jnp
from jax import lax
from jax.experimental import pallas as pl
from jax.experimental.pallas import tpu as pltpu


# Padding sentinel for layers whose BatchNorm+ReLU is fused into the consuming
# kernel's prologue: relu(sentinel*scale + shift) == 0 for any finite shift as
# long as scale > 0 (true here: BN gamma is initialized to 1, forward only).
_NEG_SENTINEL = -1.0e30


# --------------------------------------------------------------------------
# Phase (sub-pixel) decomposition of ConvTranspose with stride 2
# --------------------------------------------------------------------------

def _transpose_taps(kernel_size, padding):
    """out[2q+p] = sum over taps (kd, off) of in[q+off] . w[kd]  (per dim).

    Returns (taps per parity, pad_lo, pad_hi) with off in [-pad_lo, pad_hi].
    """
    taps = []
    for p in range(2):
        t = []
        for kd in range(kernel_size):
            if kd % 2 == (p + padding) % 2:
                t.append((kd, (p + padding - kd) // 2))
        taps.append(tuple(t))
    offs = [off for par in taps for (_, off) in par]
    return tuple(taps), max(0, -min(offs)), max(0, max(offs))


# --------------------------------------------------------------------------
# Pallas kernels
# --------------------------------------------------------------------------

def _deconv_phase_kernel(*refs, taps, rows, w_p, w_valid, cout, n_xop,
                         apply_act, compute_dtype):
    """Phase-streamed ConvTranspose3d for one (n, d) output-depth pair.

    refs = scale(1,Cin), shift(1,Cin), w_phase0..7 (T_p*Cin, Cout) bf16,
           x (1, Dp, Lp, Cin) f32 whole-sample resident block,
           out (1,1,8,rows,Cout) f32, stats (1,1,2,Cout) f32.
    """
    assert len(refs) == 13
    scale_ref, shift_ref = refs[0], refs[1]
    w_refs = refs[2:10]
    x_ref = refs[10]
    o_ref, st_ref = refs[11], refs[12]

    d = pl.program_id(1)
    scale = scale_ref[...]                      # (1, Cin) f32
    shift = shift_ref[...]

    # Fused BatchNorm(scale, shift) + ReLU of the producer layer (f32), then
    # cast to the MXU compute dtype.  Padded voxels (sentinel) map to 0.
    slabs = []
    for s in range(n_xop):
        x = x_ref[0, d + s]                     # (Lp, Cin) f32, dynamic depth
        if apply_act:
            x = jnp.maximum(x * scale + shift, 0.0)
        slabs.append(x.astype(compute_dtype))

    valid = None
    if w_p != w_valid:
        ridx = lax.broadcasted_iota(jnp.int32, (rows, 1), 0)
        valid = (ridx % w_p) < w_valid

    s1 = jnp.zeros((1, cout), jnp.float32)
    s2 = jnp.zeros((1, cout), jnp.float32)

    p = 0
    for pd in range(2):
        for ph in range(2):
            for pw in range(2):
                # One deep dot per phase: concat taps along the contraction.
                pieces = []
                for (_, sd) in taps[pd]:
                    slab = slabs[sd]
                    for (_, sh) in taps[ph]:
                        for (_, sw) in taps[pw]:
                            off = sh * w_p + sw
                            pieces.append(slab[off:off + rows, :])
                a = pieces[0] if len(pieces) == 1 else jnp.concatenate(
                    pieces, axis=-1)            # (rows, T*Cin)
                acc = jnp.dot(a, w_refs[p][...],
                              preferred_element_type=jnp.float32)
                o_ref[0, 0, p] = acc            # stream this phase's store

                # BatchNorm statistics while the tile is in registers/VMEM
                # (mask the Wp-W "ghost" columns of the padded row space).
                accv = acc if valid is None else jnp.where(valid, acc, 0.0)
                s1 = s1 + jnp.sum(accv, axis=0, keepdims=True)
                s2 = s2 + jnp.sum(accv * accv, axis=0, keepdims=True)
                p += 1

    st_ref[0, 0] = jnp.concatenate([s1, s2], axis=0)   # (2, Cout)


def _conv_kernel(scale_ref, shift_ref, w_ref, b_ref, x_ref, o_ref, *,
                 ksize, rows, w_p, n_xop, apply_act, compute_dtype):
    """Stride-1 Conv3d (k=1 or 3, bias) for one (n, d) slab, channels-first
    (lane dim = rows -> lane-dense output store), with the previous layer's
    BatchNorm+ReLU fused into the prologue."""
    d = pl.program_id(1)
    scale = scale_ref[...]                      # (Cin, 1) f32
    shift = shift_ref[...]

    slabs = []
    for s in range(n_xop):
        x = x_ref[0, d + s]                     # (Cin, Lp) f32
        if apply_act:
            x = jnp.maximum(x * scale + shift, 0.0)
        slabs.append(x.astype(compute_dtype))

    pieces = []
    for kd in range(ksize):
        slab = slabs[kd]
        for kh in range(ksize):
            for kw in range(ksize):
                off = kh * w_p + kw
                pieces.append(slab[:, off:off + rows])
    a = pieces[0] if len(pieces) == 1 else jnp.concatenate(pieces, axis=0)
    out = jnp.dot(w_ref[...], a, preferred_element_type=jnp.float32)
    o_ref[0, 0] = out + b_ref[...]              # (Cout, rows), rows on lanes


# --------------------------------------------------------------------------
# Layer wrappers
# --------------------------------------------------------------------------

def deconv_transpose_layer(x, scale, shift, w_t, *, kernel_size, padding,
                           output_padding, apply_act, channels_first_out=False,
                           compute_dtype=jnp.bfloat16):
    """ConvTranspose3d(k, stride=2, bias=False), phase decomposed.

    x: (N, D, H, W, Cin) channels-last raw producer output.  If apply_act, the
    producer's BatchNorm+ReLU (relu(x*scale+shift)) is applied inside the
    kernel.  Returns (raw deconv output, channel sum, channel sum-of-squares);
    output is (N,2D,2H,2W,Cout) or (N,2D,Cout,2H,2W) if channels_first_out.
    """
    N, D, H, W, cin = x.shape
    cout = w_t.shape[1]
    K = kernel_size
    assert w_t.shape[0] == cin and w_t.shape[2] == K
    assert (D - 1) * 2 - 2 * padding + K + output_padding == 2 * D, \
        "unsupported ConvTranspose3d geometry"

    taps_raw, plo, phi = _transpose_taps(K, padding)
    taps = tuple(tuple((kd, off + plo) for (kd, off) in par) for par in taps_raw)
    n_xop = plo + phi + 1
    tail = plo + phi
    Dp, Hp, Wp = D + tail, H + tail, W + tail
    rows = H * Wp                       # padded-width row space (ghosts stripped later)
    lp = Hp * Wp + tail

    pad_val = _NEG_SENTINEL if apply_act else 0.0
    xp = jnp.pad(x, ((0, 0), (plo, phi), (plo, phi), (plo, phi), (0, 0)),
                 constant_values=pad_val)
    xp = xp.reshape(N, Dp, Hp * Wp, cin)
    if tail:
        xp = jnp.pad(xp, ((0, 0), (0, 0), (0, tail), (0, 0)),
                     constant_values=pad_val)

    # (Cin, Cout, K, K, K) -> per-tap (Cin, Cout) matrices, packed per phase
    # along the contraction dim (tap order matches the kernel's concat order).
    w_taps = jnp.transpose(w_t, (2, 3, 4, 0, 1)).reshape(K ** 3, cin, cout)
    w_phases = []
    for pd in range(2):
        for ph in range(2):
            for pw in range(2):
                blocks = []
                for (kd, _) in taps[pd]:
                    for (kh, _) in taps[ph]:
                        for (kw, _) in taps[pw]:
                            blocks.append(w_taps[(kd * K + kh) * K + kw])
                w_phases.append(
                    jnp.concatenate(blocks, axis=0).astype(compute_dtype))

    kern = functools.partial(
        _deconv_phase_kernel, taps=taps, rows=rows, w_p=Wp, w_valid=W,
        cout=cout, n_xop=n_xop, apply_act=apply_act,
        compute_dtype=compute_dtype)

    w_specs = [pl.BlockSpec(wp.shape, lambda n, d: (0, 0)) for wp in w_phases]
    out_p, stats = pl.pallas_call(
        kern,
        out_shape=(jax.ShapeDtypeStruct((N, D, 8, rows, cout), jnp.float32),
                   jax.ShapeDtypeStruct((N, D, 2, cout), jnp.float32)),
        grid=(N, D),
        in_specs=[
            pl.BlockSpec((1, cin), lambda n, d: (0, 0)),
            pl.BlockSpec((1, cin), lambda n, d: (0, 0)),
            *w_specs,
            # Whole-sample resident block: fetched once per n, re-used for all d.
            pl.BlockSpec((1, Dp, lp, cin), lambda n, d: (n, 0, 0, 0)),
        ],
        out_specs=(
            pl.BlockSpec((1, 1, 8, rows, cout), lambda n, d: (n, d, 0, 0, 0)),
            pl.BlockSpec((1, 1, 2, cout), lambda n, d: (n, d, 0, 0)),
        ),
        compiler_params=pltpu.CompilerParams(
            dimension_semantics=("parallel", "parallel")),
    )(scale.reshape(1, cin), shift.reshape(1, cin), *w_phases, xp)

    # Un-pack phases: strip ghost columns, interleave parities into space.
    o = out_p.reshape(N, D, 2, 2, 2, H, Wp, cout)[:, :, :, :, :, :, :W]
    if channels_first_out:
        o = jnp.transpose(o, (0, 1, 2, 7, 5, 3, 6, 4)).reshape(
            N, 2 * D, cout, 2 * H, 2 * W)
    else:
        o = jnp.transpose(o, (0, 1, 2, 5, 3, 6, 4, 7)).reshape(
            N, 2 * D, 2 * H, 2 * W, cout)

    s = stats.sum(axis=(0, 1))          # (2, Cout)
    return o, s[0], s[1]


def conv3d_layer(x, scale, shift, w_t, b, *, ksize, pad, apply_act,
                 compute_dtype=jnp.bfloat16):
    """Conv3d(k, stride=1, padding=pad, bias=True) with fused BN+ReLU prologue.

    x: (N, D, Cin, H, W) channels-first rows layout (as produced by the last
    deconv layer).  Returns (N, D, Cout, H, W)."""
    N, D, cin, H, W = x.shape
    cout = w_t.shape[0]
    assert 2 * pad == ksize - 1
    tail = 2 * pad
    Dp, Hp, Wp = D + tail, H + tail, W + tail
    rows = H * Wp
    lp = Hp * Wp + tail
    n_xop = ksize

    pad_val = _NEG_SENTINEL if apply_act else 0.0
    xp = x
    if pad:
        xp = jnp.pad(xp, ((0, 0), (pad, pad), (0, 0), (pad, pad), (pad, pad)),
                     constant_values=pad_val)
    xp = xp.reshape(N, Dp, cin, Hp * Wp)
    if tail:
        xp = jnp.pad(xp, ((0, 0), (0, 0), (0, 0), (0, tail)),
                     constant_values=pad_val)

    # (Cout, Cin, k, k, k) -> (Cout, k^3*Cin), tap order matches the kernel.
    blocks = [w_t[:, :, kd, kh, kw]
              for kd in range(ksize) for kh in range(ksize) for kw in range(ksize)]
    w_pack = jnp.concatenate(blocks, axis=1).astype(compute_dtype)

    kern = functools.partial(_conv_kernel, ksize=ksize, rows=rows, w_p=Wp,
                             n_xop=n_xop, apply_act=apply_act,
                             compute_dtype=compute_dtype)
    out = pl.pallas_call(
        kern,
        out_shape=jax.ShapeDtypeStruct((N, D, cout, rows), jnp.float32),
        grid=(N, D),
        in_specs=[
            pl.BlockSpec((cin, 1), lambda n, d: (0, 0)),
            pl.BlockSpec((cin, 1), lambda n, d: (0, 0)),
            pl.BlockSpec(w_pack.shape, lambda n, d: (0, 0)),
            pl.BlockSpec((cout, 1), lambda n, d: (0, 0)),
            pl.BlockSpec((1, Dp, cin, lp), lambda n, d: (n, 0, 0, 0)),
        ],
        out_specs=pl.BlockSpec((1, 1, cout, rows), lambda n, d: (n, d, 0, 0)),
        compiler_params=pltpu.CompilerParams(
            dimension_semantics=("parallel", "parallel")),
    )(scale.reshape(cin, 1), shift.reshape(cin, 1), w_pack,
      b.reshape(cout, 1), xp)

    out = out.reshape(N, D, cout, H, Wp)[..., :W]
    return out                          # (N, D, Cout, H, W)


# --------------------------------------------------------------------------
# DeconvHead forward
# --------------------------------------------------------------------------

def deconv_head_forward(params, x_ncdhw, compute_dtype=jnp.bfloat16):
    eps = 1e-5
    num_layers = len(params["deconv"])
    if num_layers:
        x = jnp.transpose(x_ncdhw, (0, 2, 3, 4, 1)).astype(jnp.float32)  # NDHWC
        cin0 = x.shape[-1]
    else:
        x = jnp.transpose(x_ncdhw, (0, 2, 1, 3, 4)).astype(jnp.float32)  # NDCHW
        cin0 = x.shape[2]
    scale = jnp.ones((cin0,), jnp.float32)
    shift = jnp.zeros((cin0,), jnp.float32)
    apply_act = False
    for i, (w_t, gamma, beta) in enumerate(params["deconv"]):
        last = (i == num_layers - 1)
        m = 8 * x.shape[0] * x.shape[1] * x.shape[2] * x.shape[3]
        y, s_c, sq_c = deconv_transpose_layer(
            x, scale, shift, w_t,
            kernel_size=params["kernel_size"], padding=params["padding"],
            output_padding=params["output_padding"], apply_act=apply_act,
            channels_first_out=last, compute_dtype=compute_dtype)
        mean = s_c / m
        # Note: E[x^2]-E[x]^2 in f32; adequate at this module's 1e-3 weight
        # scale (clamped for safety), kept because it fuses into the epilogue.
        var = jnp.maximum(sq_c / m - mean * mean, 0.0)
        scale = gamma / jnp.sqrt(var + eps)
        shift = beta - mean * scale
        x = y
        apply_act = True
    out = conv3d_layer(x, scale, shift, params["final_w"], params["final_b"],
                       ksize=params["conv_kernel_size"], pad=params["conv_pad"],
                       apply_act=apply_act, compute_dtype=compute_dtype)
    return jnp.transpose(out, (0, 2, 1, 3, 4))          # (N,D,C,H,W) -> NCDHW


def init_params(key, in_channels, num_layers, num_filters,
                kernel_size, conv_kernel_size, num_joints):
    assert kernel_size in (2, 3, 4)
    padding, output_padding = 1, 0
    if kernel_size == 3:
        output_padding = 1
    elif kernel_size == 2:
        padding = 0
    assert conv_kernel_size in (1, 3)
    conv_pad = 0 if conv_kernel_size == 1 else 1

    keys = jax.random.split(key, num_layers + 1)
    deconv = []
    for i in range(num_layers):
        cin = in_channels if i == 0 else num_filters
        w = 0.001 * jax.random.normal(
            keys[i], (cin, num_filters, kernel_size, kernel_size, kernel_size),
            jnp.float32)
        gamma = jnp.ones((num_filters,), jnp.float32)
        beta = jnp.zeros((num_filters,), jnp.float32)
        deconv.append((w, gamma, beta))
    final_w = 0.001 * jax.random.normal(
        keys[-1], (num_joints, num_filters,
                   conv_kernel_size, conv_kernel_size, conv_kernel_size),
        jnp.float32)
    final_b = jnp.zeros((num_joints,), jnp.float32)
    return {"deconv": deconv, "final_w": final_w, "final_b": final_b,
            "kernel_size": kernel_size, "conv_kernel_size": conv_kernel_size,
            "padding": padding, "output_padding": output_padding,
            "conv_pad": conv_pad}


# --------------------------------------------------------------------------
# Pure-JAX reference (for correctness check only)
# --------------------------------------------------------------------------

def reference_forward(params, x):
    dn = ("NCDHW", "OIDHW", "NCDHW")
    pad, opad = params["padding"], params["output_padding"]
    for (w_t, gamma, beta) in params["deconv"]:
        K = w_t.shape[2]
        rhs = jnp.transpose(jnp.flip(w_t, axis=(2, 3, 4)), (1, 0, 2, 3, 4))
        x = lax.conv_general_dilated(
            x, rhs, window_strides=(1, 1, 1),
            padding=[(K - 1 - pad, K - 1 - pad + opad)] * 3,
            lhs_dilation=(2, 2, 2), dimension_numbers=dn)
        mean = jnp.mean(x, axis=(0, 2, 3, 4), keepdims=True)
        var = jnp.var(x, axis=(0, 2, 3, 4), keepdims=True)
        x = (x - mean) / jnp.sqrt(var + 1e-5)
        x = x * gamma[None, :, None, None, None] + beta[None, :, None, None, None]
        x = jnp.maximum(x, 0.0)
    x = lax.conv_general_dilated(
        x, params["final_w"], window_strides=(1, 1, 1),
        padding=[(params["conv_pad"], params["conv_pad"])] * 3,
        dimension_numbers=dn)
    return x + params["final_b"][None, :, None, None, None]


# --------------------------------------------------------------------------

if __name__ == "__main__":
    in_channels, num_layers, num_filters = 4, 2, 8
    kernel_size, conv_kernel_size, num_joints = 4, 1, 3
    N, D, H, W = 2, 4, 4, 4

    key_p, key_x = jax.random.split(jax.random.PRNGKey(0))
    params = init_params(key_p, in_channels, num_layers, num_filters,
                         kernel_size, conv_kernel_size, num_joints)
    x = jax.random.normal(key_x, (N, in_channels, D, H, W), jnp.float32)

    ref = reference_forward(params, x)

    # Tight correctness gate: f32 compute path.
    fwd_f32 = jax.jit(functools.partial(deconv_head_forward, params,
                                        compute_dtype=jnp.float32))
    out_f32 = jax.block_until_ready(fwd_f32(x))
    assert out_f32.shape == (N, num_joints, 4 * D, 4 * H, 4 * W), out_f32.shape
    err32 = float(jnp.max(jnp.abs(out_f32 - ref)))
    assert jnp.allclose(out_f32, ref, rtol=1e-3, atol=1e-5), err32

    # Performance-default path: bf16 MXU operands, f32 accumulation/statistics.
    fwd_bf16 = jax.jit(functools.partial(deconv_head_forward, params))
    out_bf16 = jax.block_until_ready(fwd_bf16(x))
    assert out_bf16.shape == out_f32.shape
    err16 = float(jnp.max(jnp.abs(out_bf16 - ref)))
    assert jnp.allclose(out_bf16, ref, rtol=1e-1, atol=5e-4), err16

    print("KERNEL_OK")
</pallas_src>

<mosaic_0001>
module attributes {stable_mosaic.version = 11 : i64} {
  func.func @_deconv_phase_kernel(%arg0: i32, %arg1: i32, %arg2: memref<1x4xf32, #tpu.memory_space<vmem>>, %arg3: memref<1x4xf32, #tpu.memory_space<vmem>>, %arg4: memref<32x8xf32, #tpu.memory_space<vmem>>, %arg5: memref<32x8xf32, #tpu.memory_space<vmem>>, %arg6: memref<32x8xf32, #tpu.memory_space<vmem>>, %arg7: memref<32x8xf32, #tpu.memory_space<vmem>>, %arg8: memref<32x8xf32, #tpu.memory_space<vmem>>, %arg9: memref<32x8xf32, #tpu.memory_space<vmem>>, %arg10: memref<32x8xf32, #tpu.memory_space<vmem>>, %arg11: memref<32x8xf32, #tpu.memory_space<vmem>>, %arg12: memref<1x6x38x4xf32, #tpu.memory_space<vmem>>, %arg13: memref<1x1x8x24x8xf32, #tpu.memory_space<vmem>>, %arg14: memref<1x1x2x8xf32, #tpu.memory_space<vmem>>) attributes {dimension_semantics = [#tpu.dimension_semantics<parallel>, #tpu.dimension_semantics<parallel>], iteration_bounds = array<i64: 2, 4>, scalar_prefetch = 0 : i64, scratch_operands = 0 : i64, tpu.core_type = #tpu.core_type<tc>, window_params = [{pipeline_mode = #tpu.pipeline_mode<synchronous>, transform_indices = @transform_0, window_bounds = array<i64: 1, 4>}, {pipeline_mode = #tpu.pipeline_mode<synchronous>, transform_indices = @transform_1, window_bounds = array<i64: 1, 4>}, {pipeline_mode = #tpu.pipeline_mode<synchronous>, transform_indices = @transform_2, window_bounds = array<i64: 32, 8>}, {pipeline_mode = #tpu.pipeline_mode<synchronous>, transform_indices = @transform_3, window_bounds = array<i64: 32, 8>}, {pipeline_mode = #tpu.pipeline_mode<synchronous>, transform_indices = @transform_4, window_bounds = array<i64: 32, 8>}, {pipeline_mode = #tpu.pipeline_mode<synchronous>, transform_indices = @transform_5, window_bounds = array<i64: 32, 8>}, {pipeline_mode = #tpu.pipeline_mode<synchronous>, transform_indices = @transform_6, window_bounds = array<i64: 32, 8>}, {pipeline_mode = #tpu.pipeline_mode<synchronous>, transform_indices = @transform_7, window_bounds = array<i64: 32, 8>}, {pipeline_mode = #tpu.pipeline_mode<synchronous>, transform_indices = @transform_8, window_bounds = array<i64: 32, 8>}, {pipeline_mode = #tpu.pipeline_mode<synchronous>, transform_indices = @transform_9, window_bounds = array<i64: 32, 8>}, {transform_indices = @transform_10, window_bounds = array<i64: 1, 6, 38, 4>}, {transform_indices = @transform_11, window_bounds = array<i64: 1, 1, 8, 24, 8>}, {transform_indices = @transform_12, window_bounds = array<i64: 1, 1, 2, 8>}]} {
    %c0_i32 = arith.constant 0 : i32
    %0 = arith.addi %arg1, %c0_i32 : i32
    %c0 = arith.constant 0 : index
    %1 = arith.index_cast %0 : i32 to index
    %c0_0 = arith.constant 0 : index
    %c0_1 = arith.constant 0 : index
    %2 = vector.load %arg12[%c0, %1, %c0_0, %c0_1] : memref<1x6x38x4xf32, #tpu.memory_space<vmem>>, vector<1x1x38x4xf32>
    %3 = vector.shape_cast %2 : vector<1x1x38x4xf32> to vector<38x4xf32>
    %c1_i32 = arith.constant 1 : i32
    %4 = arith.addi %arg1, %c1_i32 : i32
    %c0_2 = arith.constant 0 : index
    %5 = arith.index_cast %4 : i32 to index
    %c0_3 = arith.constant 0 : index
    %c0_4 = arith.constant 0 : index
    %6 = vector.load %arg12[%c0_2, %5, %c0_3, %c0_4] : memref<1x6x38x4xf32, #tpu.memory_space<vmem>>, vector<1x1x38x4xf32>
    %7 = vector.shape_cast %6 : vector<1x1x38x4xf32> to vector<38x4xf32>
    %c2_i32 = arith.constant 2 : i32
    %8 = arith.addi %arg1, %c2_i32 : i32
    %c0_5 = arith.constant 0 : index
    %9 = arith.index_cast %8 : i32 to index
    %c0_6 = arith.constant 0 : index
    %c0_7 = arith.constant 0 : index
    %10 = vector.load %arg12[%c0_5, %9, %c0_6, %c0_7] : memref<1x6x38x4xf32, #tpu.memory_space<vmem>>, vector<1x1x38x4xf32>
    %11 = vector.shape_cast %10 : vector<1x1x38x4xf32> to vector<38x4xf32>
    %12 = tpu.iota {dimensions = array<i32: 0>} : vector<24x1xi32>
    %c6_i32 = arith.constant 6 : i32
    %c0_i32_8 = arith.constant 0 : i32
    %13 = arith.cmpi eq, %c6_i32, %c0_i32_8 : i32
    %c1_i32_9 = arith.constant 1 : i32
    %14 = arith.select %13, %c1_i32_9, %c6_i32 : i32
    %15 = vector.broadcast %14 : i32 to vector<24x1xi32>
    %16 = arith.remsi %12, %15 : vector<24x1xi32>
    %c0_i32_10 = arith.constant 0 : i32
    %17 = vector.broadcast %c0_i32_10 : i32 to vector<24x1xi32>
    %18 = arith.cmpi ne, %16, %17 : vector<24x1xi32>
    %c0_i32_11 = arith.constant 0 : i32
    %19 = vector.broadcast %c0_i32_11 : i32 to vector<24x1xi32>
    %20 = arith.cmpi slt, %16, %19 : vector<24x1xi32>
    %c0_i32_12 = arith.constant 0 : i32
    %21 = arith.cmpi slt, %14, %c0_i32_12 : i32
    %22 = vector.broadcast %21 : i1 to vector<24x1xi1>
    %23 = vector.broadcast %22 : vector<24x1xi1> to vector<24x1xi1>
    %24 = arith.xori %20, %23 : vector<24x1xi1>
    %25 = arith.andi %24, %18 : vector<24x1xi1>
    %26 = vector.broadcast %14 : i32 to vector<24x1xi32>
    %27 = arith.addi %16, %26 : vector<24x1xi32>
    %28 = arith.select %25, %27, %16 : vector<24x1xi1>, vector<24x1xi32>
    %c4_i32 = arith.constant 4 : i32
    %29 = vector.broadcast %c4_i32 : i32 to vector<24x1xi32>
    %30 = arith.cmpi slt, %28, %29 : vector<24x1xi32>
    %cst = arith.constant 0.000000e+00 : f32
    %31 = vector.broadcast %cst : f32 to vector<1x8xf32>
    %cst_13 = arith.constant 0.000000e+00 : f32
    %32 = vector.broadcast %cst_13 : f32 to vector<1x8xf32>
    %33 = vector.extract_strided_slice %7 {offsets = [7, 0], sizes = [24, 4], strides = [1, 1]} : vector<38x4xf32> to vector<24x4xf32>
    %34 = vector.extract_strided_slice %7 {offsets = [6, 0], sizes = [24, 4], strides = [1, 1]} : vector<38x4xf32> to vector<24x4xf32>
    %35 = vector.extract_strided_slice %7 {offsets = [1, 0], sizes = [24, 4], strides = [1, 1]} : vector<38x4xf32> to vector<24x4xf32>
    %36 = vector.extract_strided_slice %7 {offsets = [0, 0], sizes = [24, 4], strides = [1, 1]} : vector<38x4xf32> to vector<24x4xf32>
    %37 = vector.extract_strided_slice %3 {offsets = [7, 0], sizes = [24, 4], strides = [1, 1]} : vector<38x4xf32> to vector<24x4xf32>
    %38 = vector.extract_strided_slice %3 {offsets = [6, 0], sizes = [24, 4], strides = [1, 1]} : vector<38x4xf32> to vector<24x4xf32>
    %39 = vector.extract_strided_slice %3 {offsets = [1, 0], sizes = [24, 4], strides = [1, 1]} : vector<38x4xf32> to vector<24x4xf32>
    %40 = vector.extract_strided_slice %3 {offsets = [0, 0], sizes = [24, 4], strides = [1, 1]} : vector<38x4xf32> to vector<24x4xf32>
    %41 = tpu.concatenate %33, %34, %35, %36, %37, %38, %39, %40 in 1 : vector<24x4xf32>, vector<24x4xf32>, vector<24x4xf32>, vector<24x4xf32>, vector<24x4xf32>, vector<24x4xf32>, vector<24x4xf32>, vector<24x4xf32> -> vector<24x32xf32>
    %c0_14 = arith.constant 0 : index
    %c0_15 = arith.constant 0 : index
    %42 = vector.load %arg4[%c0_14, %c0_15] : memref<32x8xf32, #tpu.memory_space<vmem>>, vector<32x8xf32>
    %cst_16 = arith.constant dense<0.000000e+00> : vector<24x8xf32>
    %43 = tpu.matmul %41, %42, %cst_16 {dimension_numbers = #tpu.dot_dimension_numbers<[1], [0], [0], [1], [0, 0, 1, 1], [], []>} : vector<24x32xf32>, vector<32x8xf32>, vector<24x8xf32> -> vector<24x8xf32>
    %c0_17 = arith.constant 0 : index
    %c0_18 = arith.constant 0 : index
    %c0_19 = arith.constant 0 : index
    %c0_20 = arith.constant 0 : index
    %c0_21 = arith.constant 0 : index
    %44 = vector.load %arg13[%c0_17, %c0_18, %c0_19, %c0_20, %c0_21] : memref<1x1x8x24x8xf32, #tpu.memory_space<vmem>>, vector<1x1x1x24x8xf32>
    %45 = vector.shape_cast %44 : vector<1x1x1x24x8xf32> to vector<24x8xf32>
    %46 = vector.shape_cast %43 : vector<24x8xf32> to vector<1x1x1x24x8xf32>
    tpu.vector_store %arg13[%c0_17, %c0_18, %c0_19, %c0_20, %c0_21], %46 {strides = array<i32>} : memref<1x1x8x24x8xf32, #tpu.memory_space<vmem>>, vector<1x1x1x24x8xf32>,
    %cst_22 = arith.constant 0.000000e+00 : f32
    %47 = vector.shape_cast %30 : vector<24x1xi1> to vector<24x1xi1>
    %48 = vector.broadcast %47 : vector<24x1xi1> to vector<24x8xi1>
    %49 = vector.broadcast %cst_22 : f32 to vector<24x8xf32>
    %50 = arith.select %48, %43, %49 : vector<24x8xi1>, vector<24x8xf32>
    %cst_23 = arith.constant dense<0.000000e+00> : vector<8xf32>
    %51 = vector.multi_reduction <add>, %50, %cst_23 [0] : vector<24x8xf32> to vector<8xf32>
    %52 = vector.shape_cast %51 : vector<8xf32> to vector<1x8xf32>
    %53 = arith.addf %31, %52 : vector<1x8xf32>
    %54 = arith.mulf %50, %50 : vector<24x8xf32>
    %cst_24 = arith.constant dense<0.000000e+00> : vector<8xf32>
    %55 = vector.multi_reduction <add>, %54, %cst_24 [0] : vector<24x8xf32> to vector<8xf32>
    %56 = vector.shape_cast %55 : vector<8xf32> to vector<1x8xf32>
    %57 = arith.addf %32, %56 : vector<1x8xf32>
    %58 = vector.extract_strided_slice %7 {offsets = [8, 0], sizes = [24, 4], strides = [1, 1]} : vector<38x4xf32> to vector<24x4xf32>
    %59 = vector.extract_strided_slice %7 {offsets = [7, 0], sizes = [24, 4], strides = [1, 1]} : vector<38x4xf32> to vector<24x4xf32>
    %60 = vector.extract_strided_slice %7 {offsets = [2, 0], sizes = [24, 4], strides = [1, 1]} : vector<38x4xf32> to vector<24x4xf32>
    %61 = vector.extract_strided_slice %7 {offsets = [1, 0], sizes = [24, 4], strides = [1, 1]} : vector<38x4xf32> to vector<24x4xf32>
    %62 = vector.extract_strided_slice %3 {offsets = [8, 0], sizes = [24, 4], strides = [1, 1]} : vector<38x4xf32> to vector<24x4xf32>
    %63 = vector.extract_strided_slice %3 {offsets = [7, 0], sizes = [24, 4], strides = [1, 1]} : vector<38x4xf32> to vector<24x4xf32>
    %64 = vector.extract_strided_slice %3 {offsets = [2, 0], sizes = [24, 4], strides = [1, 1]} : vector<38x4xf32> to vector<24x4xf32>
    %65 = vector.extract_strided_slice %3 {offsets = [1, 0], sizes = [24, 4], strides = [1, 1]} : vector<38x4xf32> to vector<24x4xf32>
    %66 = tpu.concatenate %58, %59, %60, %61, %62, %63, %64, %65 in 1 : vector<24x4xf32>, vector<24x4xf32>, vector<24x4xf32>, vector<24x4xf32>, vector<24x4xf32>, vector<24x4xf32>, vector<24x4xf32>, vector<24x4xf32> -> vector<24x32xf32>
    %c0_25 = arith.constant 0 : index
    %c0_26 = arith.constant 0 : index
    %67 = vector.load %arg5[%c0_25, %c0_26] : memref<32x8xf32, #tpu.memory_space<vmem>>, vector<32x8xf32>
    %cst_27 = arith.constant dense<0.000000e+00> : vector<24x8xf32>
    %68 = tpu.matmul %66, %67, %cst_27 {dimension_numbers = #tpu.dot_dimension_numbers<[1], [0], [0], [1], [0, 0, 1, 1], [], []>} : vector<24x32xf32>, vector<32x8xf32>, vector<24x8xf32> -> vector<24x8xf32>
    %c0_28 = arith.constant 0 : index
    %c0_29 = arith.constant 0 : index
    %c1 = arith.constant 1 : index
    %c0_30 = arith.constant 0 : index
    %c0_31 = arith.constant 0 : index
    %69 = vector.load %arg13[%c0_28, %c0_29, %c1, %c0_30, %c0_31] : memref<1x1x8x24x8xf32, #tpu.memory_space<vmem>>, vector<1x1x1x24x8xf32>
    %70 = vector.shape_cast %69 : vector<1x1x1x24x8xf32> to vector<24x8xf32>
    %71 = vector.shape_cast %68 : vector<24x8xf32> to vector<1x1x1x24x8xf32>
    tpu.vector_store %arg13[%c0_28, %c0_29, %c1, %c0_30, %c0_31], %71 {strides = array<i32>} : memref<1x1x8x24x8xf32, #tpu.memory_space<vmem>>, vector<1x1x1x24x8xf32>,
    %cst_32 = arith.constant 0.000000e+00 : f32
    %72 = vector.shape_cast %30 : vector<24x1xi1> to vector<24x1xi1>
    %73 = vector.broadcast %72 : vector<24x1xi1> to vector<24x8xi1>
    %74 = vector.broadcast %cst_32 : f32 to vector<24x8xf32>
    %75 = arith.select %73, %68, %74 : vector<24x8xi1>, vector<24x8xf32>
    %cst_33 = arith.constant dense<0.000000e+00> : vector<8xf32>
    %76 = vector.multi_reduction <add>, %75, %cst_33 [0] : vector<24x8xf32> to vector<8xf32>
    %77 = vector.shape_cast %76 : vector<8xf32> to vector<1x8xf32>
    %78 = arith.addf %53, %77 : vector<1x8xf32>
    %79 = arith.mulf %75, %75 : vector<24x8xf32>
    %cst_34 = arith.constant dense<0.000000e+00> : vector<8xf32>
    %80 = vector.multi_reduction <add>, %79, %cst_34 [0] : vector<24x8xf32> to vector<8xf32>
    %81 = vector.shape_cast %80 : vector<8xf32> to vector<1x8xf32>
    %82 = arith.addf %57, %81 : vector<1x8xf32>
    %83 = vector.extract_strided_slice %7 {offsets = [13, 0], sizes = [24, 4], strides = [1, 1]} : vector<38x4xf32> to vector<24x4xf32>
    %84 = vector.extract_strided_slice %7 {offsets = [12, 0], sizes = [24, 4], strides = [1, 1]} : vector<38x4xf32> to vector<24x4xf32>
    %85 = vector.extract_strided_slice %7 {offsets = [7, 0], sizes = [24, 4], strides = [1, 1]} : vector<38x4xf32> to vector<24x4xf32>
    %86 = vector.extract_strided_slice %7 {offsets = [6, 0], sizes = [24, 4], strides = [1, 1]} : vector<38x4xf32> to vector<24x4xf32>
    %87 = vector.extract_strided_slice %3 {offsets = [13, 0], sizes = [24, 4], strides = [1, 1]} : vector<38x4xf32> to vector<24x4xf32>
    %88 = vector.extract_strided_slice %3 {offsets = [12, 0], sizes = [24, 4], strides = [1, 1]} : vector<38x4xf32> to vector<24x4xf32>
    %89 = vector.extract_strided_slice %3 {offsets = [7, 0], sizes = [24, 4], strides = [1, 1]} : vector<38x4xf32> to vector<24x4xf32>
    %90 = vector.extract_strided_slice %3 {offsets = [6, 0], sizes = [24, 4], strides = [1, 1]} : vector<38x4xf32> to vector<24x4xf32>
    %91 = tpu.concatenate %83, %84, %85, %86, %87, %88, %89, %90 in 1 : vector<24x4xf32>, vector<24x4xf32>, vector<24x4xf32>, vector<24x4xf32>, vector<24x4xf32>, vector<24x4xf32>, vector<24x4xf32>, vector<24x4xf32> -> vector<24x32xf32>
    %c0_35 = arith.constant 0 : index
    %c0_36 = arith.constant 0 : index
    %92 = vector.load %arg6[%c0_35, %c0_36] : memref<32x8xf32, #tpu.memory_space<vmem>>, vector<32x8xf32>
    %cst_37 = arith.constant dense<0.000000e+00> : vector<24x8xf32>
    %93 = tpu.matmul %91, %92, %cst_37 {dimension_numbers = #tpu.dot_dimension_numbers<[1], [0], [0], [1], [0, 0, 1, 1], [], []>} : vector<24x32xf32>, vector<32x8xf32>, vector<24x8xf32> -> vector<24x8xf32>
    %c0_38 = arith.constant 0 : index
    %c0_39 = arith.constant 0 : index
    %c2 = arith.constant 2 : index
    %c0_40 = arith.constant 0 : index
    %c0_41 = arith.constant 0 : index
    %94 = vector.load %arg13[%c0_38, %c0_39, %c2, %c0_40, %c0_41] : memref<1x1x8x24x8xf32, #tpu.memory_space<vmem>>, vector<1x1x1x24x8xf32>
    %95 = vector.shape_cast %94 : vector<1x1x1x24x8xf32> to vector<24x8xf32>
    %96 = vector.shape_cast %93 : vector<24x8xf32> to vector<1x1x1x24x8xf32>
    tpu.vector_store %arg13[%c0_38, %c0_39, %c2, %c0_40, %c0_41], %96 {strides = array<i32>} : memref<1x1x8x24x8xf32, #tpu.memory_space<vmem>>, vector<1x1x1x24x8xf32>,
    %cst_42 = arith.constant 0.000000e+00 : f32
    %97 = vector.shape_cast %30 : vector<24x1xi1> to vector<24x1xi1>
    %98 = vector.broadcast %97 : vector<24x1xi1> to vector<24x8xi1>
    %99 = vector.broadcast %cst_42 : f32 to vector<24x8xf32>
    %100 = arith.select %98, %93, %99 : vector<24x8xi1>, vector<24x8xf32>
    %cst_43 = arith.constant dense<0.000000e+00> : vector<8xf32>
    %101 = vector.multi_reduction <add>, %100, %cst_43 [0] : vector<24x8xf32> to vector<8xf32>
    %102 = vector.shape_cast %101 : vector<8xf32> to vector<1x8xf32>
    %103 = arith.addf %78, %102 : vector<1x8xf32>
    %104 = arith.mulf %100, %100 : vector<24x8xf32>
    %cst_44 = arith.constant dense<0.000000e+00> : vector<8xf32>
    %105 = vector.multi_reduction <add>, %104, %cst_44 [0] : vector<24x8xf32> to vector<8xf32>
    %106 = vector.shape_cast %105 : vector<8xf32> to vector<1x8xf32>
    %107 = arith.addf %82, %106 : vector<1x8xf32>
    %108 = vector.extract_strided_slice %7 {offsets = [14, 0], sizes = [24, 4], strides = [1, 1]} : vector<38x4xf32> to vector<24x4xf32>
    %109 = vector.extract_strided_slice %7 {offsets = [13, 0], sizes = [24, 4], strides = [1, 1]} : vector<38x4xf32> to vector<24x4xf32>
    %110 = vector.extract_strided_slice %7 {offsets = [8, 0], sizes = [24, 4], strides = [1, 1]} : vector<38x4xf32> to vector<24x4xf32>
    %111 = vector.extract_strided_slice %7 {offsets = [7, 0], sizes = [24, 4], strides = [1, 1]} : vector<38x4xf32> to vector<24x4xf32>
    %112 = vector.extract_strided_slice %3 {offsets = [14, 0], sizes = [24, 4], strides = [1, 1]} : vector<38x4xf32> to vector<24x4xf32>
    %113 = vector.extract_strided_slice %3 {offsets = [13, 0], sizes = [24, 4], strides = [1, 1]} : vector<38x4xf32> to vector<24x4xf32>
    %114 = vector.extract_strided_slice %3 {offsets = [8, 0], sizes = [24, 4], strides = [1, 1]} : vector<38x4xf32> to vector<24x4xf32>
    %115 = vector.extract_strided_slice %3 {offsets = [7, 0], sizes = [24, 4], strides = [1, 1]} : vector<38x4xf32> to vector<24x4xf32>
    %116 = tpu.concatenate %108, %109, %110, %111, %112, %113, %114, %115 in 1 : vector<24x4xf32>, vector<24x4xf32>, vector<24x4xf32>, vector<24x4xf32>, vector<24x4xf32>, vector<24x4xf32>, vector<24x4xf32>, vector<24x4xf32> -> vector<24x32xf32>
    %c0_45 = arith.constant 0 : index
    %c0_46 = arith.constant 0 : index
    %117 = vector.load %arg7[%c0_45, %c0_46] : memref<32x8xf32, #tpu.memory_space<vmem>>, vector<32x8xf32>
    %cst_47 = arith.constant dense<0.000000e+00> : vector<24x8xf32>
    %118 = tpu.matmul %116, %117, %cst_47 {dimension_numbers = #tpu.dot_dimension_numbers<[1], [0], [0], [1], [0, 0, 1, 1], [], []>} : vector<24x32xf32>, vector<32x8xf32>, vector<24x8xf32> -> vector<24x8xf32>
    %c0_48 = arith.constant 0 : index
    %c0_49 = arith.constant 0 : index
    %c3 = arith.constant 3 : index
    %c0_50 = arith.constant 0 : index
    %c0_51 = arith.constant 0 : index
    %119 = vector.load %arg13[%c0_48, %c0_49, %c3, %c0_50, %c0_51] : memref<1x1x8x24x8xf32, #tpu.memory_space<vmem>>, vector<1x1x1x24x8xf32>
    %120 = vector.shape_cast %119 : vector<1x1x1x24x8xf32> to vector<24x8xf32>
    %121 = vector.shape_cast %118 : vector<24x8xf32> to vector<1x1x1x24x8xf32>
    tpu.vector_store %arg13[%c0_48, %c0_49, %c3, %c0_50, %c0_51], %121 {strides = array<i32>} : memref<1x1x8x24x8xf32, #tpu.memory_space<vmem>>, vector<1x1x1x24x8xf32>,
    %cst_52 = arith.constant 0.000000e+00 : f32
    %122 = vector.shape_cast %30 : vector<24x1xi1> to vector<24x1xi1>
    %123 = vector.broadcast %122 : vector<24x1xi1> to vector<24x8xi1>
    %124 = vector.broadcast %cst_52 : f32 to vector<24x8xf32>
    %125 = arith.select %123, %118, %124 : vector<24x8xi1>, vector<24x8xf32>
    %cst_53 = arith.constant dense<0.000000e+00> : vector<8xf32>
    %126 = vector.multi_reduction <add>, %125, %cst_53 [0] : vector<24x8xf32> to vector<8xf32>
    %127 = vector.shape_cast %126 : vector<8xf32> to vector<1x8xf32>
    %128 = arith.addf %103, %127 : vector<1x8xf32>
    %129 = arith.mulf %125, %125 : vector<24x8xf32>
    %cst_54 = arith.constant dense<0.000000e+00> : vector<8xf32>
    %130 = vector.multi_reduction <add>, %129, %cst_54 [0] : vector<24x8xf32> to vector<8xf32>
    %131 = vector.shape_cast %130 : vector<8xf32> to vector<1x8xf32>
    %132 = arith.addf %107, %131 : vector<1x8xf32>
    %133 = vector.extract_strided_slice %11 {offsets = [7, 0], sizes = [24, 4], strides = [1, 1]} : vector<38x4xf32> to vector<24x4xf32>
    %134 = vector.extract_strided_slice %11 {offsets = [6, 0], sizes = [24, 4], strides = [1, 1]} : vector<38x4xf32> to vector<24x4xf32>
    %135 = vector.extract_strided_slice %11 {offsets = [1, 0], sizes = [24, 4], strides = [1, 1]} : vector<38x4xf32> to vector<24x4xf32>
    %136 = vector.extract_strided_slice %11 {offsets = [0, 0], sizes = [24, 4], strides = [1, 1]} : vector<38x4xf32> to vector<24x4xf32>
    %137 = vector.extract_strided_slice %7 {offsets = [7, 0], sizes = [24, 4], strides = [1, 1]} : vector<38x4xf32> to vector<24x4xf32>
    %138 = vector.extract_strided_slice %7 {offsets = [6, 0], sizes = [24, 4], strides = [1, 1]} : vector<38x4xf32> to vector<24x4xf32>
    %139 = vector.extract_strided_slice %7 {offsets = [1, 0], sizes = [24, 4], strides = [1, 1]} : vector<38x4xf32> to vector<24x4xf32>
    %140 = vector.extract_strided_slice %7 {offsets = [0, 0], sizes = [24, 4], strides = [1, 1]} : vector<38x4xf32> to vector<24x4xf32>
    %141 = tpu.concatenate %133, %134, %135, %136, %137, %138, %139, %140 in 1 : vector<24x4xf32>, vector<24x4xf32>, vector<24x4xf32>, vector<24x4xf32>, vector<24x4xf32>, vector<24x4xf32>, vector<24x4xf32>, vector<24x4xf32> -> vector<24x32xf32>
    %c0_55 = arith.constant 0 : index
    %c0_56 = arith.constant 0 : index
    %142 = vector.load %arg8[%c0_55, %c0_56] : memref<32x8xf32, #tpu.memory_space<vmem>>, vector<32x8xf32>
    %cst_57 = arith.constant dense<0.000000e+00> : vector<24x8xf32>
    %143 = tpu.matmul %141, %142, %cst_57 {dimension_numbers = #tpu.dot_dimension_numbers<[1], [0], [0], [1], [0, 0, 1, 1], [], []>} : vector<24x32xf32>, vector<32x8xf32>, vector<24x8xf32> -> vector<24x8xf32>
    %c0_58 = arith.constant 0 : index
    %c0_59 = arith.constant 0 : index
    %c4 = arith.constant 4 : index
    %c0_60 = arith.constant 0 : index
    %c0_61 = arith.constant 0 : index
    %144 = vector.load %arg13[%c0_58, %c0_59, %c4, %c0_60, %c0_61] : memref<1x1x8x24x8xf32, #tpu.memory_space<vmem>>, vector<1x1x1x24x8xf32>
    %145 = vector.shape_cast %144 : vector<1x1x1x24x8xf32> to vector<24x8xf32>
    %146 = vector.shape_cast %143 : vector<24x8xf32> to vector<1x1x1x24x8xf32>
    tpu.vector_store %arg13[%c0_58, %c0_59, %c4, %c0_60, %c0_61], %146 {strides = array<i32>} : memref<1x1x8x24x8xf32, #tpu.memory_space<vmem>>, vector<1x1x1x24x8xf32>,
    %cst_62 = arith.constant 0.000000e+00 : f32
    %147 = vector.shape_cast %30 : vector<24x1xi1> to vector<24x1xi1>
    %148 = vector.broadcast %147 : vector<24x1xi1> to vector<24x8xi1>
    %149 = vector.broadcast %cst_62 : f32 to vector<24x8xf32>
    %150 = arith.select %148, %143, %149 : vector<24x8xi1>, vector<24x8xf32>
    %cst_63 = arith.constant dense<0.000000e+00> : vector<8xf32>
    %151 = vector.multi_reduction <add>, %150, %cst_63 [0] : vector<24x8xf32> to vector<8xf32>
    %152 = vector.shape_cast %151 : vector<8xf32> to vector<1x8xf32>
    %153 = arith.addf %128, %152 : vector<1x8xf32>
    %154 = arith.mulf %150, %150 : vector<24x8xf32>
    %cst_64 = arith.constant dense<0.000000e+00> : vector<8xf32>
    %155 = vector.multi_reduction <add>, %154, %cst_64 [0] : vector<24x8xf32> to vector<8xf32>
    %156 = vector.shape_cast %155 : vector<8xf32> to vector<1x8xf32>
    %157 = arith.addf %132, %156 : vector<1x8xf32>
    %158 = vector.extract_strided_slice %11 {offsets = [8, 0], sizes = [24, 4], strides = [1, 1]} : vector<38x4xf32> to vector<24x4xf32>
    %159 = vector.extract_strided_slice %11 {offsets = [7, 0], sizes = [24, 4], strides = [1, 1]} : vector<38x4xf32> to vector<24x4xf32>
    %160 = vector.extract_strided_slice %11 {offsets = [2, 0], sizes = [24, 4], strides = [1, 1]} : vector<38x4xf32> to vector<24x4xf32>
    %161 = vector.extract_strided_slice %11 {offsets = [1, 0], sizes = [24, 4], strides = [1, 1]} : vector<38x4xf32> to vector<24x4xf32>
    %162 = vector.extract_strided_slice %7 {offsets = [8, 0], sizes = [24, 4], strides = [1, 1]} : vector<38x4xf32> to vector<24x4xf32>
    %163 = vector.extract_strided_slice %7 {offsets = [7, 0], sizes = [24, 4], strides = [1, 1]} : vector<38x4xf32> to vector<24x4xf32>
    %164 = vector.extract_strided_slice %7 {offsets = [2, 0], sizes = [24, 4], strides = [1, 1]} : vector<38x4xf32> to vector<24x4xf32>
    %165 = vector.extract_strided_slice %7 {offsets = [1, 0], sizes = [24, 4], strides = [1, 1]} : vector<38x4xf32> to vector<24x4xf32>
    %166 = tpu.concatenate %158, %159, %160, %161, %162, %163, %164, %165 in 1 : vector<24x4xf32>, vector<24x4xf32>, vector<24x4xf32>, vector<24x4xf32>, vector<24x4xf32>, vector<24x4xf32>, vector<24x4xf32>, vector<24x4xf32> -> vector<24x32xf32>
    %c0_65 = arith.constant 0 : index
    %c0_66 = arith.constant 0 : index
    %167 = vector.load %arg9[%c0_65, %c0_66] : memref<32x8xf32, #tpu.memory_space<vmem>>, vector<32x8xf32>
    %cst_67 = arith.constant dense<0.000000e+00> : vector<24x8xf32>
    %168 = tpu.matmul %166, %167, %cst_67 {dimension_numbers = #tpu.dot_dimension_numbers<[1], [0], [0], [1], [0, 0, 1, 1], [], []>} : vector<24x32xf32>, vector<32x8xf32>, vector<24x8xf32> -> vector<24x8xf32>
    %c0_68 = arith.constant 0 : index
    %c0_69 = arith.constant 0 : index
    %c5 = arith.constant 5 : index
    %c0_70 = arith.constant 0 : index
    %c0_71 = arith.constant 0 : index
    %169 = vector.load %arg13[%c0_68, %c0_69, %c5, %c0_70, %c0_71] : memref<1x1x8x24x8xf32, #tpu.memory_space<vmem>>, vector<1x1x1x24x8xf32>
    %170 = vector.shape_cast %169 : vector<1x1x1x24x8xf32> to vector<24x8xf32>
    %171 = vector.shape_cast %168 : vector<24x8xf32> to vector<1x1x1x24x8xf32>
    tpu.vector_store %arg13[%c0_68, %c0_69, %c5, %c0_70, %c0_71], %171 {strides = array<i32>} : memref<1x1x8x24x8xf32, #tpu.memory_space<vmem>>, vector<1x1x1x24x8xf32>,
    %cst_72 = arith.constant 0.000000e+00 : f32
    %172 = vector.shape_cast %30 : vector<24x1xi1> to vector<24x1xi1>
    %173 = vector.broadcast %172 : vector<24x1xi1> to vector<24x8xi1>
    %174 = vector.broadcast %cst_72 : f32 to vector<24x8xf32>
    %175 = arith.select %173, %168, %174 : vector<24x8xi1>, vector<24x8xf32>
    %cst_73 = arith.constant dense<0.000000e+00> : vector<8xf32>
    %176 = vector.multi_reduction <add>, %175, %cst_73 [0] : vector<24x8xf32> to vector<8xf32>
    %177 = vector.shape_cast %176 : vector<8xf32> to vector<1x8xf32>
    %178 = arith.addf %153, %177 : vector<1x8xf32>
    %179 = arith.mulf %175, %175 : vector<24x8xf32>
    %cst_74 = arith.constant dense<0.000000e+00> : vector<8xf32>
    %180 = vector.multi_reduction <add>, %179, %cst_74 [0] : vector<24x8xf32> to vector<8xf32>
    %181 = vector.shape_cast %180 : vector<8xf32> to vector<1x8xf32>
    %182 = arith.addf %157, %181 : vector<1x8xf32>
    %183 = vector.extract_strided_slice %11 {offsets = [13, 0], sizes = [24, 4], strides = [1, 1]} : vector<38x4xf32> to vector<24x4xf32>
    %184 = vector.extract_strided_slice %11 {offsets = [12, 0], sizes = [24, 4], strides = [1, 1]} : vector<38x4xf32> to vector<24x4xf32>
    %185 = vector.extract_strided_slice %11 {offsets = [7, 0], sizes = [24, 4], strides = [1, 1]} : vector<38x4xf32> to vector<24x4xf32>
    %186 = vector.extract_strided_slice %11 {offsets = [6, 0], sizes = [24, 4], strides = [1, 1]} : vector<38x4xf32> to vector<24x4xf32>
    %187 = vector.extract_strided_slice %7 {offsets = [13, 0], sizes = [24, 4], strides = [1, 1]} : vector<38x4xf32> to vector<24x4xf32>
    %188 = vector.extract_strided_slice %7 {offsets = [12, 0], sizes = [24, 4], strides = [1, 1]} : vector<38x4xf32> to vector<24x4xf32>
    %189 = vector.extract_strided_slice %7 {offsets = [7, 0], sizes = [24, 4], strides = [1, 1]} : vector<38x4xf32> to vector<24x4xf32>
    %190 = vector.extract_strided_slice %7 {offsets = [6, 0], sizes = [24, 4], strides = [1, 1]} : vector<38x4xf32> to vector<24x4xf32>
    %191 = tpu.concatenate %183, %184, %185, %186, %187, %188, %189, %190 in 1 : vector<24x4xf32>, vector<24x4xf32>, vector<24x4xf32>, vector<24x4xf32>, vector<24x4xf32>, vector<24x4xf32>, vector<24x4xf32>, vector<24x4xf32> -> vector<24x32xf32>
    %c0_75 = arith.constant 0 : index
    %c0_76 = arith.constant 0 : index
    %192 = vector.load %arg10[%c0_75, %c0_76] : memref<32x8xf32, #tpu.memory_space<vmem>>, vector<32x8xf32>
    %cst_77 = arith.constant dense<0.000000e+00> : vector<24x8xf32>
    %193 = tpu.matmul %191, %192, %cst_77 {dimension_numbers = #tpu.dot_dimension_numbers<[1], [0], [0], [1], [0, 0, 1, 1], [], []>} : vector<24x32xf32>, vector<32x8xf32>, vector<24x8xf32> -> vector<24x8xf32>
    %c0_78 = arith.constant 0 : index
    %c0_79 = arith.constant 0 : index
    %c6 = arith.constant 6 : index
    %c0_80 = arith.constant 0 : index
    %c0_81 = arith.constant 0 : index
    %194 = vector.load %arg13[%c0_78, %c0_79, %c6, %c0_80, %c0_81] : memref<1x1x8x24x8xf32, #tpu.memory_space<vmem>>, vector<1x1x1x24x8xf32>
    %195 = vector.shape_cast %194 : vector<1x1x1x24x8xf32> to vector<24x8xf32>
    %196 = vector.shape_cast %193 : vector<24x8xf32> to vector<1x1x1x24x8xf32>
    tpu.vector_store %arg13[%c0_78, %c0_79, %c6, %c0_80, %c0_81], %196 {strides = array<i32>} : memref<1x1x8x24x8xf32, #tpu.memory_space<vmem>>, vector<1x1x1x24x8xf32>,
    %cst_82 = arith.constant 0.000000e+00 : f32
    %197 = vector.shape_cast %30 : vector<24x1xi1> to vector<24x1xi1>
    %198 = vector.broadcast %197 : vector<24x1xi1> to vector<24x8xi1>
    %199 = vector.broadcast %cst_82 : f32 to vector<24x8xf32>
    %200 = arith.select %198, %193, %199 : vector<24x8xi1>, vector<24x8xf32>
    %cst_83 = arith.constant dense<0.000000e+00> : vector<8xf32>
    %201 = vector.multi_reduction <add>, %200, %cst_83 [0] : vector<24x8xf32> to vector<8xf32>
    %202 = vector.shape_cast %201 : vector<8xf32> to vector<1x8xf32>
    %203 = arith.addf %178, %202 : vector<1x8xf32>
    %204 = arith.mulf %200, %200 : vector<24x8xf32>
    %cst_84 = arith.constant dense<0.000000e+00> : vector<8xf32>
    %205 = vector.multi_reduction <add>, %204, %cst_84 [0] : vector<24x8xf32> to vector<8xf32>
    %206 = vector.shape_cast %205 : vector<8xf32> to vector<1x8xf32>
    %207 = arith.addf %182, %206 : vector<1x8xf32>
    %208 = vector.extract_strided_slice %11 {offsets = [14, 0], sizes = [24, 4], strides = [1, 1]} : vector<38x4xf32> to vector<24x4xf32>
    %209 = vector.extract_strided_slice %11 {offsets = [13, 0], sizes = [24, 4], strides = [1, 1]} : vector<38x4xf32> to vector<24x4xf32>
    %210 = vector.extract_strided_slice %11 {offsets = [8, 0], sizes = [24, 4], strides = [1, 1]} : vector<38x4xf32> to vector<24x4xf32>
    %211 = vector.extract_strided_slice %11 {offsets = [7, 0], sizes = [24, 4], strides = [1, 1]} : vector<38x4xf32> to vector<24x4xf32>
    %212 = vector.extract_strided_slice %7 {offsets = [14, 0], sizes = [24, 4], strides = [1, 1]} : vector<38x4xf32> to vector<24x4xf32>
    %213 = vector.extract_strided_slice %7 {offsets = [13, 0], sizes = [24, 4], strides = [1, 1]} : vector<38x4xf32> to vector<24x4xf32>
    %214 = vector.extract_strided_slice %7 {offsets = [8, 0], sizes = [24, 4], strides = [1, 1]} : vector<38x4xf32> to vector<24x4xf32>
    %215 = vector.extract_strided_slice %7 {offsets = [7, 0], sizes = [24, 4], strides = [1, 1]} : vector<38x4xf32> to vector<24x4xf32>
    %216 = tpu.concatenate %208, %209, %210, %211, %212, %213, %214, %215 in 1 : vector<24x4xf32>, vector<24x4xf32>, vector<24x4xf32>, vector<24x4xf32>, vector<24x4xf32>, vector<24x4xf32>, vector<24x4xf32>, vector<24x4xf32> -> vector<24x32xf32>
    %c0_85 = arith.constant 0 : index
    %c0_86 = arith.constant 0 : index
    %217 = vector.load %arg11[%c0_85, %c0_86] : memref<32x8xf32, #tpu.memory_space<vmem>>, vector<32x8xf32>
    %cst_87 = arith.constant dense<0.000000e+00> : vector<24x8xf32>
    %218 = tpu.matmul %216, %217, %cst_87 {dimension_numbers = #tpu.dot_dimension_numbers<[1], [0], [0], [1], [0, 0, 1, 1], [], []>} : vector<24x32xf32>, vector<32x8xf32>, vector<24x8xf32> -> vector<24x8xf32>
    %c0_88 = arith.constant 0 : index
    %c0_89 = arith.constant 0 : index
    %c7 = arith.constant 7 : index
    %c0_90 = arith.constant 0 : index
    %c0_91 = arith.constant 0 : index
    %219 = vector.load %arg13[%c0_88, %c0_89, %c7, %c0_90, %c0_91] : memref<1x1x8x24x8xf32, #tpu.memory_space<vmem>>, vector<1x1x1x24x8xf32>
    %220 = vector.shape_cast %219 : vector<1x1x1x24x8xf32> to vector<24x8xf32>
    %221 = vector.shape_cast %218 : vector<24x8xf32> to vector<1x1x1x24x8xf32>
    tpu.vector_store %arg13[%c0_88, %c0_89, %c7, %c0_90, %c0_91], %221 {strides = array<i32>} : memref<1x1x8x24x8xf32, #tpu.memory_space<vmem>>, vector<1x1x1x24x8xf32>,
    %cst_92 = arith.constant 0.000000e+00 : f32
    %222 = vector.shape_cast %30 : vector<24x1xi1> to vector<24x1xi1>
    %223 = vector.broadcast %222 : vector<24x1xi1> to vector<24x8xi1>
    %224 = vector.broadcast %cst_92 : f32 to vector<24x8xf32>
    %225 = arith.select %223, %218, %224 : vector<24x8xi1>, vector<24x8xf32>
    %cst_93 = arith.constant dense<0.000000e+00> : vector<8xf32>
    %226 = vector.multi_reduction <add>, %225, %cst_93 [0] : vector<24x8xf32> to vector<8xf32>
    %227 = vector.shape_cast %226 : vector<8xf32> to vector<1x8xf32>
    %228 = arith.addf %203, %227 : vector<1x8xf32>
    %229 = arith.mulf %225, %225 : vector<24x8xf32>
    %cst_94 = arith.constant dense<0.000000e+00> : vector<8xf32>
    %230 = vector.multi_reduction <add>, %229, %cst_94 [0] : vector<24x8xf32> to vector<8xf32>
    %231 = vector.shape_cast %230 : vector<8xf32> to vector<1x8xf32>
    %232 = arith.addf %207, %231 : vector<1x8xf32>
    %233 = tpu.concatenate %228, %232 in 0 : vector<1x8xf32>, vector<1x8xf32> -> vector<2x8xf32>
    %c0_95 = arith.constant 0 : index
    %c0_96 = arith.constant 0 : index
    %c0_97 = arith.constant 0 : index
    %c0_98 = arith.constant 0 : index
    %234 = vector.load %arg14[%c0_95, %c0_96, %c0_97, %c0_98] : memref<1x1x2x8xf32, #tpu.memory_space<vmem>>, vector<1x1x2x8xf32>
    %235 = vector.shape_cast %234 : vector<1x1x2x8xf32> to vector<2x8xf32>
    %236 = vector.shape_cast %233 : vector<2x8xf32> to vector<1x1x2x8xf32>
    tpu.vector_store %arg14[%c0_95, %c0_96, %c0_97, %c0_98], %236 {strides = array<i32>} : memref<1x1x2x8xf32, #tpu.memory_space<vmem>>, vector<1x1x2x8xf32>,
    return
  }
  func.func @transform_0(%arg0: i32, %arg1: i32) -> (i32, i32) {
    %c0_i32 = arith.constant 0 : i32
    %c0_i32_0 = arith.constant 0 : i32
    %c0_i32_1 = arith.constant 0 : i32
    return %c0_i32, %c0_i32_0 : i32, i32
  }
  func.func @transform_1(%arg0: i32, %arg1: i32) -> (i32, i32) {
    %c0_i32 = arith.constant 0 : i32
    %c0_i32_0 = arith.constant 0 : i32
    %c0_i32_1 = arith.constant 0 : i32
    return %c0_i32, %c0_i32_0 : i32, i32
  }
  func.func @transform_2(%arg0: i32, %arg1: i32) -> (i32, i32) {
    %c0_i32 = arith.constant 0 : i32
    %c0_i32_0 = arith.constant 0 : i32
    %c0_i32_1 = arith.constant 0 : i32
    return %c0_i32, %c0_i32_0 : i32, i32
  }
  func.func @transform_3(%arg0: i32, %arg1: i32) -> (i32, i32) {
    %c0_i32 = arith.constant 0 : i32
    %c0_i32_0 = arith.constant 0 : i32
    %c0_i32_1 = arith.constant 0 : i32
    return %c0_i32, %c0_i32_0 : i32, i32
  }
  func.func @transform_4(%arg0: i32, %arg1: i32) -> (i32, i32) {
    %c0_i32 = arith.constant 0 : i32
    %c0_i32_0 = arith.constant 0 : i32
    %c0_i32_1 = arith.constant 0 : i32
    return %c0_i32, %c0_i32_0 : i32, i32
  }
  func.func @transform_5(%arg0: i32, %arg1: i32) -> (i32, i32) {
    %c0_i32 = arith.constant 0 : i32
    %c0_i32_0 = arith.constant 0 : i32
    %c0_i32_1 = arith.constant 0 : i32
    return %c0_i32, %c0_i32_0 : i32, i32
  }
  func.func @transform_6(%arg0: i32, %arg1: i32) -> (i32, i32) {
    %c0_i32 = arith.constant 0 : i32
    %c0_i32_0 = arith.constant 0 : i32
    %c0_i32_1 = arith.constant 0 : i32
    return %c0_i32, %c0_i32_0 : i32, i32
  }
  func.func @transform_7(%arg0: i32, %arg1: i32) -> (i32, i32) {
    %c0_i32 = arith.constant 0 : i32
    %c0_i32_0 = arith.constant 0 : i32
    %c0_i32_1 = arith.constant 0 : i32
    return %c0_i32, %c0_i32_0 : i32, i32
  }
  func.func @transform_8(%arg0: i32, %arg1: i32) -> (i32, i32) {
    %c0_i32 = arith.constant 0 : i32
    %c0_i32_0 = arith.constant 0 : i32
    %c0_i32_1 = arith.constant 0 : i32
    return %c0_i32, %c0_i32_0 : i32, i32
  }
  func.func @transform_9(%arg0: i32, %arg1: i32) -> (i32, i32) {
    %c0_i32 = arith.constant 0 : i32
    %c0_i32_0 = arith.constant 0 : i32
    %c0_i32_1 = arith.constant 0 : i32
    return %c0_i32, %c0_i32_0 : i32, i32
  }
  func.func @transform_10(%arg0: i32, %arg1: i32) -> (i32, i32, i32, i32) {
    %c0_i32 = arith.constant 0 : i32
    %c0_i32_0 = arith.constant 0 : i32
    %c0_i32_1 = arith.constant 0 : i32
    %c0_i32_2 = arith.constant 0 : i32
    return %arg0, %c0_i32, %c0_i32_0, %c0_i32_1 : i32, i32, i32, i32
  }
  func.func @transform_11(%arg0: i32, %arg1: i32) -> (i32, i32, i32, i32, i32) {
    %c0_i32 = arith.constant 0 : i32
    %c0_i32_0 = arith.constant 0 : i32
    %c0_i32_1 = arith.constant 0 : i32
    %c0_i32_2 = arith.constant 0 : i32
    return %arg0, %arg1, %c0_i32, %c0_i32_0, %c0_i32_1 : i32, i32, i32, i32, i32
  }
  func.func @transform_12(%arg0: i32, %arg1: i32) -> (i32, i32, i32, i32) {
    %c0_i32 = arith.constant 0 : i32
    %c0_i32_0 = arith.constant 0 : i32
    %c0_i32_1 = arith.constant 0 : i32
    return %arg0, %arg1, %c0_i32, %c0_i32_0 : i32, i32, i32, i32
  }
}

module attributes {stable_mosaic.version = 11 : i64} {
  func.func @_deconv_phase_kernel(%arg0: i32, %arg1: i32, %arg2: memref<1x8xf32, #tpu.memory_space<vmem>>, %arg3: memref<1x8xf32, #tpu.memory_space<vmem>>, %arg4: memref<64x8xf32, #tpu.memory_space<vmem>>, %arg5: memref<64x8xf32, #tpu.memory_space<vmem>>, %arg6: memref<64x8xf32, #tpu.memory_space<vmem>>, %arg7: memref<64x8xf32, #tpu.memory_space<vmem>>, %arg8: memref<64x8xf32, #tpu.memory_space<vmem>>, %arg9: memref<64x8xf32, #tpu.memory_space<vmem>>, %arg10: memref<64x8xf32, #tpu.memory_space<vmem>>, %arg11: memref<64x8xf32, #tpu.memory_space<vmem>>, %arg12: memref<1x10x102x8xf32, #tpu.memory_space<vmem>>, %arg13: memref<1x1x8x80x8xf32, #tpu.memory_space<vmem>>, %arg14: memref<1x1x2x8xf32, #tpu.memory_space<vmem>>) attributes {dimension_semantics = [#tpu.dimension_semantics<parallel>, #tpu.dimension_semantics<parallel>], iteration_bounds = array<i64: 2, 8>, scalar_prefetch = 0 : i64, scratch_operands = 0 : i64, tpu.core_type = #tpu.core_type<tc>, window_params = [{pipeline_mode = #tpu.pipeline_mode<synchronous>, transform_indices = @transform_0, window_bounds = array<i64: 1, 8>}, {pipeline_mode = #tpu.pipeline_mode<synchronous>, transform_indices = @transform_1, window_bounds = array<i64: 1, 8>}, {pipeline_mode = #tpu.pipeline_mode<synchronous>, transform_indices = @transform_2, window_bounds = array<i64: 64, 8>}, {pipeline_mode = #tpu.pipeline_mode<synchronous>, transform_indices = @transform_3, window_bounds = array<i64: 64, 8>}, {pipeline_mode = #tpu.pipeline_mode<synchronous>, transform_indices = @transform_4, window_bounds = array<i64: 64, 8>}, {pipeline_mode = #tpu.pipeline_mode<synchronous>, transform_indices = @transform_5, window_bounds = array<i64: 64, 8>}, {pipeline_mode = #tpu.pipeline_mode<synchronous>, transform_indices = @transform_6, window_bounds = array<i64: 64, 8>}, {pipeline_mode = #tpu.pipeline_mode<synchronous>, transform_indices = @transform_7, window_bounds = array<i64: 64, 8>}, {pipeline_mode = #tpu.pipeline_mode<synchronous>, transform_indices = @transform_8, window_bounds = array<i64: 64, 8>}, {pipeline_mode = #tpu.pipeline_mode<synchronous>, transform_indices = @transform_9, window_bounds = array<i64: 64, 8>}, {transform_indices = @transform_10, window_bounds = array<i64: 1, 10, 102, 8>}, {transform_indices = @transform_11, window_bounds = array<i64: 1, 1, 8, 80, 8>}, {transform_indices = @transform_12, window_bounds = array<i64: 1, 1, 2, 8>}]} {
    %c0 = arith.constant 0 : index
    %c0_0 = arith.constant 0 : index
    %0 = vector.load %arg2[%c0, %c0_0] : memref<1x8xf32, #tpu.memory_space<vmem>>, vector<1x8xf32>
    %c0_1 = arith.constant 0 : index
    %c0_2 = arith.constant 0 : index
    %1 = vector.load %arg3[%c0_1, %c0_2] : memref<1x8xf32, #tpu.memory_space<vmem>>, vector<1x8xf32>
    %c0_i32 = arith.constant 0 : i32
    %2 = arith.addi %arg1, %c0_i32 : i32
    %c0_3 = arith.constant 0 : index
    %3 = arith.index_cast %2 : i32 to index
    %c0_4 = arith.constant 0 : index
    %c0_5 = arith.constant 0 : index
    %4 = vector.load %arg12[%c0_3, %3, %c0_4, %c0_5] : memref<1x10x102x8xf32, #tpu.memory_space<vmem>>, vector<1x1x102x8xf32>
    %5 = vector.shape_cast %4 : vector<1x1x102x8xf32> to vector<102x8xf32>
    %6 = vector.broadcast %0 : vector<1x8xf32> to vector<102x8xf32>
    %7 = arith.mulf %5, %6 : vector<102x8xf32>
    %8 = vector.broadcast %1 : vector<1x8xf32> to vector<102x8xf32>
    %9 = arith.addf %7, %8 : vector<102x8xf32>
    %cst = arith.constant 0.000000e+00 : f32
    %10 = vector.broadcast %cst : f32 to vector<102x8xf32>
    %11 = arith.maximumf %9, %10 : vector<102x8xf32>
    %c1_i32 = arith.constant 1 : i32
    %12 = arith.addi %arg1, %c1_i32 : i32
    %c0_6 = arith.constant 0 : index
    %13 = arith.index_cast %12 : i32 to index
    %c0_7 = arith.constant 0 : index
    %c0_8 = arith.constant 0 : index
    %14 = vector.load %arg12[%c0_6, %13, %c0_7, %c0_8] : memref<1x10x102x8xf32, #tpu.memory_space<vmem>>, vector<1x1x102x8xf32>
    %15 = vector.shape_cast %14 : vector<1x1x102x8xf32> to vector<102x8xf32>
    %16 = vector.broadcast %0 : vector<1x8xf32> to vector<102x8xf32>
    %17 = arith.mulf %15, %16 : vector<102x8xf32>
    %18 = vector.broadcast %1 : vector<1x8xf32> to vector<102x8xf32>
    %19 = arith.addf %17, %18 : vector<102x8xf32>
    %cst_9 = arith.constant 0.000000e+00 : f32
    %20 = vector.broadcast %cst_9 : f32 to vector<102x8xf32>
    %21 = arith.maximumf %19, %20 : vector<102x8xf32>
    %c2_i32 = arith.constant 2 : i32
    %22 = arith.addi %arg1, %c2_i32 : i32
    %c0_10 = arith.constant 0 : index
    %23 = arith.index_cast %22 : i32 to index
    %c0_11 = arith.constant 0 : index
    %c0_12 = arith.constant 0 : index
    %24 = vector.load %arg12[%c0_10, %23, %c0_11, %c0_12] : memref<1x10x102x8xf32, #tpu.memory_space<vmem>>, vector<1x1x102x8xf32>
    %25 = vector.shape_cast %24 : vector<1x1x102x8xf32> to vector<102x8xf32>
    %26 = vector.broadcast %0 : vector<1x8xf32> to vector<102x8xf32>
    %27 = arith.mulf %25, %26 : vector<102x8xf32>
    %28 = vector.broadcast %1 : vector<1x8xf32> to vector<102x8xf32>
    %29 = arith.addf %27, %28 : vector<102x8xf32>
    %cst_13 = arith.constant 0.000000e+00 : f32
    %30 = vector.broadcast %cst_13 : f32 to vector<102x8xf32>
    %31 = arith.maximumf %29, %30 : vector<102x8xf32>
    %32 = tpu.iota {dimensions = array<i32: 0>} : vector<80x1xi32>
    %c10_i32 = arith.constant 10 : i32
    %c0_i32_14 = arith.constant 0 : i32
    %33 = arith.cmpi eq, %c10_i32, %c0_i32_14 : i32
    %c1_i32_15 = arith.constant 1 : i32
    %34 = arith.select %33, %c1_i32_15, %c10_i32 : i32
    %35 = vector.broadcast %34 : i32 to vector<80x1xi32>
    %36 = arith.remsi %32, %35 : vector<80x1xi32>
    %c0_i32_16 = arith.constant 0 : i32
    %37 = vector.broadcast %c0_i32_16 : i32 to vector<80x1xi32>
    %38 = arith.cmpi ne, %36, %37 : vector<80x1xi32>
    %c0_i32_17 = arith.constant 0 : i32
    %39 = vector.broadcast %c0_i32_17 : i32 to vector<80x1xi32>
    %40 = arith.cmpi slt, %36, %39 : vector<80x1xi32>
    %c0_i32_18 = arith.constant 0 : i32
    %41 = arith.cmpi slt, %34, %c0_i32_18 : i32
    %42 = vector.broadcast %41 : i1 to vector<80x1xi1>
    %43 = vector.broadcast %42 : vector<80x1xi1> to vector<80x1xi1>
    %44 = arith.xori %40, %43 : vector<80x1xi1>
    %45 = arith.andi %44, %38 : vector<80x1xi1>
    %46 = vector.broadcast %34 : i32 to vector<80x1xi32>
    %47 = arith.addi %36, %46 : vector<80x1xi32>
    %48 = arith.select %45, %47, %36 : vector<80x1xi1>, vector<80x1xi32>
    %c8_i32 = arith.constant 8 : i32
    %49 = vector.broadcast %c8_i32 : i32 to vector<80x1xi32>
    %50 = arith.cmpi slt, %48, %49 : vector<80x1xi32>
    %cst_19 = arith.constant 0.000000e+00 : f32
    %51 = vector.broadcast %cst_19 : f32 to vector<1x8xf32>
    %cst_20 = arith.constant 0.000000e+00 : f32
    %52 = vector.broadcast %cst_20 : f32 to vector<1x8xf32>
    %53 = vector.extract_strided_slice %21 {offsets = [11, 0], sizes = [80, 8], strides = [1, 1]} : vector<102x8xf32> to vector<80x8xf32>
    %54 = vector.extract_strided_slice %21 {offsets = [10, 0], sizes = [80, 8], strides = [1, 1]} : vector<102x8xf32> to vector<80x8xf32>
    %55 = vector.extract_strided_slice %21 {offsets = [1, 0], sizes = [80, 8], strides = [1, 1]} : vector<102x8xf32> to vector<80x8xf32>
    %56 = vector.extract_strided_slice %21 {offsets = [0, 0], sizes = [80, 8], strides = [1, 1]} : vector<102x8xf32> to vector<80x8xf32>
    %57 = vector.extract_strided_slice %11 {offsets = [11, 0], sizes = [80, 8], strides = [1, 1]} : vector<102x8xf32> to vector<80x8xf32>
    %58 = vector.extract_strided_slice %11 {offsets = [10, 0], sizes = [80, 8], strides = [1, 1]} : vector<102x8xf32> to vector<80x8xf32>
    %59 = vector.extract_strided_slice %11 {offsets = [1, 0], sizes = [80, 8], strides = [1, 1]} : vector<102x8xf32> to vector<80x8xf32>
    %60 = vector.extract_strided_slice %11 {offsets = [0, 0], sizes = [80, 8], strides = [1, 1]} : vector<102x8xf32> to vector<80x8xf32>
    %61 = tpu.concatenate %53, %54, %55, %56, %57, %58, %59, %60 in 1 : vector<80x8xf32>, vector<80x8xf32>, vector<80x8xf32>, vector<80x8xf32>, vector<80x8xf32>, vector<80x8xf32>, vector<80x8xf32>, vector<80x8xf32> -> vector<80x64xf32>
    %c0_21 = arith.constant 0 : index
    %c0_22 = arith.constant 0 : index
    %62 = vector.load %arg4[%c0_21, %c0_22] : memref<64x8xf32, #tpu.memory_space<vmem>>, vector<64x8xf32>
    %cst_23 = arith.constant dense<0.000000e+00> : vector<80x8xf32>
    %63 = tpu.matmul %61, %62, %cst_23 {dimension_numbers = #tpu.dot_dimension_numbers<[1], [0], [0], [1], [0, 0, 1, 1], [], []>} : vector<80x64xf32>, vector<64x8xf32>, vector<80x8xf32> -> vector<80x8xf32>
    %c0_24 = arith.constant 0 : index
    %c0_25 = arith.constant 0 : index
    %c0_26 = arith.constant 0 : index
    %c0_27 = arith.constant 0 : index
    %c0_28 = arith.constant 0 : index
    %64 = vector.load %arg13[%c0_24, %c0_25, %c0_26, %c0_27, %c0_28] : memref<1x1x8x80x8xf32, #tpu.memory_space<vmem>>, vector<1x1x1x80x8xf32>
    %65 = vector.shape_cast %64 : vector<1x1x1x80x8xf32> to vector<80x8xf32>
    %66 = vector.shape_cast %63 : vector<80x8xf32> to vector<1x1x1x80x8xf32>
    tpu.vector_store %arg13[%c0_24, %c0_25, %c0_26, %c0_27, %c0_28], %66 {strides = array<i32>} : memref<1x1x8x80x8xf32, #tpu.memory_space<vmem>>, vector<1x1x1x80x8xf32>,
    %cst_29 = arith.constant 0.000000e+00 : f32
    %67 = vector.shape_cast %50 : vector<80x1xi1> to vector<80x1xi1>
    %68 = vector.broadcast %67 : vector<80x1xi1> to vector<80x8xi1>
    %69 = vector.broadcast %cst_29 : f32 to vector<80x8xf32>
    %70 = arith.select %68, %63, %69 : vector<80x8xi1>, vector<80x8xf32>
    %cst_30 = arith.constant dense<0.000000e+00> : vector<8xf32>
    %71 = vector.multi_reduction <add>, %70, %cst_30 [0] : vector<80x8xf32> to vector<8xf32>
    %72 = vector.shape_cast %71 : vector<8xf32> to vector<1x8xf32>
    %73 = arith.addf %51, %72 : vector<1x8xf32>
    %74 = arith.mulf %70, %70 : vector<80x8xf32>
    %cst_31 = arith.constant dense<0.000000e+00> : vector<8xf32>
    %75 = vector.multi_reduction <add>, %74, %cst_31 [0] : vector<80x8xf32> to vector<8xf32>
    %76 = vector.shape_cast %75 : vector<8xf32> to vector<1x8xf32>
    %77 = arith.addf %52, %76 : vector<1x8xf32>
    %78 = vector.extract_strided_slice %21 {offsets = [12, 0], sizes = [80, 8], strides = [1, 1]} : vector<102x8xf32> to vector<80x8xf32>
    %79 = vector.extract_strided_slice %21 {offsets = [11, 0], sizes = [80, 8], strides = [1, 1]} : vector<102x8xf32> to vector<80x8xf32>
    %80 = vector.extract_strided_slice %21 {offsets = [2, 0], sizes = [80, 8], strides = [1, 1]} : vector<102x8xf32> to vector<80x8xf32>
    %81 = vector.extract_strided_slice %21 {offsets = [1, 0], sizes = [80, 8], strides = [1, 1]} : vector<102x8xf32> to vector<80x8xf32>
    %82 = vector.extract_strided_slice %11 {offsets = [12, 0], sizes = [80, 8], strides = [1, 1]} : vector<102x8xf32> to vector<80x8xf32>
    %83 = vector.extract_strided_slice %11 {offsets = [11, 0], sizes = [80, 8], strides = [1, 1]} : vector<102x8xf32> to vector<80x8xf32>
    %84 = vector.extract_strided_slice %11 {offsets = [2, 0], sizes = [80, 8], strides = [1, 1]} : vector<102x8xf32> to vector<80x8xf32>
    %85 = vector.extract_strided_slice %11 {offsets = [1, 0], sizes = [80, 8], strides = [1, 1]} : vector<102x8xf32> to vector<80x8xf32>
    %86 = tpu.concatenate %78, %79, %80, %81, %82, %83, %84, %85 in 1 : vector<80x8xf32>, vector<80x8xf32>, vector<80x8xf32>, vector<80x8xf32>, vector<80x8xf32>, vector<80x8xf32>, vector<80x8xf32>, vector<80x8xf32> -> vector<80x64xf32>
    %c0_32 = arith.constant 0 : index
    %c0_33 = arith.constant 0 : index
    %87 = vector.load %arg5[%c0_32, %c0_33] : memref<64x8xf32, #tpu.memory_space<vmem>>, vector<64x8xf32>
    %cst_34 = arith.constant dense<0.000000e+00> : vector<80x8xf32>
    %88 = tpu.matmul %86, %87, %cst_34 {dimension_numbers = #tpu.dot_dimension_numbers<[1], [0], [0], [1], [0, 0, 1, 1], [], []>} : vector<80x64xf32>, vector<64x8xf32>, vector<80x8xf32> -> vector<80x8xf32>
    %c0_35 = arith.constant 0 : index
    %c0_36 = arith.constant 0 : index
    %c1 = arith.constant 1 : index
    %c0_37 = arith.constant 0 : index
    %c0_38 = arith.constant 0 : index
    %89 = vector.load %arg13[%c0_35, %c0_36, %c1, %c0_37, %c0_38] : memref<1x1x8x80x8xf32, #tpu.memory_space<vmem>>, vector<1x1x1x80x8xf32>
    %90 = vector.shape_cast %89 : vector<1x1x1x80x8xf32> to vector<80x8xf32>
    %91 = vector.shape_cast %88 : vector<80x8xf32> to vector<1x1x1x80x8xf32>
    tpu.vector_store %arg13[%c0_35, %c0_36, %c1, %c0_37, %c0_38], %91 {strides = array<i32>} : memref<1x1x8x80x8xf32, #tpu.memory_space<vmem>>, vector<1x1x1x80x8xf32>,
    %cst_39 = arith.constant 0.000000e+00 : f32
    %92 = vector.shape_cast %50 : vector<80x1xi1> to vector<80x1xi1>
    %93 = vector.broadcast %92 : vector<80x1xi1> to vector<80x8xi1>
    %94 = vector.broadcast %cst_39 : f32 to vector<80x8xf32>
    %95 = arith.select %93, %88, %94 : vector<80x8xi1>, vector<80x8xf32>
    %cst_40 = arith.constant dense<0.000000e+00> : vector<8xf32>
    %96 = vector.multi_reduction <add>, %95, %cst_40 [0] : vector<80x8xf32> to vector<8xf32>
    %97 = vector.shape_cast %96 : vector<8xf32> to vector<1x8xf32>
    %98 = arith.addf %73, %97 : vector<1x8xf32>
    %99 = arith.mulf %95, %95 : vector<80x8xf32>
    %cst_41 = arith.constant dense<0.000000e+00> : vector<8xf32>
    %100 = vector.multi_reduction <add>, %99, %cst_41 [0] : vector<80x8xf32> to vector<8xf32>
    %101 = vector.shape_cast %100 : vector<8xf32> to vector<1x8xf32>
    %102 = arith.addf %77, %101 : vector<1x8xf32>
    %103 = vector.extract_strided_slice %21 {offsets = [21, 0], sizes = [80, 8], strides = [1, 1]} : vector<102x8xf32> to vector<80x8xf32>
    %104 = vector.extract_strided_slice %21 {offsets = [20, 0], sizes = [80, 8], strides = [1, 1]} : vector<102x8xf32> to vector<80x8xf32>
    %105 = vector.extract_strided_slice %21 {offsets = [11, 0], sizes = [80, 8], strides = [1, 1]} : vector<102x8xf32> to vector<80x8xf32>
    %106 = vector.extract_strided_slice %21 {offsets = [10, 0], sizes = [80, 8], strides = [1, 1]} : vector<102x8xf32> to vector<80x8xf32>
    %107 = vector.extract_strided_slice %11 {offsets = [21, 0], sizes = [80, 8], strides = [1, 1]} : vector<102x8xf32> to vector<80x8xf32>
    %108 = vector.extract_strided_slice %11 {offsets = [20, 0], sizes = [80, 8], strides = [1, 1]} : vector<102x8xf32> to vector<80x8xf32>
    %109 = vector.extract_strided_slice %11 {offsets = [11, 0], sizes = [80, 8], strides = [1, 1]} : vector<102x8xf32> to vector<80x8xf32>
    %110 = vector.extract_strided_slice %11 {offsets = [10, 0], sizes = [80, 8], strides = [1, 1]} : vector<102x8xf32> to vector<80x8xf32>
    %111 = tpu.concatenate %103, %104, %105, %106, %107, %108, %109, %110 in 1 : vector<80x8xf32>, vector<80x8xf32>, vector<80x8xf32>, vector<80x8xf32>, vector<80x8xf32>, vector<80x8xf32>, vector<80x8xf32>, vector<80x8xf32> -> vector<80x64xf32>
    %c0_42 = arith.constant 0 : index
    %c0_43 = arith.constant 0 : index
    %112 = vector.load %arg6[%c0_42, %c0_43] : memref<64x8xf32, #tpu.memory_space<vmem>>, vector<64x8xf32>
    %cst_44 = arith.constant dense<0.000000e+00> : vector<80x8xf32>
    %113 = tpu.matmul %111, %112, %cst_44 {dimension_numbers = #tpu.dot_dimension_numbers<[1], [0], [0], [1], [0, 0, 1, 1], [], []>} : vector<80x64xf32>, vector<64x8xf32>, vector<80x8xf32> -> vector<80x8xf32>
    %c0_45 = arith.constant 0 : index
    %c0_46 = arith.constant 0 : index
    %c2 = arith.constant 2 : index
    %c0_47 = arith.constant 0 : index
    %c0_48 = arith.constant 0 : index
    %114 = vector.load %arg13[%c0_45, %c0_46, %c2, %c0_47, %c0_48] : memref<1x1x8x80x8xf32, #tpu.memory_space<vmem>>, vector<1x1x1x80x8xf32>
    %115 = vector.shape_cast %114 : vector<1x1x1x80x8xf32> to vector<80x8xf32>
    %116 = vector.shape_cast %113 : vector<80x8xf32> to vector<1x1x1x80x8xf32>
    tpu.vector_store %arg13[%c0_45, %c0_46, %c2, %c0_47, %c0_48], %116 {strides = array<i32>} : memref<1x1x8x80x8xf32, #tpu.memory_space<vmem>>, vector<1x1x1x80x8xf32>,
    %cst_49 = arith.constant 0.000000e+00 : f32
    %117 = vector.shape_cast %50 : vector<80x1xi1> to vector<80x1xi1>
    %118 = vector.broadcast %117 : vector<80x1xi1> to vector<80x8xi1>
    %119 = vector.broadcast %cst_49 : f32 to vector<80x8xf32>
    %120 = arith.select %118, %113, %119 : vector<80x8xi1>, vector<80x8xf32>
    %cst_50 = arith.constant dense<0.000000e+00> : vector<8xf32>
    %121 = vector.multi_reduction <add>, %120, %cst_50 [0] : vector<80x8xf32> to vector<8xf32>
    %122 = vector.shape_cast %121 : vector<8xf32> to vector<1x8xf32>
    %123 = arith.addf %98, %122 : vector<1x8xf32>
    %124 = arith.mulf %120, %120 : vector<80x8xf32>
    %cst_51 = arith.constant dense<0.000000e+00> : vector<8xf32>
    %125 = vector.multi_reduction <add>, %124, %cst_51 [0] : vector<80x8xf32> to vector<8xf32>
    %126 = vector.shape_cast %125 : vector<8xf32> to vector<1x8xf32>
    %127 = arith.addf %102, %126 : vector<1x8xf32>
    %128 = vector.extract_strided_slice %21 {offsets = [22, 0], sizes = [80, 8], strides = [1, 1]} : vector<102x8xf32> to vector<80x8xf32>
    %129 = vector.extract_strided_slice %21 {offsets = [21, 0], sizes = [80, 8], strides = [1, 1]} : vector<102x8xf32> to vector<80x8xf32>
    %130 = vector.extract_strided_slice %21 {offsets = [12, 0], sizes = [80, 8], strides = [1, 1]} : vector<102x8xf32> to vector<80x8xf32>
    %131 = vector.extract_strided_slice %21 {offsets = [11, 0], sizes = [80, 8], strides = [1, 1]} : vector<102x8xf32> to vector<80x8xf32>
    %132 = vector.extract_strided_slice %11 {offsets = [22, 0], sizes = [80, 8], strides = [1, 1]} : vector<102x8xf32> to vector<80x8xf32>
    %133 = vector.extract_strided_slice %11 {offsets = [21, 0], sizes = [80, 8], strides = [1, 1]} : vector<102x8xf32> to vector<80x8xf32>
    %134 = vector.extract_strided_slice %11 {offsets = [12, 0], sizes = [80, 8], strides = [1, 1]} : vector<102x8xf32> to vector<80x8xf32>
    %135 = vector.extract_strided_slice %11 {offsets = [11, 0], sizes = [80, 8], strides = [1, 1]} : vector<102x8xf32> to vector<80x8xf32>
    %136 = tpu.concatenate %128, %129, %130, %131, %132, %133, %134, %135 in 1 : vector<80x8xf32>, vector<80x8xf32>, vector<80x8xf32>, vector<80x8xf32>, vector<80x8xf32>, vector<80x8xf32>, vector<80x8xf32>, vector<80x8xf32> -> vector<80x64xf32>
    %c0_52 = arith.constant 0 : index
    %c0_53 = arith.constant 0 : index
    %137 = vector.load %arg7[%c0_52, %c0_53] : memref<64x8xf32, #tpu.memory_space<vmem>>, vector<64x8xf32>
    %cst_54 = arith.constant dense<0.000000e+00> : vector<80x8xf32>
    %138 = tpu.matmul %136, %137, %cst_54 {dimension_numbers = #tpu.dot_dimension_numbers<[1], [0], [0], [1], [0, 0, 1, 1], [], []>} : vector<80x64xf32>, vector<64x8xf32>, vector<80x8xf32> -> vector<80x8xf32>
    %c0_55 = arith.constant 0 : index
    %c0_56 = arith.constant 0 : index
    %c3 = arith.constant 3 : index
    %c0_57 = arith.constant 0 : index
    %c0_58 = arith.constant 0 : index
    %139 = vector.load %arg13[%c0_55, %c0_56, %c3, %c0_57, %c0_58] : memref<1x1x8x80x8xf32, #tpu.memory_space<vmem>>, vector<1x1x1x80x8xf32>
    %140 = vector.shape_cast %139 : vector<1x1x1x80x8xf32> to vector<80x8xf32>
    %141 = vector.shape_cast %138 : vector<80x8xf32> to vector<1x1x1x80x8xf32>
    tpu.vector_store %arg13[%c0_55, %c0_56, %c3, %c0_57, %c0_58], %141 {strides = array<i32>} : memref<1x1x8x80x8xf32, #tpu.memory_space<vmem>>, vector<1x1x1x80x8xf32>,
    %cst_59 = arith.constant 0.000000e+00 : f32
    %142 = vector.shape_cast %50 : vector<80x1xi1> to vector<80x1xi1>
    %143 = vector.broadcast %142 : vector<80x1xi1> to vector<80x8xi1>
    %144 = vector.broadcast %cst_59 : f32 to vector<80x8xf32>
    %145 = arith.select %143, %138, %144 : vector<80x8xi1>, vector<80x8xf32>
    %cst_60 = arith.constant dense<0.000000e+00> : vector<8xf32>
    %146 = vector.multi_reduction <add>, %145, %cst_60 [0] : vector<80x8xf32> to vector<8xf32>
    %147 = vector.shape_cast %146 : vector<8xf32> to vector<1x8xf32>
    %148 = arith.addf %123, %147 : vector<1x8xf32>
    %149 = arith.mulf %145, %145 : vector<80x8xf32>
    %cst_61 = arith.constant dense<0.000000e+00> : vector<8xf32>
    %150 = vector.multi_reduction <add>, %149, %cst_61 [0] : vector<80x8xf32> to vector<8xf32>
    %151 = vector.shape_cast %150 : vector<8xf32> to vector<1x8xf32>
    %152 = arith.addf %127, %151 : vector<1x8xf32>
    %153 = vector.extract_strided_slice %31 {offsets = [11, 0], sizes = [80, 8], strides = [1, 1]} : vector<102x8xf32> to vector<80x8xf32>
    %154 = vector.extract_strided_slice %31 {offsets = [10, 0], sizes = [80, 8], strides = [1, 1]} : vector<102x8xf32> to vector<80x8xf32>
    %155 = vector.extract_strided_slice %31 {offsets = [1, 0], sizes = [80, 8], strides = [1, 1]} : vector<102x8xf32> to vector<80x8xf32>
    %156 = vector.extract_strided_slice %31 {offsets = [0, 0], sizes = [80, 8], strides = [1, 1]} : vector<102x8xf32> to vector<80x8xf32>
    %157 = vector.extract_strided_slice %21 {offsets = [11, 0], sizes = [80, 8], strides = [1, 1]} : vector<102x8xf32> to vector<80x8xf32>
    %158 = vector.extract_strided_slice %21 {offsets = [10, 0], sizes = [80, 8], strides = [1, 1]} : vector<102x8xf32> to vector<80x8xf32>
    %159 = vector.extract_strided_slice %21 {offsets = [1, 0], sizes = [80, 8], strides = [1, 1]} : vector<102x8xf32> to vector<80x8xf32>
    %160 = vector.extract_strided_slice %21 {offsets = [0, 0], sizes = [80, 8], strides = [1, 1]} : vector<102x8xf32> to vector<80x8xf32>
    %161 = tpu.concatenate %153, %154, %155, %156, %157, %158, %159, %160 in 1 : vector<80x8xf32>, vector<80x8xf32>, vector<80x8xf32>, vector<80x8xf32>, vector<80x8xf32>, vector<80x8xf32>, vector<80x8xf32>, vector<80x8xf32> -> vector<80x64xf32>
    %c0_62 = arith.constant 0 : index
    %c0_63 = arith.constant 0 : index
    %162 = vector.load %arg8[%c0_62, %c0_63] : memref<64x8xf32, #tpu.memory_space<vmem>>, vector<64x8xf32>
    %cst_64 = arith.constant dense<0.000000e+00> : vector<80x8xf32>
    %163 = tpu.matmul %161, %162, %cst_64 {dimension_numbers = #tpu.dot_dimension_numbers<[1], [0], [0], [1], [0, 0, 1, 1], [], []>} : vector<80x64xf32>, vector<64x8xf32>, vector<80x8xf32> -> vector<80x8xf32>
    %c0_65 = arith.constant 0 : index
    %c0_66 = arith.constant 0 : index
    %c4 = arith.constant 4 : index
    %c0_67 = arith.constant 0 : index
    %c0_68 = arith.constant 0 : index
    %164 = vector.load %arg13[%c0_65, %c0_66, %c4, %c0_67, %c0_68] : memref<1x1x8x80x8xf32, #tpu.memory_space<vmem>>, vector<1x1x1x80x8xf32>
    %165 = vector.shape_cast %164 : vector<1x1x1x80x8xf32> to vector<80x8xf32>
    %166 = vector.shape_cast %163 : vector<80x8xf32> to vector<1x1x1x80x8xf32>
    tpu.vector_store %arg13[%c0_65, %c0_66, %c4, %c0_67, %c0_68], %166 {strides = array<i32>} : memref<1x1x8x80x8xf32, #tpu.memory_space<vmem>>, vector<1x1x1x80x8xf32>,
    %cst_69 = arith.constant 0.000000e+00 : f32
    %167 = vector.shape_cast %50 : vector<80x1xi1> to vector<80x1xi1>
    %168 = vector.broadcast %167 : vector<80x1xi1> to vector<80x8xi1>
    %169 = vector.broadcast %cst_69 : f32 to vector<80x8xf32>
    %170 = arith.select %168, %163, %169 : vector<80x8xi1>, vector<80x8xf32>
    %cst_70 = arith.constant dense<0.000000e+00> : vector<8xf32>
    %171 = vector.multi_reduction <add>, %170, %cst_70 [0] : vector<80x8xf32> to vector<8xf32>
    %172 = vector.shape_cast %171 : vector<8xf32> to vector<1x8xf32>
    %173 = arith.addf %148, %172 : vector<1x8xf32>
    %174 = arith.mulf %170, %170 : vector<80x8xf32>
    %cst_71 = arith.constant dense<0.000000e+00> : vector<8xf32>
    %175 = vector.multi_reduction <add>, %174, %cst_71 [0] : vector<80x8xf32> to vector<8xf32>
    %176 = vector.shape_cast %175 : vector<8xf32> to vector<1x8xf32>
    %177 = arith.addf %152, %176 : vector<1x8xf32>
    %178 = vector.extract_strided_slice %31 {offsets = [12, 0], sizes = [80, 8], strides = [1, 1]} : vector<102x8xf32> to vector<80x8xf32>
    %179 = vector.extract_strided_slice %31 {offsets = [11, 0], sizes = [80, 8], strides = [1, 1]} : vector<102x8xf32> to vector<80x8xf32>
    %180 = vector.extract_strided_slice %31 {offsets = [2, 0], sizes = [80, 8], strides = [1, 1]} : vector<102x8xf32> to vector<80x8xf32>
    %181 = vector.extract_strided_slice %31 {offsets = [1, 0], sizes = [80, 8], strides = [1, 1]} : vector<102x8xf32> to vector<80x8xf32>
    %182 = vector.extract_strided_slice %21 {offsets = [12, 0], sizes = [80, 8], strides = [1, 1]} : vector<102x8xf32> to vector<80x8xf32>
    %183 = vector.extract_strided_slice %21 {offsets = [11, 0], sizes = [80, 8], strides = [1, 1]} : vector<102x8xf32> to vector<80x8xf32>
    %184 = vector.extract_strided_slice %21 {offsets = [2, 0], sizes = [80, 8], strides = [1, 1]} : vector<102x8xf32> to vector<80x8xf32>
    %185 = vector.extract_strided_slice %21 {offsets = [1, 0], sizes = [80, 8], strides = [1, 1]} : vector<102x8xf32> to vector<80x8xf32>
    %186 = tpu.concatenate %178, %179, %180, %181, %182, %183, %184, %185 in 1 : vector<80x8xf32>, vector<80x8xf32>, vector<80x8xf32>, vector<80x8xf32>, vector<80x8xf32>, vector<80x8xf32>, vector<80x8xf32>, vector<80x8xf32> -> vector<80x64xf32>
    %c0_72 = arith.constant 0 : index
    %c0_73 = arith.constant 0 : index
    %187 = vector.load %arg9[%c0_72, %c0_73] : memref<64x8xf32, #tpu.memory_space<vmem>>, vector<64x8xf32>
    %cst_74 = arith.constant dense<0.000000e+00> : vector<80x8xf32>
    %188 = tpu.matmul %186, %187, %cst_74 {dimension_numbers = #tpu.dot_dimension_numbers<[1], [0], [0], [1], [0, 0, 1, 1], [], []>} : vector<80x64xf32>, vector<64x8xf32>, vector<80x8xf32> -> vector<80x8xf32>
    %c0_75 = arith.constant 0 : index
    %c0_76 = arith.constant 0 : index
    %c5 = arith.constant 5 : index
    %c0_77 = arith.constant 0 : index
    %c0_78 = arith.constant 0 : index
    %189 = vector.load %arg13[%c0_75, %c0_76, %c5, %c0_77, %c0_78] : memref<1x1x8x80x8xf32, #tpu.memory_space<vmem>>, vector<1x1x1x80x8xf32>
    %190 = vector.shape_cast %189 : vector<1x1x1x80x8xf32> to vector<80x8xf32>
    %191 = vector.shape_cast %188 : vector<80x8xf32> to vector<1x1x1x80x8xf32>
    tpu.vector_store %arg13[%c0_75, %c0_76, %c5, %c0_77, %c0_78], %191 {strides = array<i32>} : memref<1x1x8x80x8xf32, #tpu.memory_space<vmem>>, vector<1x1x1x80x8xf32>,
    %cst_79 = arith.constant 0.000000e+00 : f32
    %192 = vector.shape_cast %50 : vector<80x1xi1> to vector<80x1xi1>
    %193 = vector.broadcast %192 : vector<80x1xi1> to vector<80x8xi1>
    %194 = vector.broadcast %cst_79 : f32 to vector<80x8xf32>
    %195 = arith.select %193, %188, %194 : vector<80x8xi1>, vector<80x8xf32>
    %cst_80 = arith.constant dense<0.000000e+00> : vector<8xf32>
    %196 = vector.multi_reduction <add>, %195, %cst_80 [0] : vector<80x8xf32> to vector<8xf32>
    %197 = vector.shape_cast %196 : vector<8xf32> to vector<1x8xf32>
    %198 = arith.addf %173, %197 : vector<1x8xf32>
    %199 = arith.mulf %195, %195 : vector<80x8xf32>
    %cst_81 = arith.constant dense<0.000000e+00> : vector<8xf32>
    %200 = vector.multi_reduction <add>, %199, %cst_81 [0] : vector<80x8xf32> to vector<8xf32>
    %201 = vector.shape_cast %200 : vector<8xf32> to vector<1x8xf32>
    %202 = arith.addf %177, %201 : vector<1x8xf32>
    %203 = vector.extract_strided_slice %31 {offsets = [21, 0], sizes = [80, 8], strides = [1, 1]} : vector<102x8xf32> to vector<80x8xf32>
    %204 = vector.extract_strided_slice %31 {offsets = [20, 0], sizes = [80, 8], strides = [1, 1]} : vector<102x8xf32> to vector<80x8xf32>
    %205 = vector.extract_strided_slice %31 {offsets = [11, 0], sizes = [80, 8], strides = [1, 1]} : vector<102x8xf32> to vector<80x8xf32>
    %206 = vector.extract_strided_slice %31 {offsets = [10, 0], sizes = [80, 8], strides = [1, 1]} : vector<102x8xf32> to vector<80x8xf32>
    %207 = vector.extract_strided_slice %21 {offsets = [21, 0], sizes = [80, 8], strides = [1, 1]} : vector<102x8xf32> to vector<80x8xf32>
    %208 = vector.extract_strided_slice %21 {offsets = [20, 0], sizes = [80, 8], strides = [1, 1]} : vector<102x8xf32> to vector<80x8xf32>
    %209 = vector.extract_strided_slice %21 {offsets = [11, 0], sizes = [80, 8], strides = [1, 1]} : vector<102x8xf32> to vector<80x8xf32>
    %210 = vector.extract_strided_slice %21 {offsets = [10, 0], sizes = [80, 8], strides = [1, 1]} : vector<102x8xf32> to vector<80x8xf32>
    %211 = tpu.concatenate %203, %204, %205, %206, %207, %208, %209, %210 in 1 : vector<80x8xf32>, vector<80x8xf32>, vector<80x8xf32>, vector<80x8xf32>, vector<80x8xf32>, vector<80x8xf32>, vector<80x8xf32>, vector<80x8xf32> -> vector<80x64xf32>
    %c0_82 = arith.constant 0 : index
    %c0_83 = arith.constant 0 : index
    %212 = vector.load %arg10[%c0_82, %c0_83] : memref<64x8xf32, #tpu.memory_space<vmem>>, vector<64x8xf32>
    %cst_84 = arith.constant dense<0.000000e+00> : vector<80x8xf32>
    %213 = tpu.matmul %211, %212, %cst_84 {dimension_numbers = #tpu.dot_dimension_numbers<[1], [0], [0], [1], [0, 0, 1, 1], [], []>} : vector<80x64xf32>, vector<64x8xf32>, vector<80x8xf32> -> vector<80x8xf32>
    %c0_85 = arith.constant 0 : index
    %c0_86 = arith.constant 0 : index
    %c6 = arith.constant 6 : index
    %c0_87 = arith.constant 0 : index
    %c0_88 = arith.constant 0 : index
    %214 = vector.load %arg13[%c0_85, %c0_86, %c6, %c0_87, %c0_88] : memref<1x1x8x80x8xf32, #tpu.memory_space<vmem>>, vector<1x1x1x80x8xf32>
    %215 = vector.shape_cast %214 : vector<1x1x1x80x8xf32> to vector<80x8xf32>
    %216 = vector.shape_cast %213 : vector<80x8xf32> to vector<1x1x1x80x8xf32>
    tpu.vector_store %arg13[%c0_85, %c0_86, %c6, %c0_87, %c0_88], %216 {strides = array<i32>} : memref<1x1x8x80x8xf32, #tpu.memory_space<vmem>>, vector<1x1x1x80x8xf32>,
    %cst_89 = arith.constant 0.000000e+00 : f32
    %217 = vector.shape_cast %50 : vector<80x1xi1> to vector<80x1xi1>
    %218 = vector.broadcast %217 : vector<80x1xi1> to vector<80x8xi1>
    %219 = vector.broadcast %cst_89 : f32 to vector<80x8xf32>
    %220 = arith.select %218, %213, %219 : vector<80x8xi1>, vector<80x8xf32>
    %cst_90 = arith.constant dense<0.000000e+00> : vector<8xf32>
    %221 = vector.multi_reduction <add>, %220, %cst_90 [0] : vector<80x8xf32> to vector<8xf32>
    %222 = vector.shape_cast %221 : vector<8xf32> to vector<1x8xf32>
    %223 = arith.addf %198, %222 : vector<1x8xf32>
    %224 = arith.mulf %220, %220 : vector<80x8xf32>
    %cst_91 = arith.constant dense<0.000000e+00> : vector<8xf32>
    %225 = vector.multi_reduction <add>, %224, %cst_91 [0] : vector<80x8xf32> to vector<8xf32>
    %226 = vector.shape_cast %225 : vector<8xf32> to vector<1x8xf32>
    %227 = arith.addf %202, %226 : vector<1x8xf32>
    %228 = vector.extract_strided_slice %31 {offsets = [22, 0], sizes = [80, 8], strides = [1, 1]} : vector<102x8xf32> to vector<80x8xf32>
    %229 = vector.extract_strided_slice %31 {offsets = [21, 0], sizes = [80, 8], strides = [1, 1]} : vector<102x8xf32> to vector<80x8xf32>
    %230 = vector.extract_strided_slice %31 {offsets = [12, 0], sizes = [80, 8], strides = [1, 1]} : vector<102x8xf32> to vector<80x8xf32>
    %231 = vector.extract_strided_slice %31 {offsets = [11, 0], sizes = [80, 8], strides = [1, 1]} : vector<102x8xf32> to vector<80x8xf32>
    %232 = vector.extract_strided_slice %21 {offsets = [22, 0], sizes = [80, 8], strides = [1, 1]} : vector<102x8xf32> to vector<80x8xf32>
    %233 = vector.extract_strided_slice %21 {offsets = [21, 0], sizes = [80, 8], strides = [1, 1]} : vector<102x8xf32> to vector<80x8xf32>
    %234 = vector.extract_strided_slice %21 {offsets = [12, 0], sizes = [80, 8], strides = [1, 1]} : vector<102x8xf32> to vector<80x8xf32>
    %235 = vector.extract_strided_slice %21 {offsets = [11, 0], sizes = [80, 8], strides = [1, 1]} : vector<102x8xf32> to vector<80x8xf32>
    %236 = tpu.concatenate %228, %229, %230, %231, %232, %233, %234, %235 in 1 : vector<80x8xf32>, vector<80x8xf32>, vector<80x8xf32>, vector<80x8xf32>, vector<80x8xf32>, vector<80x8xf32>, vector<80x8xf32>, vector<80x8xf32> -> vector<80x64xf32>
    %c0_92 = arith.constant 0 : index
    %c0_93 = arith.constant 0 : index
    %237 = vector.load %arg11[%c0_92, %c0_93] : memref<64x8xf32, #tpu.memory_space<vmem>>, vector<64x8xf32>
    %cst_94 = arith.constant dense<0.000000e+00> : vector<80x8xf32>
    %238 = tpu.matmul %236, %237, %cst_94 {dimension_numbers = #tpu.dot_dimension_numbers<[1], [0], [0], [1], [0, 0, 1, 1], [], []>} : vector<80x64xf32>, vector<64x8xf32>, vector<80x8xf32> -> vector<80x8xf32>
    %c0_95 = arith.constant 0 : index
    %c0_96 = arith.constant 0 : index
    %c7 = arith.constant 7 : index
    %c0_97 = arith.constant 0 : index
    %c0_98 = arith.constant 0 : index
    %239 = vector.load %arg13[%c0_95, %c0_96, %c7, %c0_97, %c0_98] : memref<1x1x8x80x8xf32, #tpu.memory_space<vmem>>, vector<1x1x1x80x8xf32>
    %240 = vector.shape_cast %239 : vector<1x1x1x80x8xf32> to vector<80x8xf32>
    %241 = vector.shape_cast %238 : vector<80x8xf32> to vector<1x1x1x80x8xf32>
    tpu.vector_store %arg13[%c0_95, %c0_96, %c7, %c0_97, %c0_98], %241 {strides = array<i32>} : memref<1x1x8x80x8xf32, #tpu.memory_space<vmem>>, vector<1x1x1x80x8xf32>,
    %cst_99 = arith.constant 0.000000e+00 : f32
    %242 = vector.shape_cast %50 : vector<80x1xi1> to vector<80x1xi1>
    %243 = vector.broadcast %242 : vector<80x1xi1> to vector<80x8xi1>
    %244 = vector.broadcast %cst_99 : f32 to vector<80x8xf32>
    %245 = arith.select %243, %238, %244 : vector<80x8xi1>, vector<80x8xf32>
    %cst_100 = arith.constant dense<0.000000e+00> : vector<8xf32>
    %246 = vector.multi_reduction <add>, %245, %cst_100 [0] : vector<80x8xf32> to vector<8xf32>
    %247 = vector.shape_cast %246 : vector<8xf32> to vector<1x8xf32>
    %248 = arith.addf %223, %247 : vector<1x8xf32>
    %249 = arith.mulf %245, %245 : vector<80x8xf32>
    %cst_101 = arith.constant dense<0.000000e+00> : vector<8xf32>
    %250 = vector.multi_reduction <add>, %249, %cst_101 [0] : vector<80x8xf32> to vector<8xf32>
    %251 = vector.shape_cast %250 : vector<8xf32> to vector<1x8xf32>
    %252 = arith.addf %227, %251 : vector<1x8xf32>
    %253 = tpu.concatenate %248, %252 in 0 : vector<1x8xf32>, vector<1x8xf32> -> vector<2x8xf32>
    %c0_102 = arith.constant 0 : index
    %c0_103 = arith.constant 0 : index
    %c0_104 = arith.constant 0 : index
    %c0_105 = arith.constant 0 : index
    %254 = vector.load %arg14[%c0_102, %c0_103, %c0_104, %c0_105] : memref<1x1x2x8xf32, #tpu.memory_space<vmem>>, vector<1x1x2x8xf32>
    %255 = vector.shape_cast %254 : vector<1x1x2x8xf32> to vector<2x8xf32>
    %256 = vector.shape_cast %253 : vector<2x8xf32> to vector<1x1x2x8xf32>
    tpu.vector_store %arg14[%c0_102, %c0_103, %c0_104, %c0_105], %256 {strides = array<i32>} : memref<1x1x2x8xf32, #tpu.memory_space<vmem>>, vector<1x1x2x8xf32>,
    return
  }
  func.func @transform_0(%arg0: i32, %arg1: i32) -> (i32, i32) {
    %c0_i32 = arith.constant 0 : i32
    %c0_i32_0 = arith.constant 0 : i32
    %c0_i32_1 = arith.constant 0 : i32
    return %c0_i32, %c0_i32_0 : i32, i32
  }
  func.func @transform_1(%arg0: i32, %arg1: i32) -> (i32, i32) {
    %c0_i32 = arith.constant 0 : i32
    %c0_i32_0 = arith.constant 0 : i32
    %c0_i32_1 = arith.constant 0 : i32
    return %c0_i32, %c0_i32_0 : i32, i32
  }
  func.func @transform_2(%arg0: i32, %arg1: i32) -> (i32, i32) {
    %c0_i32 = arith.constant 0 : i32
    %c0_i32_0 = arith.constant 0 : i32
    %c0_i32_1 = arith.constant 0 : i32
    return %c0_i32, %c0_i32_0 : i32, i32
  }
  func.func @transform_3(%arg0: i32, %arg1: i32) -> (i32, i32) {
    %c0_i32 = arith.constant 0 : i32
    %c0_i32_0 = arith.constant 0 : i32
    %c0_i32_1 = arith.constant 0 : i32
    return %c0_i32, %c0_i32_0 : i32, i32
  }
  func.func @transform_4(%arg0: i32, %arg1: i32) -> (i32, i32) {
    %c0_i32 = arith.constant 0 : i32
    %c0_i32_0 = arith.constant 0 : i32
    %c0_i32_1 = arith.constant 0 : i32
    return %c0_i32, %c0_i32_0 : i32, i32
  }
  func.func @transform_5(%arg0: i32, %arg1: i32) -> (i32, i32) {
    %c0_i32 = arith.constant 0 : i32
    %c0_i32_0 = arith.constant 0 : i32
    %c0_i32_1 = arith.constant 0 : i32
    return %c0_i32, %c0_i32_0 : i32, i32
  }
  func.func @transform_6(%arg0: i32, %arg1: i32) -> (i32, i32) {
    %c0_i32 = arith.constant 0 : i32
    %c0_i32_0 = arith.constant 0 : i32
    %c0_i32_1 = arith.constant 0 : i32
    return %c0_i32, %c0_i32_0 : i32, i32
  }
  func.func @transform_7(%arg0: i32, %arg1: i32) -> (i32, i32) {
    %c0_i32 = arith.constant 0 : i32
    %c0_i32_0 = arith.constant 0 : i32
    %c0_i32_1 = arith.constant 0 : i32
    return %c0_i32, %c0_i32_0 : i32, i32
  }
  func.func @transform_8(%arg0: i32, %arg1: i32) -> (i32, i32) {
    %c0_i32 = arith.constant 0 : i32
    %c0_i32_0 = arith.constant 0 : i32
    %c0_i32_1 = arith.constant 0 : i32
    return %c0_i32, %c0_i32_0 : i32, i32
  }
  func.func @transform_9(%arg0: i32, %arg1: i32) -> (i32, i32) {
    %c0_i32 = arith.constant 0 : i32
    %c0_i32_0 = arith.constant 0 : i32
    %c0_i32_1 = arith.constant 0 : i32
    return %c0_i32, %c0_i32_0 : i32, i32
  }
  func.func @transform_10(%arg0: i32, %arg1: i32) -> (i32, i32, i32, i32) {
    %c0_i32 = arith.constant 0 : i32
    %c0_i32_0 = arith.constant 0 : i32
    %c0_i32_1 = arith.constant 0 : i32
    %c0_i32_2 = arith.constant 0 : i32
    return %arg0, %c0_i32, %c0_i32_0, %c0_i32_1 : i32, i32, i32, i32
  }
  func.func @transform_11(%arg0: i32, %arg1: i32) -> (i32, i32, i32, i32, i32) {
    %c0_i32 = arith.constant 0 : i32
    %c0_i32_0 = arith.constant 0 : i32
    %c0_i32_1 = arith.constant 0 : i32
    %c0_i32_2 = arith.constant 0 : i32
    return %arg0, %arg1, %c0_i32, %c0_i32_0, %c0_i32_1 : i32, i32, i32, i32, i32
  }
  func.func @transform_12(%arg0: i32, %arg1: i32) -> (i32, i32, i32, i32) {
    %c0_i32 = arith.constant 0 : i32
    %c0_i32_0 = arith.constant 0 : i32
    %c0_i32_1 = arith.constant 0 : i32
    return %arg0, %arg1, %c0_i32, %c0_i32_0 : i32, i32, i32, i32
  }
}

module attributes {stable_mosaic.version = 11 : i64} {
  func.func @_conv_kernel(%arg0: i32, %arg1: i32, %arg2: memref<8x1xf32, #tpu.memory_space<vmem>>, %arg3: memref<8x1xf32, #tpu.memory_space<vmem>>, %arg4: memref<3x8xf32, #tpu.memory_space<vmem>>, %arg5: memref<3x1xf32, #tpu.memory_space<vmem>>, %arg6: memref<1x16x8x256xf32, #tpu.memory_space<vmem>>, %arg7: memref<1x1x3x256xf32, #tpu.memory_space<vmem>>) attributes {dimension_semantics = [#tpu.dimension_semantics<parallel>, #tpu.dimension_semantics<parallel>], iteration_bounds = array<i64: 2, 16>, scalar_prefetch = 0 : i64, scratch_operands = 0 : i64, tpu.core_type = #tpu.core_type<tc>, window_params = [{pipeline_mode = #tpu.pipeline_mode<synchronous>, transform_indices = @transform_0, window_bounds = array<i64: 8, 1>}, {pipeline_mode = #tpu.pipeline_mode<synchronous>, transform_indices = @transform_1, window_bounds = array<i64: 8, 1>}, {pipeline_mode = #tpu.pipeline_mode<synchronous>, transform_indices = @transform_2, window_bounds = array<i64: 3, 8>}, {pipeline_mode = #tpu.pipeline_mode<synchronous>, transform_indices = @transform_3, window_bounds = array<i64: 3, 1>}, {transform_indices = @transform_4, window_bounds = array<i64: 1, 16, 8, 256>}, {transform_indices = @transform_5, window_bounds = array<i64: 1, 1, 3, 256>}]} {
    %c0 = arith.constant 0 : index
    %c0_0 = arith.constant 0 : index
    %0 = vector.load %arg2[%c0, %c0_0] : memref<8x1xf32, #tpu.memory_space<vmem>>, vector<8x1xf32>
    %c0_1 = arith.constant 0 : index
    %c0_2 = arith.constant 0 : index
    %1 = vector.load %arg3[%c0_1, %c0_2] : memref<8x1xf32, #tpu.memory_space<vmem>>, vector<8x1xf32>
    %c0_i32 = arith.constant 0 : i32
    %2 = arith.addi %arg1, %c0_i32 : i32
    %c0_3 = arith.constant 0 : index
    %3 = arith.index_cast %2 : i32 to index
    %c0_4 = arith.constant 0 : index
    %c0_5 = arith.constant 0 : index
    %4 = vector.load %arg6[%c0_3, %3, %c0_4, %c0_5] : memref<1x16x8x256xf32, #tpu.memory_space<vmem>>, vector<1x1x8x256xf32>
    %5 = vector.shape_cast %4 : vector<1x1x8x256xf32> to vector<8x256xf32>
    %6 = vector.broadcast %0 : vector<8x1xf32> to vector<8x256xf32>
    %7 = arith.mulf %5, %6 : vector<8x256xf32>
    %8 = vector.broadcast %1 : vector<8x1xf32> to vector<8x256xf32>
    %9 = arith.addf %7, %8 : vector<8x256xf32>
    %cst = arith.constant 0.000000e+00 : f32
    %10 = vector.broadcast %cst : f32 to vector<8x256xf32>
    %11 = arith.maximumf %9, %10 : vector<8x256xf32>
    %c0_6 = arith.constant 0 : index
    %c0_7 = arith.constant 0 : index
    %12 = vector.load %arg4[%c0_6, %c0_7] : memref<3x8xf32, #tpu.memory_space<vmem>>, vector<3x8xf32>
    %cst_8 = arith.constant dense<0.000000e+00> : vector<3x256xf32>
    %13 = tpu.matmul %12, %11, %cst_8 {dimension_numbers = #tpu.dot_dimension_numbers<[1], [0], [0], [1], [0, 0, 1, 1], [], []>} : vector<3x8xf32>, vector<8x256xf32>, vector<3x256xf32> -> vector<3x256xf32>
    %c0_9 = arith.constant 0 : index
    %c0_10 = arith.constant 0 : index
    %14 = vector.load %arg5[%c0_9, %c0_10] : memref<3x1xf32, #tpu.memory_space<vmem>>, vector<3x1xf32>
    %15 = vector.broadcast %14 : vector<3x1xf32> to vector<3x256xf32>
    %16 = arith.addf %13, %15 : vector<3x256xf32>
    %c0_11 = arith.constant 0 : index
    %c0_12 = arith.constant 0 : index
    %c0_13 = arith.constant 0 : index
    %c0_14 = arith.constant 0 : index
    %17 = vector.load %arg7[%c0_11, %c0_12, %c0_13, %c0_14] : memref<1x1x3x256xf32, #tpu.memory_space<vmem>>, vector<1x1x3x256xf32>
    %18 = vector.shape_cast %17 : vector<1x1x3x256xf32> to vector<3x256xf32>
    %19 = vector.shape_cast %16 : vector<3x256xf32> to vector<1x1x3x256xf32>
    tpu.vector_store %arg7[%c0_11, %c0_12, %c0_13, %c0_14], %19 {strides = array<i32>} : memref<1x1x3x256xf32, #tpu.memory_space<vmem>>, vector<1x1x3x256xf32>,
    return
  }
  func.func @transform_0(%arg0: i32, %arg1: i32) -> (i32, i32) {
    %c0_i32 = arith.constant 0 : i32
    %c0_i32_0 = arith.constant 0 : i32
    %c0_i32_1 = arith.constant 0 : i32
    return %c0_i32, %c0_i32_0 : i32, i32
  }
  func.func @transform_1(%arg0: i32, %arg1: i32) -> (i32, i32) {
    %c0_i32 = arith.constant 0 : i32
    %c0_i32_0 = arith.constant 0 : i32
    %c0_i32_1 = arith.constant 0 : i32
    return %c0_i32, %c0_i32_0 : i32, i32
  }
  func.func @transform_2(%arg0: i32, %arg1: i32) -> (i32, i32) {
    %c0_i32 = arith.constant 0 : i32
    %c0_i32_0 = arith.constant 0 : i32
    %c0_i32_1 = arith.constant 0 : i32
    return %c0_i32, %c0_i32_0 : i32, i32
  }
  func.func @transform_3(%arg0: i32, %arg1: i32) -> (i32, i32) {
    %c0_i32 = arith.constant 0 : i32
    %c0_i32_0 = arith.constant 0 : i32
    %c0_i32_1 = arith.constant 0 : i32
    return %c0_i32, %c0_i32_0 : i32, i32
  }
  func.func @transform_4(%arg0: i32, %arg1: i32) -> (i32, i32, i32, i32) {
    %c0_i32 = arith.constant 0 : i32
    %c0_i32_0 = arith.constant 0 : i32
    %c0_i32_1 = arith.constant 0 : i32
    %c0_i32_2 = arith.constant 0 : i32
    return %arg0, %c0_i32, %c0_i32_0, %c0_i32_1 : i32, i32, i32, i32
  }
  func.func @transform_5(%arg0: i32, %arg1: i32) -> (i32, i32, i32, i32) {
    %c0_i32 = arith.constant 0 : i32
    %c0_i32_0 = arith.constant 0 : i32
    %c0_i32_1 = arith.constant 0 : i32
    return %arg0, %arg1, %c0_i32, %c0_i32_0 : i32, i32, i32, i32
  }
}

</mosaic_0001>

<llo_original>
// kernel: deconv_head_forward.3
$region0: #{deconv_head_forward.3}
  #allocation0 [shape = 'u32[]', space=smem, size = 0x4, offset = 0x4, fixed_abs, tag = 'smem constant byte address 0x4 - core index']
  #allocation1 [shape = 'u32[144,128]{1,0:T(1,128)}', space=vmem, size = 0x12000, scoped, tag = 'internal scratch']
  %s0 = inlined_call_operand.vmem [shape: f32[1,4], index: 0, kind: input, shape index: {}]
  %s1 = inlined_call_operand.vmem [shape: f32[1,4], index: 1, kind: input, shape index: {}]
  %s2 = inlined_call_operand.hbm [shape: f32[32,8], index: 2, kind: input, shape index: {}]
  %s3 = inlined_call_operand.hbm [shape: f32[32,8], index: 3, kind: input, shape index: {}]
  %s4 = inlined_call_operand.hbm [shape: f32[32,8], index: 4, kind: input, shape index: {}]
  %s5 = inlined_call_operand.hbm [shape: f32[32,8], index: 5, kind: input, shape index: {}]
  %s6 = inlined_call_operand.hbm [shape: f32[32,8], index: 6, kind: input, shape index: {}]
  %s7 = inlined_call_operand.hbm [shape: f32[32,8], index: 7, kind: input, shape index: {}]
  %s8 = inlined_call_operand.hbm [shape: f32[32,8], index: 8, kind: input, shape index: {}]
  %s9 = inlined_call_operand.hbm [shape: f32[32,8], index: 9, kind: input, shape index: {}]
  %s10 = inlined_call_operand.vmem [shape: f32[2,6,38,4], index: 10, kind: input, shape index: {}]
  %s11 = inlined_call_operand.vmem [shape: f32[2,4,8,24,8], index: 11, kind: output, shape index: {0}]
  %s12 = inlined_call_operand.vmem [shape: f32[2,4,2,8], index: 12, kind: output, shape index: {1}]
  %13 = xla_tuple %s11, %s12
  %s14 = sld [smem:[#allocation0]]
  $region117: #{deconv_head_forward.3} parent=0
    _
  %s16 = ssub.s32 1, %s14
  %s17 = scalar_select 0, %s16, %s14
  $region1: #{deconv_head_forward.3} parent=0
    #allocation2 [shape = 'u8[16384]{0}', space=vmem, size = 0x4000, scoped, tag = 'input window, operand 2, single buffered']
    #allocation3 [shape = 's32[2]{0}', space=sflag, size = 0x8, scoped, tag = 'scoped memory for deconv_head_forward.3']
    #allocation4 [shape = 'u8[16384]{0}', space=vmem, size = 0x4000, scoped, tag = 'input window, operand 3, single buffered']
    #allocation5 [shape = 's32[1]{0}', space=sflag, size = 0x4, scoped, tag = 'scoped memory for deconv_head_forward.3']
    #allocation6 [shape = 'u8[16384]{0}', space=vmem, size = 0x4000, scoped, tag = 'input window, operand 4, single buffered']
    #allocation7 [shape = 'u8[16384]{0}', space=vmem, size = 0x4000, scoped, tag = 'input window, operand 5, single buffered']
    #allocation8 [shape = 's32[1]{0}', space=sflag, size = 0x4, scoped, tag = 'scoped memory for deconv_head_forward.3']
    #allocation9 [shape = 'u8[16384]{0}', space=vmem, size = 0x4000, scoped, tag = 'input window, operand 6, single buffered']
    #allocation10 [shape = 'u8[16384]{0}', space=vmem, size = 0x4000, scoped, tag = 'input window, operand 7, single buffered']
    #allocation11 [shape = 's32[1]{0}', space=sflag, size = 0x4, scoped, tag = 'scoped memory for deconv_head_forward.3']
    #allocation12 [shape = 'u8[16384]{0}', space=vmem, size = 0x4000, scoped, tag = 'input window, operand 8, single buffered']
    #allocation13 [shape = 'u8[16384]{0}', space=vmem, size = 0x4000, scoped, tag = 'input window, operand 9, single buffered']
    #allocation14 [shape = 's32[1]{0}', space=sflag, size = 0x4, scoped, tag = 'scoped memory for deconv_head_forward.3']
    %18 = vsyncpa [#allocation3], 0
    %19 = vsyncpa [#allocation5], 0
    %20 = vsyncpa [#allocation8], 0
    %21 = vsyncpa [#allocation11], 0
    %22 = vsyncpa [#allocation14], 0
    loop: start=0, step=1, limit=10
    $region2: #{deconv_head_forward.3} parent=1 // loop_pre_header
      _
    $region3: #{deconv_head_forward.3} parent=1 // loop_header
      %s24 = sphi 0, %s28
      %p25 = scmp.ge.s32.totalorder %s24, 10
      %s31 = sphi 0, %s43
      %s32 = sphi 0, %s39
      %s33 = sphi 0, %s31
      %s34 = sphi 0, %s32
      %s35 = sphi 0, %s33
      %s36 = sphi 0, %s34
      %s44 = sphi 0, %s44
      %s46 = sphi 0, %s44
      %s47 = sphi 0, %s46
      %s61 = sphi 0, %s47
      %s65 = sphi 0, %s65
      %s67 = sphi 0, %s65
      %s68 = sphi 0, %s67
      %s82 = sphi 0, %s68
      %s86 = sphi 0, %s86
      %s88 = sphi 0, %s86
      %s89 = sphi 0, %s88
      %s103 = sphi 0, %s89
      %s107 = sphi 0, %s107
      %s109 = sphi 0, %s107
      %s110 = sphi 0, %s109
      %s124 = sphi 0, %s110
      %s128 = sphi 0, %s128
      %s130 = sphi 0, %s128
      %s131 = sphi 0, %s130
      %s145 = sphi 0, %s131
      %s149 = sphi 0, %s149
      %s151 = sphi 0, %s149
      %s152 = sphi 0, %s151
      %s166 = sphi 0, %s152
      %s170 = sphi 0, %s170
      %s172 = sphi 0, %s170
      %s173 = sphi 0, %s172
      %s187 = sphi 0, %s173
      %s191 = sphi 0, %s191
      %s193 = sphi 0, %s191
      %s194 = sphi 0, %s193
      %s208 = sphi 0, %s194
      %s212 = sphi 0, %s212
      %s214 = sphi 0, %s212
      %s215 = sphi 0, %s214
      %s229 = sphi 0, %s215
      %s233 = sphi 0, %s233
      %s235 = sphi 0, %s233
      %s236 = sphi 0, %s235
      %s250 = sphi 0, %s236
      %s256 = sphi 0, %s258
      %s259 = sphi 0, %s256
      %s260 = sphi 0, %s259
      %s276 = sphi 0, %s260
      %s284 = sphi 0, %s286
      %s287 = sphi 0, %s284
      %s288 = sphi 0, %s287
      %s304 = sphi 0, %s288
      %s312 = sphi 0, %s314
      %s315 = sphi 0, %s312
      %s316 = sphi 0, %s315
      %s332 = sphi 0, %s316
    $region4: #{deconv_head_forward.3} parent=1 // loop_header_branch
      %27 = sbr.rel (%p25) target = $region8
    $region5: #{deconv_head_forward.3} parent=1 // loop_body
      %s29 = ssub.s32 %s24, 1
      %s30 = ssub.s32 %s24, 2
      %s37 = sadd.s32 1, %s32
      %p38 = scmp.ge.s32.totalorder %s37, 4
      %s39 = scalar_select %p38, 0, %s37
      %s40 = sadd.s32 1, %s31
      %s41 = scalar_select %p38, %s40, %s31
      %p42 = scmp.ge.s32.totalorder %s41, 2
      %s43 = scalar_select %p42, 0, %s41
      %s45 = sadd.s32 %s44, 1
      %p48 = scmp.eq.s32.totalorder %s24, 7
      %p49 = scmp.ne.s32.totalorder %s44, %s46
      %p50 = scmp.eq.s32.totalorder %s24, 0
      %p51 = por %p49, %p50
      %p52 = scmp.ne.s32.totalorder %s44, %s46
      %p53 = scmp.eq.s32.totalorder %s29, 7
      %p54 = por %p52, %p53
      %p55 = scmp.ne.s32.totalorder %s46, %s47
      %p56 = scmp.eq.s32.totalorder %s29, 0
      %p57 = por %p55, %p56
      %p58 = scmp.ne.s32.totalorder %s46, %s47
      %p59 = scmp.eq.s32.totalorder %s30, 7
      %p60 = por %p58, %p59
      %p62 = scmp.ne.s32.totalorder %s47, %s61
      %p63 = scmp.eq.s32.totalorder %s30, 0
      %p64 = por %p62, %p63
      %s66 = sadd.s32 %s65, 1
      %p69 = scmp.eq.s32.totalorder %s24, 7
      %p70 = scmp.ne.s32.totalorder %s65, %s67
      %p71 = scmp.eq.s32.totalorder %s24, 0
      %p72 = por %p70, %p71
      %p73 = scmp.ne.s32.totalorder %s65, %s67
      %p74 = scmp.eq.s32.totalorder %s29, 7
      %p75 = por %p73, %p74
      %p76 = scmp.ne.s32.totalorder %s67, %s68
      %p77 = scmp.eq.s32.totalorder %s29, 0
      %p78 = por %p76, %p77
      %p79 = scmp.ne.s32.totalorder %s67, %s68
      %p80 = scmp.eq.s32.totalorder %s30, 7
      %p81 = por %p79, %p80
      %p83 = scmp.ne.s32.totalorder %s68, %s82
      %p84 = scmp.eq.s32.totalorder %s30, 0
      %p85 = por %p83, %p84
      %s87 = sadd.s32 %s86, 1
      %p90 = scmp.eq.s32.totalorder %s24, 7
      %p91 = scmp.ne.s32.totalorder %s86, %s88
      %p92 = scmp.eq.s32.totalorder %s24, 0
      %p93 = por %p91, %p92
      %p94 = scmp.ne.s32.totalorder %s86, %s88
      %p95 = scmp.eq.s32.totalorder %s29, 7
      %p96 = por %p94, %p95
      %p97 = scmp.ne.s32.totalorder %s88, %s89
      %p98 = scmp.eq.s32.totalorder %s29, 0
      %p99 = por %p97, %p98
      %p100 = scmp.ne.s32.totalorder %s88, %s89
      %p101 = scmp.eq.s32.totalorder %s30, 7
      %p102 = por %p100, %p101
      %p104 = scmp.ne.s32.totalorder %s89, %s103
      %p105 = scmp.eq.s32.totalorder %s30, 0
      %p106 = por %p104, %p105
      %s108 = sadd.s32 %s107, 1
      %p111 = scmp.eq.s32.totalorder %s24, 7
      %p112 = scmp.ne.s32.totalorder %s107, %s109
      %p113 = scmp.eq.s32.totalorder %s24, 0
      %p114 = por %p112, %p113
      %p115 = scmp.ne.s32.totalorder %s107, %s109
      %p116 = scmp.eq.s32.totalorder %s29, 7
      %p117 = por %p115, %p116
      %p118 = scmp.ne.s32.totalorder %s109, %s110
      %p119 = scmp.eq.s32.totalorder %s29, 0
      %p120 = por %p118, %p119
      %p121 = scmp.ne.s32.totalorder %s109, %s110
      %p122 = scmp.eq.s32.totalorder %s30, 7
      %p123 = por %p121, %p122
      %p125 = scmp.ne.s32.totalorder %s110, %s124
      %p126 = scmp.eq.s32.totalorder %s30, 0
      %p127 = por %p125, %p126
      %s129 = sadd.s32 %s128, 1
      %p132 = scmp.eq.s32.totalorder %s24, 7
      %p133 = scmp.ne.s32.totalorder %s128, %s130
      %p134 = scmp.eq.s32.totalorder %s24, 0
      %p135 = por %p133, %p134
      %p136 = scmp.ne.s32.totalorder %s128, %s130
      %p137 = scmp.eq.s32.totalorder %s29, 7
      %p138 = por %p136, %p137
      %p139 = scmp.ne.s32.totalorder %s130, %s131
      %p140 = scmp.eq.s32.totalorder %s29, 0
      %p141 = por %p139, %p140
      %p142 = scmp.ne.s32.totalorder %s130, %s131
      %p143 = scmp.eq.s32.totalorder %s30, 7
      %p144 = por %p142, %p143
      %p146 = scmp.ne.s32.totalorder %s131, %s145
      %p147 = scmp.eq.s32.totalorder %s30, 0
      %p148 = por %p146, %p147
      %s150 = sadd.s32 %s149, 1
      %p153 = scmp.eq.s32.totalorder %s24, 7
      %p154 = scmp.ne.s32.totalorder %s149, %s151
      %p155 = scmp.eq.s32.totalorder %s24, 0
      %p156 = por %p154, %p155
      %p157 = scmp.ne.s32.totalorder %s149, %s151
      %p158 = scmp.eq.s32.totalorder %s29, 7
      %p159 = por %p157, %p158
      %p160 = scmp.ne.s32.totalorder %s151, %s152
      %p161 = scmp.eq.s32.totalorder %s29, 0
      %p162 = por %p160, %p161
      %p163 = scmp.ne.s32.totalorder %s151, %s152
      %p164 = scmp.eq.s32.totalorder %s30, 7
      %p165 = por %p163, %p164
      %p167 = scmp.ne.s32.totalorder %s152, %s166
      %p168 = scmp.eq.s32.totalorder %s30, 0
      %p169 = por %p167, %p168
      %s171 = sadd.s32 %s170, 1
      %p174 = scmp.eq.s32.totalorder %s24, 7
      %p175 = scmp.ne.s32.totalorder %s170, %s172
      %p176 = scmp.eq.s32.totalorder %s24, 0
      %p177 = por %p175, %p176
      %p178 = scmp.ne.s32.totalorder %s170, %s172
      %p179 = scmp.eq.s32.totalorder %s29, 7
      %p180 = por %p178, %p179
      %p181 = scmp.ne.s32.totalorder %s172, %s173
      %p182 = scmp.eq.s32.totalorder %s29, 0
      %p183 = por %p181, %p182
      %p184 = scmp.ne.s32.totalorder %s172, %s173
      %p185 = scmp.eq.s32.totalorder %s30, 7
      %p186 = por %p184, %p185
      %p188 = scmp.ne.s32.totalorder %s173, %s187
      %p189 = scmp.eq.s32.totalorder %s30, 0
      %p190 = por %p188, %p189
      %s192 = sadd.s32 %s191, 1
      %p195 = scmp.eq.s32.totalorder %s24, 7
      %p196 = scmp.ne.s32.totalorder %s191, %s193
      %p197 = scmp.eq.s32.totalorder %s24, 0
      %p198 = por %p196, %p197
      %p199 = scmp.ne.s32.totalorder %s191, %s193
      %p200 = scmp.eq.s32.totalorder %s29, 7
      %p201 = por %p199, %p200
      %p202 = scmp.ne.s32.totalorder %s193, %s194
      %p203 = scmp.eq.s32.totalorder %s29, 0
      %p204 = por %p202, %p203
      %p205 = scmp.ne.s32.totalorder %s193, %s194
      %p206 = scmp.eq.s32.totalorder %s30, 7
      %p207 = por %p205, %p206
      %p209 = scmp.ne.s32.totalorder %s194, %s208
      %p210 = scmp.eq.s32.totalorder %s30, 0
      %p211 = por %p209, %p210
      %s213 = sadd.s32 %s212, 1
      %p216 = scmp.eq.s32.totalorder %s24, 7
      %p217 = scmp.ne.s32.totalorder %s212, %s214
      %p218 = scmp.eq.s32.totalorder %s24, 0
      %p219 = por %p217, %p218
      %p220 = scmp.ne.s32.totalorder %s212, %s214
      %p221 = scmp.eq.s32.totalorder %s29, 7
      %p222 = por %p220, %p221
      %p223 = scmp.ne.s32.totalorder %s214, %s215
      %p224 = scmp.eq.s32.totalorder %s29, 0
      %p225 = por %p223, %p224
      %p226 = scmp.ne.s32.totalorder %s214, %s215
      %p227 = scmp.eq.s32.totalorder %s30, 7
      %p228 = por %p226, %p227
      %p230 = scmp.ne.s32.totalorder %s215, %s229
      %p231 = scmp.eq.s32.totalorder %s30, 0
      %p232 = por %p230, %p231
      %s234 = sadd.s32 %s233, 1
      %p237 = scmp.eq.s32.totalorder %s24, 7
      %p238 = scmp.ne.s32.totalorder %s233, %s235
      %p239 = scmp.eq.s32.totalorder %s24, 0
      %p240 = por %p238, %p239
      %p241 = scmp.ne.s32.totalorder %s233, %s235
      %p242 = scmp.eq.s32.totalorder %s29, 7
      %p243 = por %p241, %p242
      %p244 = scmp.ne.s32.totalorder %s235, %s236
      %p245 = scmp.eq.s32.totalorder %s29, 0
      %p246 = por %p244, %p245
      %p247 = scmp.ne.s32.totalorder %s235, %s236
      %p248 = scmp.eq.s32.totalorder %s30, 7
      %p249 = por %p247, %p248
      %p251 = scmp.ne.s32.totalorder %s236, %s250
      %p252 = scmp.eq.s32.totalorder %s30, 0
      %p253 = por %p251, %p252
      %s254 = ssub.s32 %s31, %s43
      %p255 = scmp.eq.s32.totalorder %s254, 0
      %s257 = sadd.s32 %s256, 1
      %s258 = scalar_select %p255, %s256, %s257
      %p261 = pneg %p255
      %p262 = scmp.eq.s32.totalorder %s24, 7
      %p263 = por %p261, %p262
      %p264 = scmp.ne.s32.totalorder %s256, %s259
      %p265 = scmp.eq.s32.totalorder %s24, 0
      %p266 = por %p264, %p265
      %p267 = scmp.ne.s32.totalorder %s256, %s259
      %p268 = scmp.eq.s32.totalorder %s29, 7
      %p269 = por %p267, %p268
      %p270 = scmp.ne.s32.totalorder %s259, %s260
      %p271 = scmp.eq.s32.totalorder %s29, 0
      %p272 = por %p270, %p271
      %p273 = scmp.ne.s32.totalorder %s259, %s260
      %p274 = scmp.eq.s32.totalorder %s30, 7
      %p275 = por %p273, %p274
      %p277 = scmp.ne.s32.totalorder %s260, %s276
      %p278 = scmp.eq.s32.totalorder %s30, 0
      %p279 = por %p277, %p278
      %s280 = ssub.s32 %s31, %s43
      %s281 = ssub.s32 %s32, %s39
      %s282 = sor.u32 %s280, %s281
      %p283 = scmp.eq.s32.totalorder %s282, 0
      %s285 = sadd.s32 %s284, 1
      %s286 = scalar_select %p283, %s284, %s285
      %p289 = pneg %p283
      %p290 = scmp.eq.s32.totalorder %s24, 7
      %p291 = por %p289, %p290
      %p292 = scmp.ne.s32.totalorder %s284, %s287
      %p293 = scmp.eq.s32.totalorder %s24, 0
      %p294 = por %p292, %p293
      %p295 = scmp.ne.s32.totalorder %s284, %s287
      %p296 = scmp.eq.s32.totalorder %s29, 7
      %p297 = por %p295, %p296
      %p298 = scmp.ne.s32.totalorder %s287, %s288
      %p299 = scmp.eq.s32.totalorder %s29, 0
      %p300 = por %p298, %p299
      %p301 = scmp.ne.s32.totalorder %s287, %s288
      %p302 = scmp.eq.s32.totalorder %s30, 7
      %p303 = por %p301, %p302
      %p305 = scmp.ne.s32.totalorder %s288, %s304
      %p306 = scmp.eq.s32.totalorder %s30, 0
      %p307 = por %p305, %p306
      %s308 = ssub.s32 %s31, %s43
      %s309 = ssub.s32 %s32, %s39
      %s310 = sor.u32 %s308, %s309
      %p311 = scmp.eq.s32.totalorder %s310, 0
      %s313 = sadd.s32 %s312, 1
      %s314 = scalar_select %p311, %s312, %s313
      %p317 = pneg %p311
      %p318 = scmp.eq.s32.totalorder %s24, 7
      %p319 = por %p317, %p318
      %p320 = scmp.ne.s32.totalorder %s312, %s315
      %p321 = scmp.eq.s32.totalorder %s24, 0
      %p322 = por %p320, %p321
      %p323 = scmp.ne.s32.totalorder %s312, %s315
      %p324 = scmp.eq.s32.totalorder %s29, 7
      %p325 = por %p323, %p324
      %p326 = scmp.ne.s32.totalorder %s315, %s316
      %p327 = scmp.eq.s32.totalorder %s29, 0
      %p328 = por %p326, %p327
      %p329 = scmp.ne.s32.totalorder %s315, %s316
      %p330 = scmp.eq.s32.totalorder %s30, 7
      %p331 = por %p329, %p330
      %p333 = scmp.ne.s32.totalorder %s316, %s332
      %p334 = scmp.eq.s32.totalorder %s30, 0
      %p335 = por %p333, %p334
      %p336 = scmp.le.s32.totalorder 1, %s24
      %p337 = scmp.lt.s32.totalorder %s24, 9
      %p338 = pnand %p336, %p337
      %p339 = pneg %p338
      // Predicated region
      $region9: #{deconv_head_forward.3} parent=5 // pred_check
        _
      $region10: #{deconv_head_forward.3} parent=5 // pred_check_branch
        %341 = sbr.rel (%p338) target = $region12
      $region11: #{deconv_head_forward.3} parent=5 // pred_region
        %s342 = ssub.s32 %s24, 1
        // Predicated region
        $region13: #{deconv_head_forward.3} parent=11 // pred_check
          %p343 = pneg %p57
        $region14: #{deconv_head_forward.3} parent=11 // pred_check_branch
          %345 = sbr.rel (%p343) target = $region16
        $region15: #{deconv_head_forward.3} parent=11 // pred_region
          _
        $region16: #{deconv_head_forward.3} parent=11 // pred_fallthru
          _
        // Predicated region
        $region17: #{deconv_head_forward.3} parent=11 // pred_check
          %p346 = pneg %p78
        $region18: #{deconv_head_forward.3} parent=11 // pred_check_branch
          %348 = sbr.rel (%p346) target = $region20
        $region19: #{deconv_head_forward.3} parent=11 // pred_region
          _
        $region20: #{deconv_head_forward.3} parent=11 // pred_fallthru
          _
        // Predicated region
        $region21: #{deconv_head_forward.3} parent=11 // pred_check
          %p349 = pneg %p99
        $region22: #{deconv_head_forward.3} parent=11 // pred_check_branch
          %351 = sbr.rel (%p349) target = $region24
        $region23: #{deconv_head_forward.3} parent=11 // pred_region
          %s353 = ssub.s32 512, 512
          %354 = vsyncadd [#allocation3], %s353
          %s355 = sshll.u32 [#allocation2], 4
          %s356 = int_to_ptr.vmem [resolvable:$true] %s355
          %361 = dma.hbm_to_vmem [thread:$0]  %s2, 512, %s356, [#allocation3], 128, 128, 8
        $region24: #{deconv_head_forward.3} parent=11 // pred_fallthru
          _
        // Predicated region
        $region25: #{deconv_head_forward.3} parent=11 // pred_check
          %p362 = pneg %p120
        $region26: #{deconv_head_forward.3} parent=11 // pred_check_branch
          %364 = sbr.rel (%p362) target = $region28
        $region27: #{deconv_head_forward.3} parent=11 // pred_region
          %s366 = ssub.s32 512, 512
          %367 = vsyncadd [#allocation5], %s366
          %s368 = sshll.u32 [#allocation4], 4
          %s369 = int_to_ptr.vmem [resolvable:$true] %s368
          %374 = dma.hbm_to_vmem [thread:$0]  %s3, 512, %s369, [#allocation5], 128, 128, 8
        $region28: #{deconv_head_forward.3} parent=11 // pred_fallthru
          _
        // Predicated region
        $region29: #{deconv_head_forward.3} parent=11 // pred_check
          %p375 = pneg %p141
        $region30: #{deconv_head_forward.3} parent=11 // pred_check_branch
          %377 = sbr.rel (%p375) target = $region32
        $region31: #{deconv_head_forward.3} parent=11 // pred_region
          %s379 = ssub.s32 512, 512
          %380 = vsyncadd [#allocation5], %s379
          %s381 = sshll.u32 [#allocation6], 4
          %s382 = int_to_ptr.vmem [resolvable:$true] %s381
          %387 = dma.hbm_to_vmem [thread:$0]  %s4, 512, %s382, [#allocation5], 128, 128, 8
        $region32: #{deconv_head_forward.3} parent=11 // pred_fallthru
          _
        // Predicated region
        $region33: #{deconv_head_forward.3} parent=11 // pred_check
          %p388 = pneg %p162
        $region34: #{deconv_head_forward.3} parent=11 // pred_check_branch
          %390 = sbr.rel (%p388) target = $region36
        $region35: #{deconv_head_forward.3} parent=11 // pred_region
          %s392 = ssub.s32 512, 512
          %393 = vsyncadd [#allocation8], %s392
          %s394 = sshll.u32 [#allocation7], 4
          %s395 = int_to_ptr.vmem [resolvable:$true] %s394
          %400 = dma.hbm_to_vmem [thread:$0]  %s5, 512, %s395, [#allocation8], 128, 128, 8
        $region36: #{deconv_head_forward.3} parent=11 // pred_fallthru
          _
        // Predicated region
        $region37: #{deconv_head_forward.3} parent=11 // pred_check
          %p401 = pneg %p183
        $region38: #{deconv_head_forward.3} parent=11 // pred_check_branch
          %403 = sbr.rel (%p401) target = $region40
        $region39: #{deconv_head_forward.3} parent=11 // pred_region
          %s405 = ssub.s32 512, 512
          %406 = vsyncadd [#allocation8], %s405
          %s407 = sshll.u32 [#allocation9], 4
          %s408 = int_to_ptr.vmem [resolvable:$true] %s407
          %413 = dma.hbm_to_vmem [thread:$0]  %s6, 512, %s408, [#allocation8], 128, 128, 8
        $region40: #{deconv_head_forward.3} parent=11 // pred_fallthru
          _
        // Predicated region
        $region41: #{deconv_head_forward.3} parent=11 // pred_check
          %p414 = pneg %p204
        $region42: #{deconv_head_forward.3} parent=11 // pred_check_branch
          %416 = sbr.rel (%p414) target = $region44
        $region43: #{deconv_head_forward.3} parent=11 // pred_region
          %s418 = ssub.s32 512, 512
          %419 = vsyncadd [#allocation11], %s418
          %s420 = sshll.u32 [#allocation10], 4
          %s421 = int_to_ptr.vmem [resolvable:$true] %s420
          %426 = dma.hbm_to_vmem [thread:$0]  %s7, 512, %s421, [#allocation11], 128, 128, 8
        $region44: #{deconv_head_forward.3} parent=11 // pred_fallthru
          _
        // Predicated region
        $region45: #{deconv_head_forward.3} parent=11 // pred_check
          %p427 = pneg %p225
        $region46: #{deconv_head_forward.3} parent=11 // pred_check_branch
          %429 = sbr.rel (%p427) target = $region48
        $region47: #{deconv_head_forward.3} parent=11 // pred_region
          %s431 = ssub.s32 512, 512
          %432 = vsyncadd [#allocation11], %s431
          %s433 = sshll.u32 [#allocation12], 4
          %s434 = int_to_ptr.vmem [resolvable:$true] %s433
          %439 = dma.hbm_to_vmem [thread:$0]  %s8, 512, %s434, [#allocation11], 128, 128, 8
        $region48: #{deconv_head_forward.3} parent=11 // pred_fallthru
          _
        // Predicated region
        $region49: #{deconv_head_forward.3} parent=11 // pred_check
          %p440 = pneg %p246
        $region50: #{deconv_head_forward.3} parent=11 // pred_check_branch
          %442 = sbr.rel (%p440) target = $region52
        $region51: #{deconv_head_forward.3} parent=11 // pred_region
          %s444 = ssub.s32 512, 512
          %445 = vsyncadd [#allocation14], %s444
          %s446 = sshll.u32 [#allocation13], 4
          %s447 = int_to_ptr.vmem [resolvable:$true] %s446
          %452 = dma.hbm_to_vmem [thread:$0]  %s9, 512, %s447, [#allocation14], 128, 128, 8
        $region52: #{deconv_head_forward.3} parent=11 // pred_fallthru
          _
      $region12: #{deconv_head_forward.3} parent=5 // pred_fallthru
        _
      %p453 = scmp.lt.s32.totalorder %s24, 8
      // Predicated region
      $region53: #{deconv_head_forward.3} parent=5 // pred_check
        %p454 = pneg %p453
      $region54: #{deconv_head_forward.3} parent=5 // pred_check_branch
        %456 = sbr.rel (%p454) target = $region56
      $region55: #{deconv_head_forward.3} parent=5 // pred_region
        // Predicated region
        $region57: #{deconv_head_forward.3} parent=55 // pred_check
          %p457 = pneg %p266
        $region58: #{deconv_head_forward.3} parent=55 // pred_check_branch
          %459 = sbr.rel (%p457) target = $region60
        $region59: #{deconv_head_forward.3} parent=55 // pred_region
          %p460 = scmp.lt.s32.totalorder %s31, 1
          %s461 = scalar_select %p460, %s31, 1
          %s462 = smul.addr %s461, 30
          %s463 = smul.addr %s462, 8
          %s464 = scalar_lea.vmem %s10, %s463
        $region60: #{deconv_head_forward.3} parent=55 // pred_fallthru
          _
      $region56: #{deconv_head_forward.3} parent=5 // pred_fallthru
        _
      %p465 = scmp.le.s32.totalorder 1, %s24
      %p466 = scmp.lt.s32.totalorder %s24, 9
      %p467 = pnand %p465, %p466
      %p468 = pneg %p467
      // Predicated region
      $region61: #{deconv_head_forward.3} parent=5 // pred_check
        _
      $region62: #{deconv_head_forward.3} parent=5 // pred_check_branch
        %470 = sbr.rel (%p467) target = $region64
      $region63: #{deconv_head_forward.3} parent=5 // pred_region
        %s471 = ssub.s32 %s24, 1
        // Predicated region
        $region65: #{deconv_head_forward.3} parent=63 // pred_check
          %p472 = pneg %p99
        $region66: #{deconv_head_forward.3} parent=63 // pred_check_branch
          %474 = sbr.rel (%p472) target = $region68
        $region67: #{deconv_head_forward.3} parent=63 // pred_region
          %475 = dma.done [#allocation3], 512
        $region68: #{deconv_head_forward.3} parent=63 // pred_fallthru
          _
        // Predicated region
        $region69: #{deconv_head_forward.3} parent=63 // pred_check
          %p476 = pneg %p120
        $region70: #{deconv_head_forward.3} parent=63 // pred_check_branch
          %478 = sbr.rel (%p476) target = $region72
        $region71: #{deconv_head_forward.3} parent=63 // pred_region
          %479 = dma.done [#allocation5], 512
        $region72: #{deconv_head_forward.3} parent=63 // pred_fallthru
          _
        // Predicated region
        $region73: #{deconv_head_forward.3} parent=63 // pred_check
          %p480 = pneg %p141
        $region74: #{deconv_head_forward.3} parent=63 // pred_check_branch
          %482 = sbr.rel (%p480) target = $region76
        $region75: #{deconv_head_forward.3} parent=63 // pred_region
          %483 = dma.done [#allocation5], 512
        $region76: #{deconv_head_forward.3} parent=63 // pred_fallthru
          _
        // Predicated region
        $region77: #{deconv_head_forward.3} parent=63 // pred_check
          %p484 = pneg %p162
        $region78: #{deconv_head_forward.3} parent=63 // pred_check_branch
          %486 = sbr.rel (%p484) target = $region80
        $region79: #{deconv_head_forward.3} parent=63 // pred_region
          %487 = dma.done [#allocation8], 512
        $region80: #{deconv_head_forward.3} parent=63 // pred_fallthru
          _
        // Predicated region
        $region81: #{deconv_head_forward.3} parent=63 // pred_check
          %p488 = pneg %p183
        $region82: #{deconv_head_forward.3} parent=63 // pred_check_branch
          %490 = sbr.rel (%p488) target = $region84
        $region83: #{deconv_head_forward.3} parent=63 // pred_region
          %491 = dma.done [#allocation8], 512
        $region84: #{deconv_head_forward.3} parent=63 // pred_fallthru
          _
        // Predicated region
        $region85: #{deconv_head_forward.3} parent=63 // pred_check
          %p492 = pneg %p204
        $region86: #{deconv_head_forward.3} parent=63 // pred_check_branch
          %494 = sbr.rel (%p492) target = $region88
        $region87: #{deconv_head_forward.3} parent=63 // pred_region
          %495 = dma.done [#allocation11], 512
        $region88: #{deconv_head_forward.3} parent=63 // pred_fallthru
          _
        // Predicated region
        $region89: #{deconv_head_forward.3} parent=63 // pred_check
          %p496 = pneg %p225
        $region90: #{deconv_head_forward.3} parent=63 // pred_check_branch
          %498 = sbr.rel (%p496) target = $region92
        $region91: #{deconv_head_forward.3} parent=63 // pred_region
          %499 = dma.done [#allocation11], 512
        $region92: #{deconv_head_forward.3} parent=63 // pred_fallthru
          _
        // Predicated region
        $region93: #{deconv_head_forward.3} parent=63 // pred_check
          %p500 = pneg %p246
        $region94: #{deconv_head_forward.3} parent=63 // pred_check_branch
          %502 = sbr.rel (%p500) target = $region96
        $region95: #{deconv_head_forward.3} parent=63 // pred_region
          %503 = dma.done [#allocation14], 512
        $region96: #{deconv_head_forward.3} parent=63 // pred_fallthru
          _
        %p504 = pneg %p57
        %p505 = pneg %p54
        %p506 = pneg %p78
        %p507 = pneg %p75
        %p508 = pneg %p99
        %p509 = pneg %p96
        %p510 = pneg %p120
        %p511 = pneg %p117
        %p512 = pneg %p141
        %p513 = pneg %p138
        %p514 = pneg %p162
        %p515 = pneg %p159
        %p516 = pneg %p183
        %p517 = pneg %p180
        %p518 = pneg %p204
        %p519 = pneg %p201
        %p520 = pneg %p225
        %p521 = pneg %p222
        %p522 = pneg %p246
        %p523 = pneg %p243
        %p524 = scmp.lt.s32.totalorder %s33, 1
        %s525 = scalar_select %p524, %s33, 1
        %s526 = smul.addr %s525, 30
        %s527 = smul.addr %s526, 8
        %s528 = scalar_lea.vmem %s10, %s527
        %p529 = pneg %p272
        %p530 = pneg %p269
        %p531 = pneg %p300
        %p532 = pneg %p297
        %p533 = scmp.lt.s32.totalorder %s33, 1
        %s534 = scalar_select %p533, %s33, 1
        %p535 = scmp.lt.s32.totalorder %s34, 3
        %s536 = scalar_select %p535, %s34, 3
        %s537 = smul.addr %s536, 24
        %s538 = smul.addr %s534, 96
        %s539 = sadd.s32 %s537, %s538
        %s540 = smul.addr %s539, 8
        %s541 = scalar_lea.vmem %s11, %s540
        %p542 = pneg %p328
        %p543 = pneg %p325
        %p544 = scmp.lt.s32.totalorder %s33, 1
        %s545 = scalar_select %p544, %s33, 1
        %p546 = scmp.lt.s32.totalorder %s34, 3
        %s547 = scalar_select %p546, %s34, 3
        %s548 = smul.addr %s545, 4
        %s549 = sadd.s32 %s547, %s548
        %s550 = smul.addr %s549, 2
        %s551 = scalar_lea.vmem %s12, %s550
        %p552 = scmp.lt.s32.totalorder %s33, 1
        %s553 = scalar_select %p552, %s33, 1
        %s554 = smul.addr %s553, 30
        %s555 = smul.addr %s554, 8
        %s556 = scalar_lea.vmem %s10, %s555
        %p557 = scmp.lt.s32.totalorder %s33, 1
        %s558 = scalar_select %p557, %s33, 1
        %p559 = scmp.lt.s32.totalorder %s34, 3
        %s560 = scalar_select %p559, %s34, 3
        %s561 = smul.addr %s560, 24
        %s562 = smul.addr %s558, 96
        %s563 = sadd.s32 %s561, %s562
        %s564 = smul.addr %s563, 8
        %s565 = scalar_lea.vmem %s11, %s564
        %p566 = scmp.lt.s32.totalorder %s33, 1
        %s567 = scalar_select %p566, %s33, 1
        %p568 = scmp.lt.s32.totalorder %s34, 3
        %s569 = scalar_select %p568, %s34, 3
        %s570 = smul.addr %s567, 4
        %s571 = sadd.s32 %s569, %s570
        %s572 = smul.addr %s571, 2
        %s573 = scalar_lea.vmem %s12, %s572
        %s574 = smul.u32 %s34, 40
        %s575 = scalar_lea.vmem %s556, %s574
        %v576 = vld [vmem:[%s575] sm:$0xff]
        %v577 = vld [vmem:[%s575 + $0x8] sm:$0xff]
        %v578 = vld [vmem:[%s575 + $0x10] sm:$0xff]
        %v579 = vld [vmem:[%s575 + $0x18] sm:$0xff]
        %v580 = vld [vmem:[%s575 + $0x20] sm:$0x3f]
        %s581 = sadd.s32 %s34, 1
        %s582 = smul.u32 %s581, 40
        %s583 = scalar_lea.vmem %s556, %s582
        %v584 = vld [vmem:[%s583] sm:$0xff]
        %v585 = vld [vmem:[%s583 + $0x8] sm:$0xff]
        %v586 = vld [vmem:[%s583 + $0x10] sm:$0xff]
        %v587 = vld [vmem:[%s583 + $0x18] sm:$0xff]
        %v588 = vld [vmem:[%s583 + $0x20] sm:$0x3f]
        %s589 = sadd.s32 %s34, 2
        %s590 = smul.u32 %s589, 40
        %s591 = scalar_lea.vmem %s556, %s590
        %v592 = vld [vmem:[%s591] sm:$0xff]
        %v593 = vld [vmem:[%s591 + $0x8] sm:$0xff]
        %v594 = vld [vmem:[%s591 + $0x10] sm:$0xff]
        %v595 = vld [vmem:[%s591 + $0x18] sm:$0xff]
        %v596 = vld [vmem:[%s591 + $0x20] sm:$0x3f]
        %v597 = vlaneseq
        %v598 = vshrl.u32 %v597, 7
        %v599 = vadd.s32 %v598, 8
        %v600 = vadd.s32 %v598, 16
        %vm601 = vcmp.lt.s32.totalorder %v598, 0
        %v602 = vsub.s32 0, %v598
        %v603 = vsel %vm601, %v602, %v598
        %v604 = vmul.u32.u64.compose %v603, 2863311531
        %v605 = vextract.low.u32 %v604
        %v606 = vextract.high.u32 %v604
        %v607 = vshrl.u32 %v606, 2
        %v608 = vmul.u32 %v607, 6
        %v609 = vsub.s32 %v603, %v608
        %v610 = vsub.s32 0, %v609
        %v611 = vsel %vm601, %v610, %v609
        %vm612 = vcmp.lt.s32.totalorder %v599, 0
        %v613 = vsub.s32 0, %v599
        %v614 = vsel %vm612, %v613, %v599
        %v615 = vmul.u32.u64.compose %v614, 2863311531
        %v616 = vextract.low.u32 %v615
        %v617 = vextract.high.u32 %v615
        %v618 = vshrl.u32 %v617, 2
        %v619 = vmul.u32 %v618, 6
        %v620 = vsub.s32 %v614, %v619
        %v621 = vsub.s32 0, %v620
        %v622 = vsel %vm612, %v621, %v620
        %vm623 = vcmp.lt.s32.totalorder %v600, 0
        %v624 = vsub.s32 0, %v600
        %v625 = vsel %vm623, %v624, %v600
        %v626 = vmul.u32.u64.compose %v625, 2863311531
        %v627 = vextract.low.u32 %v626
        %v628 = vextract.high.u32 %v626
        %v629 = vshrl.u32 %v628, 2
        %v630 = vmul.u32 %v629, 6
        %v631 = vsub.s32 %v625, %v630
        %v632 = vsub.s32 0, %v631
        %v633 = vsel %vm623, %v632, %v631
        %vm634 = vcmp.ne.s32.totalorder %v611, 0
        %vm635 = vcmp.ne.s32.totalorder %v622, 0
        %vm636 = vcmp.ne.s32.totalorder %v633, 0
        %vm637 = vcmp.lt.s32.totalorder %v611, 0
        %vm638 = vcmp.lt.s32.totalorder %v622, 0
        %vm639 = vcmp.lt.s32.totalorder %v633, 0
        %vm640 = vmand %vm637, %vm634
        %vm641 = vmand %vm638, %vm635
        %vm642 = vmand %vm639, %vm636
        %v643 = vadd.s32 %v611, 6
        %v644 = vadd.s32 %v622, 6
        %v645 = vadd.s32 %v633, 6
        %v646 = vsel %vm640, %v643, %v611
        %v647 = vsel %vm641, %v644, %v622
        %v648 = vsel %vm642, %v645, %v633
        %vm649 = vcmp.lt.s32.totalorder %v646, 4
        %vm650 = vcmp.lt.s32.totalorder %v647, 4
        %vm651 = vcmp.lt.s32.totalorder %v648, 4
        %vm656 = vcmask 1040384
        %v657 = vrot.slane %v584, 7
        %v658 = vrot.slane %v585, 7
        %v659 = vsel %vm656, %v657, %v658
        %v660 = vrot.slane %v586, 7
        %v661 = vsel %vm656, %v658, %v660
        %v662 = vrot.slane %v587, 7
        %v663 = vsel %vm656, %v660, %v662
        %664 = vrot.lane.b32.xlu0 %v657, 4
        %v665 = vpop.permute.xlu0 %664
        %666 = vrot.lane.b32.xlu0 %v659, 4
        %v667 = vpop.permute.xlu0 %666
        %668 = vrot.lane.b32.xlu0 %v661, 4
        %v669 = vpop.permute.xlu0 %668
        %670 = vrot.lane.b32.xlu0 %v663, 4
        %v671 = vpop.permute.xlu0 %670
        %vm676 = vcmask 1045504
        %v677 = vrot.slane %v584, 2
        %v678 = vrot.slane %v585, 2
        %v679 = vsel %vm676, %v677, %v678
        %v680 = vrot.slane %v586, 2
        %v681 = vsel %vm676, %v678, %v680
        %v682 = vrot.slane %v587, 2
        %v683 = vsel %vm676, %v680, %v682
        %684 = vrot.lane.b32.xlu0 %v677, 8
        %v685 = vpop.permute.xlu0 %684
        %686 = vrot.lane.b32.xlu0 %v679, 8
        %v687 = vpop.permute.xlu0 %686
        %688 = vrot.lane.b32.xlu0 %v681, 8
        %v689 = vpop.permute.xlu0 %688
        %690 = vrot.lane.b32.xlu0 %v683, 8
        %v691 = vpop.permute.xlu0 %690
        %vm696 = vcmask 1046528
        %v697 = vrot.slane %v584, 1
        %v698 = vrot.slane %v585, 1
        %v699 = vsel %vm696, %v697, %v698
        %v700 = vrot.slane %v586, 1
        %v701 = vsel %vm696, %v698, %v700
        %702 = vrot.lane.b32.xlu0 %v697, 12
        %v703 = vpop.permute.xlu0 %702
        %704 = vrot.lane.b32.xlu0 %v699, 12
        %v705 = vpop.permute.xlu0 %704
        %706 = vrot.lane.b32.xlu0 %v701, 12
        %v707 = vpop.permute.xlu0 %706
        %708 = vrot.lane.b32.xlu0 %v700, 12
        %v709 = vpop.permute.xlu0 %708
        %718 = vrot.lane.b32.xlu0 %v576, 16
        %v719 = vpop.permute.xlu0 %718
        %720 = vrot.lane.b32.xlu0 %v577, 16
        %v721 = vpop.permute.xlu0 %720
        %722 = vrot.lane.b32.xlu0 %v578, 16
        %v723 = vpop.permute.xlu0 %722
        %724 = vrot.lane.b32.xlu0 %v579, 16
        %v725 = vpop.permute.xlu0 %724
        %v730 = vrot.slane %v576, 7
        %v731 = vrot.slane %v577, 7
        %v732 = vsel %vm656, %v730, %v731
        %v733 = vrot.slane %v578, 7
        %v734 = vsel %vm656, %v731, %v733
        %v735 = vrot.slane %v579, 7
        %v736 = vsel %vm656, %v733, %v735
        %737 = vrot.lane.b32.xlu0 %v730, 20
        %v738 = vpop.permute.xlu0 %737
        %739 = vrot.lane.b32.xlu0 %v732, 20
        %v740 = vpop.permute.xlu0 %739
        %741 = vrot.lane.b32.xlu0 %v734, 20
        %v742 = vpop.permute.xlu0 %741
        %743 = vrot.lane.b32.xlu0 %v736, 20
        %v744 = vpop.permute.xlu0 %743
        %v749 = vrot.slane %v576, 2
        %v750 = vrot.slane %v577, 2
        %v751 = vsel %vm676, %v749, %v750
        %v752 = vrot.slane %v578, 2
        %v753 = vsel %vm676, %v750, %v752
        %v754 = vrot.slane %v579, 2
        %v755 = vsel %vm676, %v752, %v754
        %756 = vrot.lane.b32.xlu0 %v749, 24
        %v757 = vpop.permute.xlu0 %756
        %758 = vrot.lane.b32.xlu0 %v751, 24
        %v759 = vpop.permute.xlu0 %758
        %760 = vrot.lane.b32.xlu0 %v753, 24
        %v761 = vpop.permute.xlu0 %760
        %762 = vrot.lane.b32.xlu0 %v755, 24
        %v763 = vpop.permute.xlu0 %762
        %v768 = vrot.slane %v576, 1
        %v769 = vrot.slane %v577, 1
        %v770 = vsel %vm696, %v768, %v769
        %v771 = vrot.slane %v578, 1
        %v772 = vsel %vm696, %v769, %v771
        %773 = vrot.lane.b32.xlu0 %v768, 28
        %v774 = vpop.permute.xlu0 %773
        %775 = vrot.lane.b32.xlu0 %v770, 28
        %v776 = vpop.permute.xlu0 %775
        %777 = vrot.lane.b32.xlu0 %v772, 28
        %v778 = vpop.permute.xlu0 %777
        %779 = vrot.lane.b32.xlu0 %v771, 28
        %v780 = vpop.permute.xlu0 %779
        %vm785 = vcmask 31744
        %v786 = vsel %vm785, %v584, %v665
        %v787 = vsel %vm785, %v585, %v667
        %v788 = vsel %vm785, %v586, %v669
        %v789 = vsel %vm785, %v587, %v671
        %vm790 = vcmask 64512
        %v791 = vsel %vm790, %v786, %v685
        %v792 = vsel %vm790, %v787, %v687
        %v793 = vsel %vm790, %v788, %v689
        %v794 = vsel %vm790, %v789, %v691
        %vm795 = vcmask 97280
        %v796 = vsel %vm795, %v791, %v703
        %v797 = vsel %vm795, %v792, %v705
        %v798 = vsel %vm795, %v793, %v707
        %v799 = vsel %vm795, %v794, %v709
        %vm800 = vcmask 130048
        %v801 = vsel %vm800, %v796, %v719
        %v802 = vsel %vm800, %v797, %v721
        %v803 = vsel %vm800, %v798, %v723
        %v804 = vsel %vm800, %v799, %v725
        %vm805 = vcmask 162816
        %v806 = vsel %vm805, %v801, %v738
        %v807 = vsel %vm805, %v802, %v740
        %v808 = vsel %vm805, %v803, %v742
        %v809 = vsel %vm805, %v804, %v744
        %vm810 = vcmask 195584
        %v811 = vsel %vm810, %v806, %v757
        %v812 = vsel %vm810, %v807, %v759
        %v813 = vsel %vm810, %v808, %v761
        %v814 = vsel %vm810, %v809, %v763
        %vm815 = vcmask 228352
        %v816 = vsel %vm815, %v811, %v774
        %v817 = vsel %vm815, %v812, %v776
        %v818 = vsel %vm815, %v813, %v778
        %v819 = vsel %vm815, %v814, %v780
        %v820 = vld [vmem:[#allocation2] sm:$0xff]
        %v821 = vld [vmem:[#allocation2 + $0x8] sm:$0xff]
        %v822 = vld [vmem:[#allocation2 + $0x10] sm:$0xff]
        %v823 = vld [vmem:[#allocation2 + $0x18] sm:$0xff]
        %v828 = vrot.slane %v816, 7
        %v829 = vrot.slane %v817, 7
        %v830 = vsel %vm656, %v828, %v829
        %v831 = vrot.slane %v818, 7
        %v832 = vsel %vm656, %v829, %v831
        %v833 = vrot.slane %v819, 7
        %v834 = vsel %vm656, %v831, %v833
        %vm835 = vcmask 261120
        %v836 = vsel %vm835, %v830, 0
        %v838 = vsel %vm835, %v832, 0
        %v840 = vsel %vm835, %v834, 0
        %842 = vmatprep.subr.mxu0 0.0
        %843 = vmatpush1.msra.mxu0 %v820
        %844 = vmatprep.subr.mxu0 0.0
        %845 = vmatpush1.msra.mxu0 %v821
        %846 = vmatprep.subr.mxu0 0.0
        %847 = vmatpush1.msra.mxu0 %v822
        %848 = vmatprep.subr.mxu0 0.0
        %849 = vmatpush1.msra.mxu0 %v823
        %850 = vmatprep.subr.mxu0 0.0
        %851 = vmatpush1.msra.mxu0 0.0
        %852 = vmatprep.subr.mxu0 0.0
        %853 = vmatpush1.msra.mxu0 0.0
        %854 = vmatprep.subr.mxu0 0.0
        %855 = vmatpush1.msra.mxu0 0.0
        %856 = vmatprep.subr.mxu0 0.0
        %857 = vmatpush1.msra.mxu0 0.0
        %858 = vmatprep.subr.mxu0 0.0
        %859 = vmatpush1.msra.mxu0 0.0
        %860 = vmatprep.subr.mxu0 0.0
        %861 = vmatpush1.msra.mxu0 0.0
        %862 = vmatprep.subr.mxu0 0.0
        %863 = vmatpush1.msra.mxu0 0.0
        %864 = vmatprep.subr.mxu0 0.0
        %865 = vmatpush1.msra.mxu0 0.0
        %866 = vmatprep.subr.mxu0 0.0
        %867 = vmatpush1.msra.mxu0 0.0
        %868 = vmatprep.subr.mxu0 0.0
        %869 = vmatpush1.msra.mxu0 0.0
        %870 = vmatprep.subr.mxu0 0.0
        %871 = vmatpush1.msra.mxu0 0.0
        %872 = vmatprep.subr.mxu0 0.0
        %873 = vmatpush1.msra.mxu0 0.0
        %874 = vmatprep.subr.mxu0 0.0
        %875 = vmatpush1.msra.mxu0 0.0
        %876 = vmatprep.subr.mxu0 0.0
        %877 = vmatpush1.msra.mxu0 0.0
        %878 = vmatprep.subr.mxu0 0.0
        %879 = vmatpush1.msra.mxu0 0.0
        %880 = vmatprep.subr.mxu0 0.0
        %881 = vmatpush1.msra.mxu0 0.0
        %882 = vmatprep.subr.mxu0 0.0
        %883 = vmatpush1.msra.mxu0 0.0
        %884 = vmatprep.subr.mxu0 0.0
        %885 = vmatpush1.msra.mxu0 0.0
        %886 = vmatprep.subr.mxu0 0.0
        %887 = vmatpush1.msra.mxu0 0.0
        %888 = vmatprep.subr.mxu0 0.0
        %889 = vmatpush1.msra.mxu0 0.0
        %890 = vmatprep.subr.mxu0 0.0
        %891 = vmatpush1.msra.mxu0 0.0
        %892 = vmatprep.subr.mxu0 0.0
        %893 = vmatpush1.msra.mxu0 0.0
        %894 = vmatprep.subr.mxu0 0.0
        %895 = vmatpush1.msra.mxu0 0.0
        %896 = vmatprep.subr.mxu0 0.0
        %897 = vmatpush1.msra.mxu0 0.0
        %898 = vmatprep.subr.mxu0 0.0
        %899 = vmatpush1.msra.mxu0 0.0
        %900 = vmatprep.subr.mxu0 0.0
        %901 = vmatpush1.msra.mxu0 0.0
        %902 = vmatprep.subr.mxu0 0.0
        %903 = vmatpush1.msra.mxu0 0.0
        %904 = vmatprep.subr.mxu0 0.0
        %905 = vmatpush1.msra.mxu0 0.0
        %906 = vmatprep.mubr.f32.mxu0 0.0
        %907 = vmatmul.mubr.f32.gmra.mrb[0].mxu0 %v836
        %v908 = vpop.f32.mrb[0].mxu0
        %v909 = vadd.f32 0.0, %v908
        %v910 = vpop.f32.mrb[0].mxu0
        %911 = vmatprep.mubr.f32.mxu0 0.0
        %912 = vmatmul.mubr.f32.gmra.mrb[0].mxu0 %v838
        %v913 = vpop.f32.mrb[0].mxu0
        %v914 = vadd.f32 0.0, %v913
        %v915 = vpop.f32.mrb[0].mxu0
        %916 = vmatprep.mubr.f32.mxu0 0.0
        %917 = vmatmul.mubr.f32.gmra.mrb[0].mxu0 %v840
        %v918 = vpop.f32.mrb[0].mxu0
        %v919 = vadd.f32 0.0, %v918
        %v920 = vpop.f32.mrb[0].mxu0
        %921 = vdwg.mxu0
        %922 = vst.msk [vmem:[%s565] sm:$0xff] %vm790, %v909
        %923 = vst.msk [vmem:[%s565 + $0x8] sm:$0xff] %vm790, %v914
        %924 = vst.msk [vmem:[%s565 + $0x10] sm:$0xff] %vm790, %v919
        %v925 = vsel %vm649, 1, 0
        %v926 = vsel %vm650, 1, 0
        %v927 = vsel %vm651, 1, 0
        %vm928 = vcmp.eq.s32.totalorder %v925, 1
        %vm929 = vcmp.eq.s32.totalorder %v926, 1
        %vm930 = vcmp.eq.s32.totalorder %v927, 1
        %v931 = vsel %vm928, %v909, 0.0
        %v932 = vsel %vm929, %v914, 0.0
        %v933 = vsel %vm930, %v919, 0.0
        %v934 = vsel %vm790, %v931, 0.0
        %v935 = vsel %vm790, %v932, 0.0
        %v936 = vadd.f32 %v934, %v935
        %v937 = vsel %vm790, %v933, 0.0
        %v938 = vadd.f32 %v936, %v937
        %v939 = vrot.slane %v938, 4
        %v940 = vadd.f32 %v938, %v939
        %v941 = vrot.slane %v940, 2
        %v942 = vadd.f32 %v940, %v941
        %v943 = vrot.slane %v942, 1
        %v944 = vadd.f32 %v942, %v943
        %v945 = vadd.f32 %v944, 0.0
        %v946 = vmul.f32 %v931, %v931
        %v947 = vmul.f32 %v932, %v932
        %v948 = vmul.f32 %v933, %v933
        %v949 = vsel %vm790, %v946, 0.0
        %v950 = vsel %vm790, %v947, 0.0
        %v951 = vadd.f32 %v949, %v950
        %v952 = vsel %vm790, %v948, 0.0
        %v953 = vadd.f32 %v951, %v952
        %v954 = vrot.slane %v953, 4
        %v955 = vadd.f32 %v953, %v954
        %v956 = vrot.slane %v955, 2
        %v957 = vadd.f32 %v955, %v956
        %v958 = vrot.slane %v957, 1
        %v959 = vadd.f32 %v957, %v958
        %v960 = vadd.f32 %v959, 0.0
        %v961 = vrot.slane %v587, 1
        %v962 = vsel %vm696, %v700, %v961
        %963 = vrot.lane.b32.xlu0 %v962, 12
        %v964 = vpop.permute.xlu0 %963
        %v966 = vrot.slane %v579, 1
        %v967 = vsel %vm696, %v771, %v966
        %968 = vrot.lane.b32.xlu0 %v967, 28
        %v969 = vpop.permute.xlu0 %968
        %v971 = vsel %vm795, %v794, %v964
        %v972 = vsel %vm800, %v971, %v725
        %v973 = vsel %vm805, %v972, %v744
        %v974 = vsel %vm810, %v973, %v763
        %v975 = vsel %vm815, %v974, %v969
        %v976 = vld [vmem:[#allocation4] sm:$0xff]
        %v977 = vld [vmem:[#allocation4 + $0x8] sm:$0xff]
        %v978 = vld [vmem:[#allocation4 + $0x10] sm:$0xff]
        %v979 = vld [vmem:[#allocation4 + $0x18] sm:$0xff]
        %v980 = vsel %vm835, %v817, 0
        %v982 = vsel %vm835, %v818, 0
        %v985 = vsel %vm835, %v975, 0
        %987 = vmatprep.subr.mxu0 0.0
        %988 = vmatpush1.msra.mxu0 %v976
        %989 = vmatprep.subr.mxu0 0.0
        %990 = vmatpush1.msra.mxu0 %v977
        %991 = vmatprep.subr.mxu0 0.0
        %992 = vmatpush1.msra.mxu0 %v978
        %993 = vmatprep.subr.mxu0 0.0
        %994 = vmatpush1.msra.mxu0 %v979
        %995 = vmatprep.subr.mxu0 0.0
        %996 = vmatpush1.msra.mxu0 0.0
        %997 = vmatprep.subr.mxu0 0.0
        %998 = vmatpush1.msra.mxu0 0.0
        %999 = vmatprep.subr.mxu0 0.0
        %1000 = vmatpush1.msra.mxu0 0.0
        %1001 = vmatprep.subr.mxu0 0.0
        %1002 = vmatpush1.msra.mxu0 0.0
        %1003 = vmatprep.subr.mxu0 0.0
        %1004 = vmatpush1.msra.mxu0 0.0
        %1005 = vmatprep.subr.mxu0 0.0
        %1006 = vmatpush1.msra.mxu0 0.0
        %1007 = vmatprep.subr.mxu0 0.0
        %1008 = vmatpush1.msra.mxu0 0.0
        %1009 = vmatprep.subr.mxu0 0.0
        %1010 = vmatpush1.msra.mxu0 0.0
        %1011 = vmatprep.subr.mxu0 0.0
        %1012 = vmatpush1.msra.mxu0 0.0
        %1013 = vmatprep.subr.mxu0 0.0
        %1014 = vmatpush1.msra.mxu0 0.0
        %1015 = vmatprep.subr.mxu0 0.0
        %1016 = vmatpush1.msra.mxu0 0.0
        %1017 = vmatprep.subr.mxu0 0.0
        %1018 = vmatpush1.msra.mxu0 0.0
        %1019 = vmatprep.subr.mxu0 0.0
        %1020 = vmatpush1.msra.mxu0 0.0
        %1021 = vmatprep.subr.mxu0 0.0
        %1022 = vmatpush1.msra.mxu0 0.0
        %1023 = vmatprep.subr.mxu0 0.0
        %1024 = vmatpush1.msra.mxu0 0.0
        %1025 = vmatprep.subr.mxu0 0.0
        %1026 = vmatpush1.msra.mxu0 0.0
        %1027 = vmatprep.subr.mxu0 0.0
        %1028 = vmatpush1.msra.mxu0 0.0
        %1029 = vmatprep.subr.mxu0 0.0
        %1030 = vmatpush1.msra.mxu0 0.0
        %1031 = vmatprep.subr.mxu0 0.0
        %1032 = vmatpush1.msra.mxu0 0.0
        %1033 = vmatprep.subr.mxu0 0.0
        %1034 = vmatpush1.msra.mxu0 0.0
        %1035 = vmatprep.subr.mxu0 0.0
        %1036 = vmatpush1.msra.mxu0 0.0
        %1037 = vmatprep.subr.mxu0 0.0
        %1038 = vmatpush1.msra.mxu0 0.0
        %1039 = vmatprep.subr.mxu0 0.0
        %1040 = vmatpush1.msra.mxu0 0.0
        %1041 = vmatprep.subr.mxu0 0.0
        %1042 = vmatpush1.msra.mxu0 0.0
        %1043 = vmatprep.subr.mxu0 0.0
        %1044 = vmatpush1.msra.mxu0 0.0
        %1045 = vmatprep.subr.mxu0 0.0
        %1046 = vmatpush1.msra.mxu0 0.0
        %1047 = vmatprep.subr.mxu0 0.0
        %1048 = vmatpush1.msra.mxu0 0.0
        %1049 = vmatprep.subr.mxu0 0.0
        %1050 = vmatpush1.msra.mxu0 0.0
        %1051 = vmatprep.mubr.f32.mxu0 0.0
        %1052 = vmatmul.mubr.f32.gmra.mrb[0].mxu0 %v980
        %v1053 = vpop.f32.mrb[0].mxu0
        %v1054 = vadd.f32 0.0, %v1053
        %v1055 = vpop.f32.mrb[0].mxu0
        %1056 = vmatprep.mubr.f32.mxu0 0.0
        %1057 = vmatmul.mubr.f32.gmra.mrb[0].mxu0 %v982
        %v1058 = vpop.f32.mrb[0].mxu0
        %v1059 = vadd.f32 0.0, %v1058
        %v1060 = vpop.f32.mrb[0].mxu0
        %1061 = vmatprep.mubr.f32.mxu0 0.0
        %1062 = vmatmul.mubr.f32.gmra.mrb[0].mxu0 %v985
        %v1063 = vpop.f32.mrb[0].mxu0
        %v1064 = vadd.f32 0.0, %v1063
        %v1065 = vpop.f32.mrb[0].mxu0
        %1066 = vdwg.mxu0
        %s1067 = scalar_lea.vmem %s565, 24
        %1068 = vst.msk [vmem:[%s1067] sm:$0xff] %vm790, %v1054
        %1069 = vst.msk [vmem:[%s1067 + $0x8] sm:$0xff] %vm790, %v1059
        %1070 = vst.msk [vmem:[%s1067 + $0x10] sm:$0xff] %vm790, %v1064
        %v1071 = vsel %vm928, %v1054, 0.0
        %v1072 = vsel %vm929, %v1059, 0.0
        %v1073 = vsel %vm930, %v1064, 0.0
        %v1074 = vsel %vm790, %v1071, 0.0
        %v1075 = vsel %vm790, %v1072, 0.0
        %v1076 = vadd.f32 %v1074, %v1075
        %v1077 = vsel %vm790, %v1073, 0.0
        %v1078 = vadd.f32 %v1076, %v1077
        %v1079 = vrot.slane %v1078, 4
        %v1080 = vadd.f32 %v1078, %v1079
        %v1081 = vrot.slane %v1080, 2
        %v1082 = vadd.f32 %v1080, %v1081
        %v1083 = vrot.slane %v1082, 1
        %v1084 = vadd.f32 %v1082, %v1083
        %v1085 = vadd.f32 %v945, %v1084
        %v1086 = vmul.f32 %v1071, %v1071
        %v1087 = vmul.f32 %v1072, %v1072
        %v1088 = vmul.f32 %v1073, %v1073
        %v1089 = vsel %vm790, %v1086, 0.0
        %v1090 = vsel %vm790, %v1087, 0.0
        %v1091 = vadd.f32 %v1089, %v1090
        %v1092 = vsel %vm790, %v1088, 0.0
        %v1093 = vadd.f32 %v1091, %v1092
        %v1094 = vrot.slane %v1093, 4
        %v1095 = vadd.f32 %v1093, %v1094
        %v1096 = vrot.slane %v1095, 2
        %v1097 = vadd.f32 %v1095, %v1096
        %v1098 = vrot.slane %v1097, 1
        %v1099 = vadd.f32 %v1097, %v1098
        %v1100 = vadd.f32 %v960, %v1099
        %v1102 = vrot.slane %v588, 7
        %v1103 = vsel %vm656, %v662, %v1102
        %1104 = vrot.lane.b32.xlu0 %v658, 4
        %v1105 = vpop.permute.xlu0 %1104
        %1106 = vrot.lane.b32.xlu0 %v1103, 4
        %v1107 = vpop.permute.xlu0 %1106
        %1110 = vrot.lane.b32.xlu0 %v682, 8
        %v1111 = vpop.permute.xlu0 %1110
        %1113 = vrot.lane.b32.xlu0 %v961, 12
        %v1114 = vpop.permute.xlu0 %1113
        %1117 = vrot.lane.b32.xlu0 %v580, 16
        %v1118 = vpop.permute.xlu0 %1117
        %v1120 = vrot.slane %v580, 7
        %v1121 = vsel %vm656, %v735, %v1120
        %1122 = vrot.lane.b32.xlu0 %v731, 20
        %v1123 = vpop.permute.xlu0 %1122
        %1124 = vrot.lane.b32.xlu0 %v1121, 20
        %v1125 = vpop.permute.xlu0 %1124
        %1128 = vrot.lane.b32.xlu0 %v754, 24
        %v1129 = vpop.permute.xlu0 %1128
        %1131 = vrot.lane.b32.xlu0 %v966, 28
        %v1132 = vpop.permute.xlu0 %1131
        %v1134 = vsel %vm785, %v585, %v1105
        %v1135 = vsel %vm785, %v588, %v1107
        %v1136 = vsel %vm790, %v1134, %v687
        %v1137 = vsel %vm790, %v1135, %v1111
        %v1138 = vsel %vm795, %v1136, %v705
        %v1139 = vsel %vm795, %v1137, %v1114
        %v1140 = vsel %vm800, %v1138, %v721
        %v1141 = vsel %vm800, %v1139, %v1118
        %v1142 = vsel %vm805, %v1140, %v1123
        %v1143 = vsel %vm805, %v1141, %v1125
        %v1144 = vsel %vm810, %v1142, %v759
        %v1145 = vsel %vm810, %v1143, %v1129
        %v1146 = vsel %vm815, %v1144, %v776
        %v1147 = vsel %vm815, %v1145, %v1132
        %v1148 = vld [vmem:[#allocation6] sm:$0xff]
        %v1149 = vld [vmem:[#allocation6 + $0x8] sm:$0xff]
        %v1150 = vld [vmem:[#allocation6 + $0x10] sm:$0xff]
        %v1151 = vld [vmem:[#allocation6 + $0x18] sm:$0xff]
        %vm1154 = vcmask 1042432
        %v1155 = vrot.slane %v1146, 5
        %v1156 = vrot.slane %v818, 5
        %v1157 = vsel %vm1154, %v1155, %v1156
        %v1158 = vrot.slane %v975, 5
        %v1159 = vsel %vm1154, %v1156, %v1158
        %v1160 = vrot.slane %v1147, 5
        %v1161 = vsel %vm1154, %v1158, %v1160
        %v1162 = vsel %vm835, %v1157, 0
        %v1164 = vsel %vm835, %v1159, 0
        %v1166 = vsel %vm835, %v1161, 0
        %1168 = vmatprep.subr.mxu0 0.0
        %1169 = vmatpush1.msra.mxu0 %v1148
        %1170 = vmatprep.subr.mxu0 0.0
        %1171 = vmatpush1.msra.mxu0 %v1149
        %1172 = vmatprep.subr.mxu0 0.0
        %1173 = vmatpush1.msra.mxu0 %v1150
        %1174 = vmatprep.subr.mxu0 0.0
        %1175 = vmatpush1.msra.mxu0 %v1151
        %1176 = vmatprep.subr.mxu0 0.0
        %1177 = vmatpush1.msra.mxu0 0.0
        %1178 = vmatprep.subr.mxu0 0.0
        %1179 = vmatpush1.msra.mxu0 0.0
        %1180 = vmatprep.subr.mxu0 0.0
        %1181 = vmatpush1.msra.mxu0 0.0
        %1182 = vmatprep.subr.mxu0 0.0
        %1183 = vmatpush1.msra.mxu0 0.0
        %1184 = vmatprep.subr.mxu0 0.0
        %1185 = vmatpush1.msra.mxu0 0.0
        %1186 = vmatprep.subr.mxu0 0.0
        %1187 = vmatpush1.msra.mxu0 0.0
        %1188 = vmatprep.subr.mxu0 0.0
        %1189 = vmatpush1.msra.mxu0 0.0
        %1190 = vmatprep.subr.mxu0 0.0
        %1191 = vmatpush1.msra.mxu0 0.0
        %1192 = vmatprep.subr.mxu0 0.0
        %1193 = vmatpush1.msra.mxu0 0.0
        %1194 = vmatprep.subr.mxu0 0.0
        %1195 = vmatpush1.msra.mxu0 0.0
        %1196 = vmatprep.subr.mxu0 0.0
        %1197 = vmatpush1.msra.mxu0 0.0
        %1198 = vmatprep.subr.mxu0 0.0
        %1199 = vmatpush1.msra.mxu0 0.0
        %1200 = vmatprep.subr.mxu0 0.0
        %1201 = vmatpush1.msra.mxu0 0.0
        %1202 = vmatprep.subr.mxu0 0.0
        %1203 = vmatpush1.msra.mxu0 0.0
        %1204 = vmatprep.subr.mxu0 0.0
        %1205 = vmatpush1.msra.mxu0 0.0
        %1206 = vmatprep.subr.mxu0 0.0
        %1207 = vmatpush1.msra.mxu0 0.0
        %1208 = vmatprep.subr.mxu0 0.0
        %1209 = vmatpush1.msra.mxu0 0.0
        %1210 = vmatprep.subr.mxu0 0.0
        %1211 = vmatpush1.msra.mxu0 0.0
        %1212 = vmatprep.subr.mxu0 0.0
        %1213 = vmatpush1.msra.mxu0 0.0
        %1214 = vmatprep.subr.mxu0 0.0
        %1215 = vmatpush1.msra.mxu0 0.0
        %1216 = vmatprep.subr.mxu0 0.0
        %1217 = vmatpush1.msra.mxu0 0.0
        %1218 = vmatprep.subr.mxu0 0.0
        %1219 = vmatpush1.msra.mxu0 0.0
        %1220 = vmatprep.subr.mxu0 0.0
        %1221 = vmatpush1.msra.mxu0 0.0
        %1222 = vmatprep.subr.mxu0 0.0
        %1223 = vmatpush1.msra.mxu0 0.0
        %1224 = vmatprep.subr.mxu0 0.0
        %1225 = vmatpush1.msra.mxu0 0.0
        %1226 = vmatprep.subr.mxu0 0.0
        %1227 = vmatpush1.msra.mxu0 0.0
        %1228 = vmatprep.subr.mxu0 0.0
        %1229 = vmatpush1.msra.mxu0 0.0
        %1230 = vmatprep.subr.mxu0 0.0
        %1231 = vmatpush1.msra.mxu0 0.0
        %1232 = vmatprep.mubr.f32.mxu0 0.0
        %1233 = vmatmul.mubr.f32.gmra.mrb[0].mxu0 %v1162
        %v1234 = vpop.f32.mrb[0].mxu0
        %v1235 = vadd.f32 0.0, %v1234
        %v1236 = vpop.f32.mrb[0].mxu0
        %1237 = vmatprep.mubr.f32.mxu0 0.0
        %1238 = vmatmul.mubr.f32.gmra.mrb[0].mxu0 %v1164
        %v1239 = vpop.f32.mrb[0].mxu0
        %v1240 = vadd.f32 0.0, %v1239
        %v1241 = vpop.f32.mrb[0].mxu0
        %1242 = vmatprep.mubr.f32.mxu0 0.0
        %1243 = vmatmul.mubr.f32.gmra.mrb[0].mxu0 %v1166
        %v1244 = vpop.f32.mrb[0].mxu0
        %v1245 = vadd.f32 0.0, %v1244
        %v1246 = vpop.f32.mrb[0].mxu0
        %1247 = vdwg.mxu0
        %s1248 = scalar_lea.vmem %s565, 48
        %1249 = vst.msk [vmem:[%s1248] sm:$0xff] %vm790, %v1235
        %1250 = vst.msk [vmem:[%s1248 + $0x8] sm:$0xff] %vm790, %v1240
        %1251 = vst.msk [vmem:[%s1248 + $0x10] sm:$0xff] %vm790, %v1245
        %v1252 = vsel %vm928, %v1235, 0.0
        %v1253 = vsel %vm929, %v1240, 0.0
        %v1254 = vsel %vm930, %v1245, 0.0
        %v1255 = vsel %vm790, %v1252, 0.0
        %v1256 = vsel %vm790, %v1253, 0.0
        %v1257 = vadd.f32 %v1255, %v1256
        %v1258 = vsel %vm790, %v1254, 0.0
        %v1259 = vadd.f32 %v1257, %v1258
        %v1260 = vrot.slane %v1259, 4
        %v1261 = vadd.f32 %v1259, %v1260
        %v1262 = vrot.slane %v1261, 2
        %v1263 = vadd.f32 %v1261, %v1262
        %v1264 = vrot.slane %v1263, 1
        %v1265 = vadd.f32 %v1263, %v1264
        %v1266 = vadd.f32 %v1085, %v1265
        %v1267 = vmul.f32 %v1252, %v1252
        %v1268 = vmul.f32 %v1253, %v1253
        %v1269 = vmul.f32 %v1254, %v1254
        %v1270 = vsel %vm790, %v1267, 0.0
        %v1271 = vsel %vm790, %v1268, 0.0
        %v1272 = vadd.f32 %v1270, %v1271
        %v1273 = vsel %vm790, %v1269, 0.0
        %v1274 = vadd.f32 %v1272, %v1273
        %v1275 = vrot.slane %v1274, 4
        %v1276 = vadd.f32 %v1274, %v1275
        %v1277 = vrot.slane %v1276, 2
        %v1278 = vadd.f32 %v1276, %v1277
        %v1279 = vrot.slane %v1278, 1
        %v1280 = vadd.f32 %v1278, %v1279
        %v1281 = vadd.f32 %v1100, %v1280
        %1282 = vrot.lane.b32.xlu0 %v678, 8
        %v1283 = vpop.permute.xlu0 %1282
        %1285 = vrot.lane.b32.xlu0 %v750, 24
        %v1286 = vpop.permute.xlu0 %1285
        %v1288 = vsel %vm790, %v1134, %v1283
        %v1289 = vsel %vm795, %v1288, %v705
        %v1290 = vsel %vm800, %v1289, %v721
        %v1291 = vsel %vm805, %v1290, %v1123
        %v1292 = vsel %vm810, %v1291, %v1286
        %v1293 = vsel %vm815, %v1292, %v776
        %v1294 = vld [vmem:[#allocation7] sm:$0xff]
        %v1295 = vld [vmem:[#allocation7 + $0x8] sm:$0xff]
        %v1296 = vld [vmem:[#allocation7 + $0x10] sm:$0xff]
        %v1297 = vld [vmem:[#allocation7 + $0x18] sm:$0xff]
        %vm1299 = vcmask 1041408
        %v1300 = vrot.slane %v1293, 6
        %v1301 = vrot.slane %v818, 6
        %v1302 = vsel %vm1299, %v1300, %v1301
        %v1303 = vrot.slane %v975, 6
        %v1304 = vsel %vm1299, %v1301, %v1303
        %v1305 = vrot.slane %v1147, 6
        %v1306 = vsel %vm1299, %v1303, %v1305
        %v1307 = vsel %vm835, %v1302, 0
        %v1309 = vsel %vm835, %v1304, 0
        %v1311 = vsel %vm835, %v1306, 0
        %1313 = vmatprep.subr.mxu0 0.0
        %1314 = vmatpush1.msra.mxu0 %v1294
        %1315 = vmatprep.subr.mxu0 0.0
        %1316 = vmatpush1.msra.mxu0 %v1295
        %1317 = vmatprep.subr.mxu0 0.0
        %1318 = vmatpush1.msra.mxu0 %v1296
        %1319 = vmatprep.subr.mxu0 0.0
        %1320 = vmatpush1.msra.mxu0 %v1297
        %1321 = vmatprep.subr.mxu0 0.0
        %1322 = vmatpush1.msra.mxu0 0.0
        %1323 = vmatprep.subr.mxu0 0.0
        %1324 = vmatpush1.msra.mxu0 0.0
        %1325 = vmatprep.subr.mxu0 0.0
        %1326 = vmatpush1.msra.mxu0 0.0
        %1327 = vmatprep.subr.mxu0 0.0
        %1328 = vmatpush1.msra.mxu0 0.0
        %1329 = vmatprep.subr.mxu0 0.0
        %1330 = vmatpush1.msra.mxu0 0.0
        %1331 = vmatprep.subr.mxu0 0.0
        %1332 = vmatpush1.msra.mxu0 0.0
        %1333 = vmatprep.subr.mxu0 0.0
        %1334 = vmatpush1.msra.mxu0 0.0
        %1335 = vmatprep.subr.mxu0 0.0
        %1336 = vmatpush1.msra.mxu0 0.0
        %1337 = vmatprep.subr.mxu0 0.0
        %1338 = vmatpush1.msra.mxu0 0.0
        %1339 = vmatprep.subr.mxu0 0.0
        %1340 = vmatpush1.msra.mxu0 0.0
        %1341 = vmatprep.subr.mxu0 0.0
        %1342 = vmatpush1.msra.mxu0 0.0
        %1343 = vmatprep.subr.mxu0 0.0
        %1344 = vmatpush1.msra.mxu0 0.0
        %1345 = vmatprep.subr.mxu0 0.0
        %1346 = vmatpush1.msra.mxu0 0.0
        %1347 = vmatprep.subr.mxu0 0.0
        %1348 = vmatpush1.msra.mxu0 0.0
        %1349 = vmatprep.subr.mxu0 0.0
        %1350 = vmatpush1.msra.mxu0 0.0
        %1351 = vmatprep.subr.mxu0 0.0
        %1352 = vmatpush1.msra.mxu0 0.0
        %1353 = vmatprep.subr.mxu0 0.0
        %1354 = vmatpush1.msra.mxu0 0.0
        %1355 = vmatprep.subr.mxu0 0.0
        %1356 = vmatpush1.msra.mxu0 0.0
        %1357 = vmatprep.subr.mxu0 0.0
        %1358 = vmatpush1.msra.mxu0 0.0
        %1359 = vmatprep.subr.mxu0 0.0
        %1360 = vmatpush1.msra.mxu0 0.0
        %1361 = vmatprep.subr.mxu0 0.0
        %1362 = vmatpush1.msra.mxu0 0.0
        %1363 = vmatprep.subr.mxu0 0.0
        %1364 = vmatpush1.msra.mxu0 0.0
        %1365 = vmatprep.subr.mxu0 0.0
        %1366 = vmatpush1.msra.mxu0 0.0
        %1367 = vmatprep.subr.mxu0 0.0
        %1368 = vmatpush1.msra.mxu0 0.0
        %1369 = vmatprep.subr.mxu0 0.0
        %1370 = vmatpush1.msra.mxu0 0.0
        %1371 = vmatprep.subr.mxu0 0.0
        %1372 = vmatpush1.msra.mxu0 0.0
        %1373 = vmatprep.subr.mxu0 0.0
        %1374 = vmatpush1.msra.mxu0 0.0
        %1375 = vmatprep.subr.mxu0 0.0
        %1376 = vmatpush1.msra.mxu0 0.0
        %1377 = vmatprep.mubr.f32.mxu0 0.0
        %1378 = vmatmul.mubr.f32.gmra.mrb[0].mxu0 %v1307
        %v1379 = vpop.f32.mrb[0].mxu0
        %v1380 = vadd.f32 0.0, %v1379
        %v1381 = vpop.f32.mrb[0].mxu0
        %1382 = vmatprep.mubr.f32.mxu0 0.0
        %1383 = vmatmul.mubr.f32.gmra.mrb[0].mxu0 %v1309
        %v1384 = vpop.f32.mrb[0].mxu0
        %v1385 = vadd.f32 0.0, %v1384
        %v1386 = vpop.f32.mrb[0].mxu0
        %1387 = vmatprep.mubr.f32.mxu0 0.0
        %1388 = vmatmul.mubr.f32.gmra.mrb[0].mxu0 %v1311
        %v1389 = vpop.f32.mrb[0].mxu0
        %v1390 = vadd.f32 0.0, %v1389
        %v1391 = vpop.f32.mrb[0].mxu0
        %1392 = vdwg.mxu0
        %s1393 = scalar_lea.vmem %s565, 72
        %1394 = vst.msk [vmem:[%s1393] sm:$0xff] %vm790, %v1380
        %1395 = vst.msk [vmem:[%s1393 + $0x8] sm:$0xff] %vm790, %v1385
        %1396 = vst.msk [vmem:[%s1393 + $0x10] sm:$0xff] %vm790, %v1390
        %v1397 = vsel %vm928, %v1380, 0.0
        %v1398 = vsel %vm929, %v1385, 0.0
        %v1399 = vsel %vm930, %v1390, 0.0
        %v1400 = vsel %vm790, %v1397, 0.0
        %v1401 = vsel %vm790, %v1398, 0.0
        %v1402 = vadd.f32 %v1400, %v1401
        %v1403 = vsel %vm790, %v1399, 0.0
        %v1404 = vadd.f32 %v1402, %v1403
        %v1405 = vrot.slane %v1404, 4
        %v1406 = vadd.f32 %v1404, %v1405
        %v1407 = vrot.slane %v1406, 2
        %v1408 = vadd.f32 %v1406, %v1407
        %v1409 = vrot.slane %v1408, 1
        %v1410 = vadd.f32 %v1408, %v1409
        %v1411 = vadd.f32 %v1266, %v1410
        %v1412 = vmul.f32 %v1397, %v1397
        %v1413 = vmul.f32 %v1398, %v1398
        %v1414 = vmul.f32 %v1399, %v1399
        %v1415 = vsel %vm790, %v1412, 0.0
        %v1416 = vsel %vm790, %v1413, 0.0
        %v1417 = vadd.f32 %v1415, %v1416
        %v1418 = vsel %vm790, %v1414, 0.0
        %v1419 = vadd.f32 %v1417, %v1418
        %v1420 = vrot.slane %v1419, 4
        %v1421 = vadd.f32 %v1419, %v1420
        %v1422 = vrot.slane %v1421, 2
        %v1423 = vadd.f32 %v1421, %v1422
        %v1424 = vrot.slane %v1423, 1
        %v1425 = vadd.f32 %v1423, %v1424
        %v1426 = vadd.f32 %v1281, %v1425
        %v1431 = vrot.slane %v592, 7
        %v1432 = vrot.slane %v593, 7
        %v1433 = vsel %vm656, %v1431, %v1432
        %v1434 = vrot.slane %v594, 7
        %v1435 = vsel %vm656, %v1432, %v1434
        %v1436 = vrot.slane %v595, 7
        %v1437 = vsel %vm656, %v1434, %v1436
        %1438 = vrot.lane.b32.xlu0 %v1431, 4
        %v1439 = vpop.permute.xlu0 %1438
        %1440 = vrot.lane.b32.xlu0 %v1433, 4
        %v1441 = vpop.permute.xlu0 %1440
        %1442 = vrot.lane.b32.xlu0 %v1435, 4
        %v1443 = vpop.permute.xlu0 %1442
        %1444 = vrot.lane.b32.xlu0 %v1437, 4
        %v1445 = vpop.permute.xlu0 %1444
        %v1450 = vrot.slane %v592, 2
        %v1451 = vrot.slane %v593, 2
        %v1452 = vsel %vm676, %v1450, %v1451
        %v1453 = vrot.slane %v594, 2
        %v1454 = vsel %vm676, %v1451, %v1453
        %v1455 = vrot.slane %v595, 2
        %v1456 = vsel %vm676, %v1453, %v1455
        %1457 = vrot.lane.b32.xlu0 %v1450, 8
        %v1458 = vpop.permute.xlu0 %1457
        %1459 = vrot.lane.b32.xlu0 %v1452, 8
        %v1460 = vpop.permute.xlu0 %1459
        %1461 = vrot.lane.b32.xlu0 %v1454, 8
        %v1462 = vpop.permute.xlu0 %1461
        %1463 = vrot.lane.b32.xlu0 %v1456, 8
        %v1464 = vpop.permute.xlu0 %1463
        %v1469 = vrot.slane %v592, 1
        %v1470 = vrot.slane %v593, 1
        %v1471 = vsel %vm696, %v1469, %v1470
        %v1472 = vrot.slane %v594, 1
        %v1473 = vsel %vm696, %v1470, %v1472
        %1474 = vrot.lane.b32.xlu0 %v1469, 12
        %v1475 = vpop.permute.xlu0 %1474
        %1476 = vrot.lane.b32.xlu0 %v1471, 12
        %v1477 = vpop.permute.xlu0 %1476
        %1478 = vrot.lane.b32.xlu0 %v1473, 12
        %v1479 = vpop.permute.xlu0 %1478
        %1480 = vrot.lane.b32.xlu0 %v1472, 12
        %v1481 = vpop.permute.xlu0 %1480
        %1486 = vrot.lane.b32.xlu0 %v584, 16
        %v1487 = vpop.permute.xlu0 %1486
        %1488 = vrot.lane.b32.xlu0 %v585, 16
        %v1489 = vpop.permute.xlu0 %1488
        %1490 = vrot.lane.b32.xlu0 %v586, 16
        %v1491 = vpop.permute.xlu0 %1490
        %1492 = vrot.lane.b32.xlu0 %v587, 16
        %v1493 = vpop.permute.xlu0 %1492
        %1498 = vrot.lane.b32.xlu0 %v657, 20
        %v1499 = vpop.permute.xlu0 %1498
        %1500 = vrot.lane.b32.xlu0 %v659, 20
        %v1501 = vpop.permute.xlu0 %1500
        %1502 = vrot.lane.b32.xlu0 %v661, 20
        %v1503 = vpop.permute.xlu0 %1502
        %1504 = vrot.lane.b32.xlu0 %v663, 20
        %v1505 = vpop.permute.xlu0 %1504
        %1510 = vrot.lane.b32.xlu0 %v677, 24
        %v1511 = vpop.permute.xlu0 %1510
        %1512 = vrot.lane.b32.xlu0 %v679, 24
        %v1513 = vpop.permute.xlu0 %1512
        %1514 = vrot.lane.b32.xlu0 %v681, 24
        %v1515 = vpop.permute.xlu0 %1514
        %1516 = vrot.lane.b32.xlu0 %v683, 24
        %v1517 = vpop.permute.xlu0 %1516
        %1522 = vrot.lane.b32.xlu0 %v697, 28
        %v1523 = vpop.permute.xlu0 %1522
        %1524 = vrot.lane.b32.xlu0 %v699, 28
        %v1525 = vpop.permute.xlu0 %1524
        %1526 = vrot.lane.b32.xlu0 %v701, 28
        %v1527 = vpop.permute.xlu0 %1526
        %1528 = vrot.lane.b32.xlu0 %v700, 28
        %v1529 = vpop.permute.xlu0 %1528
        %v1534 = vsel %vm785, %v592, %v1439
        %v1535 = vsel %vm785, %v593, %v1441
        %v1536 = vsel %vm785, %v594, %v1443
        %v1537 = vsel %vm785, %v595, %v1445
        %v1538 = vsel %vm790, %v1534, %v1458
        %v1539 = vsel %vm790, %v1535, %v1460
        %v1540 = vsel %vm790, %v1536, %v1462
        %v1541 = vsel %vm790, %v1537, %v1464
        %v1542 = vsel %vm795, %v1538, %v1475
        %v1543 = vsel %vm795, %v1539, %v1477
        %v1544 = vsel %vm795, %v1540, %v1479
        %v1545 = vsel %vm795, %v1541, %v1481
        %v1546 = vsel %vm800, %v1542, %v1487
        %v1547 = vsel %vm800, %v1543, %v1489
        %v1548 = vsel %vm800, %v1544, %v1491
        %v1549 = vsel %vm800, %v1545, %v1493
        %v1550 = vsel %vm805, %v1546, %v1499
        %v1551 = vsel %vm805, %v1547, %v1501
        %v1552 = vsel %vm805, %v1548, %v1503
        %v1553 = vsel %vm805, %v1549, %v1505
        %v1554 = vsel %vm810, %v1550, %v1511
        %v1555 = vsel %vm810, %v1551, %v1513
        %v1556 = vsel %vm810, %v1552, %v1515
        %v1557 = vsel %vm810, %v1553, %v1517
        %v1558 = vsel %vm815, %v1554, %v1523
        %v1559 = vsel %vm815, %v1555, %v1525
        %v1560 = vsel %vm815, %v1556, %v1527
        %v1561 = vsel %vm815, %v1557, %v1529
        %v1562 = vld [vmem:[#allocation9] sm:$0xff]
        %v1563 = vld [vmem:[#allocation9 + $0x8] sm:$0xff]
        %v1564 = vld [vmem:[#allocation9 + $0x10] sm:$0xff]
        %v1565 = vld [vmem:[#allocation9 + $0x18] sm:$0xff]
        %v1570 = vrot.slane %v1558, 7
        %v1571 = vrot.slane %v1559, 7
        %v1572 = vsel %vm656, %v1570, %v1571
        %v1573 = vrot.slane %v1560, 7
        %v1574 = vsel %vm656, %v1571, %v1573
        %v1575 = vrot.slane %v1561, 7
        %v1576 = vsel %vm656, %v1573, %v1575
        %v1577 = vsel %vm835, %v1572, 0
        %v1579 = vsel %vm835, %v1574, 0
        %v1581 = vsel %vm835, %v1576, 0
        %1583 = vmatprep.subr.mxu0 0.0
        %1584 = vmatpush1.msra.mxu0 %v1562
        %1585 = vmatprep.subr.mxu0 0.0
        %1586 = vmatpush1.msra.mxu0 %v1563
        %1587 = vmatprep.subr.mxu0 0.0
        %1588 = vmatpush1.msra.mxu0 %v1564
        %1589 = vmatprep.subr.mxu0 0.0
        %1590 = vmatpush1.msra.mxu0 %v1565
        %1591 = vmatprep.subr.mxu0 0.0
        %1592 = vmatpush1.msra.mxu0 0.0
        %1593 = vmatprep.subr.mxu0 0.0
        %1594 = vmatpush1.msra.mxu0 0.0
        %1595 = vmatprep.subr.mxu0 0.0
        %1596 = vmatpush1.msra.mxu0 0.0
        %1597 = vmatprep.subr.mxu0 0.0
        %1598 = vmatpush1.msra.mxu0 0.0
        %1599 = vmatprep.subr.mxu0 0.0
        %1600 = vmatpush1.msra.mxu0 0.0
        %1601 = vmatprep.subr.mxu0 0.0
        %1602 = vmatpush1.msra.mxu0 0.0
        %1603 = vmatprep.subr.mxu0 0.0
        %1604 = vmatpush1.msra.mxu0 0.0
        %1605 = vmatprep.subr.mxu0 0.0
        %1606 = vmatpush1.msra.mxu0 0.0
        %1607 = vmatprep.subr.mxu0 0.0
        %1608 = vmatpush1.msra.mxu0 0.0
        %1609 = vmatprep.subr.mxu0 0.0
        %1610 = vmatpush1.msra.mxu0 0.0
        %1611 = vmatprep.subr.mxu0 0.0
        %1612 = vmatpush1.msra.mxu0 0.0
        %1613 = vmatprep.subr.mxu0 0.0
        %1614 = vmatpush1.msra.mxu0 0.0
        %1615 = vmatprep.subr.mxu0 0.0
        %1616 = vmatpush1.msra.mxu0 0.0
        %1617 = vmatprep.subr.mxu0 0.0
        %1618 = vmatpush1.msra.mxu0 0.0
        %1619 = vmatprep.subr.mxu0 0.0
        %1620 = vmatpush1.msra.mxu0 0.0
        %1621 = vmatprep.subr.mxu0 0.0
        %1622 = vmatpush1.msra.mxu0 0.0
        %1623 = vmatprep.subr.mxu0 0.0
        %1624 = vmatpush1.msra.mxu0 0.0
        %1625 = vmatprep.subr.mxu0 0.0
        %1626 = vmatpush1.msra.mxu0 0.0
        %1627 = vmatprep.subr.mxu0 0.0
        %1628 = vmatpush1.msra.mxu0 0.0
        %1629 = vmatprep.subr.mxu0 0.0
        %1630 = vmatpush1.msra.mxu0 0.0
        %1631 = vmatprep.subr.mxu0 0.0
        %1632 = vmatpush1.msra.mxu0 0.0
        %1633 = vmatprep.subr.mxu0 0.0
        %1634 = vmatpush1.msra.mxu0 0.0
        %1635 = vmatprep.subr.mxu0 0.0
        %1636 = vmatpush1.msra.mxu0 0.0
        %1637 = vmatprep.subr.mxu0 0.0
        %1638 = vmatpush1.msra.mxu0 0.0
        %1639 = vmatprep.subr.mxu0 0.0
        %1640 = vmatpush1.msra.mxu0 0.0
        %1641 = vmatprep.subr.mxu0 0.0
        %1642 = vmatpush1.msra.mxu0 0.0
        %1643 = vmatprep.subr.mxu0 0.0
        %1644 = vmatpush1.msra.mxu0 0.0
        %1645 = vmatprep.subr.mxu0 0.0
        %1646 = vmatpush1.msra.mxu0 0.0
        %1647 = vmatprep.mubr.f32.mxu0 0.0
        %1648 = vmatmul.mubr.f32.gmra.mrb[0].mxu0 %v1577
        %v1649 = vpop.f32.mrb[0].mxu0
        %v1650 = vadd.f32 0.0, %v1649
        %v1651 = vpop.f32.mrb[0].mxu0
        %1652 = vmatprep.mubr.f32.mxu0 0.0
        %1653 = vmatmul.mubr.f32.gmra.mrb[0].mxu0 %v1579
        %v1654 = vpop.f32.mrb[0].mxu0
        %v1655 = vadd.f32 0.0, %v1654
        %v1656 = vpop.f32.mrb[0].mxu0
        %1657 = vmatprep.mubr.f32.mxu0 0.0
        %1658 = vmatmul.mubr.f32.gmra.mrb[0].mxu0 %v1581
        %v1659 = vpop.f32.mrb[0].mxu0
        %v1660 = vadd.f32 0.0, %v1659
        %v1661 = vpop.f32.mrb[0].mxu0
        %1662 = vdwg.mxu0
        %s1663 = scalar_lea.vmem %s565, 96
        %1664 = vst.msk [vmem:[%s1663] sm:$0xff] %vm790, %v1650
        %1665 = vst.msk [vmem:[%s1663 + $0x8] sm:$0xff] %vm790, %v1655
        %1666 = vst.msk [vmem:[%s1663 + $0x10] sm:$0xff] %vm790, %v1660
        %v1667 = vsel %vm928, %v1650, 0.0
        %v1668 = vsel %vm929, %v1655, 0.0
        %v1669 = vsel %vm930, %v1660, 0.0
        %v1670 = vsel %vm790, %v1667, 0.0
        %v1671 = vsel %vm790, %v1668, 0.0
        %v1672 = vadd.f32 %v1670, %v1671
        %v1673 = vsel %vm790, %v1669, 0.0
        %v1674 = vadd.f32 %v1672, %v1673
        %v1675 = vrot.slane %v1674, 4
        %v1676 = vadd.f32 %v1674, %v1675
        %v1677 = vrot.slane %v1676, 2
        %v1678 = vadd.f32 %v1676, %v1677
        %v1679 = vrot.slane %v1678, 1
        %v1680 = vadd.f32 %v1678, %v1679
        %v1681 = vadd.f32 %v1411, %v1680
        %v1682 = vmul.f32 %v1667, %v1667
        %v1683 = vmul.f32 %v1668, %v1668
        %v1684 = vmul.f32 %v1669, %v1669
        %v1685 = vsel %vm790, %v1682, 0.0
        %v1686 = vsel %vm790, %v1683, 0.0
        %v1687 = vadd.f32 %v1685, %v1686
        %v1688 = vsel %vm790, %v1684, 0.0
        %v1689 = vadd.f32 %v1687, %v1688
        %v1690 = vrot.slane %v1689, 4
        %v1691 = vadd.f32 %v1689, %v1690
        %v1692 = vrot.slane %v1691, 2
        %v1693 = vadd.f32 %v1691, %v1692
        %v1694 = vrot.slane %v1693, 1
        %v1695 = vadd.f32 %v1693, %v1694
        %v1696 = vadd.f32 %v1426, %v1695
        %v1697 = vrot.slane %v595, 1
        %v1698 = vsel %vm696, %v1472, %v1697
        %1699 = vrot.lane.b32.xlu0 %v1698, 12
        %v1700 = vpop.permute.xlu0 %1699
        %1702 = vrot.lane.b32.xlu0 %v962, 28
        %v1703 = vpop.permute.xlu0 %1702
        %v1705 = vsel %vm795, %v1541, %v1700
        %v1706 = vsel %vm800, %v1705, %v1493
        %v1707 = vsel %vm805, %v1706, %v1505
        %v1708 = vsel %vm810, %v1707, %v1517
        %v1709 = vsel %vm815, %v1708, %v1703
        %v1710 = vld [vmem:[#allocation10] sm:$0xff]
        %v1711 = vld [vmem:[#allocation10 + $0x8] sm:$0xff]
        %v1712 = vld [vmem:[#allocation10 + $0x10] sm:$0xff]
        %v1713 = vld [vmem:[#allocation10 + $0x18] sm:$0xff]
        %v1714 = vsel %vm835, %v1559, 0
        %v1716 = vsel %vm835, %v1560, 0
        %v1719 = vsel %vm835, %v1709, 0
        %1721 = vmatprep.subr.mxu0 0.0
        %1722 = vmatpush1.msra.mxu0 %v1710
        %1723 = vmatprep.subr.mxu0 0.0
        %1724 = vmatpush1.msra.mxu0 %v1711
        %1725 = vmatprep.subr.mxu0 0.0
        %1726 = vmatpush1.msra.mxu0 %v1712
        %1727 = vmatprep.subr.mxu0 0.0
        %1728 = vmatpush1.msra.mxu0 %v1713
        %1729 = vmatprep.subr.mxu0 0.0
        %1730 = vmatpush1.msra.mxu0 0.0
        %1731 = vmatprep.subr.mxu0 0.0
        %1732 = vmatpush1.msra.mxu0 0.0
        %1733 = vmatprep.subr.mxu0 0.0
        %1734 = vmatpush1.msra.mxu0 0.0
        %1735 = vmatprep.subr.mxu0 0.0
        %1736 = vmatpush1.msra.mxu0 0.0
        %1737 = vmatprep.subr.mxu0 0.0
        %1738 = vmatpush1.msra.mxu0 0.0
        %1739 = vmatprep.subr.mxu0 0.0
        %1740 = vmatpush1.msra.mxu0 0.0
        %1741 = vmatprep.subr.mxu0 0.0
        %1742 = vmatpush1.msra.mxu0 0.0
        %1743 = vmatprep.subr.mxu0 0.0
        %1744 = vmatpush1.msra.mxu0 0.0
        %1745 = vmatprep.subr.mxu0 0.0
        %1746 = vmatpush1.msra.mxu0 0.0
        %1747 = vmatprep.subr.mxu0 0.0
        %1748 = vmatpush1.msra.mxu0 0.0
        %1749 = vmatprep.subr.mxu0 0.0
        %1750 = vmatpush1.msra.mxu0 0.0
        %1751 = vmatprep.subr.mxu0 0.0
        %1752 = vmatpush1.msra.mxu0 0.0
        %1753 = vmatprep.subr.mxu0 0.0
        %1754 = vmatpush1.msra.mxu0 0.0
        %1755 = vmatprep.subr.mxu0 0.0
        %1756 = vmatpush1.msra.mxu0 0.0
        %1757 = vmatprep.subr.mxu0 0.0
        %1758 = vmatpush1.msra.mxu0 0.0
        %1759 = vmatprep.subr.mxu0 0.0
        %1760 = vmatpush1.msra.mxu0 0.0
        %1761 = vmatprep.subr.mxu0 0.0
        %1762 = vmatpush1.msra.mxu0 0.0
        %1763 = vmatprep.subr.mxu0 0.0
        %1764 = vmatpush1.msra.mxu0 0.0
        %1765 = vmatprep.subr.mxu0 0.0
        %1766 = vmatpush1.msra.mxu0 0.0
        %1767 = vmatprep.subr.mxu0 0.0
        %1768 = vmatpush1.msra.mxu0 0.0
        %1769 = vmatprep.subr.mxu0 0.0
        %1770 = vmatpush1.msra.mxu0 0.0
        %1771 = vmatprep.subr.mxu0 0.0
        %1772 = vmatpush1.msra.mxu0 0.0
        %1773 = vmatprep.subr.mxu0 0.0
        %1774 = vmatpush1.msra.mxu0 0.0
        %1775 = vmatprep.subr.mxu0 0.0
        %1776 = vmatpush1.msra.mxu0 0.0
        %1777 = vmatprep.subr.mxu0 0.0
        %1778 = vmatpush1.msra.mxu0 0.0
        %1779 = vmatprep.subr.mxu0 0.0
        %1780 = vmatpush1.msra.mxu0 0.0
        %1781 = vmatprep.subr.mxu0 0.0
        %1782 = vmatpush1.msra.mxu0 0.0
        %1783 = vmatprep.subr.mxu0 0.0
        %1784 = vmatpush1.msra.mxu0 0.0
        %1785 = vmatprep.mubr.f32.mxu0 0.0
        %1786 = vmatmul.mubr.f32.gmra.mrb[0].mxu0 %v1714
        %v1787 = vpop.f32.mrb[0].mxu0
        %v1788 = vadd.f32 0.0, %v1787
        %v1789 = vpop.f32.mrb[0].mxu0
        %1790 = vmatprep.mubr.f32.mxu0 0.0
        %1791 = vmatmul.mubr.f32.gmra.mrb[0].mxu0 %v1716
        %v1792 = vpop.f32.mrb[0].mxu0
        %v1793 = vadd.f32 0.0, %v1792
        %v1794 = vpop.f32.mrb[0].mxu0
        %1795 = vmatprep.mubr.f32.mxu0 0.0
        %1796 = vmatmul.mubr.f32.gmra.mrb[0].mxu0 %v1719
        %v1797 = vpop.f32.mrb[0].mxu0
        %v1798 = vadd.f32 0.0, %v1797
        %v1799 = vpop.f32.mrb[0].mxu0
        %1800 = vdwg.mxu0
        %s1801 = scalar_lea.vmem %s565, 120
        %1802 = vst.msk [vmem:[%s1801] sm:$0xff] %vm790, %v1788
        %1803 = vst.msk [vmem:[%s1801 + $0x8] sm:$0xff] %vm790, %v1793
        %1804 = vst.msk [vmem:[%s1801 + $0x10] sm:$0xff] %vm790, %v1798
        %v1805 = vsel %vm928, %v1788, 0.0
        %v1806 = vsel %vm929, %v1793, 0.0
        %v1807 = vsel %vm930, %v1798, 0.0
        %v1808 = vsel %vm790, %v1805, 0.0
        %v1809 = vsel %vm790, %v1806, 0.0
        %v1810 = vadd.f32 %v1808, %v1809
        %v1811 = vsel %vm790, %v1807, 0.0
        %v1812 = vadd.f32 %v1810, %v1811
        %v1813 = vrot.slane %v1812, 4
        %v1814 = vadd.f32 %v1812, %v1813
        %v1815 = vrot.slane %v1814, 2
        %v1816 = vadd.f32 %v1814, %v1815
        %v1817 = vrot.slane %v1816, 1
        %v1818 = vadd.f32 %v1816, %v1817
        %v1819 = vadd.f32 %v1681, %v1818
        %v1820 = vmul.f32 %v1805, %v1805
        %v1821 = vmul.f32 %v1806, %v1806
        %v1822 = vmul.f32 %v1807, %v1807
        %v1823 = vsel %vm790, %v1820, 0.0
        %v1824 = vsel %vm790, %v1821, 0.0
        %v1825 = vadd.f32 %v1823, %v1824
        %v1826 = vsel %vm790, %v1822, 0.0
        %v1827 = vadd.f32 %v1825, %v1826
        %v1828 = vrot.slane %v1827, 4
        %v1829 = vadd.f32 %v1827, %v1828
        %v1830 = vrot.slane %v1829, 2
        %v1831 = vadd.f32 %v1829, %v1830
        %v1832 = vrot.slane %v1831, 1
        %v1833 = vadd.f32 %v1831, %v1832
        %v1834 = vadd.f32 %v1696, %v1833
        %v1836 = vrot.slane %v596, 7
        %v1837 = vsel %vm656, %v1436, %v1836
        %1838 = vrot.lane.b32.xlu0 %v1432, 4
        %v1839 = vpop.permute.xlu0 %1838
        %1840 = vrot.lane.b32.xlu0 %v1837, 4
        %v1841 = vpop.permute.xlu0 %1840
        %1844 = vrot.lane.b32.xlu0 %v1455, 8
        %v1845 = vpop.permute.xlu0 %1844
        %1847 = vrot.lane.b32.xlu0 %v1697, 12
        %v1848 = vpop.permute.xlu0 %1847
        %1850 = vrot.lane.b32.xlu0 %v588, 16
        %v1851 = vpop.permute.xlu0 %1850
        %1853 = vrot.lane.b32.xlu0 %v658, 20
        %v1854 = vpop.permute.xlu0 %1853
        %1855 = vrot.lane.b32.xlu0 %v1103, 20
        %v1856 = vpop.permute.xlu0 %1855
        %1859 = vrot.lane.b32.xlu0 %v682, 24
        %v1860 = vpop.permute.xlu0 %1859
        %1862 = vrot.lane.b32.xlu0 %v961, 28
        %v1863 = vpop.permute.xlu0 %1862
        %v1865 = vsel %vm785, %v593, %v1839
        %v1866 = vsel %vm785, %v596, %v1841
        %v1867 = vsel %vm790, %v1865, %v1460
        %v1868 = vsel %vm790, %v1866, %v1845
        %v1869 = vsel %vm795, %v1867, %v1477
        %v1870 = vsel %vm795, %v1868, %v1848
        %v1871 = vsel %vm800, %v1869, %v1489
        %v1872 = vsel %vm800, %v1870, %v1851
        %v1873 = vsel %vm805, %v1871, %v1854
        %v1874 = vsel %vm805, %v1872, %v1856
        %v1875 = vsel %vm810, %v1873, %v1513
        %v1876 = vsel %vm810, %v1874, %v1860
        %v1877 = vsel %vm815, %v1875, %v1525
        %v1878 = vsel %vm815, %v1876, %v1863
        %v1879 = vld [vmem:[#allocation12] sm:$0xff]
        %v1880 = vld [vmem:[#allocation12 + $0x8] sm:$0xff]
        %v1881 = vld [vmem:[#allocation12 + $0x10] sm:$0xff]
        %v1882 = vld [vmem:[#allocation12 + $0x18] sm:$0xff]
        %v1885 = vrot.slane %v1877, 5
        %v1886 = vrot.slane %v1560, 5
        %v1887 = vsel %vm1154, %v1885, %v1886
        %v1888 = vrot.slane %v1709, 5
        %v1889 = vsel %vm1154, %v1886, %v1888
        %v1890 = vrot.slane %v1878, 5
        %v1891 = vsel %vm1154, %v1888, %v1890
        %v1892 = vsel %vm835, %v1887, 0
        %v1894 = vsel %vm835, %v1889, 0
        %v1896 = vsel %vm835, %v1891, 0
        %1898 = vmatprep.subr.mxu0 0.0
        %1899 = vmatpush1.msra.mxu0 %v1879
        %1900 = vmatprep.subr.mxu0 0.0
        %1901 = vmatpush1.msra.mxu0 %v1880
        %1902 = vmatprep.subr.mxu0 0.0
        %1903 = vmatpush1.msra.mxu0 %v1881
        %1904 = vmatprep.subr.mxu0 0.0
        %1905 = vmatpush1.msra.mxu0 %v1882
        %1906 = vmatprep.subr.mxu0 0.0
        %1907 = vmatpush1.msra.mxu0 0.0
        %1908 = vmatprep.subr.mxu0 0.0
        %1909 = vmatpush1.msra.mxu0 0.0
        %1910 = vmatprep.subr.mxu0 0.0
        %1911 = vmatpush1.msra.mxu0 0.0
        %1912 = vmatprep.subr.mxu0 0.0
        %1913 = vmatpush1.msra.mxu0 0.0
        %1914 = vmatprep.subr.mxu0 0.0
        %1915 = vmatpush1.msra.mxu0 0.0
        %1916 = vmatprep.subr.mxu0 0.0
        %1917 = vmatpush1.msra.mxu0 0.0
        %1918 = vmatprep.subr.mxu0 0.0
        %1919 = vmatpush1.msra.mxu0 0.0
        %1920 = vmatprep.subr.mxu0 0.0
        %1921 = vmatpush1.msra.mxu0 0.0
        %1922 = vmatprep.subr.mxu0 0.0
        %1923 = vmatpush1.msra.mxu0 0.0
        %1924 = vmatprep.subr.mxu0 0.0
        %1925 = vmatpush1.msra.mxu0 0.0
        %1926 = vmatprep.subr.mxu0 0.0
        %1927 = vmatpush1.msra.mxu0 0.0
        %1928 = vmatprep.subr.mxu0 0.0
        %1929 = vmatpush1.msra.mxu0 0.0
        %1930 = vmatprep.subr.mxu0 0.0
        %1931 = vmatpush1.msra.mxu0 0.0
        %1932 = vmatprep.subr.mxu0 0.0
        %1933 = vmatpush1.msra.mxu0 0.0
        %1934 = vmatprep.subr.mxu0 0.0
        %1935 = vmatpush1.msra.mxu0 0.0
        %1936 = vmatprep.subr.mxu0 0.0
        %1937 = vmatpush1.msra.mxu0 0.0
        %1938 = vmatprep.subr.mxu0 0.0
        %1939 = vmatpush1.msra.mxu0 0.0
        %1940 = vmatprep.subr.mxu0 0.0
        %1941 = vmatpush1.msra.mxu0 0.0
        %1942 = vmatprep.subr.mxu0 0.0
        %1943 = vmatpush1.msra.mxu0 0.0
        %1944 = vmatprep.subr.mxu0 0.0
        %1945 = vmatpush1.msra.mxu0 0.0
        %1946 = vmatprep.subr.mxu0 0.0
        %1947 = vmatpush1.msra.mxu0 0.0
        %1948 = vmatprep.subr.mxu0 0.0
        %1949 = vmatpush1.msra.mxu0 0.0
        %1950 = vmatprep.subr.mxu0 0.0
        %1951 = vmatpush1.msra.mxu0 0.0
        %1952 = vmatprep.subr.mxu0 0.0
        %1953 = vmatpush1.msra.mxu0 0.0
        %1954 = vmatprep.subr.mxu0 0.0
        %1955 = vmatpush1.msra.mxu0 0.0
        %1956 = vmatprep.subr.mxu0 0.0
        %1957 = vmatpush1.msra.mxu0 0.0
        %1958 = vmatprep.subr.mxu0 0.0
        %1959 = vmatpush1.msra.mxu0 0.0
        %1960 = vmatprep.subr.mxu0 0.0
        %1961 = vmatpush1.msra.mxu0 0.0
        %1962 = vmatprep.mubr.f32.mxu0 0.0
        %1963 = vmatmul.mubr.f32.gmra.mrb[0].mxu0 %v1892
        %v1964 = vpop.f32.mrb[0].mxu0
        %v1965 = vadd.f32 0.0, %v1964
        %v1966 = vpop.f32.mrb[0].mxu0
        %1967 = vmatprep.mubr.f32.mxu0 0.0
        %1968 = vmatmul.mubr.f32.gmra.mrb[0].mxu0 %v1894
        %v1969 = vpop.f32.mrb[0].mxu0
        %v1970 = vadd.f32 0.0, %v1969
        %v1971 = vpop.f32.mrb[0].mxu0
        %1972 = vmatprep.mubr.f32.mxu0 0.0
        %1973 = vmatmul.mubr.f32.gmra.mrb[0].mxu0 %v1896
        %v1974 = vpop.f32.mrb[0].mxu0
        %v1975 = vadd.f32 0.0, %v1974
        %v1976 = vpop.f32.mrb[0].mxu0
        %1977 = vdwg.mxu0
        %s1978 = scalar_lea.vmem %s565, 144
        %1979 = vst.msk [vmem:[%s1978] sm:$0xff] %vm790, %v1965
        %1980 = vst.msk [vmem:[%s1978 + $0x8] sm:$0xff] %vm790, %v1970
        %1981 = vst.msk [vmem:[%s1978 + $0x10] sm:$0xff] %vm790, %v1975
        %v1982 = vsel %vm928, %v1965, 0.0
        %v1983 = vsel %vm929, %v1970, 0.0
        %v1984 = vsel %vm930, %v1975, 0.0
        %v1985 = vsel %vm790, %v1982, 0.0
        %v1986 = vsel %vm790, %v1983, 0.0
        %v1987 = vadd.f32 %v1985, %v1986
        %v1988 = vsel %vm790, %v1984, 0.0
        %v1989 = vadd.f32 %v1987, %v1988
        %v1990 = vrot.slane %v1989, 4
        %v1991 = vadd.f32 %v1989, %v1990
        %v1992 = vrot.slane %v1991, 2
        %v1993 = vadd.f32 %v1991, %v1992
        %v1994 = vrot.slane %v1993, 1
        %v1995 = vadd.f32 %v1993, %v1994
        %v1996 = vadd.f32 %v1819, %v1995
        %v1997 = vmul.f32 %v1982, %v1982
        %v1998 = vmul.f32 %v1983, %v1983
        %v1999 = vmul.f32 %v1984, %v1984
        %v2000 = vsel %vm790, %v1997, 0.0
        %v2001 = vsel %vm790, %v1998, 0.0
        %v2002 = vadd.f32 %v2000, %v2001
        %v2003 = vsel %vm790, %v1999, 0.0
        %v2004 = vadd.f32 %v2002, %v2003
        %v2005 = vrot.slane %v2004, 4
        %v2006 = vadd.f32 %v2004, %v2005
        %v2007 = vrot.slane %v2006, 2
        %v2008 = vadd.f32 %v2006, %v2007
        %v2009 = vrot.slane %v2008, 1
        %v2010 = vadd.f32 %v2008, %v2009
        %v2011 = vadd.f32 %v1834, %v2010
        %2012 = vrot.lane.b32.xlu0 %v1451, 8
        %v2013 = vpop.permute.xlu0 %2012
        %2015 = vrot.lane.b32.xlu0 %v678, 24
        %v2016 = vpop.permute.xlu0 %2015
        %v2018 = vsel %vm790, %v1865, %v2013
        %v2019 = vsel %vm795, %v2018, %v1477
        %v2020 = vsel %vm800, %v2019, %v1489
        %v2021 = vsel %vm805, %v2020, %v1854
        %v2022 = vsel %vm810, %v2021, %v2016
        %v2023 = vsel %vm815, %v2022, %v1525
        %v2024 = vld [vmem:[#allocation13] sm:$0xff]
        %v2025 = vld [vmem:[#allocation13 + $0x8] sm:$0xff]
        %v2026 = vld [vmem:[#allocation13 + $0x10] sm:$0xff]
        %v2027 = vld [vmem:[#allocation13 + $0x18] sm:$0xff]
        %v2029 = vrot.slane %v2023, 6
        %v2030 = vrot.slane %v1560, 6
        %v2031 = vsel %vm1299, %v2029, %v2030
        %v2032 = vrot.slane %v1709, 6
        %v2033 = vsel %vm1299, %v2030, %v2032
        %v2034 = vrot.slane %v1878, 6
        %v2035 = vsel %vm1299, %v2032, %v2034
        %v2036 = vsel %vm835, %v2031, 0
        %v2038 = vsel %vm835, %v2033, 0
        %v2040 = vsel %vm835, %v2035, 0
        %2042 = vmatprep.subr.mxu0 0.0
        %2043 = vmatpush1.msra.mxu0 %v2024
        %2044 = vmatprep.subr.mxu0 0.0
        %2045 = vmatpush1.msra.mxu0 %v2025
        %2046 = vmatprep.subr.mxu0 0.0
        %2047 = vmatpush1.msra.mxu0 %v2026
        %2048 = vmatprep.subr.mxu0 0.0
        %2049 = vmatpush1.msra.mxu0 %v2027
        %2050 = vmatprep.subr.mxu0 0.0
        %2051 = vmatpush1.msra.mxu0 0.0
        %2052 = vmatprep.subr.mxu0 0.0
        %2053 = vmatpush1.msra.mxu0 0.0
        %2054 = vmatprep.subr.mxu0 0.0
        %2055 = vmatpush1.msra.mxu0 0.0
        %2056 = vmatprep.subr.mxu0 0.0
        %2057 = vmatpush1.msra.mxu0 0.0
        %2058 = vmatprep.subr.mxu0 0.0
        %2059 = vmatpush1.msra.mxu0 0.0
        %2060 = vmatprep.subr.mxu0 0.0
        %2061 = vmatpush1.msra.mxu0 0.0
        %2062 = vmatprep.subr.mxu0 0.0
        %2063 = vmatpush1.msra.mxu0 0.0
        %2064 = vmatprep.subr.mxu0 0.0
        %2065 = vmatpush1.msra.mxu0 0.0
        %2066 = vmatprep.subr.mxu0 0.0
        %2067 = vmatpush1.msra.mxu0 0.0
        %2068 = vmatprep.subr.mxu0 0.0
        %2069 = vmatpush1.msra.mxu0 0.0
        %2070 = vmatprep.subr.mxu0 0.0
        %2071 = vmatpush1.msra.mxu0 0.0
        %2072 = vmatprep.subr.mxu0 0.0
        %2073 = vmatpush1.msra.mxu0 0.0
        %2074 = vmatprep.subr.mxu0 0.0
        %2075 = vmatpush1.msra.mxu0 0.0
        %2076 = vmatprep.subr.mxu0 0.0
        %2077 = vmatpush1.msra.mxu0 0.0
        %2078 = vmatprep.subr.mxu0 0.0
        %2079 = vmatpush1.msra.mxu0 0.0
        %2080 = vmatprep.subr.mxu0 0.0
        %2081 = vmatpush1.msra.mxu0 0.0
        %2082 = vmatprep.subr.mxu0 0.0
        %2083 = vmatpush1.msra.mxu0 0.0
        %2084 = vmatprep.subr.mxu0 0.0
        %2085 = vmatpush1.msra.mxu0 0.0
        %2086 = vmatprep.subr.mxu0 0.0
        %2087 = vmatpush1.msra.mxu0 0.0
        %2088 = vmatprep.subr.mxu0 0.0
        %2089 = vmatpush1.msra.mxu0 0.0
        %2090 = vmatprep.subr.mxu0 0.0
        %2091 = vmatpush1.msra.mxu0 0.0
        %2092 = vmatprep.subr.mxu0 0.0
        %2093 = vmatpush1.msra.mxu0 0.0
        %2094 = vmatprep.subr.mxu0 0.0
        %2095 = vmatpush1.msra.mxu0 0.0
        %2096 = vmatprep.subr.mxu0 0.0
        %2097 = vmatpush1.msra.mxu0 0.0
        %2098 = vmatprep.subr.mxu0 0.0
        %2099 = vmatpush1.msra.mxu0 0.0
        %2100 = vmatprep.subr.mxu0 0.0
        %2101 = vmatpush1.msra.mxu0 0.0
        %2102 = vmatprep.subr.mxu0 0.0
        %2103 = vmatpush1.msra.mxu0 0.0
        %2104 = vmatprep.subr.mxu0 0.0
        %2105 = vmatpush1.msra.mxu0 0.0
        %2106 = vmatprep.mubr.f32.mxu0 0.0
        %2107 = vmatmul.mubr.f32.gmra.mrb[0].mxu0 %v2036
        %v2108 = vpop.f32.mrb[0].mxu0
        %v2109 = vadd.f32 0.0, %v2108
        %v2110 = vpop.f32.mrb[0].mxu0
        %2111 = vmatprep.mubr.f32.mxu0 0.0
        %2112 = vmatmul.mubr.f32.gmra.mrb[0].mxu0 %v2038
        %v2113 = vpop.f32.mrb[0].mxu0
        %v2114 = vadd.f32 0.0, %v2113
        %v2115 = vpop.f32.mrb[0].mxu0
        %2116 = vmatprep.mubr.f32.mxu0 0.0
        %2117 = vmatmul.mubr.f32.gmra.mrb[0].mxu0 %v2040
        %v2118 = vpop.f32.mrb[0].mxu0
        %v2119 = vadd.f32 0.0, %v2118
        %v2120 = vpop.f32.mrb[0].mxu0
        %2121 = vdwg.mxu0
        %s2122 = scalar_lea.vmem %s565, 168
        %2123 = vst.msk [vmem:[%s2122] sm:$0xff] %vm790, %v2109
        %2124 = vst.msk [vmem:[%s2122 + $0x8] sm:$0xff] %vm790, %v2114
        %2125 = vst.msk [vmem:[%s2122 + $0x10] sm:$0xff] %vm790, %v2119
        %v2126 = vsel %vm928, %v2109, 0.0
        %v2127 = vsel %vm929, %v2114, 0.0
        %v2128 = vsel %vm930, %v2119, 0.0
        %v2129 = vsel %vm790, %v2126, 0.0
        %v2130 = vsel %vm790, %v2127, 0.0
        %v2131 = vadd.f32 %v2129, %v2130
        %v2132 = vsel %vm790, %v2128, 0.0
        %v2133 = vadd.f32 %v2131, %v2132
        %v2134 = vrot.slane %v2133, 4
        %v2135 = vadd.f32 %v2133, %v2134
        %v2136 = vrot.slane %v2135, 2
        %v2137 = vadd.f32 %v2135, %v2136
        %v2138 = vrot.slane %v2137, 1
        %v2139 = vadd.f32 %v2137, %v2138
        %v2140 = vadd.f32 %v1996, %v2139
        %v2141 = vmul.f32 %v2126, %v2126
        %v2142 = vmul.f32 %v2127, %v2127
        %v2143 = vmul.f32 %v2128, %v2128
        %v2144 = vsel %vm790, %v2141, 0.0
        %v2145 = vsel %vm790, %v2142, 0.0
        %v2146 = vadd.f32 %v2144, %v2145
        %v2147 = vsel %vm790, %v2143, 0.0
        %v2148 = vadd.f32 %v2146, %v2147
        %v2149 = vrot.slane %v2148, 4
        %v2150 = vadd.f32 %v2148, %v2149
        %v2151 = vrot.slane %v2150, 2
        %v2152 = vadd.f32 %v2150, %v2151
        %v2153 = vrot.slane %v2152, 1
        %v2154 = vadd.f32 %v2152, %v2153
        %v2155 = vadd.f32 %v2011, %v2154
        %v2156 = vsel %vm656, %v2140, %v2155
        %vm2157 = vcmask 58368
        %2158 = vst.msk [vmem:[%s573] sm:$0x3] %vm2157, %v2156
        %p2159 = scmp.lt.s32.totalorder %s33, 1
        %s2160 = scalar_select %p2159, %s33, 1
        %p2161 = scmp.lt.s32.totalorder %s34, 3
        %s2162 = scalar_select %p2161, %s34, 3
        %s2163 = smul.addr %s2162, 24
        %s2164 = smul.addr %s2160, 96
        %s2165 = sadd.s32 %s2163, %s2164
        %s2166 = smul.addr %s2165, 8
        %s2167 = scalar_lea.vmem %s11, %s2166
        %p2168 = scmp.lt.s32.totalorder %s33, 1
        %s2169 = scalar_select %p2168, %s33, 1
        %p2170 = scmp.lt.s32.totalorder %s34, 3
        %s2171 = scalar_select %p2170, %s34, 3
        %s2172 = smul.addr %s2169, 4
        %s2173 = sadd.s32 %s2171, %s2172
        %s2174 = smul.addr %s2173, 2
        %s2175 = scalar_lea.vmem %s12, %s2174
        // Predicated region
        $region97: #{deconv_head_forward.3} parent=63 // pred_check
          %p2176 = pneg %p297
        $region98: #{deconv_head_forward.3} parent=63 // pred_check_branch
          %2178 = sbr.rel (%p2176) target = $region100
        $region99: #{deconv_head_forward.3} parent=63 // pred_region
          _
        $region100: #{deconv_head_forward.3} parent=63 // pred_fallthru
          _
        // Predicated region
        $region101: #{deconv_head_forward.3} parent=63 // pred_check
          %p2179 = pneg %p325
        $region102: #{deconv_head_forward.3} parent=63 // pred_check_branch
          %2181 = sbr.rel (%p2179) target = $region104
        $region103: #{deconv_head_forward.3} parent=63 // pred_region
          _
        $region104: #{deconv_head_forward.3} parent=63 // pred_fallthru
          _
      $region64: #{deconv_head_forward.3} parent=5 // pred_fallthru
        _
      %p2182 = scmp.le.s32.totalorder 2, %s24
      // Predicated region
      $region105: #{deconv_head_forward.3} parent=5 // pred_check
        %p2183 = pneg %p2182
      $region106: #{deconv_head_forward.3} parent=5 // pred_check_branch
        %2185 = sbr.rel (%p2183) target = $region108
      $region107: #{deconv_head_forward.3} parent=5 // pred_region
        %s2186 = ssub.s32 %s24, 2
        // Predicated region
        $region109: #{deconv_head_forward.3} parent=107 // pred_check
          %p2187 = pneg %p303
        $region110: #{deconv_head_forward.3} parent=107 // pred_check_branch
          %2189 = sbr.rel (%p2187) target = $region112
        $region111: #{deconv_head_forward.3} parent=107 // pred_region
          %p2190 = scmp.lt.s32.totalorder %s35, 1
          %s2191 = scalar_select %p2190, %s35, 1
          %p2192 = scmp.lt.s32.totalorder %s36, 3
          %s2193 = scalar_select %p2192, %s36, 3
          %s2194 = smul.addr %s2193, 24
          %s2195 = smul.addr %s2191, 96
          %s2196 = sadd.s32 %s2194, %s2195
          %s2197 = smul.addr %s2196, 8
          %s2198 = scalar_lea.vmem %s11, %s2197
        $region112: #{deconv_head_forward.3} parent=107 // pred_fallthru
          _
        // Predicated region
        $region113: #{deconv_head_forward.3} parent=107 // pred_check
          %p2199 = pneg %p331
        $region114: #{deconv_head_forward.3} parent=107 // pred_check_branch
          %2201 = sbr.rel (%p2199) target = $region116
        $region115: #{deconv_head_forward.3} parent=107 // pred_region
          %p2202 = scmp.lt.s32.totalorder %s35, 1
          %s2203 = scalar_select %p2202, %s35, 1
          %p2204 = scmp.lt.s32.totalorder %s36, 3
          %s2205 = scalar_select %p2204, %s36, 3
          %s2206 = smul.addr %s2203, 4
          %s2207 = sadd.s32 %s2205, %s2206
          %s2208 = smul.addr %s2207, 2
          %s2209 = scalar_lea.vmem %s12, %s2208
        $region116: #{deconv_head_forward.3} parent=107 // pred_fallthru
          _
      $region108: #{deconv_head_forward.3} parent=5 // pred_fallthru
        _
    $region6: #{deconv_head_forward.3} parent=1 // loop_footer
      %s28 = sadd.s32 1, %s24
    $region7: #{deconv_head_forward.3} parent=1 // loop_footer_branch
      %23 = sbr.rel target = $region3
    $region8: #{deconv_head_forward.3} parent=1 // loop_exit
      _
    %2210 = vsyncpa [#allocation3], 1
    %s2211 = scalar_lea.sflag [#allocation3], 1
    %2212 = vsyncpa %s2211, 1
    %2213 = vsyncpa [#allocation5], 1
    %2214 = vsyncpa [#allocation8], 1
    %2215 = vsyncpa [#allocation11], 1
    %2216 = vsyncpa [#allocation14], 1

// kernel: deconv_head_forward.4
$region0: #{deconv_head_forward.4}
  #allocation0 [shape = 'u32[]', space=smem, size = 0x4, offset = 0x4, fixed_abs, tag = 'smem constant byte address 0x4 - core index']
  #allocation1 [shape = 'u32[144,128]{1,0:T(1,128)}', space=vmem, size = 0x12000, scoped, tag = 'internal scratch']
  %s0 = inlined_call_operand.vmem [shape: f32[1,8], index: 0, kind: input, shape index: {}]
  %s1 = inlined_call_operand.vmem [shape: f32[1,8], index: 1, kind: input, shape index: {}]
  %s2 = inlined_call_operand.vmem [shape: f32[64,8], index: 2, kind: input, shape index: {}]
  %s3 = inlined_call_operand.vmem [shape: f32[64,8], index: 3, kind: input, shape index: {}]
  %s4 = inlined_call_operand.vmem [shape: f32[64,8], index: 4, kind: input, shape index: {}]
  %s5 = inlined_call_operand.vmem [shape: f32[64,8], index: 5, kind: input, shape index: {}]
  %s6 = inlined_call_operand.vmem [shape: f32[64,8], index: 6, kind: input, shape index: {}]
  %s7 = inlined_call_operand.vmem [shape: f32[64,8], index: 7, kind: input, shape index: {}]
  %s8 = inlined_call_operand.vmem [shape: f32[64,8], index: 8, kind: input, shape index: {}]
  %s9 = inlined_call_operand.vmem [shape: f32[64,8], index: 9, kind: input, shape index: {}]
  %s10 = inlined_call_operand.vmem [shape: f32[2,10,102,8], index: 10, kind: input, shape index: {}]
  %s11 = inlined_call_operand.vmem [shape: f32[2,8,8,80,8], index: 11, kind: output, shape index: {0}]
  %s12 = inlined_call_operand.vmem [shape: f32[2,8,2,8], index: 12, kind: output, shape index: {1}]
  %13 = xla_tuple %s11, %s12
  %s14 = sld [smem:[#allocation0]]
  $region85: #{deconv_head_forward.4} parent=0
    _
  %s16 = ssub.s32 1, %s14
  %s17 = scalar_select 0, %s16, %s14
  loop: start=0, step=1, limit=18
  $region2: #{deconv_head_forward.4} parent=0 // loop_pre_header
    _
  $region3: #{deconv_head_forward.4} parent=0 // loop_header
    %s19 = sphi 0, %s23
    %p20 = scmp.ge.s32.totalorder %s19, 18
    %s26 = sphi 0, %s38
    %s27 = sphi 0, %s34
    %s28 = sphi 0, %s26
    %s29 = sphi 0, %s27
    %s30 = sphi 0, %s28
    %s31 = sphi 0, %s29
    %s39 = sphi 0, %s39
    %s41 = sphi 0, %s39
    %s42 = sphi 0, %s41
    %s56 = sphi 0, %s42
    %s60 = sphi 0, %s60
    %s62 = sphi 0, %s60
    %s63 = sphi 0, %s62
    %s77 = sphi 0, %s63
    %s81 = sphi 0, %s81
    %s83 = sphi 0, %s81
    %s84 = sphi 0, %s83
    %s98 = sphi 0, %s84
    %s102 = sphi 0, %s102
    %s104 = sphi 0, %s102
    %s105 = sphi 0, %s104
    %s119 = sphi 0, %s105
    %s123 = sphi 0, %s123
    %s125 = sphi 0, %s123
    %s126 = sphi 0, %s125
    %s140 = sphi 0, %s126
    %s144 = sphi 0, %s144
    %s146 = sphi 0, %s144
    %s147 = sphi 0, %s146
    %s161 = sphi 0, %s147
    %s165 = sphi 0, %s165
    %s167 = sphi 0, %s165
    %s168 = sphi 0, %s167
    %s182 = sphi 0, %s168
    %s186 = sphi 0, %s186
    %s188 = sphi 0, %s186
    %s189 = sphi 0, %s188
    %s203 = sphi 0, %s189
    %s207 = sphi 0, %s207
    %s209 = sphi 0, %s207
    %s210 = sphi 0, %s209
    %s224 = sphi 0, %s210
    %s228 = sphi 0, %s228
    %s230 = sphi 0, %s228
    %s231 = sphi 0, %s230
    %s245 = sphi 0, %s231
    %s251 = sphi 0, %s253
    %s254 = sphi 0, %s251
    %s255 = sphi 0, %s254
    %s271 = sphi 0, %s255
    %s279 = sphi 0, %s281
    %s282 = sphi 0, %s279
    %s283 = sphi 0, %s282
    %s299 = sphi 0, %s283
    %s307 = sphi 0, %s309
    %s310 = sphi 0, %s307
    %s311 = sphi 0, %s310
    %s327 = sphi 0, %s311
  $region4: #{deconv_head_forward.4} parent=0 // loop_header_branch
    %22 = sbr.rel (%p20) target = $region8
  $region5: #{deconv_head_forward.4} parent=0 // loop_body
    %s24 = ssub.s32 %s19, 1
    %s25 = ssub.s32 %s19, 2
    %s32 = sadd.s32 1, %s27
    %p33 = scmp.ge.s32.totalorder %s32, 8
    %s34 = scalar_select %p33, 0, %s32
    %s35 = sadd.s32 1, %s26
    %s36 = scalar_select %p33, %s35, %s26
    %p37 = scmp.ge.s32.totalorder %s36, 2
    %s38 = scalar_select %p37, 0, %s36
    %s40 = sadd.s32 %s39, 1
    %p43 = scmp.eq.s32.totalorder %s19, 15
    %p44 = scmp.ne.s32.totalorder %s39, %s41
    %p45 = scmp.eq.s32.totalorder %s19, 0
    %p46 = por %p44, %p45
    %p47 = scmp.ne.s32.totalorder %s39, %s41
    %p48 = scmp.eq.s32.totalorder %s24, 15
    %p49 = por %p47, %p48
    %p50 = scmp.ne.s32.totalorder %s41, %s42
    %p51 = scmp.eq.s32.totalorder %s24, 0
    %p52 = por %p50, %p51
    %p53 = scmp.ne.s32.totalorder %s41, %s42
    %p54 = scmp.eq.s32.totalorder %s25, 15
    %p55 = por %p53, %p54
    %p57 = scmp.ne.s32.totalorder %s42, %s56
    %p58 = scmp.eq.s32.totalorder %s25, 0
    %p59 = por %p57, %p58
    %s61 = sadd.s32 %s60, 1
    %p64 = scmp.eq.s32.totalorder %s19, 15
    %p65 = scmp.ne.s32.totalorder %s60, %s62
    %p66 = scmp.eq.s32.totalorder %s19, 0
    %p67 = por %p65, %p66
    %p68 = scmp.ne.s32.totalorder %s60, %s62
    %p69 = scmp.eq.s32.totalorder %s24, 15
    %p70 = por %p68, %p69
    %p71 = scmp.ne.s32.totalorder %s62, %s63
    %p72 = scmp.eq.s32.totalorder %s24, 0
    %p73 = por %p71, %p72
    %p74 = scmp.ne.s32.totalorder %s62, %s63
    %p75 = scmp.eq.s32.totalorder %s25, 15
    %p76 = por %p74, %p75
    %p78 = scmp.ne.s32.totalorder %s63, %s77
    %p79 = scmp.eq.s32.totalorder %s25, 0
    %p80 = por %p78, %p79
    %s82 = sadd.s32 %s81, 1
    %p85 = scmp.eq.s32.totalorder %s19, 15
    %p86 = scmp.ne.s32.totalorder %s81, %s83
    %p87 = scmp.eq.s32.totalorder %s19, 0
    %p88 = por %p86, %p87
    %p89 = scmp.ne.s32.totalorder %s81, %s83
    %p90 = scmp.eq.s32.totalorder %s24, 15
    %p91 = por %p89, %p90
    %p92 = scmp.ne.s32.totalorder %s83, %s84
    %p93 = scmp.eq.s32.totalorder %s24, 0
    %p94 = por %p92, %p93
    %p95 = scmp.ne.s32.totalorder %s83, %s84
    %p96 = scmp.eq.s32.totalorder %s25, 15
    %p97 = por %p95, %p96
    %p99 = scmp.ne.s32.totalorder %s84, %s98
    %p100 = scmp.eq.s32.totalorder %s25, 0
    %p101 = por %p99, %p100
    %s103 = sadd.s32 %s102, 1
    %p106 = scmp.eq.s32.totalorder %s19, 15
    %p107 = scmp.ne.s32.totalorder %s102, %s104
    %p108 = scmp.eq.s32.totalorder %s19, 0
    %p109 = por %p107, %p108
    %p110 = scmp.ne.s32.totalorder %s102, %s104
    %p111 = scmp.eq.s32.totalorder %s24, 15
    %p112 = por %p110, %p111
    %p113 = scmp.ne.s32.totalorder %s104, %s105
    %p114 = scmp.eq.s32.totalorder %s24, 0
    %p115 = por %p113, %p114
    %p116 = scmp.ne.s32.totalorder %s104, %s105
    %p117 = scmp.eq.s32.totalorder %s25, 15
    %p118 = por %p116, %p117
    %p120 = scmp.ne.s32.totalorder %s105, %s119
    %p121 = scmp.eq.s32.totalorder %s25, 0
    %p122 = por %p120, %p121
    %s124 = sadd.s32 %s123, 1
    %p127 = scmp.eq.s32.totalorder %s19, 15
    %p128 = scmp.ne.s32.totalorder %s123, %s125
    %p129 = scmp.eq.s32.totalorder %s19, 0
    %p130 = por %p128, %p129
    %p131 = scmp.ne.s32.totalorder %s123, %s125
    %p132 = scmp.eq.s32.totalorder %s24, 15
    %p133 = por %p131, %p132
    %p134 = scmp.ne.s32.totalorder %s125, %s126
    %p135 = scmp.eq.s32.totalorder %s24, 0
    %p136 = por %p134, %p135
    %p137 = scmp.ne.s32.totalorder %s125, %s126
    %p138 = scmp.eq.s32.totalorder %s25, 15
    %p139 = por %p137, %p138
    %p141 = scmp.ne.s32.totalorder %s126, %s140
    %p142 = scmp.eq.s32.totalorder %s25, 0
    %p143 = por %p141, %p142
    %s145 = sadd.s32 %s144, 1
    %p148 = scmp.eq.s32.totalorder %s19, 15
    %p149 = scmp.ne.s32.totalorder %s144, %s146
    %p150 = scmp.eq.s32.totalorder %s19, 0
    %p151 = por %p149, %p150
    %p152 = scmp.ne.s32.totalorder %s144, %s146
    %p153 = scmp.eq.s32.totalorder %s24, 15
    %p154 = por %p152, %p153
    %p155 = scmp.ne.s32.totalorder %s146, %s147
    %p156 = scmp.eq.s32.totalorder %s24, 0
    %p157 = por %p155, %p156
    %p158 = scmp.ne.s32.totalorder %s146, %s147
    %p159 = scmp.eq.s32.totalorder %s25, 15
    %p160 = por %p158, %p159
    %p162 = scmp.ne.s32.totalorder %s147, %s161
    %p163 = scmp.eq.s32.totalorder %s25, 0
    %p164 = por %p162, %p163
    %s166 = sadd.s32 %s165, 1
    %p169 = scmp.eq.s32.totalorder %s19, 15
    %p170 = scmp.ne.s32.totalorder %s165, %s167
    %p171 = scmp.eq.s32.totalorder %s19, 0
    %p172 = por %p170, %p171
    %p173 = scmp.ne.s32.totalorder %s165, %s167
    %p174 = scmp.eq.s32.totalorder %s24, 15
    %p175 = por %p173, %p174
    %p176 = scmp.ne.s32.totalorder %s167, %s168
    %p177 = scmp.eq.s32.totalorder %s24, 0
    %p178 = por %p176, %p177
    %p179 = scmp.ne.s32.totalorder %s167, %s168
    %p180 = scmp.eq.s32.totalorder %s25, 15
    %p181 = por %p179, %p180
    %p183 = scmp.ne.s32.totalorder %s168, %s182
    %p184 = scmp.eq.s32.totalorder %s25, 0
    %p185 = por %p183, %p184
    %s187 = sadd.s32 %s186, 1
    %p190 = scmp.eq.s32.totalorder %s19, 15
    %p191 = scmp.ne.s32.totalorder %s186, %s188
    %p192 = scmp.eq.s32.totalorder %s19, 0
    %p193 = por %p191, %p192
    %p194 = scmp.ne.s32.totalorder %s186, %s188
    %p195 = scmp.eq.s32.totalorder %s24, 15
    %p196 = por %p194, %p195
    %p197 = scmp.ne.s32.totalorder %s188, %s189
    %p198 = scmp.eq.s32.totalorder %s24, 0
    %p199 = por %p197, %p198
    %p200 = scmp.ne.s32.totalorder %s188, %s189
    %p201 = scmp.eq.s32.totalorder %s25, 15
    %p202 = por %p200, %p201
    %p204 = scmp.ne.s32.totalorder %s189, %s203
    %p205 = scmp.eq.s32.totalorder %s25, 0
    %p206 = por %p204, %p205
    %s208 = sadd.s32 %s207, 1
    %p211 = scmp.eq.s32.totalorder %s19, 15
    %p212 = scmp.ne.s32.totalorder %s207, %s209
    %p213 = scmp.eq.s32.totalorder %s19, 0
    %p214 = por %p212, %p213
    %p215 = scmp.ne.s32.totalorder %s207, %s209
    %p216 = scmp.eq.s32.totalorder %s24, 15
    %p217 = por %p215, %p216
    %p218 = scmp.ne.s32.totalorder %s209, %s210
    %p219 = scmp.eq.s32.totalorder %s24, 0
    %p220 = por %p218, %p219
    %p221 = scmp.ne.s32.totalorder %s209, %s210
    %p222 = scmp.eq.s32.totalorder %s25, 15
    %p223 = por %p221, %p222
    %p225 = scmp.ne.s32.totalorder %s210, %s224
    %p226 = scmp.eq.s32.totalorder %s25, 0
    %p227 = por %p225, %p226
    %s229 = sadd.s32 %s228, 1
    %p232 = scmp.eq.s32.totalorder %s19, 15
    %p233 = scmp.ne.s32.totalorder %s228, %s230
    %p234 = scmp.eq.s32.totalorder %s19, 0
    %p235 = por %p233, %p234
    %p236 = scmp.ne.s32.totalorder %s228, %s230
    %p237 = scmp.eq.s32.totalorder %s24, 15
    %p238 = por %p236, %p237
    %p239 = scmp.ne.s32.totalorder %s230, %s231
    %p240 = scmp.eq.s32.totalorder %s24, 0
    %p241 = por %p239, %p240
    %p242 = scmp.ne.s32.totalorder %s230, %s231
    %p243 = scmp.eq.s32.totalorder %s25, 15
    %p244 = por %p242, %p243
    %p246 = scmp.ne.s32.totalorder %s231, %s245
    %p247 = scmp.eq.s32.totalorder %s25, 0
    %p248 = por %p246, %p247
    %s249 = ssub.s32 %s26, %s38
    %p250 = scmp.eq.s32.totalorder %s249, 0
    %s252 = sadd.s32 %s251, 1
    %s253 = scalar_select %p250, %s251, %s252
    %p256 = pneg %p250
    %p257 = scmp.eq.s32.totalorder %s19, 15
    %p258 = por %p256, %p257
    %p259 = scmp.ne.s32.totalorder %s251, %s254
    %p260 = scmp.eq.s32.totalorder %s19, 0
    %p261 = por %p259, %p260
    %p262 = scmp.ne.s32.totalorder %s251, %s254
    %p263 = scmp.eq.s32.totalorder %s24, 15
    %p264 = por %p262, %p263
    %p265 = scmp.ne.s32.totalorder %s254, %s255
    %p266 = scmp.eq.s32.totalorder %s24, 0
    %p267 = por %p265, %p266
    %p268 = scmp.ne.s32.totalorder %s254, %s255
    %p269 = scmp.eq.s32.totalorder %s25, 15
    %p270 = por %p268, %p269
    %p272 = scmp.ne.s32.totalorder %s255, %s271
    %p273 = scmp.eq.s32.totalorder %s25, 0
    %p274 = por %p272, %p273
    %s275 = ssub.s32 %s26, %s38
    %s276 = ssub.s32 %s27, %s34
    %s277 = sor.u32 %s275, %s276
    %p278 = scmp.eq.s32.totalorder %s277, 0
    %s280 = sadd.s32 %s279, 1
    %s281 = scalar_select %p278, %s279, %s280
    %p284 = pneg %p278
    %p285 = scmp.eq.s32.totalorder %s19, 15
    %p286 = por %p284, %p285
    %p287 = scmp.ne.s32.totalorder %s279, %s282
    %p288 = scmp.eq.s32.totalorder %s19, 0
    %p289 = por %p287, %p288
    %p290 = scmp.ne.s32.totalorder %s279, %s282
    %p291 = scmp.eq.s32.totalorder %s24, 15
    %p292 = por %p290, %p291
    %p293 = scmp.ne.s32.totalorder %s282, %s283
    %p294 = scmp.eq.s32.totalorder %s24, 0
    %p295 = por %p293, %p294
    %p296 = scmp.ne.s32.totalorder %s282, %s283
    %p297 = scmp.eq.s32.totalorder %s25, 15
    %p298 = por %p296, %p297
    %p300 = scmp.ne.s32.totalorder %s283, %s299
    %p301 = scmp.eq.s32.totalorder %s25, 0
    %p302 = por %p300, %p301
    %s303 = ssub.s32 %s26, %s38
    %s304 = ssub.s32 %s27, %s34
    %s305 = sor.u32 %s303, %s304
    %p306 = scmp.eq.s32.totalorder %s305, 0
    %s308 = sadd.s32 %s307, 1
    %s309 = scalar_select %p306, %s307, %s308
    %p312 = pneg %p306
    %p313 = scmp.eq.s32.totalorder %s19, 15
    %p314 = por %p312, %p313
    %p315 = scmp.ne.s32.totalorder %s307, %s310
    %p316 = scmp.eq.s32.totalorder %s19, 0
    %p317 = por %p315, %p316
    %p318 = scmp.ne.s32.totalorder %s307, %s310
    %p319 = scmp.eq.s32.totalorder %s24, 15
    %p320 = por %p318, %p319
    %p321 = scmp.ne.s32.totalorder %s310, %s311
    %p322 = scmp.eq.s32.totalorder %s24, 0
    %p323 = por %p321, %p322
    %p324 = scmp.ne.s32.totalorder %s310, %s311
    %p325 = scmp.eq.s32.totalorder %s25, 15
    %p326 = por %p324, %p325
    %p328 = scmp.ne.s32.totalorder %s311, %s327
    %p329 = scmp.eq.s32.totalorder %s25, 0
    %p330 = por %p328, %p329
    %p331 = scmp.le.s32.totalorder 1, %s19
    %p332 = scmp.lt.s32.totalorder %s19, 17
    %p333 = pnand %p331, %p332
    %p334 = pneg %p333
    // Predicated region
    $region9: #{deconv_head_forward.4} parent=5 // pred_check
      _
    $region10: #{deconv_head_forward.4} parent=5 // pred_check_branch
      %336 = sbr.rel (%p333) target = $region12
    $region11: #{deconv_head_forward.4} parent=5 // pred_region
      %s337 = ssub.s32 %s19, 1
      // Predicated region
      $region13: #{deconv_head_forward.4} parent=11 // pred_check
        %p338 = pneg %p52
      $region14: #{deconv_head_forward.4} parent=11 // pred_check_branch
        %340 = sbr.rel (%p338) target = $region16
      $region15: #{deconv_head_forward.4} parent=11 // pred_region
        _
      $region16: #{deconv_head_forward.4} parent=11 // pred_fallthru
        _
      // Predicated region
      $region17: #{deconv_head_forward.4} parent=11 // pred_check
        %p341 = pneg %p73
      $region18: #{deconv_head_forward.4} parent=11 // pred_check_branch
        %343 = sbr.rel (%p341) target = $region20
      $region19: #{deconv_head_forward.4} parent=11 // pred_region
        _
      $region20: #{deconv_head_forward.4} parent=11 // pred_fallthru
        _
      // Predicated region
      $region21: #{deconv_head_forward.4} parent=11 // pred_check
        %p344 = pneg %p94
      $region22: #{deconv_head_forward.4} parent=11 // pred_check_branch
        %346 = sbr.rel (%p344) target = $region24
      $region23: #{deconv_head_forward.4} parent=11 // pred_region
        _
      $region24: #{deconv_head_forward.4} parent=11 // pred_fallthru
        _
      // Predicated region
      $region25: #{deconv_head_forward.4} parent=11 // pred_check
        %p347 = pneg %p115
      $region26: #{deconv_head_forward.4} parent=11 // pred_check_branch
        %349 = sbr.rel (%p347) target = $region28
      $region27: #{deconv_head_forward.4} parent=11 // pred_region
        _
      $region28: #{deconv_head_forward.4} parent=11 // pred_fallthru
        _
      // Predicated region
      $region29: #{deconv_head_forward.4} parent=11 // pred_check
        %p350 = pneg %p136
      $region30: #{deconv_head_forward.4} parent=11 // pred_check_branch
        %352 = sbr.rel (%p350) target = $region32
      $region31: #{deconv_head_forward.4} parent=11 // pred_region
        _
      $region32: #{deconv_head_forward.4} parent=11 // pred_fallthru
        _
      // Predicated region
      $region33: #{deconv_head_forward.4} parent=11 // pred_check
        %p353 = pneg %p157
      $region34: #{deconv_head_forward.4} parent=11 // pred_check_branch
        %355 = sbr.rel (%p353) target = $region36
      $region35: #{deconv_head_forward.4} parent=11 // pred_region
        _
      $region36: #{deconv_head_forward.4} parent=11 // pred_fallthru
        _
      // Predicated region
      $region37: #{deconv_head_forward.4} parent=11 // pred_check
        %p356 = pneg %p178
      $region38: #{deconv_head_forward.4} parent=11 // pred_check_branch
        %358 = sbr.rel (%p356) target = $region40
      $region39: #{deconv_head_forward.4} parent=11 // pred_region
        _
      $region40: #{deconv_head_forward.4} parent=11 // pred_fallthru
        _
      // Predicated region
      $region41: #{deconv_head_forward.4} parent=11 // pred_check
        %p359 = pneg %p199
      $region42: #{deconv_head_forward.4} parent=11 // pred_check_branch
        %361 = sbr.rel (%p359) target = $region44
      $region43: #{deconv_head_forward.4} parent=11 // pred_region
        _
      $region44: #{deconv_head_forward.4} parent=11 // pred_fallthru
        _
      // Predicated region
      $region45: #{deconv_head_forward.4} parent=11 // pred_check
        %p362 = pneg %p220
      $region46: #{deconv_head_forward.4} parent=11 // pred_check_branch
        %364 = sbr.rel (%p362) target = $region48
      $region47: #{deconv_head_forward.4} parent=11 // pred_region
        _
      $region48: #{deconv_head_forward.4} parent=11 // pred_fallthru
        _
      // Predicated region
      $region49: #{deconv_head_forward.4} parent=11 // pred_check
        %p365 = pneg %p241
      $region50: #{deconv_head_forward.4} parent=11 // pred_check_branch
        %367 = sbr.rel (%p365) target = $region52
      $region51: #{deconv_head_forward.4} parent=11 // pred_region
        _
      $region52: #{deconv_head_forward.4} parent=11 // pred_fallthru
        _
    $region12: #{deconv_head_forward.4} parent=5 // pred_fallthru
      _
    %p368 = scmp.lt.s32.totalorder %s19, 16
    // Predicated region
    $region53: #{deconv_head_forward.4} parent=5 // pred_check
      %p369 = pneg %p368
    $region54: #{deconv_head_forward.4} parent=5 // pred_check_branch
      %371 = sbr.rel (%p369) target = $region56
    $region55: #{deconv_head_forward.4} parent=5 // pred_region
      // Predicated region
      $region57: #{deconv_head_forward.4} parent=55 // pred_check
        %p372 = pneg %p261
      $region58: #{deconv_head_forward.4} parent=55 // pred_check_branch
        %374 = sbr.rel (%p372) target = $region60
      $region59: #{deconv_head_forward.4} parent=55 // pred_region
        %p375 = scmp.lt.s32.totalorder %s26, 1
        %s376 = scalar_select %p375, %s26, 1
        %s377 = smul.addr %s376, 130
        %s378 = smul.addr %s377, 8
        %s379 = scalar_lea.vmem %s10, %s378
      $region60: #{deconv_head_forward.4} parent=55 // pred_fallthru
        _
    $region56: #{deconv_head_forward.4} parent=5 // pred_fallthru
      _
    %p380 = scmp.le.s32.totalorder 1, %s19
    %p381 = scmp.lt.s32.totalorder %s19, 17
    %p382 = pnand %p380, %p381
    %p383 = pneg %p382
    // Predicated region
    $region61: #{deconv_head_forward.4} parent=5 // pred_check
      _
    $region62: #{deconv_head_forward.4} parent=5 // pred_check_branch
      %385 = sbr.rel (%p382) target = $region64
    $region63: #{deconv_head_forward.4} parent=5 // pred_region
      %s386 = ssub.s32 %s19, 1
      %p387 = pneg %p52
      %p388 = pneg %p49
      %p389 = pneg %p73
      %p390 = pneg %p70
      %p391 = pneg %p94
      %p392 = pneg %p91
      %p393 = pneg %p115
      %p394 = pneg %p112
      %p395 = pneg %p136
      %p396 = pneg %p133
      %p397 = pneg %p157
      %p398 = pneg %p154
      %p399 = pneg %p178
      %p400 = pneg %p175
      %p401 = pneg %p199
      %p402 = pneg %p196
      %p403 = pneg %p220
      %p404 = pneg %p217
      %p405 = pneg %p241
      %p406 = pneg %p238
      %p407 = scmp.lt.s32.totalorder %s28, 1
      %s408 = scalar_select %p407, %s28, 1
      %s409 = smul.addr %s408, 130
      %s410 = smul.addr %s409, 8
      %s411 = scalar_lea.vmem %s10, %s410
      %p412 = pneg %p267
      %p413 = pneg %p264
      %p414 = pneg %p295
      %p415 = pneg %p292
      %p416 = scmp.lt.s32.totalorder %s28, 1
      %s417 = scalar_select %p416, %s28, 1
      %p418 = scmp.lt.s32.totalorder %s29, 7
      %s419 = scalar_select %p418, %s29, 7
      %s420 = smul.addr %s419, 80
      %s421 = smul.addr %s417, 640
      %s422 = sadd.s32 %s420, %s421
      %s423 = smul.addr %s422, 8
      %s424 = scalar_lea.vmem %s11, %s423
      %p425 = pneg %p323
      %p426 = pneg %p320
      %p427 = scmp.lt.s32.totalorder %s28, 1
      %s428 = scalar_select %p427, %s28, 1
      %p429 = scmp.lt.s32.totalorder %s29, 7
      %s430 = scalar_select %p429, %s29, 7
      %s431 = smul.addr %s428, 8
      %s432 = sadd.s32 %s430, %s431
      %s433 = smul.addr %s432, 2
      %s434 = scalar_lea.vmem %s12, %s433
      %p435 = scmp.lt.s32.totalorder %s28, 1
      %s436 = scalar_select %p435, %s28, 1
      %s437 = smul.addr %s436, 130
      %s438 = smul.addr %s437, 8
      %s439 = scalar_lea.vmem %s10, %s438
      %p440 = scmp.lt.s32.totalorder %s28, 1
      %s441 = scalar_select %p440, %s28, 1
      %p442 = scmp.lt.s32.totalorder %s29, 7
      %s443 = scalar_select %p442, %s29, 7
      %s444 = smul.addr %s443, 80
      %s445 = smul.addr %s441, 640
      %s446 = sadd.s32 %s444, %s445
      %s447 = smul.addr %s446, 8
      %s448 = scalar_lea.vmem %s11, %s447
      %p449 = scmp.lt.s32.totalorder %s28, 1
      %s450 = scalar_select %p449, %s28, 1
      %p451 = scmp.lt.s32.totalorder %s29, 7
      %s452 = scalar_select %p451, %s29, 7
      %s453 = smul.addr %s450, 8
      %s454 = sadd.s32 %s452, %s453
      %s455 = smul.addr %s454, 2
      %s456 = scalar_lea.vmem %s12, %s455
      %v457 = vld [vmem:[%s0] sm:$0x1]
      %v458 = vld [vmem:[%s1] sm:$0x1]
      %s459 = smul.u32 %s29, 104
      %s460 = scalar_lea.vmem %s439, %s459
      %v461 = vld [vmem:[%s460] sm:$0xff]
      %v462 = vld [vmem:[%s460 + $0x8] sm:$0xff]
      %v463 = vld [vmem:[%s460 + $0x10] sm:$0xff]
      %v464 = vld [vmem:[%s460 + $0x18] sm:$0xff]
      %v465 = vld [vmem:[%s460 + $0x20] sm:$0xff]
      %v466 = vld [vmem:[%s460 + $0x28] sm:$0xff]
      %v467 = vld [vmem:[%s460 + $0x30] sm:$0xff]
      %v468 = vld [vmem:[%s460 + $0x38] sm:$0xff]
      %v469 = vld [vmem:[%s460 + $0x40] sm:$0xff]
      %v470 = vld [vmem:[%s460 + $0x48] sm:$0xff]
      %v471 = vld [vmem:[%s460 + $0x50] sm:$0xff]
      %v472 = vld [vmem:[%s460 + $0x58] sm:$0xff]
      %v473 = vld [vmem:[%s460 + $0x60] sm:$0x3f]
      %v475 = vlaneseq
      %v476 = vshrl.u32 %v475, 7
      %v477 = vsub.s32 0, %v476
      %v478 = vrot.slane %v457, %v477
      %v480 = vmul.f32 %v461, %v478
      %v481 = vmul.f32 %v462, %v478
      %v482 = vmul.f32 %v463, %v478
      %v483 = vmul.f32 %v464, %v478
      %v484 = vmul.f32 %v465, %v478
      %v485 = vmul.f32 %v466, %v478
      %v486 = vmul.f32 %v467, %v478
      %v487 = vmul.f32 %v468, %v478
      %v488 = vmul.f32 %v469, %v478
      %v489 = vmul.f32 %v470, %v478
      %v490 = vmul.f32 %v471, %v478
      %v491 = vmul.f32 %v472, %v478
      %v492 = vmul.f32 %v473, %v478
      %v494 = vlaneseq
      %v495 = vshrl.u32 %v494, 7
      %v496 = vsub.s32 0, %v495
      %v497 = vrot.slane %v458, %v496
      %v499 = vadd.f32 %v480, %v497
      %v500 = vadd.f32 %v481, %v497
      %v501 = vadd.f32 %v482, %v497
      %v502 = vadd.f32 %v483, %v497
      %v503 = vadd.f32 %v484, %v497
      %v504 = vadd.f32 %v485, %v497
      %v505 = vadd.f32 %v486, %v497
      %v506 = vadd.f32 %v487, %v497
      %v507 = vadd.f32 %v488, %v497
      %v508 = vadd.f32 %v489, %v497
      %v509 = vadd.f32 %v490, %v497
      %v510 = vadd.f32 %v491, %v497
      %v511 = vadd.f32 %v492, %v497
      %v512 = vmax.f32 %v499, 0.0
      %v513 = vmax.f32 %v500, 0.0
      %v514 = vmax.f32 %v501, 0.0
      %v515 = vmax.f32 %v502, 0.0
      %v516 = vmax.f32 %v503, 0.0
      %v517 = vmax.f32 %v504, 0.0
      %v518 = vmax.f32 %v505, 0.0
      %v519 = vmax.f32 %v506, 0.0
      %v520 = vmax.f32 %v507, 0.0
      %v521 = vmax.f32 %v508, 0.0
      %v522 = vmax.f32 %v509, 0.0
      %v523 = vmax.f32 %v510, 0.0
      %v524 = vmax.f32 %v511, 0.0
      %s525 = sadd.s32 %s29, 1
      %s526 = smul.u32 %s525, 104
      %s527 = scalar_lea.vmem %s439, %s526
      %v528 = vld [vmem:[%s527] sm:$0xff]
      %v529 = vld [vmem:[%s527 + $0x8] sm:$0xff]
      %v530 = vld [vmem:[%s527 + $0x10] sm:$0xff]
      %v531 = vld [vmem:[%s527 + $0x18] sm:$0xff]
      %v532 = vld [vmem:[%s527 + $0x20] sm:$0xff]
      %v533 = vld [vmem:[%s527 + $0x28] sm:$0xff]
      %v534 = vld [vmem:[%s527 + $0x30] sm:$0xff]
      %v535 = vld [vmem:[%s527 + $0x38] sm:$0xff]
      %v536 = vld [vmem:[%s527 + $0x40] sm:$0xff]
      %v537 = vld [vmem:[%s527 + $0x48] sm:$0xff]
      %v538 = vld [vmem:[%s527 + $0x50] sm:$0xff]
      %v539 = vld [vmem:[%s527 + $0x58] sm:$0xff]
      %v540 = vld [vmem:[%s527 + $0x60] sm:$0x3f]
      %v541 = vmul.f32 %v528, %v478
      %v542 = vmul.f32 %v529, %v478
      %v543 = vmul.f32 %v530, %v478
      %v544 = vmul.f32 %v531, %v478
      %v545 = vmul.f32 %v532, %v478
      %v546 = vmul.f32 %v533, %v478
      %v547 = vmul.f32 %v534, %v478
      %v548 = vmul.f32 %v535, %v478
      %v549 = vmul.f32 %v536, %v478
      %v550 = vmul.f32 %v537, %v478
      %v551 = vmul.f32 %v538, %v478
      %v552 = vmul.f32 %v539, %v478
      %v553 = vmul.f32 %v540, %v478
      %v554 = vadd.f32 %v541, %v497
      %v555 = vadd.f32 %v542, %v497
      %v556 = vadd.f32 %v543, %v497
      %v557 = vadd.f32 %v544, %v497
      %v558 = vadd.f32 %v545, %v497
      %v559 = vadd.f32 %v546, %v497
      %v560 = vadd.f32 %v547, %v497
      %v561 = vadd.f32 %v548, %v497
      %v562 = vadd.f32 %v549, %v497
      %v563 = vadd.f32 %v550, %v497
      %v564 = vadd.f32 %v551, %v497
      %v565 = vadd.f32 %v552, %v497
      %v566 = vadd.f32 %v553, %v497
      %v567 = vmax.f32 %v554, 0.0
      %v568 = vmax.f32 %v555, 0.0
      %v569 = vmax.f32 %v556, 0.0
      %v570 = vmax.f32 %v557, 0.0
      %v571 = vmax.f32 %v558, 0.0
      %v572 = vmax.f32 %v559, 0.0
      %v573 = vmax.f32 %v560, 0.0
      %v574 = vmax.f32 %v561, 0.0
      %v575 = vmax.f32 %v562, 0.0
      %v576 = vmax.f32 %v563, 0.0
      %v577 = vmax.f32 %v564, 0.0
      %v578 = vmax.f32 %v565, 0.0
      %v579 = vmax.f32 %v566, 0.0
      %s580 = sadd.s32 %s29, 2
      %s581 = smul.u32 %s580, 104
      %s582 = scalar_lea.vmem %s439, %s581
      %v583 = vld [vmem:[%s582] sm:$0xff]
      %v584 = vld [vmem:[%s582 + $0x8] sm:$0xff]
      %v585 = vld [vmem:[%s582 + $0x10] sm:$0xff]
      %v586 = vld [vmem:[%s582 + $0x18] sm:$0xff]
      %v587 = vld [vmem:[%s582 + $0x20] sm:$0xff]
      %v588 = vld [vmem:[%s582 + $0x28] sm:$0xff]
      %v589 = vld [vmem:[%s582 + $0x30] sm:$0xff]
      %v590 = vld [vmem:[%s582 + $0x38] sm:$0xff]
      %v591 = vld [vmem:[%s582 + $0x40] sm:$0xff]
      %v592 = vld [vmem:[%s582 + $0x48] sm:$0xff]
      %v593 = vld [vmem:[%s582 + $0x50] sm:$0xff]
      %v594 = vld [vmem:[%s582 + $0x58] sm:$0xff]
      %v595 = vld [vmem:[%s582 + $0x60] sm:$0x3f]
      %v596 = vmul.f32 %v583, %v478
      %v597 = vmul.f32 %v584, %v478
      %v598 = vmul.f32 %v585, %v478
      %v599 = vmul.f32 %v586, %v478
      %v600 = vmul.f32 %v587, %v478
      %v601 = vmul.f32 %v588, %v478
      %v602 = vmul.f32 %v589, %v478
      %v603 = vmul.f32 %v590, %v478
      %v604 = vmul.f32 %v591, %v478
      %v605 = vmul.f32 %v592, %v478
      %v606 = vmul.f32 %v593, %v478
      %v607 = vmul.f32 %v594, %v478
      %v608 = vmul.f32 %v595, %v478
      %v609 = vadd.f32 %v596, %v497
      %v610 = vadd.f32 %v597, %v497
      %v611 = vadd.f32 %v598, %v497
      %v612 = vadd.f32 %v599, %v497
      %v613 = vadd.f32 %v600, %v497
      %v614 = vadd.f32 %v601, %v497
      %v615 = vadd.f32 %v602, %v497
      %v616 = vadd.f32 %v603, %v497
      %v617 = vadd.f32 %v604, %v497
      %v618 = vadd.f32 %v605, %v497
      %v619 = vadd.f32 %v606, %v497
      %v620 = vadd.f32 %v607, %v497
      %v621 = vadd.f32 %v608, %v497
      %v622 = vmax.f32 %v609, 0.0
      %v623 = vmax.f32 %v610, 0.0
      %v624 = vmax.f32 %v611, 0.0
      %v625 = vmax.f32 %v612, 0.0
      %v626 = vmax.f32 %v613, 0.0
      %v627 = vmax.f32 %v614, 0.0
      %v628 = vmax.f32 %v615, 0.0
      %v629 = vmax.f32 %v616, 0.0
      %v630 = vmax.f32 %v617, 0.0
      %v631 = vmax.f32 %v618, 0.0
      %v632 = vmax.f32 %v619, 0.0
      %v633 = vmax.f32 %v620, 0.0
      %v634 = vmax.f32 %v621, 0.0
      %v635 = vlaneseq
      %v636 = vshrl.u32 %v635, 7
      %v637 = vadd.s32 %v636, 8
      %v638 = vadd.s32 %v636, 16
      %v639 = vadd.s32 %v636, 24
      %v640 = vadd.s32 %v636, 32
      %v641 = vadd.s32 %v636, 40
      %v642 = vadd.s32 %v636, 48
      %v643 = vadd.s32 %v636, 56
      %v644 = vadd.s32 %v636, 64
      %v645 = vadd.s32 %v636, 72
      %vm646 = vcmp.lt.s32.totalorder %v636, 0
      %v647 = vsub.s32 0, %v636
      %v648 = vsel %vm646, %v647, %v636
      %v649 = vmul.u32.u64.compose %v648, 3435973837
      %v650 = vextract.low.u32 %v649
      %v651 = vextract.high.u32 %v649
      %v652 = vshrl.u32 %v651, 3
      %v653 = vmul.u32 %v652, 10
      %v654 = vsub.s32 %v648, %v653
      %v655 = vsub.s32 0, %v654
      %v656 = vsel %vm646, %v655, %v654
      %vm657 = vcmp.lt.s32.totalorder %v637, 0
      %v658 = vsub.s32 0, %v637
      %v659 = vsel %vm657, %v658, %v637
      %v660 = vmul.u32.u64.compose %v659, 3435973837
      %v661 = vextract.low.u32 %v660
      %v662 = vextract.high.u32 %v660
      %v663 = vshrl.u32 %v662, 3
      %v664 = vmul.u32 %v663, 10
      %v665 = vsub.s32 %v659, %v664
      %v666 = vsub.s32 0, %v665
      %v667 = vsel %vm657, %v666, %v665
      %vm668 = vcmp.lt.s32.totalorder %v638, 0
      %v669 = vsub.s32 0, %v638
      %v670 = vsel %vm668, %v669, %v638
      %v671 = vmul.u32.u64.compose %v670, 3435973837
      %v672 = vextract.low.u32 %v671
      %v673 = vextract.high.u32 %v671
      %v674 = vshrl.u32 %v673, 3
      %v675 = vmul.u32 %v674, 10
      %v676 = vsub.s32 %v670, %v675
      %v677 = vsub.s32 0, %v676
      %v678 = vsel %vm668, %v677, %v676
      %vm679 = vcmp.lt.s32.totalorder %v639, 0
      %v680 = vsub.s32 0, %v639
      %v681 = vsel %vm679, %v680, %v639
      %v682 = vmul.u32.u64.compose %v681, 3435973837
      %v683 = vextract.low.u32 %v682
      %v684 = vextract.high.u32 %v682
      %v685 = vshrl.u32 %v684, 3
      %v686 = vmul.u32 %v685, 10
      %v687 = vsub.s32 %v681, %v686
      %v688 = vsub.s32 0, %v687
      %v689 = vsel %vm679, %v688, %v687
      %vm690 = vcmp.lt.s32.totalorder %v640, 0
      %v691 = vsub.s32 0, %v640
      %v692 = vsel %vm690, %v691, %v640
      %v693 = vmul.u32.u64.compose %v692, 3435973837
      %v694 = vextract.low.u32 %v693
      %v695 = vextract.high.u32 %v693
      %v696 = vshrl.u32 %v695, 3
      %v697 = vmul.u32 %v696, 10
      %v698 = vsub.s32 %v692, %v697
      %v699 = vsub.s32 0, %v698
      %v700 = vsel %vm690, %v699, %v698
      %vm701 = vcmp.lt.s32.totalorder %v641, 0
      %v702 = vsub.s32 0, %v641
      %v703 = vsel %vm701, %v702, %v641
      %v704 = vmul.u32.u64.compose %v703, 3435973837
      %v705 = vextract.low.u32 %v704
      %v706 = vextract.high.u32 %v704
      %v707 = vshrl.u32 %v706, 3
      %v708 = vmul.u32 %v707, 10
      %v709 = vsub.s32 %v703, %v708
      %v710 = vsub.s32 0, %v709
      %v711 = vsel %vm701, %v710, %v709
      %vm712 = vcmp.lt.s32.totalorder %v642, 0
      %v713 = vsub.s32 0, %v642
      %v714 = vsel %vm712, %v713, %v642
      %v715 = vmul.u32.u64.compose %v714, 3435973837
      %v716 = vextract.low.u32 %v715
      %v717 = vextract.high.u32 %v715
      %v718 = vshrl.u32 %v717, 3
      %v719 = vmul.u32 %v718, 10
      %v720 = vsub.s32 %v714, %v719
      %v721 = vsub.s32 0, %v720
      %v722 = vsel %vm712, %v721, %v720
      %vm723 = vcmp.lt.s32.totalorder %v643, 0
      %v724 = vsub.s32 0, %v643
      %v725 = vsel %vm723, %v724, %v643
      %v726 = vmul.u32.u64.compose %v725, 3435973837
      %v727 = vextract.low.u32 %v726
      %v728 = vextract.high.u32 %v726
      %v729 = vshrl.u32 %v728, 3
      %v730 = vmul.u32 %v729, 10
      %v731 = vsub.s32 %v725, %v730
      %v732 = vsub.s32 0, %v731
      %v733 = vsel %vm723, %v732, %v731
      %vm734 = vcmp.lt.s32.totalorder %v644, 0
      %v735 = vsub.s32 0, %v644
      %v736 = vsel %vm734, %v735, %v644
      %v737 = vmul.u32.u64.compose %v736, 3435973837
      %v738 = vextract.low.u32 %v737
      %v739 = vextract.high.u32 %v737
      %v740 = vshrl.u32 %v739, 3
      %v741 = vmul.u32 %v740, 10
      %v742 = vsub.s32 %v736, %v741
      %v743 = vsub.s32 0, %v742
      %v744 = vsel %vm734, %v743, %v742
      %vm745 = vcmp.lt.s32.totalorder %v645, 0
      %v746 = vsub.s32 0, %v645
      %v747 = vsel %vm745, %v746, %v645
      %v748 = vmul.u32.u64.compose %v747, 3435973837
      %v749 = vextract.low.u32 %v748
      %v750 = vextract.high.u32 %v748
      %v751 = vshrl.u32 %v750, 3
      %v752 = vmul.u32 %v751, 10
      %v753 = vsub.s32 %v747, %v752
      %v754 = vsub.s32 0, %v753
      %v755 = vsel %vm745, %v754, %v753
      %vm756 = vcmp.ne.s32.totalorder %v656, 0
      %vm757 = vcmp.ne.s32.totalorder %v667, 0
      %vm758 = vcmp.ne.s32.totalorder %v678, 0
      %vm759 = vcmp.ne.s32.totalorder %v689, 0
      %vm760 = vcmp.ne.s32.totalorder %v700, 0
      %vm761 = vcmp.ne.s32.totalorder %v711, 0
      %vm762 = vcmp.ne.s32.totalorder %v722, 0
      %vm763 = vcmp.ne.s32.totalorder %v733, 0
      %vm764 = vcmp.ne.s32.totalorder %v744, 0
      %vm765 = vcmp.ne.s32.totalorder %v755, 0
      %vm766 = vcmp.lt.s32.totalorder %v656, 0
      %vm767 = vcmp.lt.s32.totalorder %v667, 0
      %vm768 = vcmp.lt.s32.totalorder %v678, 0
      %vm769 = vcmp.lt.s32.totalorder %v689, 0
      %vm770 = vcmp.lt.s32.totalorder %v700, 0
      %vm771 = vcmp.lt.s32.totalorder %v711, 0
      %vm772 = vcmp.lt.s32.totalorder %v722, 0
      %vm773 = vcmp.lt.s32.totalorder %v733, 0
      %vm774 = vcmp.lt.s32.totalorder %v744, 0
      %vm775 = vcmp.lt.s32.totalorder %v755, 0
      %vm776 = vmand %vm766, %vm756
      %vm777 = vmand %vm767, %vm757
      %vm778 = vmand %vm768, %vm758
      %vm779 = vmand %vm769, %vm759
      %vm780 = vmand %vm770, %vm760
      %vm781 = vmand %vm771, %vm761
      %vm782 = vmand %vm772, %vm762
      %vm783 = vmand %vm773, %vm763
      %vm784 = vmand %vm774, %vm764
      %vm785 = vmand %vm775, %vm765
      %v786 = vadd.s32 %v656, 10
      %v787 = vadd.s32 %v667, 10
      %v788 = vadd.s32 %v678, 10
      %v789 = vadd.s32 %v689, 10
      %v790 = vadd.s32 %v700, 10
      %v791 = vadd.s32 %v711, 10
      %v792 = vadd.s32 %v722, 10
      %v793 = vadd.s32 %v733, 10
      %v794 = vadd.s32 %v744, 10
      %v795 = vadd.s32 %v755, 10
      %v796 = vsel %vm776, %v786, %v656
      %v797 = vsel %vm777, %v787, %v667
      %v798 = vsel %vm778, %v788, %v678
      %v799 = vsel %vm779, %v789, %v689
      %v800 = vsel %vm780, %v790, %v700
      %v801 = vsel %vm781, %v791, %v711
      %v802 = vsel %vm782, %v792, %v722
      %v803 = vsel %vm783, %v793, %v733
      %v804 = vsel %vm784, %v794, %v744
      %v805 = vsel %vm785, %v795, %v755
      %vm806 = vcmp.lt.s32.totalorder %v796, 8
      %vm807 = vcmp.lt.s32.totalorder %v797, 8
      %vm808 = vcmp.lt.s32.totalorder %v798, 8
      %vm809 = vcmp.lt.s32.totalorder %v799, 8
      %vm810 = vcmp.lt.s32.totalorder %v800, 8
      %vm811 = vcmp.lt.s32.totalorder %v801, 8
      %vm812 = vcmp.lt.s32.totalorder %v802, 8
      %vm813 = vcmp.lt.s32.totalorder %v803, 8
      %vm814 = vcmp.lt.s32.totalorder %v804, 8
      %vm815 = vcmp.lt.s32.totalorder %v805, 8
      %vm827 = vcmask 1040384
      %v828 = vrot.slane %v568, 7
      %v829 = vrot.slane %v569, 7
      %v830 = vsel %vm827, %v828, %v829
      %v831 = vrot.slane %v570, 7
      %v832 = vsel %vm827, %v829, %v831
      %v833 = vrot.slane %v571, 7
      %v834 = vsel %vm827, %v831, %v833
      %v835 = vrot.slane %v572, 7
      %v836 = vsel %vm827, %v833, %v835
      %v837 = vrot.slane %v573, 7
      %v838 = vsel %vm827, %v835, %v837
      %v839 = vrot.slane %v574, 7
      %v840 = vsel %vm827, %v837, %v839
      %v841 = vrot.slane %v575, 7
      %v842 = vsel %vm827, %v839, %v841
      %v843 = vrot.slane %v576, 7
      %v844 = vsel %vm827, %v841, %v843
      %v845 = vrot.slane %v577, 7
      %v846 = vsel %vm827, %v843, %v845
      %v847 = vrot.slane %v578, 7
      %v848 = vsel %vm827, %v845, %v847
      %849 = vrot.lane.b32.xlu0 %v828, 8
      %v850 = vpop.permute.xlu0 %849
      %851 = vrot.lane.b32.xlu0 %v830, 8
      %v852 = vpop.permute.xlu0 %851
      %853 = vrot.lane.b32.xlu0 %v832, 8
      %v854 = vpop.permute.xlu0 %853
      %855 = vrot.lane.b32.xlu0 %v834, 8
      %v856 = vpop.permute.xlu0 %855
      %857 = vrot.lane.b32.xlu0 %v836, 8
      %v858 = vpop.permute.xlu0 %857
      %859 = vrot.lane.b32.xlu0 %v838, 8
      %v860 = vpop.permute.xlu0 %859
      %861 = vrot.lane.b32.xlu0 %v840, 8
      %v862 = vpop.permute.xlu0 %861
      %863 = vrot.lane.b32.xlu0 %v842, 8
      %v864 = vpop.permute.xlu0 %863
      %865 = vrot.lane.b32.xlu0 %v844, 8
      %v866 = vpop.permute.xlu0 %865
      %867 = vrot.lane.b32.xlu0 %v846, 8
      %v868 = vpop.permute.xlu0 %867
      %869 = vrot.lane.b32.xlu0 %v848, 8
      %v870 = vpop.permute.xlu0 %869
      %vm883 = vcmask 1041408
      %v884 = vrot.slane %v567, 6
      %v885 = vrot.slane %v568, 6
      %v886 = vsel %vm883, %v884, %v885
      %v887 = vrot.slane %v569, 6
      %v888 = vsel %vm883, %v885, %v887
      %v889 = vrot.slane %v570, 6
      %v890 = vsel %vm883, %v887, %v889
      %v891 = vrot.slane %v571, 6
      %v892 = vsel %vm883, %v889, %v891
      %v893 = vrot.slane %v572, 6
      %v894 = vsel %vm883, %v891, %v893
      %v895 = vrot.slane %v573, 6
      %v896 = vsel %vm883, %v893, %v895
      %v897 = vrot.slane %v574, 6
      %v898 = vsel %vm883, %v895, %v897
      %v899 = vrot.slane %v575, 6
      %v900 = vsel %vm883, %v897, %v899
      %v901 = vrot.slane %v576, 6
      %v902 = vsel %vm883, %v899, %v901
      %v903 = vrot.slane %v577, 6
      %v904 = vsel %vm883, %v901, %v903
      %905 = vrot.lane.b32.xlu0 %v884, 16
      %v906 = vpop.permute.xlu0 %905
      %907 = vrot.lane.b32.xlu0 %v886, 16
      %v908 = vpop.permute.xlu0 %907
      %909 = vrot.lane.b32.xlu0 %v888, 16
      %v910 = vpop.permute.xlu0 %909
      %911 = vrot.lane.b32.xlu0 %v890, 16
      %v912 = vpop.permute.xlu0 %911
      %913 = vrot.lane.b32.xlu0 %v892, 16
      %v914 = vpop.permute.xlu0 %913
      %915 = vrot.lane.b32.xlu0 %v894, 16
      %v916 = vpop.permute.xlu0 %915
      %917 = vrot.lane.b32.xlu0 %v896, 16
      %v918 = vpop.permute.xlu0 %917
      %919 = vrot.lane.b32.xlu0 %v898, 16
      %v920 = vpop.permute.xlu0 %919
      %921 = vrot.lane.b32.xlu0 %v900, 16
      %v922 = vpop.permute.xlu0 %921
      %923 = vrot.lane.b32.xlu0 %v902, 16
      %v924 = vpop.permute.xlu0 %923
      %925 = vrot.lane.b32.xlu0 %v904, 16
      %v926 = vpop.permute.xlu0 %925
      %vm938 = vcmask 1042432
      %v939 = vrot.slane %v567, 5
      %v940 = vrot.slane %v568, 5
      %v941 = vsel %vm938, %v939, %v940
      %v942 = vrot.slane %v569, 5
      %v943 = vsel %vm938, %v940, %v942
      %v944 = vrot.slane %v570, 5
      %v945 = vsel %vm938, %v942, %v944
      %v946 = vrot.slane %v571, 5
      %v947 = vsel %vm938, %v944, %v946
      %v948 = vrot.slane %v572, 5
      %v949 = vsel %vm938, %v946, %v948
      %v950 = vrot.slane %v573, 5
      %v951 = vsel %vm938, %v948, %v950
      %v952 = vrot.slane %v574, 5
      %v953 = vsel %vm938, %v950, %v952
      %v954 = vrot.slane %v575, 5
      %v955 = vsel %vm938, %v952, %v954
      %v956 = vrot.slane %v576, 5
      %v957 = vsel %vm938, %v954, %v956
      %958 = vrot.lane.b32.xlu0 %v939, 24
      %v959 = vpop.permute.xlu0 %958
      %960 = vrot.lane.b32.xlu0 %v941, 24
      %v961 = vpop.permute.xlu0 %960
      %962 = vrot.lane.b32.xlu0 %v943, 24
      %v963 = vpop.permute.xlu0 %962
      %964 = vrot.lane.b32.xlu0 %v945, 24
      %v965 = vpop.permute.xlu0 %964
      %966 = vrot.lane.b32.xlu0 %v947, 24
      %v967 = vpop.permute.xlu0 %966
      %968 = vrot.lane.b32.xlu0 %v949, 24
      %v969 = vpop.permute.xlu0 %968
      %970 = vrot.lane.b32.xlu0 %v951, 24
      %v971 = vpop.permute.xlu0 %970
      %972 = vrot.lane.b32.xlu0 %v953, 24
      %v973 = vpop.permute.xlu0 %972
      %974 = vrot.lane.b32.xlu0 %v955, 24
      %v975 = vpop.permute.xlu0 %974
      %976 = vrot.lane.b32.xlu0 %v957, 24
      %v977 = vpop.permute.xlu0 %976
      %978 = vrot.lane.b32.xlu0 %v956, 24
      %v979 = vpop.permute.xlu0 %978
      %1002 = vrot.lane.b32.xlu0 %v513, 32
      %v1003 = vpop.permute.xlu0 %1002
      %1004 = vrot.lane.b32.xlu0 %v514, 32
      %v1005 = vpop.permute.xlu0 %1004
      %1006 = vrot.lane.b32.xlu0 %v515, 32
      %v1007 = vpop.permute.xlu0 %1006
      %1008 = vrot.lane.b32.xlu0 %v516, 32
      %v1009 = vpop.permute.xlu0 %1008
      %1010 = vrot.lane.b32.xlu0 %v517, 32
      %v1011 = vpop.permute.xlu0 %1010
      %1012 = vrot.lane.b32.xlu0 %v518, 32
      %v1013 = vpop.permute.xlu0 %1012
      %1014 = vrot.lane.b32.xlu0 %v519, 32
      %v1015 = vpop.permute.xlu0 %1014
      %1016 = vrot.lane.b32.xlu0 %v520, 32
      %v1017 = vpop.permute.xlu0 %1016
      %1018 = vrot.lane.b32.xlu0 %v521, 32
      %v1019 = vpop.permute.xlu0 %1018
      %1020 = vrot.lane.b32.xlu0 %v522, 32
      %v1021 = vpop.permute.xlu0 %1020
      %1022 = vrot.lane.b32.xlu0 %v523, 32
      %v1023 = vpop.permute.xlu0 %1022
      %v1035 = vrot.slane %v513, 7
      %v1036 = vrot.slane %v514, 7
      %v1037 = vsel %vm827, %v1035, %v1036
      %v1038 = vrot.slane %v515, 7
      %v1039 = vsel %vm827, %v1036, %v1038
      %v1040 = vrot.slane %v516, 7
      %v1041 = vsel %vm827, %v1038, %v1040
      %v1042 = vrot.slane %v517, 7
      %v1043 = vsel %vm827, %v1040, %v1042
      %v1044 = vrot.slane %v518, 7
      %v1045 = vsel %vm827, %v1042, %v1044
      %v1046 = vrot.slane %v519, 7
      %v1047 = vsel %vm827, %v1044, %v1046
      %v1048 = vrot.slane %v520, 7
      %v1049 = vsel %vm827, %v1046, %v1048
      %v1050 = vrot.slane %v521, 7
      %v1051 = vsel %vm827, %v1048, %v1050
      %v1052 = vrot.slane %v522, 7
      %v1053 = vsel %vm827, %v1050, %v1052
      %v1054 = vrot.slane %v523, 7
      %v1055 = vsel %vm827, %v1052, %v1054
      %1056 = vrot.lane.b32.xlu0 %v1035, 40
      %v1057 = vpop.permute.xlu0 %1056
      %1058 = vrot.lane.b32.xlu0 %v1037, 40
      %v1059 = vpop.permute.xlu0 %1058
      %1060 = vrot.lane.b32.xlu0 %v1039, 40
      %v1061 = vpop.permute.xlu0 %1060
      %1062 = vrot.lane.b32.xlu0 %v1041, 40
      %v1063 = vpop.permute.xlu0 %1062
      %1064 = vrot.lane.b32.xlu0 %v1043, 40
      %v1065 = vpop.permute.xlu0 %1064
      %1066 = vrot.lane.b32.xlu0 %v1045, 40
      %v1067 = vpop.permute.xlu0 %1066
      %1068 = vrot.lane.b32.xlu0 %v1047, 40
      %v1069 = vpop.permute.xlu0 %1068
      %1070 = vrot.lane.b32.xlu0 %v1049, 40
      %v1071 = vpop.permute.xlu0 %1070
      %1072 = vrot.lane.b32.xlu0 %v1051, 40
      %v1073 = vpop.permute.xlu0 %1072
      %1074 = vrot.lane.b32.xlu0 %v1053, 40
      %v1075 = vpop.permute.xlu0 %1074
      %1076 = vrot.lane.b32.xlu0 %v1055, 40
      %v1077 = vpop.permute.xlu0 %1076
      %v1090 = vrot.slane %v512, 6
      %v1091 = vrot.slane %v513, 6
      %v1092 = vsel %vm883, %v1090, %v1091
      %v1093 = vrot.slane %v514, 6
      %v1094 = vsel %vm883, %v1091, %v1093
      %v1095 = vrot.slane %v515, 6
      %v1096 = vsel %vm883, %v1093, %v1095
      %v1097 = vrot.slane %v516, 6
      %v1098 = vsel %vm883, %v1095, %v1097
      %v1099 = vrot.slane %v517, 6
      %v1100 = vsel %vm883, %v1097, %v1099
      %v1101 = vrot.slane %v518, 6
      %v1102 = vsel %vm883, %v1099, %v1101
      %v1103 = vrot.slane %v519, 6
      %v1104 = vsel %vm883, %v1101, %v1103
      %v1105 = vrot.slane %v520, 6
      %v1106 = vsel %vm883, %v1103, %v1105
      %v1107 = vrot.slane %v521, 6
      %v1108 = vsel %vm883, %v1105, %v1107
      %v1109 = vrot.slane %v522, 6
      %v1110 = vsel %vm883, %v1107, %v1109
      %1111 = vrot.lane.b32.xlu0 %v1090, 48
      %v1112 = vpop.permute.xlu0 %1111
      %1113 = vrot.lane.b32.xlu0 %v1092, 48
      %v1114 = vpop.permute.xlu0 %1113
      %1115 = vrot.lane.b32.xlu0 %v1094, 48
      %v1116 = vpop.permute.xlu0 %1115
      %1117 = vrot.lane.b32.xlu0 %v1096, 48
      %v1118 = vpop.permute.xlu0 %1117
      %1119 = vrot.lane.b32.xlu0 %v1098, 48
      %v1120 = vpop.permute.xlu0 %1119
      %1121 = vrot.lane.b32.xlu0 %v1100, 48
      %v1122 = vpop.permute.xlu0 %1121
      %1123 = vrot.lane.b32.xlu0 %v1102, 48
      %v1124 = vpop.permute.xlu0 %1123
      %1125 = vrot.lane.b32.xlu0 %v1104, 48
      %v1126 = vpop.permute.xlu0 %1125
      %1127 = vrot.lane.b32.xlu0 %v1106, 48
      %v1128 = vpop.permute.xlu0 %1127
      %1129 = vrot.lane.b32.xlu0 %v1108, 48
      %v1130 = vpop.permute.xlu0 %1129
      %1131 = vrot.lane.b32.xlu0 %v1110, 48
      %v1132 = vpop.permute.xlu0 %1131
      %v1144 = vrot.slane %v512, 5
      %v1145 = vrot.slane %v513, 5
      %v1146 = vsel %vm938, %v1144, %v1145
      %v1147 = vrot.slane %v514, 5
      %v1148 = vsel %vm938, %v1145, %v1147
      %v1149 = vrot.slane %v515, 5
      %v1150 = vsel %vm938, %v1147, %v1149
      %v1151 = vrot.slane %v516, 5
      %v1152 = vsel %vm938, %v1149, %v1151
      %v1153 = vrot.slane %v517, 5
      %v1154 = vsel %vm938, %v1151, %v1153
      %v1155 = vrot.slane %v518, 5
      %v1156 = vsel %vm938, %v1153, %v1155
      %v1157 = vrot.slane %v519, 5
      %v1158 = vsel %vm938, %v1155, %v1157
      %v1159 = vrot.slane %v520, 5
      %v1160 = vsel %vm938, %v1157, %v1159
      %v1161 = vrot.slane %v521, 5
      %v1162 = vsel %vm938, %v1159, %v1161
      %1163 = vrot.lane.b32.xlu0 %v1144, 56
      %v1164 = vpop.permute.xlu0 %1163
      %1165 = vrot.lane.b32.xlu0 %v1146, 56
      %v1166 = vpop.permute.xlu0 %1165
      %1167 = vrot.lane.b32.xlu0 %v1148, 56
      %v1168 = vpop.permute.xlu0 %1167
      %1169 = vrot.lane.b32.xlu0 %v1150, 56
      %v1170 = vpop.permute.xlu0 %1169
      %1171 = vrot.lane.b32.xlu0 %v1152, 56
      %v1172 = vpop.permute.xlu0 %1171
      %1173 = vrot.lane.b32.xlu0 %v1154, 56
      %v1174 = vpop.permute.xlu0 %1173
      %1175 = vrot.lane.b32.xlu0 %v1156, 56
      %v1176 = vpop.permute.xlu0 %1175
      %1177 = vrot.lane.b32.xlu0 %v1158, 56
      %v1178 = vpop.permute.xlu0 %1177
      %1179 = vrot.lane.b32.xlu0 %v1160, 56
      %v1180 = vpop.permute.xlu0 %1179
      %1181 = vrot.lane.b32.xlu0 %v1162, 56
      %v1182 = vpop.permute.xlu0 %1181
      %1183 = vrot.lane.b32.xlu0 %v1161, 56
      %v1184 = vpop.permute.xlu0 %1183
      %vm1196 = vcmask 64512
      %v1197 = vsel %vm1196, %v568, %v850
      %v1198 = vsel %vm1196, %v569, %v852
      %v1199 = vsel %vm1196, %v570, %v854
      %v1200 = vsel %vm1196, %v571, %v856
      %v1201 = vsel %vm1196, %v572, %v858
      %v1202 = vsel %vm1196, %v573, %v860
      %v1203 = vsel %vm1196, %v574, %v862
      %v1204 = vsel %vm1196, %v575, %v864
      %v1205 = vsel %vm1196, %v576, %v866
      %v1206 = vsel %vm1196, %v577, %v868
      %v1207 = vsel %vm1196, %v578, %v870
      %vm1208 = vcmask 130048
      %v1209 = vsel %vm1208, %v1197, %v906
      %v1210 = vsel %vm1208, %v1198, %v908
      %v1211 = vsel %vm1208, %v1199, %v910
      %v1212 = vsel %vm1208, %v1200, %v912
      %v1213 = vsel %vm1208, %v1201, %v914
      %v1214 = vsel %vm1208, %v1202, %v916
      %v1215 = vsel %vm1208, %v1203, %v918
      %v1216 = vsel %vm1208, %v1204, %v920
      %v1217 = vsel %vm1208, %v1205, %v922
      %v1218 = vsel %vm1208, %v1206, %v924
      %v1219 = vsel %vm1208, %v1207, %v926
      %vm1220 = vcmask 195584
      %v1221 = vsel %vm1220, %v1209, %v959
      %v1222 = vsel %vm1220, %v1210, %v961
      %v1223 = vsel %vm1220, %v1211, %v963
      %v1224 = vsel %vm1220, %v1212, %v965
      %v1225 = vsel %vm1220, %v1213, %v967
      %v1226 = vsel %vm1220, %v1214, %v969
      %v1227 = vsel %vm1220, %v1215, %v971
      %v1228 = vsel %vm1220, %v1216, %v973
      %v1229 = vsel %vm1220, %v1217, %v975
      %v1230 = vsel %vm1220, %v1218, %v977
      %v1231 = vsel %vm1220, %v1219, %v979
      %vm1232 = vcmask 261120
      %v1233 = vsel %vm1232, %v1221, %v1003
      %v1234 = vsel %vm1232, %v1222, %v1005
      %v1235 = vsel %vm1232, %v1223, %v1007
      %v1236 = vsel %vm1232, %v1224, %v1009
      %v1237 = vsel %vm1232, %v1225, %v1011
      %v1238 = vsel %vm1232, %v1226, %v1013
      %v1239 = vsel %vm1232, %v1227, %v1015
      %v1240 = vsel %vm1232, %v1228, %v1017
      %v1241 = vsel %vm1232, %v1229, %v1019
      %v1242 = vsel %vm1232, %v1230, %v1021
      %v1243 = vsel %vm1232, %v1231, %v1023
      %vm1244 = vcmask 326656
      %v1245 = vsel %vm1244, %v1233, %v1057
      %v1246 = vsel %vm1244, %v1234, %v1059
      %v1247 = vsel %vm1244, %v1235, %v1061
      %v1248 = vsel %vm1244, %v1236, %v1063
      %v1249 = vsel %vm1244, %v1237, %v1065
      %v1250 = vsel %vm1244, %v1238, %v1067
      %v1251 = vsel %vm1244, %v1239, %v1069
      %v1252 = vsel %vm1244, %v1240, %v1071
      %v1253 = vsel %vm1244, %v1241, %v1073
      %v1254 = vsel %vm1244, %v1242, %v1075
      %v1255 = vsel %vm1244, %v1243, %v1077
      %vm1256 = vcmask 392192
      %v1257 = vsel %vm1256, %v1245, %v1112
      %v1258 = vsel %vm1256, %v1246, %v1114
      %v1259 = vsel %vm1256, %v1247, %v1116
      %v1260 = vsel %vm1256, %v1248, %v1118
      %v1261 = vsel %vm1256, %v1249, %v1120
      %v1262 = vsel %vm1256, %v1250, %v1122
      %v1263 = vsel %vm1256, %v1251, %v1124
      %v1264 = vsel %vm1256, %v1252, %v1126
      %v1265 = vsel %vm1256, %v1253, %v1128
      %v1266 = vsel %vm1256, %v1254, %v1130
      %v1267 = vsel %vm1256, %v1255, %v1132
      %vm1268 = vcmask 457728
      %v1269 = vsel %vm1268, %v1257, %v1164
      %v1270 = vsel %vm1268, %v1258, %v1166
      %v1271 = vsel %vm1268, %v1259, %v1168
      %v1272 = vsel %vm1268, %v1260, %v1170
      %v1273 = vsel %vm1268, %v1261, %v1172
      %v1274 = vsel %vm1268, %v1262, %v1174
      %v1275 = vsel %vm1268, %v1263, %v1176
      %v1276 = vsel %vm1268, %v1264, %v1178
      %v1277 = vsel %vm1268, %v1265, %v1180
      %v1278 = vsel %vm1268, %v1266, %v1182
      %v1279 = vsel %vm1268, %v1267, %v1184
      %v1280 = vld [vmem:[%s2] sm:$0xff]
      %v1281 = vld [vmem:[%s2 + $0x8] sm:$0xff]
      %v1282 = vld [vmem:[%s2 + $0x10] sm:$0xff]
      %v1283 = vld [vmem:[%s2 + $0x18] sm:$0xff]
      %v1284 = vld [vmem:[%s2 + $0x20] sm:$0xff]
      %v1285 = vld [vmem:[%s2 + $0x28] sm:$0xff]
      %v1286 = vld [vmem:[%s2 + $0x30] sm:$0xff]
      %v1287 = vld [vmem:[%s2 + $0x38] sm:$0xff]
      %vm1299 = vcmask 1044480
      %v1300 = vrot.slane %v1269, 3
      %v1301 = vrot.slane %v1270, 3
      %v1302 = vsel %vm1299, %v1300, %v1301
      %v1303 = vrot.slane %v1271, 3
      %v1304 = vsel %vm1299, %v1301, %v1303
      %v1305 = vrot.slane %v1272, 3
      %v1306 = vsel %vm1299, %v1303, %v1305
      %v1307 = vrot.slane %v1273, 3
      %v1308 = vsel %vm1299, %v1305, %v1307
      %v1309 = vrot.slane %v1274, 3
      %v1310 = vsel %vm1299, %v1307, %v1309
      %v1311 = vrot.slane %v1275, 3
      %v1312 = vsel %vm1299, %v1309, %v1311
      %v1313 = vrot.slane %v1276, 3
      %v1314 = vsel %vm1299, %v1311, %v1313
      %v1315 = vrot.slane %v1277, 3
      %v1316 = vsel %vm1299, %v1313, %v1315
      %v1317 = vrot.slane %v1278, 3
      %v1318 = vsel %vm1299, %v1315, %v1317
      %v1319 = vrot.slane %v1279, 3
      %v1320 = vsel %vm1299, %v1317, %v1319
      %vm1321 = vcmask 523264
      %v1322 = vsel %vm1321, %v1302, 0
      %v1324 = vsel %vm1321, %v1304, 0
      %v1326 = vsel %vm1321, %v1306, 0
      %v1328 = vsel %vm1321, %v1308, 0
      %v1330 = vsel %vm1321, %v1310, 0
      %v1332 = vsel %vm1321, %v1312, 0
      %v1334 = vsel %vm1321, %v1314, 0
      %v1336 = vsel %vm1321, %v1316, 0
      %v1338 = vsel %vm1321, %v1318, 0
      %v1340 = vsel %vm1321, %v1320, 0
      %1342 = vmatprep.subr.mxu0 0.0
      %1343 = vmatpush1.msra.mxu0 %v1280
      %1344 = vmatprep.subr.mxu0 0.0
      %1345 = vmatpush1.msra.mxu0 %v1281
      %1346 = vmatprep.subr.mxu0 0.0
      %1347 = vmatpush1.msra.mxu0 %v1282
      %1348 = vmatprep.subr.mxu0 0.0
      %1349 = vmatpush1.msra.mxu0 %v1283
      %1350 = vmatprep.subr.mxu0 0.0
      %1351 = vmatpush1.msra.mxu0 %v1284
      %1352 = vmatprep.subr.mxu0 0.0
      %1353 = vmatpush1.msra.mxu0 %v1285
      %1354 = vmatprep.subr.mxu0 0.0
      %1355 = vmatpush1.msra.mxu0 %v1286
      %1356 = vmatprep.subr.mxu0 0.0
      %1357 = vmatpush1.msra.mxu0 %v1287
      %1358 = vmatprep.subr.mxu0 0.0
      %1359 = vmatpush1.msra.mxu0 0.0
      %1360 = vmatprep.subr.mxu0 0.0
      %1361 = vmatpush1.msra.mxu0 0.0
      %1362 = vmatprep.subr.mxu0 0.0
      %1363 = vmatpush1.msra.mxu0 0.0
      %1364 = vmatprep.subr.mxu0 0.0
      %1365 = vmatpush1.msra.mxu0 0.0
      %1366 = vmatprep.subr.mxu0 0.0
      %1367 = vmatpush1.msra.mxu0 0.0
      %1368 = vmatprep.subr.mxu0 0.0
      %1369 = vmatpush1.msra.mxu0 0.0
      %1370 = vmatprep.subr.mxu0 0.0
      %1371 = vmatpush1.msra.mxu0 0.0
      %1372 = vmatprep.subr.mxu0 0.0
      %1373 = vmatpush1.msra.mxu0 0.0
      %1374 = vmatprep.subr.mxu0 0.0
      %1375 = vmatpush1.msra.mxu0 0.0
      %1376 = vmatprep.subr.mxu0 0.0
      %1377 = vmatpush1.msra.mxu0 0.0
      %1378 = vmatprep.subr.mxu0 0.0
      %1379 = vmatpush1.msra.mxu0 0.0
      %1380 = vmatprep.subr.mxu0 0.0
      %1381 = vmatpush1.msra.mxu0 0.0
      %1382 = vmatprep.subr.mxu0 0.0
      %1383 = vmatpush1.msra.mxu0 0.0
      %1384 = vmatprep.subr.mxu0 0.0
      %1385 = vmatpush1.msra.mxu0 0.0
      %1386 = vmatprep.subr.mxu0 0.0
      %1387 = vmatpush1.msra.mxu0 0.0
      %1388 = vmatprep.subr.mxu0 0.0
      %1389 = vmatpush1.msra.mxu0 0.0
      %1390 = vmatprep.subr.mxu0 0.0
      %1391 = vmatpush1.msra.mxu0 0.0
      %1392 = vmatprep.subr.mxu0 0.0
      %1393 = vmatpush1.msra.mxu0 0.0
      %1394 = vmatprep.subr.mxu0 0.0
      %1395 = vmatpush1.msra.mxu0 0.0
      %1396 = vmatprep.subr.mxu0 0.0
      %1397 = vmatpush1.msra.mxu0 0.0
      %1398 = vmatprep.subr.mxu0 0.0
      %1399 = vmatpush1.msra.mxu0 0.0
      %1400 = vmatprep.subr.mxu0 0.0
      %1401 = vmatpush1.msra.mxu0 0.0
      %1402 = vmatprep.subr.mxu0 0.0
      %1403 = vmatpush1.msra.mxu0 0.0
      %1404 = vmatprep.subr.mxu0 0.0
      %1405 = vmatpush1.msra.mxu0 0.0
      %1406 = vmatprep.mubr.f32.mxu0 0.0
      %1407 = vmatmul.mubr.f32.gmra.mrb[0].mxu0 %v1322
      %v1408 = vpop.f32.mrb[0].mxu0
      %v1409 = vadd.f32 0.0, %v1408
      %v1410 = vpop.f32.mrb[0].mxu0
      %1411 = vmatprep.mubr.f32.mxu0 0.0
      %1412 = vmatmul.mubr.f32.gmra.mrb[0].mxu0 %v1324
      %v1413 = vpop.f32.mrb[0].mxu0
      %v1414 = vadd.f32 0.0, %v1413
      %v1415 = vpop.f32.mrb[0].mxu0
      %1416 = vmatprep.mubr.f32.mxu0 0.0
      %1417 = vmatmul.mubr.f32.gmra.mrb[0].mxu0 %v1326
      %v1418 = vpop.f32.mrb[0].mxu0
      %v1419 = vadd.f32 0.0, %v1418
      %v1420 = vpop.f32.mrb[0].mxu0
      %1421 = vmatprep.mubr.f32.mxu0 0.0
      %1422 = vmatmul.mubr.f32.gmra.mrb[0].mxu0 %v1328
      %v1423 = vpop.f32.mrb[0].mxu0
      %v1424 = vadd.f32 0.0, %v1423
      %v1425 = vpop.f32.mrb[0].mxu0
      %1426 = vmatprep.mubr.f32.mxu0 0.0
      %1427 = vmatmul.mubr.f32.gmra.mrb[0].mxu0 %v1330
      %v1428 = vpop.f32.mrb[0].mxu0
      %v1429 = vadd.f32 0.0, %v1428
      %v1430 = vpop.f32.mrb[0].mxu0
      %1431 = vmatprep.mubr.f32.mxu0 0.0
      %1432 = vmatmul.mubr.f32.gmra.mrb[0].mxu0 %v1332
      %v1433 = vpop.f32.mrb[0].mxu0
      %v1434 = vadd.f32 0.0, %v1433
      %v1435 = vpop.f32.mrb[0].mxu0
      %1436 = vmatprep.mubr.f32.mxu0 0.0
      %1437 = vmatmul.mubr.f32.gmra.mrb[0].mxu0 %v1334
      %v1438 = vpop.f32.mrb[0].mxu0
      %v1439 = vadd.f32 0.0, %v1438
      %v1440 = vpop.f32.mrb[0].mxu0
      %1441 = vmatprep.mubr.f32.mxu0 0.0
      %1442 = vmatmul.mubr.f32.gmra.mrb[0].mxu0 %v1336
      %v1443 = vpop.f32.mrb[0].mxu0
      %v1444 = vadd.f32 0.0, %v1443
      %v1445 = vpop.f32.mrb[0].mxu0
      %1446 = vmatprep.mubr.f32.mxu0 0.0
      %1447 = vmatmul.mubr.f32.gmra.mrb[0].mxu0 %v1338
      %v1448 = vpop.f32.mrb[0].mxu0
      %v1449 = vadd.f32 0.0, %v1448
      %v1450 = vpop.f32.mrb[0].mxu0
      %1451 = vmatprep.mubr.f32.mxu0 0.0
      %1452 = vmatmul.mubr.f32.gmra.mrb[0].mxu0 %v1340
      %v1453 = vpop.f32.mrb[0].mxu0
      %v1454 = vadd.f32 0.0, %v1453
      %v1455 = vpop.f32.mrb[0].mxu0
      %1456 = vdwg.mxu0
      %1457 = vst.msk [vmem:[%s448] sm:$0xff] %vm1196, %v1409
      %1458 = vst.msk [vmem:[%s448 + $0x8] sm:$0xff] %vm1196, %v1414
      %1459 = vst.msk [vmem:[%s448 + $0x10] sm:$0xff] %vm1196, %v1419
      %1460 = vst.msk [vmem:[%s448 + $0x18] sm:$0xff] %vm1196, %v1424
      %1461 = vst.msk [vmem:[%s448 + $0x20] sm:$0xff] %vm1196, %v1429
      %1462 = vst.msk [vmem:[%s448 + $0x28] sm:$0xff] %vm1196, %v1434
      %1463 = vst.msk [vmem:[%s448 + $0x30] sm:$0xff] %vm1196, %v1439
      %1464 = vst.msk [vmem:[%s448 + $0x38] sm:$0xff] %vm1196, %v1444
      %1465 = vst.msk [vmem:[%s448 + $0x40] sm:$0xff] %vm1196, %v1449
      %1466 = vst.msk [vmem:[%s448 + $0x48] sm:$0xff] %vm1196, %v1454
      %v1467 = vsel %vm806, 1, 0
      %v1468 = vsel %vm807, 1, 0
      %v1469 = vsel %vm808, 1, 0
      %v1470 = vsel %vm809, 1, 0
      %v1471 = vsel %vm810, 1, 0
      %v1472 = vsel %vm811, 1, 0
      %v1473 = vsel %vm812, 1, 0
      %v1474 = vsel %vm813, 1, 0
      %v1475 = vsel %vm814, 1, 0
      %v1476 = vsel %vm815, 1, 0
      %vm1477 = vcmp.eq.s32.totalorder %v1467, 1
      %vm1478 = vcmp.eq.s32.totalorder %v1468, 1
      %vm1479 = vcmp.eq.s32.totalorder %v1469, 1
      %vm1480 = vcmp.eq.s32.totalorder %v1470, 1
      %vm1481 = vcmp.eq.s32.totalorder %v1471, 1
      %vm1482 = vcmp.eq.s32.totalorder %v1472, 1
      %vm1483 = vcmp.eq.s32.totalorder %v1473, 1
      %vm1484 = vcmp.eq.s32.totalorder %v1474, 1
      %vm1485 = vcmp.eq.s32.totalorder %v1475, 1
      %vm1486 = vcmp.eq.s32.totalorder %v1476, 1
      %v1487 = vsel %vm1477, %v1409, 0.0
      %v1488 = vsel %vm1478, %v1414, 0.0
      %v1489 = vsel %vm1479, %v1419, 0.0
      %v1490 = vsel %vm1480, %v1424, 0.0
      %v1491 = vsel %vm1481, %v1429, 0.0
      %v1492 = vsel %vm1482, %v1434, 0.0
      %v1493 = vsel %vm1483, %v1439, 0.0
      %v1494 = vsel %vm1484, %v1444, 0.0
      %v1495 = vsel %vm1485, %v1449, 0.0
      %v1496 = vsel %vm1486, %v1454, 0.0
      %v1497 = vsel %vm1196, %v1487, 0.0
      %v1498 = vsel %vm1196, %v1488, 0.0
      %v1499 = vadd.f32 %v1497, %v1498
      %v1500 = vsel %vm1196, %v1489, 0.0
      %v1501 = vadd.f32 %v1499, %v1500
      %v1502 = vsel %vm1196, %v1490, 0.0
      %v1503 = vadd.f32 %v1501, %v1502
      %v1504 = vsel %vm1196, %v1491, 0.0
      %v1505 = vadd.f32 %v1503, %v1504
      %v1506 = vsel %vm1196, %v1492, 0.0
      %v1507 = vadd.f32 %v1505, %v1506
      %v1508 = vsel %vm1196, %v1493, 0.0
      %v1509 = vadd.f32 %v1507, %v1508
      %v1510 = vsel %vm1196, %v1494, 0.0
      %v1511 = vadd.f32 %v1509, %v1510
      %v1512 = vsel %vm1196, %v1495, 0.0
      %v1513 = vadd.f32 %v1511, %v1512
      %v1514 = vsel %vm1196, %v1496, 0.0
      %v1515 = vadd.f32 %v1513, %v1514
      %v1516 = vrot.slane %v1515, 4
      %v1517 = vadd.f32 %v1515, %v1516
      %v1518 = vrot.slane %v1517, 2
      %v1519 = vadd.f32 %v1517, %v1518
      %v1520 = vrot.slane %v1519, 1
      %v1521 = vadd.f32 %v1519, %v1520
      %v1522 = vadd.f32 %v1521, 0.0
      %v1523 = vmul.f32 %v1487, %v1487
      %v1524 = vmul.f32 %v1488, %v1488
      %v1525 = vmul.f32 %v1489, %v1489
      %v1526 = vmul.f32 %v1490, %v1490
      %v1527 = vmul.f32 %v1491, %v1491
      %v1528 = vmul.f32 %v1492, %v1492
      %v1529 = vmul.f32 %v1493, %v1493
      %v1530 = vmul.f32 %v1494, %v1494
      %v1531 = vmul.f32 %v1495, %v1495
      %v1532 = vmul.f32 %v1496, %v1496
      %v1533 = vsel %vm1196, %v1523, 0.0
      %v1534 = vsel %vm1196, %v1524, 0.0
      %v1535 = vadd.f32 %v1533, %v1534
      %v1536 = vsel %vm1196, %v1525, 0.0
      %v1537 = vadd.f32 %v1535, %v1536
      %v1538 = vsel %vm1196, %v1526, 0.0
      %v1539 = vadd.f32 %v1537, %v1538
      %v1540 = vsel %vm1196, %v1527, 0.0
      %v1541 = vadd.f32 %v1539, %v1540
      %v1542 = vsel %vm1196, %v1528, 0.0
      %v1543 = vadd.f32 %v1541, %v1542
      %v1544 = vsel %vm1196, %v1529, 0.0
      %v1545 = vadd.f32 %v1543, %v1544
      %v1546 = vsel %vm1196, %v1530, 0.0
      %v1547 = vadd.f32 %v1545, %v1546
      %v1548 = vsel %vm1196, %v1531, 0.0
      %v1549 = vadd.f32 %v1547, %v1548
      %v1550 = vsel %vm1196, %v1532, 0.0
      %v1551 = vadd.f32 %v1549, %v1550
      %v1552 = vrot.slane %v1551, 4
      %v1553 = vadd.f32 %v1551, %v1552
      %v1554 = vrot.slane %v1553, 2
      %v1555 = vadd.f32 %v1553, %v1554
      %v1556 = vrot.slane %v1555, 1
      %v1557 = vadd.f32 %v1555, %v1556
      %v1558 = vadd.f32 %v1557, 0.0
      %v1559 = vrot.slane %v577, 5
      %v1560 = vsel %vm938, %v956, %v1559
      %1561 = vrot.lane.b32.xlu0 %v1560, 24
      %v1562 = vpop.permute.xlu0 %1561
      %v1564 = vrot.slane %v522, 5
      %v1565 = vsel %vm938, %v1161, %v1564
      %1566 = vrot.lane.b32.xlu0 %v1565, 56
      %v1567 = vpop.permute.xlu0 %1566
      %v1569 = vsel %vm1220, %v1219, %v1562
      %v1570 = vsel %vm1232, %v1569, %v1023
      %v1571 = vsel %vm1244, %v1570, %v1077
      %v1572 = vsel %vm1256, %v1571, %v1132
      %v1573 = vsel %vm1268, %v1572, %v1567
      %v1574 = vld [vmem:[%s3] sm:$0xff]
      %v1575 = vld [vmem:[%s3 + $0x8] sm:$0xff]
      %v1576 = vld [vmem:[%s3 + $0x10] sm:$0xff]
      %v1577 = vld [vmem:[%s3 + $0x18] sm:$0xff]
      %v1578 = vld [vmem:[%s3 + $0x20] sm:$0xff]
      %v1579 = vld [vmem:[%s3 + $0x28] sm:$0xff]
      %v1580 = vld [vmem:[%s3 + $0x30] sm:$0xff]
      %v1581 = vld [vmem:[%s3 + $0x38] sm:$0xff]
      %vm1583 = vcmask 1043456
      %v1584 = vrot.slane %v1269, 4
      %v1585 = vrot.slane %v1270, 4
      %v1586 = vsel %vm1583, %v1584, %v1585
      %v1587 = vrot.slane %v1271, 4
      %v1588 = vsel %vm1583, %v1585, %v1587
      %v1589 = vrot.slane %v1272, 4
      %v1590 = vsel %vm1583, %v1587, %v1589
      %v1591 = vrot.slane %v1273, 4
      %v1592 = vsel %vm1583, %v1589, %v1591
      %v1593 = vrot.slane %v1274, 4
      %v1594 = vsel %vm1583, %v1591, %v1593
      %v1595 = vrot.slane %v1275, 4
      %v1596 = vsel %vm1583, %v1593, %v1595
      %v1597 = vrot.slane %v1276, 4
      %v1598 = vsel %vm1583, %v1595, %v1597
      %v1599 = vrot.slane %v1277, 4
      %v1600 = vsel %vm1583, %v1597, %v1599
      %v1601 = vrot.slane %v1278, 4
      %v1602 = vsel %vm1583, %v1599, %v1601
      %v1603 = vrot.slane %v1573, 4
      %v1604 = vsel %vm1583, %v1601, %v1603
      %v1605 = vsel %vm1321, %v1586, 0
      %v1607 = vsel %vm1321, %v1588, 0
      %v1609 = vsel %vm1321, %v1590, 0
      %v1611 = vsel %vm1321, %v1592, 0
      %v1613 = vsel %vm1321, %v1594, 0
      %v1615 = vsel %vm1321, %v1596, 0
      %v1617 = vsel %vm1321, %v1598, 0
      %v1619 = vsel %vm1321, %v1600, 0
      %v1621 = vsel %vm1321, %v1602, 0
      %v1623 = vsel %vm1321, %v1604, 0
      %1625 = vmatprep.subr.mxu0 0.0
      %1626 = vmatpush1.msra.mxu0 %v1574
      %1627 = vmatprep.subr.mxu0 0.0
      %1628 = vmatpush1.msra.mxu0 %v1575
      %1629 = vmatprep.subr.mxu0 0.0
      %1630 = vmatpush1.msra.mxu0 %v1576
      %1631 = vmatprep.subr.mxu0 0.0
      %1632 = vmatpush1.msra.mxu0 %v1577
      %1633 = vmatprep.subr.mxu0 0.0
      %1634 = vmatpush1.msra.mxu0 %v1578
      %1635 = vmatprep.subr.mxu0 0.0
      %1636 = vmatpush1.msra.mxu0 %v1579
      %1637 = vmatprep.subr.mxu0 0.0
      %1638 = vmatpush1.msra.mxu0 %v1580
      %1639 = vmatprep.subr.mxu0 0.0
      %1640 = vmatpush1.msra.mxu0 %v1581
      %1641 = vmatprep.subr.mxu0 0.0
      %1642 = vmatpush1.msra.mxu0 0.0
      %1643 = vmatprep.subr.mxu0 0.0
      %1644 = vmatpush1.msra.mxu0 0.0
      %1645 = vmatprep.subr.mxu0 0.0
      %1646 = vmatpush1.msra.mxu0 0.0
      %1647 = vmatprep.subr.mxu0 0.0
      %1648 = vmatpush1.msra.mxu0 0.0
      %1649 = vmatprep.subr.mxu0 0.0
      %1650 = vmatpush1.msra.mxu0 0.0
      %1651 = vmatprep.subr.mxu0 0.0
      %1652 = vmatpush1.msra.mxu0 0.0
      %1653 = vmatprep.subr.mxu0 0.0
      %1654 = vmatpush1.msra.mxu0 0.0
      %1655 = vmatprep.subr.mxu0 0.0
      %1656 = vmatpush1.msra.mxu0 0.0
      %1657 = vmatprep.subr.mxu0 0.0
      %1658 = vmatpush1.msra.mxu0 0.0
      %1659 = vmatprep.subr.mxu0 0.0
      %1660 = vmatpush1.msra.mxu0 0.0
      %1661 = vmatprep.subr.mxu0 0.0
      %1662 = vmatpush1.msra.mxu0 0.0
      %1663 = vmatprep.subr.mxu0 0.0
      %1664 = vmatpush1.msra.mxu0 0.0
      %1665 = vmatprep.subr.mxu0 0.0
      %1666 = vmatpush1.msra.mxu0 0.0
      %1667 = vmatprep.subr.mxu0 0.0
      %1668 = vmatpush1.msra.mxu0 0.0
      %1669 = vmatprep.subr.mxu0 0.0
      %1670 = vmatpush1.msra.mxu0 0.0
      %1671 = vmatprep.subr.mxu0 0.0
      %1672 = vmatpush1.msra.mxu0 0.0
      %1673 = vmatprep.subr.mxu0 0.0
      %1674 = vmatpush1.msra.mxu0 0.0
      %1675 = vmatprep.subr.mxu0 0.0
      %1676 = vmatpush1.msra.mxu0 0.0
      %1677 = vmatprep.subr.mxu0 0.0
      %1678 = vmatpush1.msra.mxu0 0.0
      %1679 = vmatprep.subr.mxu0 0.0
      %1680 = vmatpush1.msra.mxu0 0.0
      %1681 = vmatprep.subr.mxu0 0.0
      %1682 = vmatpush1.msra.mxu0 0.0
      %1683 = vmatprep.subr.mxu0 0.0
      %1684 = vmatpush1.msra.mxu0 0.0
      %1685 = vmatprep.subr.mxu0 0.0
      %1686 = vmatpush1.msra.mxu0 0.0
      %1687 = vmatprep.subr.mxu0 0.0
      %1688 = vmatpush1.msra.mxu0 0.0
      %1689 = vmatprep.mubr.f32.mxu0 0.0
      %1690 = vmatmul.mubr.f32.gmra.mrb[0].mxu0 %v1605
      %v1691 = vpop.f32.mrb[0].mxu0
      %v1692 = vadd.f32 0.0, %v1691
      %v1693 = vpop.f32.mrb[0].mxu0
      %1694 = vmatprep.mubr.f32.mxu0 0.0
      %1695 = vmatmul.mubr.f32.gmra.mrb[0].mxu0 %v1607
      %v1696 = vpop.f32.mrb[0].mxu0
      %v1697 = vadd.f32 0.0, %v1696
      %v1698 = vpop.f32.mrb[0].mxu0
      %1699 = vmatprep.mubr.f32.mxu0 0.0
      %1700 = vmatmul.mubr.f32.gmra.mrb[0].mxu0 %v1609
      %v1701 = vpop.f32.mrb[0].mxu0
      %v1702 = vadd.f32 0.0, %v1701
      %v1703 = vpop.f32.mrb[0].mxu0
      %1704 = vmatprep.mubr.f32.mxu0 0.0
      %1705 = vmatmul.mubr.f32.gmra.mrb[0].mxu0 %v1611
      %v1706 = vpop.f32.mrb[0].mxu0
      %v1707 = vadd.f32 0.0, %v1706
      %v1708 = vpop.f32.mrb[0].mxu0
      %1709 = vmatprep.mubr.f32.mxu0 0.0
      %1710 = vmatmul.mubr.f32.gmra.mrb[0].mxu0 %v1613
      %v1711 = vpop.f32.mrb[0].mxu0
      %v1712 = vadd.f32 0.0, %v1711
      %v1713 = vpop.f32.mrb[0].mxu0
      %1714 = vmatprep.mubr.f32.mxu0 0.0
      %1715 = vmatmul.mubr.f32.gmra.mrb[0].mxu0 %v1615
      %v1716 = vpop.f32.mrb[0].mxu0
      %v1717 = vadd.f32 0.0, %v1716
      %v1718 = vpop.f32.mrb[0].mxu0
      %1719 = vmatprep.mubr.f32.mxu0 0.0
      %1720 = vmatmul.mubr.f32.gmra.mrb[0].mxu0 %v1617
      %v1721 = vpop.f32.mrb[0].mxu0
      %v1722 = vadd.f32 0.0, %v1721
      %v1723 = vpop.f32.mrb[0].mxu0
      %1724 = vmatprep.mubr.f32.mxu0 0.0
      %1725 = vmatmul.mubr.f32.gmra.mrb[0].mxu0 %v1619
      %v1726 = vpop.f32.mrb[0].mxu0
      %v1727 = vadd.f32 0.0, %v1726
      %v1728 = vpop.f32.mrb[0].mxu0
      %1729 = vmatprep.mubr.f32.mxu0 0.0
      %1730 = vmatmul.mubr.f32.gmra.mrb[0].mxu0 %v1621
      %v1731 = vpop.f32.mrb[0].mxu0
      %v1732 = vadd.f32 0.0, %v1731
      %v1733 = vpop.f32.mrb[0].mxu0
      %1734 = vmatprep.mubr.f32.mxu0 0.0
      %1735 = vmatmul.mubr.f32.gmra.mrb[0].mxu0 %v1623
      %v1736 = vpop.f32.mrb[0].mxu0
      %v1737 = vadd.f32 0.0, %v1736
      %v1738 = vpop.f32.mrb[0].mxu0
      %1739 = vdwg.mxu0
      %s1740 = scalar_lea.vmem %s448, 80
      %1741 = vst.msk [vmem:[%s1740] sm:$0xff] %vm1196, %v1692
      %1742 = vst.msk [vmem:[%s1740 + $0x8] sm:$0xff] %vm1196, %v1697
      %1743 = vst.msk [vmem:[%s1740 + $0x10] sm:$0xff] %vm1196, %v1702
      %1744 = vst.msk [vmem:[%s1740 + $0x18] sm:$0xff] %vm1196, %v1707
      %1745 = vst.msk [vmem:[%s1740 + $0x20] sm:$0xff] %vm1196, %v1712
      %1746 = vst.msk [vmem:[%s1740 + $0x28] sm:$0xff] %vm1196, %v1717
      %1747 = vst.msk [vmem:[%s1740 + $0x30] sm:$0xff] %vm1196, %v1722
      %1748 = vst.msk [vmem:[%s1740 + $0x38] sm:$0xff] %vm1196, %v1727
      %1749 = vst.msk [vmem:[%s1740 + $0x40] sm:$0xff] %vm1196, %v1732
      %1750 = vst.msk [vmem:[%s1740 + $0x48] sm:$0xff] %vm1196, %v1737
      %v1751 = vsel %vm1477, %v1692, 0.0
      %v1752 = vsel %vm1478, %v1697, 0.0
      %v1753 = vsel %vm1479, %v1702, 0.0
      %v1754 = vsel %vm1480, %v1707, 0.0
      %v1755 = vsel %vm1481, %v1712, 0.0
      %v1756 = vsel %vm1482, %v1717, 0.0
      %v1757 = vsel %vm1483, %v1722, 0.0
      %v1758 = vsel %vm1484, %v1727, 0.0
      %v1759 = vsel %vm1485, %v1732, 0.0
      %v1760 = vsel %vm1486, %v1737, 0.0
      %v1761 = vsel %vm1196, %v1751, 0.0
      %v1762 = vsel %vm1196, %v1752, 0.0
      %v1763 = vadd.f32 %v1761, %v1762
      %v1764 = vsel %vm1196, %v1753, 0.0
      %v1765 = vadd.f32 %v1763, %v1764
      %v1766 = vsel %vm1196, %v1754, 0.0
      %v1767 = vadd.f32 %v1765, %v1766
      %v1768 = vsel %vm1196, %v1755, 0.0
      %v1769 = vadd.f32 %v1767, %v1768
      %v1770 = vsel %vm1196, %v1756, 0.0
      %v1771 = vadd.f32 %v1769, %v1770
      %v1772 = vsel %vm1196, %v1757, 0.0
      %v1773 = vadd.f32 %v1771, %v1772
      %v1774 = vsel %vm1196, %v1758, 0.0
      %v1775 = vadd.f32 %v1773, %v1774
      %v1776 = vsel %vm1196, %v1759, 0.0
      %v1777 = vadd.f32 %v1775, %v1776
      %v1778 = vsel %vm1196, %v1760, 0.0
      %v1779 = vadd.f32 %v1777, %v1778
      %v1780 = vrot.slane %v1779, 4
      %v1781 = vadd.f32 %v1779, %v1780
      %v1782 = vrot.slane %v1781, 2
      %v1783 = vadd.f32 %v1781, %v1782
      %v1784 = vrot.slane %v1783, 1
      %v1785 = vadd.f32 %v1783, %v1784
      %v1786 = vadd.f32 %v1522, %v1785
      %v1787 = vmul.f32 %v1751, %v1751
      %v1788 = vmul.f32 %v1752, %v1752
      %v1789 = vmul.f32 %v1753, %v1753
      %v1790 = vmul.f32 %v1754, %v1754
      %v1791 = vmul.f32 %v1755, %v1755
      %v1792 = vmul.f32 %v1756, %v1756
      %v1793 = vmul.f32 %v1757, %v1757
      %v1794 = vmul.f32 %v1758, %v1758
      %v1795 = vmul.f32 %v1759, %v1759
      %v1796 = vmul.f32 %v1760, %v1760
      %v1797 = vsel %vm1196, %v1787, 0.0
      %v1798 = vsel %vm1196, %v1788, 0.0
      %v1799 = vadd.f32 %v1797, %v1798
      %v1800 = vsel %vm1196, %v1789, 0.0
      %v1801 = vadd.f32 %v1799, %v1800
      %v1802 = vsel %vm1196, %v1790, 0.0
      %v1803 = vadd.f32 %v1801, %v1802
      %v1804 = vsel %vm1196, %v1791, 0.0
      %v1805 = vadd.f32 %v1803, %v1804
      %v1806 = vsel %vm1196, %v1792, 0.0
      %v1807 = vadd.f32 %v1805, %v1806
      %v1808 = vsel %vm1196, %v1793, 0.0
      %v1809 = vadd.f32 %v1807, %v1808
      %v1810 = vsel %vm1196, %v1794, 0.0
      %v1811 = vadd.f32 %v1809, %v1810
      %v1812 = vsel %vm1196, %v1795, 0.0
      %v1813 = vadd.f32 %v1811, %v1812
      %v1814 = vsel %vm1196, %v1796, 0.0
      %v1815 = vadd.f32 %v1813, %v1814
      %v1816 = vrot.slane %v1815, 4
      %v1817 = vadd.f32 %v1815, %v1816
      %v1818 = vrot.slane %v1817, 2
      %v1819 = vadd.f32 %v1817, %v1818
      %v1820 = vrot.slane %v1819, 1
      %v1821 = vadd.f32 %v1819, %v1820
      %v1822 = vadd.f32 %v1558, %v1821
      %v1824 = vrot.slane %v579, 7
      %v1825 = vsel %vm827, %v847, %v1824
      %1826 = vrot.lane.b32.xlu0 %v829, 8
      %v1827 = vpop.permute.xlu0 %1826
      %1828 = vrot.lane.b32.xlu0 %v1825, 8
      %v1829 = vpop.permute.xlu0 %1828
      %v1832 = vrot.slane %v578, 6
      %v1833 = vsel %vm883, %v903, %v1832
      %1834 = vrot.lane.b32.xlu0 %v885, 16
      %v1835 = vpop.permute.xlu0 %1834
      %1836 = vrot.lane.b32.xlu0 %v1833, 16
      %v1837 = vpop.permute.xlu0 %1836
      %v1840 = vrot.slane %v578, 5
      %v1841 = vsel %vm938, %v1559, %v1840
      %1842 = vrot.lane.b32.xlu0 %v940, 24
      %v1843 = vpop.permute.xlu0 %1842
      %1844 = vrot.lane.b32.xlu0 %v1841, 24
      %v1845 = vpop.permute.xlu0 %1844
      %1849 = vrot.lane.b32.xlu0 %v524, 32
      %v1850 = vpop.permute.xlu0 %1849
      %v1852 = vrot.slane %v524, 7
      %v1853 = vsel %vm827, %v1054, %v1852
      %1854 = vrot.lane.b32.xlu0 %v1036, 40
      %v1855 = vpop.permute.xlu0 %1854
      %1856 = vrot.lane.b32.xlu0 %v1853, 40
      %v1857 = vpop.permute.xlu0 %1856
      %v1860 = vrot.slane %v523, 6
      %v1861 = vsel %vm883, %v1109, %v1860
      %1862 = vrot.lane.b32.xlu0 %v1091, 48
      %v1863 = vpop.permute.xlu0 %1862
      %1864 = vrot.lane.b32.xlu0 %v1861, 48
      %v1865 = vpop.permute.xlu0 %1864
      %v1868 = vrot.slane %v523, 5
      %v1869 = vsel %vm938, %v1564, %v1868
      %1870 = vrot.lane.b32.xlu0 %v1145, 56
      %v1871 = vpop.permute.xlu0 %1870
      %1872 = vrot.lane.b32.xlu0 %v1869, 56
      %v1873 = vpop.permute.xlu0 %1872
      %v1876 = vsel %vm1196, %v569, %v1827
      %v1877 = vsel %vm1196, %v579, %v1829
      %v1878 = vsel %vm1208, %v1876, %v1835
      %v1879 = vsel %vm1208, %v1877, %v1837
      %v1880 = vsel %vm1220, %v1878, %v1843
      %v1881 = vsel %vm1220, %v1879, %v1845
      %v1882 = vsel %vm1232, %v1880, %v1005
      %v1883 = vsel %vm1232, %v1881, %v1850
      %v1884 = vsel %vm1244, %v1882, %v1855
      %v1885 = vsel %vm1244, %v1883, %v1857
      %v1886 = vsel %vm1256, %v1884, %v1863
      %v1887 = vsel %vm1256, %v1885, %v1865
      %v1888 = vsel %vm1268, %v1886, %v1871
      %v1889 = vsel %vm1268, %v1887, %v1873
      %v1890 = vld [vmem:[%s4] sm:$0xff]
      %v1891 = vld [vmem:[%s4 + $0x8] sm:$0xff]
      %v1892 = vld [vmem:[%s4 + $0x10] sm:$0xff]
      %v1893 = vld [vmem:[%s4 + $0x18] sm:$0xff]
      %v1894 = vld [vmem:[%s4 + $0x20] sm:$0xff]
      %v1895 = vld [vmem:[%s4 + $0x28] sm:$0xff]
      %v1896 = vld [vmem:[%s4 + $0x30] sm:$0xff]
      %v1897 = vld [vmem:[%s4 + $0x38] sm:$0xff]
      %v1900 = vrot.slane %v1888, 5
      %v1901 = vrot.slane %v1271, 5
      %v1902 = vsel %vm938, %v1900, %v1901
      %v1903 = vrot.slane %v1272, 5
      %v1904 = vsel %vm938, %v1901, %v1903
      %v1905 = vrot.slane %v1273, 5
      %v1906 = vsel %vm938, %v1903, %v1905
      %v1907 = vrot.slane %v1274, 5
      %v1908 = vsel %vm938, %v1905, %v1907
      %v1909 = vrot.slane %v1275, 5
      %v1910 = vsel %vm938, %v1907, %v1909
      %v1911 = vrot.slane %v1276, 5
      %v1912 = vsel %vm938, %v1909, %v1911
      %v1913 = vrot.slane %v1277, 5
      %v1914 = vsel %vm938, %v1911, %v1913
      %v1915 = vrot.slane %v1278, 5
      %v1916 = vsel %vm938, %v1913, %v1915
      %v1917 = vrot.slane %v1573, 5
      %v1918 = vsel %vm938, %v1915, %v1917
      %v1919 = vrot.slane %v1889, 5
      %v1920 = vsel %vm938, %v1917, %v1919
      %v1921 = vsel %vm1321, %v1902, 0
      %v1923 = vsel %vm1321, %v1904, 0
      %v1925 = vsel %vm1321, %v1906, 0
      %v1927 = vsel %vm1321, %v1908, 0
      %v1929 = vsel %vm1321, %v1910, 0
      %v1931 = vsel %vm1321, %v1912, 0
      %v1933 = vsel %vm1321, %v1914, 0
      %v1935 = vsel %vm1321, %v1916, 0
      %v1937 = vsel %vm1321, %v1918, 0
      %v1939 = vsel %vm1321, %v1920, 0
      %1941 = vmatprep.subr.mxu0 0.0
      %1942 = vmatpush1.msra.mxu0 %v1890
      %1943 = vmatprep.subr.mxu0 0.0
      %1944 = vmatpush1.msra.mxu0 %v1891
      %1945 = vmatprep.subr.mxu0 0.0
      %1946 = vmatpush1.msra.mxu0 %v1892
      %1947 = vmatprep.subr.mxu0 0.0
      %1948 = vmatpush1.msra.mxu0 %v1893
      %1949 = vmatprep.subr.mxu0 0.0
      %1950 = vmatpush1.msra.mxu0 %v1894
      %1951 = vmatprep.subr.mxu0 0.0
      %1952 = vmatpush1.msra.mxu0 %v1895
      %1953 = vmatprep.subr.mxu0 0.0
      %1954 = vmatpush1.msra.mxu0 %v1896
      %1955 = vmatprep.subr.mxu0 0.0
      %1956 = vmatpush1.msra.mxu0 %v1897
      %1957 = vmatprep.subr.mxu0 0.0
      %1958 = vmatpush1.msra.mxu0 0.0
      %1959 = vmatprep.subr.mxu0 0.0
      %1960 = vmatpush1.msra.mxu0 0.0
      %1961 = vmatprep.subr.mxu0 0.0
      %1962 = vmatpush1.msra.mxu0 0.0
      %1963 = vmatprep.subr.mxu0 0.0
      %1964 = vmatpush1.msra.mxu0 0.0
      %1965 = vmatprep.subr.mxu0 0.0
      %1966 = vmatpush1.msra.mxu0 0.0
      %1967 = vmatprep.subr.mxu0 0.0
      %1968 = vmatpush1.msra.mxu0 0.0
      %1969 = vmatprep.subr.mxu0 0.0
      %1970 = vmatpush1.msra.mxu0 0.0
      %1971 = vmatprep.subr.mxu0 0.0
      %1972 = vmatpush1.msra.mxu0 0.0
      %1973 = vmatprep.subr.mxu0 0.0
      %1974 = vmatpush1.msra.mxu0 0.0
      %1975 = vmatprep.subr.mxu0 0.0
      %1976 = vmatpush1.msra.mxu0 0.0
      %1977 = vmatprep.subr.mxu0 0.0
      %1978 = vmatpush1.msra.mxu0 0.0
      %1979 = vmatprep.subr.mxu0 0.0
      %1980 = vmatpush1.msra.mxu0 0.0
      %1981 = vmatprep.subr.mxu0 0.0
      %1982 = vmatpush1.msra.mxu0 0.0
      %1983 = vmatprep.subr.mxu0 0.0
      %1984 = vmatpush1.msra.mxu0 0.0
      %1985 = vmatprep.subr.mxu0 0.0
      %1986 = vmatpush1.msra.mxu0 0.0
      %1987 = vmatprep.subr.mxu0 0.0
      %1988 = vmatpush1.msra.mxu0 0.0
      %1989 = vmatprep.subr.mxu0 0.0
      %1990 = vmatpush1.msra.mxu0 0.0
      %1991 = vmatprep.subr.mxu0 0.0
      %1992 = vmatpush1.msra.mxu0 0.0
      %1993 = vmatprep.subr.mxu0 0.0
      %1994 = vmatpush1.msra.mxu0 0.0
      %1995 = vmatprep.subr.mxu0 0.0
      %1996 = vmatpush1.msra.mxu0 0.0
      %1997 = vmatprep.subr.mxu0 0.0
      %1998 = vmatpush1.msra.mxu0 0.0
      %1999 = vmatprep.subr.mxu0 0.0
      %2000 = vmatpush1.msra.mxu0 0.0
      %2001 = vmatprep.subr.mxu0 0.0
      %2002 = vmatpush1.msra.mxu0 0.0
      %2003 = vmatprep.subr.mxu0 0.0
      %2004 = vmatpush1.msra.mxu0 0.0
      %2005 = vmatprep.mubr.f32.mxu0 0.0
      %2006 = vmatmul.mubr.f32.gmra.mrb[0].mxu0 %v1921
      %v2007 = vpop.f32.mrb[0].mxu0
      %v2008 = vadd.f32 0.0, %v2007
      %v2009 = vpop.f32.mrb[0].mxu0
      %2010 = vmatprep.mubr.f32.mxu0 0.0
      %2011 = vmatmul.mubr.f32.gmra.mrb[0].mxu0 %v1923
      %v2012 = vpop.f32.mrb[0].mxu0
      %v2013 = vadd.f32 0.0, %v2012
      %v2014 = vpop.f32.mrb[0].mxu0
      %2015 = vmatprep.mubr.f32.mxu0 0.0
      %2016 = vmatmul.mubr.f32.gmra.mrb[0].mxu0 %v1925
      %v2017 = vpop.f32.mrb[0].mxu0
      %v2018 = vadd.f32 0.0, %v2017
      %v2019 = vpop.f32.mrb[0].mxu0
      %2020 = vmatprep.mubr.f32.mxu0 0.0
      %2021 = vmatmul.mubr.f32.gmra.mrb[0].mxu0 %v1927
      %v2022 = vpop.f32.mrb[0].mxu0
      %v2023 = vadd.f32 0.0, %v2022
      %v2024 = vpop.f32.mrb[0].mxu0
      %2025 = vmatprep.mubr.f32.mxu0 0.0
      %2026 = vmatmul.mubr.f32.gmra.mrb[0].mxu0 %v1929
      %v2027 = vpop.f32.mrb[0].mxu0
      %v2028 = vadd.f32 0.0, %v2027
      %v2029 = vpop.f32.mrb[0].mxu0
      %2030 = vmatprep.mubr.f32.mxu0 0.0
      %2031 = vmatmul.mubr.f32.gmra.mrb[0].mxu0 %v1931
      %v2032 = vpop.f32.mrb[0].mxu0
      %v2033 = vadd.f32 0.0, %v2032
      %v2034 = vpop.f32.mrb[0].mxu0
      %2035 = vmatprep.mubr.f32.mxu0 0.0
      %2036 = vmatmul.mubr.f32.gmra.mrb[0].mxu0 %v1933
      %v2037 = vpop.f32.mrb[0].mxu0
      %v2038 = vadd.f32 0.0, %v2037
      %v2039 = vpop.f32.mrb[0].mxu0
      %2040 = vmatprep.mubr.f32.mxu0 0.0
      %2041 = vmatmul.mubr.f32.gmra.mrb[0].mxu0 %v1935
      %v2042 = vpop.f32.mrb[0].mxu0
      %v2043 = vadd.f32 0.0, %v2042
      %v2044 = vpop.f32.mrb[0].mxu0
      %2045 = vmatprep.mubr.f32.mxu0 0.0
      %2046 = vmatmul.mubr.f32.gmra.mrb[0].mxu0 %v1937
      %v2047 = vpop.f32.mrb[0].mxu0
      %v2048 = vadd.f32 0.0, %v2047
      %v2049 = vpop.f32.mrb[0].mxu0
      %2050 = vmatprep.mubr.f32.mxu0 0.0
      %2051 = vmatmul.mubr.f32.gmra.mrb[0].mxu0 %v1939
      %v2052 = vpop.f32.mrb[0].mxu0
      %v2053 = vadd.f32 0.0, %v2052
      %v2054 = vpop.f32.mrb[0].mxu0
      %2055 = vdwg.mxu0
      %s2056 = scalar_lea.vmem %s448, 160
      %2057 = vst.msk [vmem:[%s2056] sm:$0xff] %vm1196, %v2008
      %2058 = vst.msk [vmem:[%s2056 + $0x8] sm:$0xff] %vm1196, %v2013
      %2059 = vst.msk [vmem:[%s2056 + $0x10] sm:$0xff] %vm1196, %v2018
      %2060 = vst.msk [vmem:[%s2056 + $0x18] sm:$0xff] %vm1196, %v2023
      %2061 = vst.msk [vmem:[%s2056 + $0x20] sm:$0xff] %vm1196, %v2028
      %2062 = vst.msk [vmem:[%s2056 + $0x28] sm:$0xff] %vm1196, %v2033
      %2063 = vst.msk [vmem:[%s2056 + $0x30] sm:$0xff] %vm1196, %v2038
      %2064 = vst.msk [vmem:[%s2056 + $0x38] sm:$0xff] %vm1196, %v2043
      %2065 = vst.msk [vmem:[%s2056 + $0x40] sm:$0xff] %vm1196, %v2048
      %2066 = vst.msk [vmem:[%s2056 + $0x48] sm:$0xff] %vm1196, %v2053
      %v2067 = vsel %vm1477, %v2008, 0.0
      %v2068 = vsel %vm1478, %v2013, 0.0
      %v2069 = vsel %vm1479, %v2018, 0.0
      %v2070 = vsel %vm1480, %v2023, 0.0
      %v2071 = vsel %vm1481, %v2028, 0.0
      %v2072 = vsel %vm1482, %v2033, 0.0
      %v2073 = vsel %vm1483, %v2038, 0.0
      %v2074 = vsel %vm1484, %v2043, 0.0
      %v2075 = vsel %vm1485, %v2048, 0.0
      %v2076 = vsel %vm1486, %v2053, 0.0
      %v2077 = vsel %vm1196, %v2067, 0.0
      %v2078 = vsel %vm1196, %v2068, 0.0
      %v2079 = vadd.f32 %v2077, %v2078
      %v2080 = vsel %vm1196, %v2069, 0.0
      %v2081 = vadd.f32 %v2079, %v2080
      %v2082 = vsel %vm1196, %v2070, 0.0
      %v2083 = vadd.f32 %v2081, %v2082
      %v2084 = vsel %vm1196, %v2071, 0.0
      %v2085 = vadd.f32 %v2083, %v2084
      %v2086 = vsel %vm1196, %v2072, 0.0
      %v2087 = vadd.f32 %v2085, %v2086
      %v2088 = vsel %vm1196, %v2073, 0.0
      %v2089 = vadd.f32 %v2087, %v2088
      %v2090 = vsel %vm1196, %v2074, 0.0
      %v2091 = vadd.f32 %v2089, %v2090
      %v2092 = vsel %vm1196, %v2075, 0.0
      %v2093 = vadd.f32 %v2091, %v2092
      %v2094 = vsel %vm1196, %v2076, 0.0
      %v2095 = vadd.f32 %v2093, %v2094
      %v2096 = vrot.slane %v2095, 4
      %v2097 = vadd.f32 %v2095, %v2096
      %v2098 = vrot.slane %v2097, 2
      %v2099 = vadd.f32 %v2097, %v2098
      %v2100 = vrot.slane %v2099, 1
      %v2101 = vadd.f32 %v2099, %v2100
      %v2102 = vadd.f32 %v1786, %v2101
      %v2103 = vmul.f32 %v2067, %v2067
      %v2104 = vmul.f32 %v2068, %v2068
      %v2105 = vmul.f32 %v2069, %v2069
      %v2106 = vmul.f32 %v2070, %v2070
      %v2107 = vmul.f32 %v2071, %v2071
      %v2108 = vmul.f32 %v2072, %v2072
      %v2109 = vmul.f32 %v2073, %v2073
      %v2110 = vmul.f32 %v2074, %v2074
      %v2111 = vmul.f32 %v2075, %v2075
      %v2112 = vmul.f32 %v2076, %v2076
      %v2113 = vsel %vm1196, %v2103, 0.0
      %v2114 = vsel %vm1196, %v2104, 0.0
      %v2115 = vadd.f32 %v2113, %v2114
      %v2116 = vsel %vm1196, %v2105, 0.0
      %v2117 = vadd.f32 %v2115, %v2116
      %v2118 = vsel %vm1196, %v2106, 0.0
      %v2119 = vadd.f32 %v2117, %v2118
      %v2120 = vsel %vm1196, %v2107, 0.0
      %v2121 = vadd.f32 %v2119, %v2120
      %v2122 = vsel %vm1196, %v2108, 0.0
      %v2123 = vadd.f32 %v2121, %v2122
      %v2124 = vsel %vm1196, %v2109, 0.0
      %v2125 = vadd.f32 %v2123, %v2124
      %v2126 = vsel %vm1196, %v2110, 0.0
      %v2127 = vadd.f32 %v2125, %v2126
      %v2128 = vsel %vm1196, %v2111, 0.0
      %v2129 = vadd.f32 %v2127, %v2128
      %v2130 = vsel %vm1196, %v2112, 0.0
      %v2131 = vadd.f32 %v2129, %v2130
      %v2132 = vrot.slane %v2131, 4
      %v2133 = vadd.f32 %v2131, %v2132
      %v2134 = vrot.slane %v2133, 2
      %v2135 = vadd.f32 %v2133, %v2134
      %v2136 = vrot.slane %v2135, 1
      %v2137 = vadd.f32 %v2135, %v2136
      %v2138 = vadd.f32 %v1822, %v2137
      %v2139 = vld [vmem:[%s5] sm:$0xff]
      %v2140 = vld [vmem:[%s5 + $0x8] sm:$0xff]
      %v2141 = vld [vmem:[%s5 + $0x10] sm:$0xff]
      %v2142 = vld [vmem:[%s5 + $0x18] sm:$0xff]
      %v2143 = vld [vmem:[%s5 + $0x20] sm:$0xff]
      %v2144 = vld [vmem:[%s5 + $0x28] sm:$0xff]
      %v2145 = vld [vmem:[%s5 + $0x30] sm:$0xff]
      %v2146 = vld [vmem:[%s5 + $0x38] sm:$0xff]
      %v2147 = vrot.slane %v1888, 6
      %v2148 = vrot.slane %v1271, 6
      %v2149 = vsel %vm883, %v2147, %v2148
      %v2150 = vrot.slane %v1272, 6
      %v2151 = vsel %vm883, %v2148, %v2150
      %v2152 = vrot.slane %v1273, 6
      %v2153 = vsel %vm883, %v2150, %v2152
      %v2154 = vrot.slane %v1274, 6
      %v2155 = vsel %vm883, %v2152, %v2154
      %v2156 = vrot.slane %v1275, 6
      %v2157 = vsel %vm883, %v2154, %v2156
      %v2158 = vrot.slane %v1276, 6
      %v2159 = vsel %vm883, %v2156, %v2158
      %v2160 = vrot.slane %v1277, 6
      %v2161 = vsel %vm883, %v2158, %v2160
      %v2162 = vrot.slane %v1278, 6
      %v2163 = vsel %vm883, %v2160, %v2162
      %v2164 = vrot.slane %v1573, 6
      %v2165 = vsel %vm883, %v2162, %v2164
      %v2166 = vrot.slane %v1889, 6
      %v2167 = vsel %vm883, %v2164, %v2166
      %v2168 = vsel %vm1321, %v2149, 0
      %v2170 = vsel %vm1321, %v2151, 0
      %v2172 = vsel %vm1321, %v2153, 0
      %v2174 = vsel %vm1321, %v2155, 0
      %v2176 = vsel %vm1321, %v2157, 0
      %v2178 = vsel %vm1321, %v2159, 0
      %v2180 = vsel %vm1321, %v2161, 0
      %v2182 = vsel %vm1321, %v2163, 0
      %v2184 = vsel %vm1321, %v2165, 0
      %v2186 = vsel %vm1321, %v2167, 0
      %2188 = vmatprep.subr.mxu0 0.0
      %2189 = vmatpush1.msra.mxu0 %v2139
      %2190 = vmatprep.subr.mxu0 0.0
      %2191 = vmatpush1.msra.mxu0 %v2140
      %2192 = vmatprep.subr.mxu0 0.0
      %2193 = vmatpush1.msra.mxu0 %v2141
      %2194 = vmatprep.subr.mxu0 0.0
      %2195 = vmatpush1.msra.mxu0 %v2142
      %2196 = vmatprep.subr.mxu0 0.0
      %2197 = vmatpush1.msra.mxu0 %v2143
      %2198 = vmatprep.subr.mxu0 0.0
      %2199 = vmatpush1.msra.mxu0 %v2144
      %2200 = vmatprep.subr.mxu0 0.0
      %2201 = vmatpush1.msra.mxu0 %v2145
      %2202 = vmatprep.subr.mxu0 0.0
      %2203 = vmatpush1.msra.mxu0 %v2146
      %2204 = vmatprep.subr.mxu0 0.0
      %2205 = vmatpush1.msra.mxu0 0.0
      %2206 = vmatprep.subr.mxu0 0.0
      %2207 = vmatpush1.msra.mxu0 0.0
      %2208 = vmatprep.subr.mxu0 0.0
      %2209 = vmatpush1.msra.mxu0 0.0
      %2210 = vmatprep.subr.mxu0 0.0
      %2211 = vmatpush1.msra.mxu0 0.0
      %2212 = vmatprep.subr.mxu0 0.0
      %2213 = vmatpush1.msra.mxu0 0.0
      %2214 = vmatprep.subr.mxu0 0.0
      %2215 = vmatpush1.msra.mxu0 0.0
      %2216 = vmatprep.subr.mxu0 0.0
      %2217 = vmatpush1.msra.mxu0 0.0
      %2218 = vmatprep.subr.mxu0 0.0
      %2219 = vmatpush1.msra.mxu0 0.0
      %2220 = vmatprep.subr.mxu0 0.0
      %2221 = vmatpush1.msra.mxu0 0.0
      %2222 = vmatprep.subr.mxu0 0.0
      %2223 = vmatpush1.msra.mxu0 0.0
      %2224 = vmatprep.subr.mxu0 0.0
      %2225 = vmatpush1.msra.mxu0 0.0
      %2226 = vmatprep.subr.mxu0 0.0
      %2227 = vmatpush1.msra.mxu0 0.0
      %2228 = vmatprep.subr.mxu0 0.0
      %2229 = vmatpush1.msra.mxu0 0.0
      %2230 = vmatprep.subr.mxu0 0.0
      %2231 = vmatpush1.msra.mxu0 0.0
      %2232 = vmatprep.subr.mxu0 0.0
      %2233 = vmatpush1.msra.mxu0 0.0
      %2234 = vmatprep.subr.mxu0 0.0
      %2235 = vmatpush1.msra.mxu0 0.0
      %2236 = vmatprep.subr.mxu0 0.0
      %2237 = vmatpush1.msra.mxu0 0.0
      %2238 = vmatprep.subr.mxu0 0.0
      %2239 = vmatpush1.msra.mxu0 0.0
      %2240 = vmatprep.subr.mxu0 0.0
      %2241 = vmatpush1.msra.mxu0 0.0
      %2242 = vmatprep.subr.mxu0 0.0
      %2243 = vmatpush1.msra.mxu0 0.0
      %2244 = vmatprep.subr.mxu0 0.0
      %2245 = vmatpush1.msra.mxu0 0.0
      %2246 = vmatprep.subr.mxu0 0.0
      %2247 = vmatpush1.msra.mxu0 0.0
      %2248 = vmatprep.subr.mxu0 0.0
      %2249 = vmatpush1.msra.mxu0 0.0
      %2250 = vmatprep.subr.mxu0 0.0
      %2251 = vmatpush1.msra.mxu0 0.0
      %2252 = vmatprep.mubr.f32.mxu0 0.0
      %2253 = vmatmul.mubr.f32.gmra.mrb[0].mxu0 %v2168
      %v2254 = vpop.f32.mrb[0].mxu0
      %v2255 = vadd.f32 0.0, %v2254
      %v2256 = vpop.f32.mrb[0].mxu0
      %2257 = vmatprep.mubr.f32.mxu0 0.0
      %2258 = vmatmul.mubr.f32.gmra.mrb[0].mxu0 %v2170
      %v2259 = vpop.f32.mrb[0].mxu0
      %v2260 = vadd.f32 0.0, %v2259
      %v2261 = vpop.f32.mrb[0].mxu0
      %2262 = vmatprep.mubr.f32.mxu0 0.0
      %2263 = vmatmul.mubr.f32.gmra.mrb[0].mxu0 %v2172
      %v2264 = vpop.f32.mrb[0].mxu0
      %v2265 = vadd.f32 0.0, %v2264
      %v2266 = vpop.f32.mrb[0].mxu0
      %2267 = vmatprep.mubr.f32.mxu0 0.0
      %2268 = vmatmul.mubr.f32.gmra.mrb[0].mxu0 %v2174
      %v2269 = vpop.f32.mrb[0].mxu0
      %v2270 = vadd.f32 0.0, %v2269
      %v2271 = vpop.f32.mrb[0].mxu0
      %2272 = vmatprep.mubr.f32.mxu0 0.0
      %2273 = vmatmul.mubr.f32.gmra.mrb[0].mxu0 %v2176
      %v2274 = vpop.f32.mrb[0].mxu0
      %v2275 = vadd.f32 0.0, %v2274
      %v2276 = vpop.f32.mrb[0].mxu0
      %2277 = vmatprep.mubr.f32.mxu0 0.0
      %2278 = vmatmul.mubr.f32.gmra.mrb[0].mxu0 %v2178
      %v2279 = vpop.f32.mrb[0].mxu0
      %v2280 = vadd.f32 0.0, %v2279
      %v2281 = vpop.f32.mrb[0].mxu0
      %2282 = vmatprep.mubr.f32.mxu0 0.0
      %2283 = vmatmul.mubr.f32.gmra.mrb[0].mxu0 %v2180
      %v2284 = vpop.f32.mrb[0].mxu0
      %v2285 = vadd.f32 0.0, %v2284
      %v2286 = vpop.f32.mrb[0].mxu0
      %2287 = vmatprep.mubr.f32.mxu0 0.0
      %2288 = vmatmul.mubr.f32.gmra.mrb[0].mxu0 %v2182
      %v2289 = vpop.f32.mrb[0].mxu0
      %v2290 = vadd.f32 0.0, %v2289
      %v2291 = vpop.f32.mrb[0].mxu0
      %2292 = vmatprep.mubr.f32.mxu0 0.0
      %2293 = vmatmul.mubr.f32.gmra.mrb[0].mxu0 %v2184
      %v2294 = vpop.f32.mrb[0].mxu0
      %v2295 = vadd.f32 0.0, %v2294
      %v2296 = vpop.f32.mrb[0].mxu0
      %2297 = vmatprep.mubr.f32.mxu0 0.0
      %2298 = vmatmul.mubr.f32.gmra.mrb[0].mxu0 %v2186
      %v2299 = vpop.f32.mrb[0].mxu0
      %v2300 = vadd.f32 0.0, %v2299
      %v2301 = vpop.f32.mrb[0].mxu0
      %2302 = vdwg.mxu0
      %s2303 = scalar_lea.vmem %s448, 240
      %2304 = vst.msk [vmem:[%s2303] sm:$0xff] %vm1196, %v2255
      %2305 = vst.msk [vmem:[%s2303 + $0x8] sm:$0xff] %vm1196, %v2260
      %2306 = vst.msk [vmem:[%s2303 + $0x10] sm:$0xff] %vm1196, %v2265
      %2307 = vst.msk [vmem:[%s2303 + $0x18] sm:$0xff] %vm1196, %v2270
      %2308 = vst.msk [vmem:[%s2303 + $0x20] sm:$0xff] %vm1196, %v2275
      %2309 = vst.msk [vmem:[%s2303 + $0x28] sm:$0xff] %vm1196, %v2280
      %2310 = vst.msk [vmem:[%s2303 + $0x30] sm:$0xff] %vm1196, %v2285
      %2311 = vst.msk [vmem:[%s2303 + $0x38] sm:$0xff] %vm1196, %v2290
      %2312 = vst.msk [vmem:[%s2303 + $0x40] sm:$0xff] %vm1196, %v2295
      %2313 = vst.msk [vmem:[%s2303 + $0x48] sm:$0xff] %vm1196, %v2300
      %v2314 = vsel %vm1477, %v2255, 0.0
      %v2315 = vsel %vm1478, %v2260, 0.0
      %v2316 = vsel %vm1479, %v2265, 0.0
      %v2317 = vsel %vm1480, %v2270, 0.0
      %v2318 = vsel %vm1481, %v2275, 0.0
      %v2319 = vsel %vm1482, %v2280, 0.0
      %v2320 = vsel %vm1483, %v2285, 0.0
      %v2321 = vsel %vm1484, %v2290, 0.0
      %v2322 = vsel %vm1485, %v2295, 0.0
      %v2323 = vsel %vm1486, %v2300, 0.0
      %v2324 = vsel %vm1196, %v2314, 0.0
      %v2325 = vsel %vm1196, %v2315, 0.0
      %v2326 = vadd.f32 %v2324, %v2325
      %v2327 = vsel %vm1196, %v2316, 0.0
      %v2328 = vadd.f32 %v2326, %v2327
      %v2329 = vsel %vm1196, %v2317, 0.0
      %v2330 = vadd.f32 %v2328, %v2329
      %v2331 = vsel %vm1196, %v2318, 0.0
      %v2332 = vadd.f32 %v2330, %v2331
      %v2333 = vsel %vm1196, %v2319, 0.0
      %v2334 = vadd.f32 %v2332, %v2333
      %v2335 = vsel %vm1196, %v2320, 0.0
      %v2336 = vadd.f32 %v2334, %v2335
      %v2337 = vsel %vm1196, %v2321, 0.0
      %v2338 = vadd.f32 %v2336, %v2337
      %v2339 = vsel %vm1196, %v2322, 0.0
      %v2340 = vadd.f32 %v2338, %v2339
      %v2341 = vsel %vm1196, %v2323, 0.0
      %v2342 = vadd.f32 %v2340, %v2341
      %v2343 = vrot.slane %v2342, 4
      %v2344 = vadd.f32 %v2342, %v2343
      %v2345 = vrot.slane %v2344, 2
      %v2346 = vadd.f32 %v2344, %v2345
      %v2347 = vrot.slane %v2346, 1
      %v2348 = vadd.f32 %v2346, %v2347
      %v2349 = vadd.f32 %v2102, %v2348
      %v2350 = vmul.f32 %v2314, %v2314
      %v2351 = vmul.f32 %v2315, %v2315
      %v2352 = vmul.f32 %v2316, %v2316
      %v2353 = vmul.f32 %v2317, %v2317
      %v2354 = vmul.f32 %v2318, %v2318
      %v2355 = vmul.f32 %v2319, %v2319
      %v2356 = vmul.f32 %v2320, %v2320
      %v2357 = vmul.f32 %v2321, %v2321
      %v2358 = vmul.f32 %v2322, %v2322
      %v2359 = vmul.f32 %v2323, %v2323
      %v2360 = vsel %vm1196, %v2350, 0.0
      %v2361 = vsel %vm1196, %v2351, 0.0
      %v2362 = vadd.f32 %v2360, %v2361
      %v2363 = vsel %vm1196, %v2352, 0.0
      %v2364 = vadd.f32 %v2362, %v2363
      %v2365 = vsel %vm1196, %v2353, 0.0
      %v2366 = vadd.f32 %v2364, %v2365
      %v2367 = vsel %vm1196, %v2354, 0.0
      %v2368 = vadd.f32 %v2366, %v2367
      %v2369 = vsel %vm1196, %v2355, 0.0
      %v2370 = vadd.f32 %v2368, %v2369
      %v2371 = vsel %vm1196, %v2356, 0.0
      %v2372 = vadd.f32 %v2370, %v2371
      %v2373 = vsel %vm1196, %v2357, 0.0
      %v2374 = vadd.f32 %v2372, %v2373
      %v2375 = vsel %vm1196, %v2358, 0.0
      %v2376 = vadd.f32 %v2374, %v2375
      %v2377 = vsel %vm1196, %v2359, 0.0
      %v2378 = vadd.f32 %v2376, %v2377
      %v2379 = vrot.slane %v2378, 4
      %v2380 = vadd.f32 %v2378, %v2379
      %v2381 = vrot.slane %v2380, 2
      %v2382 = vadd.f32 %v2380, %v2381
      %v2383 = vrot.slane %v2382, 1
      %v2384 = vadd.f32 %v2382, %v2383
      %v2385 = vadd.f32 %v2138, %v2384
      %v2397 = vrot.slane %v623, 7
      %v2398 = vrot.slane %v624, 7
      %v2399 = vsel %vm827, %v2397, %v2398
      %v2400 = vrot.slane %v625, 7
      %v2401 = vsel %vm827, %v2398, %v2400
      %v2402 = vrot.slane %v626, 7
      %v2403 = vsel %vm827, %v2400, %v2402
      %v2404 = vrot.slane %v627, 7
      %v2405 = vsel %vm827, %v2402, %v2404
      %v2406 = vrot.slane %v628, 7
      %v2407 = vsel %vm827, %v2404, %v2406
      %v2408 = vrot.slane %v629, 7
      %v2409 = vsel %vm827, %v2406, %v2408
      %v2410 = vrot.slane %v630, 7
      %v2411 = vsel %vm827, %v2408, %v2410
      %v2412 = vrot.slane %v631, 7
      %v2413 = vsel %vm827, %v2410, %v2412
      %v2414 = vrot.slane %v632, 7
      %v2415 = vsel %vm827, %v2412, %v2414
      %v2416 = vrot.slane %v633, 7
      %v2417 = vsel %vm827, %v2414, %v2416
      %2418 = vrot.lane.b32.xlu0 %v2397, 8
      %v2419 = vpop.permute.xlu0 %2418
      %2420 = vrot.lane.b32.xlu0 %v2399, 8
      %v2421 = vpop.permute.xlu0 %2420
      %2422 = vrot.lane.b32.xlu0 %v2401, 8
      %v2423 = vpop.permute.xlu0 %2422
      %2424 = vrot.lane.b32.xlu0 %v2403, 8
      %v2425 = vpop.permute.xlu0 %2424
      %2426 = vrot.lane.b32.xlu0 %v2405, 8
      %v2427 = vpop.permute.xlu0 %2426
      %2428 = vrot.lane.b32.xlu0 %v2407, 8
      %v2429 = vpop.permute.xlu0 %2428
      %2430 = vrot.lane.b32.xlu0 %v2409, 8
      %v2431 = vpop.permute.xlu0 %2430
      %2432 = vrot.lane.b32.xlu0 %v2411, 8
      %v2433 = vpop.permute.xlu0 %2432
      %2434 = vrot.lane.b32.xlu0 %v2413, 8
      %v2435 = vpop.permute.xlu0 %2434
      %2436 = vrot.lane.b32.xlu0 %v2415, 8
      %v2437 = vpop.permute.xlu0 %2436
      %2438 = vrot.lane.b32.xlu0 %v2417, 8
      %v2439 = vpop.permute.xlu0 %2438
      %v2452 = vrot.slane %v622, 6
      %v2453 = vrot.slane %v623, 6
      %v2454 = vsel %vm883, %v2452, %v2453
      %v2455 = vrot.slane %v624, 6
      %v2456 = vsel %vm883, %v2453, %v2455
      %v2457 = vrot.slane %v625, 6
      %v2458 = vsel %vm883, %v2455, %v2457
      %v2459 = vrot.slane %v626, 6
      %v2460 = vsel %vm883, %v2457, %v2459
      %v2461 = vrot.slane %v627, 6
      %v2462 = vsel %vm883, %v2459, %v2461
      %v2463 = vrot.slane %v628, 6
      %v2464 = vsel %vm883, %v2461, %v2463
      %v2465 = vrot.slane %v629, 6
      %v2466 = vsel %vm883, %v2463, %v2465
      %v2467 = vrot.slane %v630, 6
      %v2468 = vsel %vm883, %v2465, %v2467
      %v2469 = vrot.slane %v631, 6
      %v2470 = vsel %vm883, %v2467, %v2469
      %v2471 = vrot.slane %v632, 6
      %v2472 = vsel %vm883, %v2469, %v2471
      %2473 = vrot.lane.b32.xlu0 %v2452, 16
      %v2474 = vpop.permute.xlu0 %2473
      %2475 = vrot.lane.b32.xlu0 %v2454, 16
      %v2476 = vpop.permute.xlu0 %2475
      %2477 = vrot.lane.b32.xlu0 %v2456, 16
      %v2478 = vpop.permute.xlu0 %2477
      %2479 = vrot.lane.b32.xlu0 %v2458, 16
      %v2480 = vpop.permute.xlu0 %2479
      %2481 = vrot.lane.b32.xlu0 %v2460, 16
      %v2482 = vpop.permute.xlu0 %2481
      %2483 = vrot.lane.b32.xlu0 %v2462, 16
      %v2484 = vpop.permute.xlu0 %2483
      %2485 = vrot.lane.b32.xlu0 %v2464, 16
      %v2486 = vpop.permute.xlu0 %2485
      %2487 = vrot.lane.b32.xlu0 %v2466, 16
      %v2488 = vpop.permute.xlu0 %2487
      %2489 = vrot.lane.b32.xlu0 %v2468, 16
      %v2490 = vpop.permute.xlu0 %2489
      %2491 = vrot.lane.b32.xlu0 %v2470, 16
      %v2492 = vpop.permute.xlu0 %2491
      %2493 = vrot.lane.b32.xlu0 %v2472, 16
      %v2494 = vpop.permute.xlu0 %2493
      %v2506 = vrot.slane %v622, 5
      %v2507 = vrot.slane %v623, 5
      %v2508 = vsel %vm938, %v2506, %v2507
      %v2509 = vrot.slane %v624, 5
      %v2510 = vsel %vm938, %v2507, %v2509
      %v2511 = vrot.slane %v625, 5
      %v2512 = vsel %vm938, %v2509, %v2511
      %v2513 = vrot.slane %v626, 5
      %v2514 = vsel %vm938, %v2511, %v2513
      %v2515 = vrot.slane %v627, 5
      %v2516 = vsel %vm938, %v2513, %v2515
      %v2517 = vrot.slane %v628, 5
      %v2518 = vsel %vm938, %v2515, %v2517
      %v2519 = vrot.slane %v629, 5
      %v2520 = vsel %vm938, %v2517, %v2519
      %v2521 = vrot.slane %v630, 5
      %v2522 = vsel %vm938, %v2519, %v2521
      %v2523 = vrot.slane %v631, 5
      %v2524 = vsel %vm938, %v2521, %v2523
      %2525 = vrot.lane.b32.xlu0 %v2506, 24
      %v2526 = vpop.permute.xlu0 %2525
      %2527 = vrot.lane.b32.xlu0 %v2508, 24
      %v2528 = vpop.permute.xlu0 %2527
      %2529 = vrot.lane.b32.xlu0 %v2510, 24
      %v2530 = vpop.permute.xlu0 %2529
      %2531 = vrot.lane.b32.xlu0 %v2512, 24
      %v2532 = vpop.permute.xlu0 %2531
      %2533 = vrot.lane.b32.xlu0 %v2514, 24
      %v2534 = vpop.permute.xlu0 %2533
      %2535 = vrot.lane.b32.xlu0 %v2516, 24
      %v2536 = vpop.permute.xlu0 %2535
      %2537 = vrot.lane.b32.xlu0 %v2518, 24
      %v2538 = vpop.permute.xlu0 %2537
      %2539 = vrot.lane.b32.xlu0 %v2520, 24
      %v2540 = vpop.permute.xlu0 %2539
      %2541 = vrot.lane.b32.xlu0 %v2522, 24
      %v2542 = vpop.permute.xlu0 %2541
      %2543 = vrot.lane.b32.xlu0 %v2524, 24
      %v2544 = vpop.permute.xlu0 %2543
      %2545 = vrot.lane.b32.xlu0 %v2523, 24
      %v2546 = vpop.permute.xlu0 %2545
      %2558 = vrot.lane.b32.xlu0 %v568, 32
      %v2559 = vpop.permute.xlu0 %2558
      %2560 = vrot.lane.b32.xlu0 %v569, 32
      %v2561 = vpop.permute.xlu0 %2560
      %2562 = vrot.lane.b32.xlu0 %v570, 32
      %v2563 = vpop.permute.xlu0 %2562
      %2564 = vrot.lane.b32.xlu0 %v571, 32
      %v2565 = vpop.permute.xlu0 %2564
      %2566 = vrot.lane.b32.xlu0 %v572, 32
      %v2567 = vpop.permute.xlu0 %2566
      %2568 = vrot.lane.b32.xlu0 %v573, 32
      %v2569 = vpop.permute.xlu0 %2568
      %2570 = vrot.lane.b32.xlu0 %v574, 32
      %v2571 = vpop.permute.xlu0 %2570
      %2572 = vrot.lane.b32.xlu0 %v575, 32
      %v2573 = vpop.permute.xlu0 %2572
      %2574 = vrot.lane.b32.xlu0 %v576, 32
      %v2575 = vpop.permute.xlu0 %2574
      %2576 = vrot.lane.b32.xlu0 %v577, 32
      %v2577 = vpop.permute.xlu0 %2576
      %2578 = vrot.lane.b32.xlu0 %v578, 32
      %v2579 = vpop.permute.xlu0 %2578
      %2591 = vrot.lane.b32.xlu0 %v828, 40
      %v2592 = vpop.permute.xlu0 %2591
      %2593 = vrot.lane.b32.xlu0 %v830, 40
      %v2594 = vpop.permute.xlu0 %2593
      %2595 = vrot.lane.b32.xlu0 %v832, 40
      %v2596 = vpop.permute.xlu0 %2595
      %2597 = vrot.lane.b32.xlu0 %v834, 40
      %v2598 = vpop.permute.xlu0 %2597
      %2599 = vrot.lane.b32.xlu0 %v836, 40
      %v2600 = vpop.permute.xlu0 %2599
      %2601 = vrot.lane.b32.xlu0 %v838, 40
      %v2602 = vpop.permute.xlu0 %2601
      %2603 = vrot.lane.b32.xlu0 %v840, 40
      %v2604 = vpop.permute.xlu0 %2603
      %2605 = vrot.lane.b32.xlu0 %v842, 40
      %v2606 = vpop.permute.xlu0 %2605
      %2607 = vrot.lane.b32.xlu0 %v844, 40
      %v2608 = vpop.permute.xlu0 %2607
      %2609 = vrot.lane.b32.xlu0 %v846, 40
      %v2610 = vpop.permute.xlu0 %2609
      %2611 = vrot.lane.b32.xlu0 %v848, 40
      %v2612 = vpop.permute.xlu0 %2611
      %2624 = vrot.lane.b32.xlu0 %v884, 48
      %v2625 = vpop.permute.xlu0 %2624
      %2626 = vrot.lane.b32.xlu0 %v886, 48
      %v2627 = vpop.permute.xlu0 %2626
      %2628 = vrot.lane.b32.xlu0 %v888, 48
      %v2629 = vpop.permute.xlu0 %2628
      %2630 = vrot.lane.b32.xlu0 %v890, 48
      %v2631 = vpop.permute.xlu0 %2630
      %2632 = vrot.lane.b32.xlu0 %v892, 48
      %v2633 = vpop.permute.xlu0 %2632
      %2634 = vrot.lane.b32.xlu0 %v894, 48
      %v2635 = vpop.permute.xlu0 %2634
      %2636 = vrot.lane.b32.xlu0 %v896, 48
      %v2637 = vpop.permute.xlu0 %2636
      %2638 = vrot.lane.b32.xlu0 %v898, 48
      %v2639 = vpop.permute.xlu0 %2638
      %2640 = vrot.lane.b32.xlu0 %v900, 48
      %v2641 = vpop.permute.xlu0 %2640
      %2642 = vrot.lane.b32.xlu0 %v902, 48
      %v2643 = vpop.permute.xlu0 %2642
      %2644 = vrot.lane.b32.xlu0 %v904, 48
      %v2645 = vpop.permute.xlu0 %2644
      %2657 = vrot.lane.b32.xlu0 %v939, 56
      %v2658 = vpop.permute.xlu0 %2657
      %2659 = vrot.lane.b32.xlu0 %v941, 56
      %v2660 = vpop.permute.xlu0 %2659
      %2661 = vrot.lane.b32.xlu0 %v943, 56
      %v2662 = vpop.permute.xlu0 %2661
      %2663 = vrot.lane.b32.xlu0 %v945, 56
      %v2664 = vpop.permute.xlu0 %2663
      %2665 = vrot.lane.b32.xlu0 %v947, 56
      %v2666 = vpop.permute.xlu0 %2665
      %2667 = vrot.lane.b32.xlu0 %v949, 56
      %v2668 = vpop.permute.xlu0 %2667
      %2669 = vrot.lane.b32.xlu0 %v951, 56
      %v2670 = vpop.permute.xlu0 %2669
      %2671 = vrot.lane.b32.xlu0 %v953, 56
      %v2672 = vpop.permute.xlu0 %2671
      %2673 = vrot.lane.b32.xlu0 %v955, 56
      %v2674 = vpop.permute.xlu0 %2673
      %2675 = vrot.lane.b32.xlu0 %v957, 56
      %v2676 = vpop.permute.xlu0 %2675
      %2677 = vrot.lane.b32.xlu0 %v956, 56
      %v2678 = vpop.permute.xlu0 %2677
      %v2690 = vsel %vm1196, %v623, %v2419
      %v2691 = vsel %vm1196, %v624, %v2421
      %v2692 = vsel %vm1196, %v625, %v2423
      %v2693 = vsel %vm1196, %v626, %v2425
      %v2694 = vsel %vm1196, %v627, %v2427
      %v2695 = vsel %vm1196, %v628, %v2429
      %v2696 = vsel %vm1196, %v629, %v2431
      %v2697 = vsel %vm1196, %v630, %v2433
      %v2698 = vsel %vm1196, %v631, %v2435
      %v2699 = vsel %vm1196, %v632, %v2437
      %v2700 = vsel %vm1196, %v633, %v2439
      %v2701 = vsel %vm1208, %v2690, %v2474
      %v2702 = vsel %vm1208, %v2691, %v2476
      %v2703 = vsel %vm1208, %v2692, %v2478
      %v2704 = vsel %vm1208, %v2693, %v2480
      %v2705 = vsel %vm1208, %v2694, %v2482
      %v2706 = vsel %vm1208, %v2695, %v2484
      %v2707 = vsel %vm1208, %v2696, %v2486
      %v2708 = vsel %vm1208, %v2697, %v2488
      %v2709 = vsel %vm1208, %v2698, %v2490
      %v2710 = vsel %vm1208, %v2699, %v2492
      %v2711 = vsel %vm1208, %v2700, %v2494
      %v2712 = vsel %vm1220, %v2701, %v2526
      %v2713 = vsel %vm1220, %v2702, %v2528
      %v2714 = vsel %vm1220, %v2703, %v2530
      %v2715 = vsel %vm1220, %v2704, %v2532
      %v2716 = vsel %vm1220, %v2705, %v2534
      %v2717 = vsel %vm1220, %v2706, %v2536
      %v2718 = vsel %vm1220, %v2707, %v2538
      %v2719 = vsel %vm1220, %v2708, %v2540
      %v2720 = vsel %vm1220, %v2709, %v2542
      %v2721 = vsel %vm1220, %v2710, %v2544
      %v2722 = vsel %vm1220, %v2711, %v2546
      %v2723 = vsel %vm1232, %v2712, %v2559
      %v2724 = vsel %vm1232, %v2713, %v2561
      %v2725 = vsel %vm1232, %v2714, %v2563
      %v2726 = vsel %vm1232, %v2715, %v2565
      %v2727 = vsel %vm1232, %v2716, %v2567
      %v2728 = vsel %vm1232, %v2717, %v2569
      %v2729 = vsel %vm1232, %v2718, %v2571
      %v2730 = vsel %vm1232, %v2719, %v2573
      %v2731 = vsel %vm1232, %v2720, %v2575
      %v2732 = vsel %vm1232, %v2721, %v2577
      %v2733 = vsel %vm1232, %v2722, %v2579
      %v2734 = vsel %vm1244, %v2723, %v2592
      %v2735 = vsel %vm1244, %v2724, %v2594
      %v2736 = vsel %vm1244, %v2725, %v2596
      %v2737 = vsel %vm1244, %v2726, %v2598
      %v2738 = vsel %vm1244, %v2727, %v2600
      %v2739 = vsel %vm1244, %v2728, %v2602
      %v2740 = vsel %vm1244, %v2729, %v2604
      %v2741 = vsel %vm1244, %v2730, %v2606
      %v2742 = vsel %vm1244, %v2731, %v2608
      %v2743 = vsel %vm1244, %v2732, %v2610
      %v2744 = vsel %vm1244, %v2733, %v2612
      %v2745 = vsel %vm1256, %v2734, %v2625
      %v2746 = vsel %vm1256, %v2735, %v2627
      %v2747 = vsel %vm1256, %v2736, %v2629
      %v2748 = vsel %vm1256, %v2737, %v2631
      %v2749 = vsel %vm1256, %v2738, %v2633
      %v2750 = vsel %vm1256, %v2739, %v2635
      %v2751 = vsel %vm1256, %v2740, %v2637
      %v2752 = vsel %vm1256, %v2741, %v2639
      %v2753 = vsel %vm1256, %v2742, %v2641
      %v2754 = vsel %vm1256, %v2743, %v2643
      %v2755 = vsel %vm1256, %v2744, %v2645
      %v2756 = vsel %vm1268, %v2745, %v2658
      %v2757 = vsel %vm1268, %v2746, %v2660
      %v2758 = vsel %vm1268, %v2747, %v2662
      %v2759 = vsel %vm1268, %v2748, %v2664
      %v2760 = vsel %vm1268, %v2749, %v2666
      %v2761 = vsel %vm1268, %v2750, %v2668
      %v2762 = vsel %vm1268, %v2751, %v2670
      %v2763 = vsel %vm1268, %v2752, %v2672
      %v2764 = vsel %vm1268, %v2753, %v2674
      %v2765 = vsel %vm1268, %v2754, %v2676
      %v2766 = vsel %vm1268, %v2755, %v2678
      %v2767 = vld [vmem:[%s6] sm:$0xff]
      %v2768 = vld [vmem:[%s6 + $0x8] sm:$0xff]
      %v2769 = vld [vmem:[%s6 + $0x10] sm:$0xff]
      %v2770 = vld [vmem:[%s6 + $0x18] sm:$0xff]
      %v2771 = vld [vmem:[%s6 + $0x20] sm:$0xff]
      %v2772 = vld [vmem:[%s6 + $0x28] sm:$0xff]
      %v2773 = vld [vmem:[%s6 + $0x30] sm:$0xff]
      %v2774 = vld [vmem:[%s6 + $0x38] sm:$0xff]
      %v2786 = vrot.slane %v2756, 3
      %v2787 = vrot.slane %v2757, 3
      %v2788 = vsel %vm1299, %v2786, %v2787
      %v2789 = vrot.slane %v2758, 3
      %v2790 = vsel %vm1299, %v2787, %v2789
      %v2791 = vrot.slane %v2759, 3
      %v2792 = vsel %vm1299, %v2789, %v2791
      %v2793 = vrot.slane %v2760, 3
      %v2794 = vsel %vm1299, %v2791, %v2793
      %v2795 = vrot.slane %v2761, 3
      %v2796 = vsel %vm1299, %v2793, %v2795
      %v2797 = vrot.slane %v2762, 3
      %v2798 = vsel %vm1299, %v2795, %v2797
      %v2799 = vrot.slane %v2763, 3
      %v2800 = vsel %vm1299, %v2797, %v2799
      %v2801 = vrot.slane %v2764, 3
      %v2802 = vsel %vm1299, %v2799, %v2801
      %v2803 = vrot.slane %v2765, 3
      %v2804 = vsel %vm1299, %v2801, %v2803
      %v2805 = vrot.slane %v2766, 3
      %v2806 = vsel %vm1299, %v2803, %v2805
      %v2807 = vsel %vm1321, %v2788, 0
      %v2809 = vsel %vm1321, %v2790, 0
      %v2811 = vsel %vm1321, %v2792, 0
      %v2813 = vsel %vm1321, %v2794, 0
      %v2815 = vsel %vm1321, %v2796, 0
      %v2817 = vsel %vm1321, %v2798, 0
      %v2819 = vsel %vm1321, %v2800, 0
      %v2821 = vsel %vm1321, %v2802, 0
      %v2823 = vsel %vm1321, %v2804, 0
      %v2825 = vsel %vm1321, %v2806, 0
      %2827 = vmatprep.subr.mxu0 0.0
      %2828 = vmatpush1.msra.mxu0 %v2767
      %2829 = vmatprep.subr.mxu0 0.0
      %2830 = vmatpush1.msra.mxu0 %v2768
      %2831 = vmatprep.subr.mxu0 0.0
      %2832 = vmatpush1.msra.mxu0 %v2769
      %2833 = vmatprep.subr.mxu0 0.0
      %2834 = vmatpush1.msra.mxu0 %v2770
      %2835 = vmatprep.subr.mxu0 0.0
      %2836 = vmatpush1.msra.mxu0 %v2771
      %2837 = vmatprep.subr.mxu0 0.0
      %2838 = vmatpush1.msra.mxu0 %v2772
      %2839 = vmatprep.subr.mxu0 0.0
      %2840 = vmatpush1.msra.mxu0 %v2773
      %2841 = vmatprep.subr.mxu0 0.0
      %2842 = vmatpush1.msra.mxu0 %v2774
      %2843 = vmatprep.subr.mxu0 0.0
      %2844 = vmatpush1.msra.mxu0 0.0
      %2845 = vmatprep.subr.mxu0 0.0
      %2846 = vmatpush1.msra.mxu0 0.0
      %2847 = vmatprep.subr.mxu0 0.0
      %2848 = vmatpush1.msra.mxu0 0.0
      %2849 = vmatprep.subr.mxu0 0.0
      %2850 = vmatpush1.msra.mxu0 0.0
      %2851 = vmatprep.subr.mxu0 0.0
      %2852 = vmatpush1.msra.mxu0 0.0
      %2853 = vmatprep.subr.mxu0 0.0
      %2854 = vmatpush1.msra.mxu0 0.0
      %2855 = vmatprep.subr.mxu0 0.0
      %2856 = vmatpush1.msra.mxu0 0.0
      %2857 = vmatprep.subr.mxu0 0.0
      %2858 = vmatpush1.msra.mxu0 0.0
      %2859 = vmatprep.subr.mxu0 0.0
      %2860 = vmatpush1.msra.mxu0 0.0
      %2861 = vmatprep.subr.mxu0 0.0
      %2862 = vmatpush1.msra.mxu0 0.0
      %2863 = vmatprep.subr.mxu0 0.0
      %2864 = vmatpush1.msra.mxu0 0.0
      %2865 = vmatprep.subr.mxu0 0.0
      %2866 = vmatpush1.msra.mxu0 0.0
      %2867 = vmatprep.subr.mxu0 0.0
      %2868 = vmatpush1.msra.mxu0 0.0
      %2869 = vmatprep.subr.mxu0 0.0
      %2870 = vmatpush1.msra.mxu0 0.0
      %2871 = vmatprep.subr.mxu0 0.0
      %2872 = vmatpush1.msra.mxu0 0.0
      %2873 = vmatprep.subr.mxu0 0.0
      %2874 = vmatpush1.msra.mxu0 0.0
      %2875 = vmatprep.subr.mxu0 0.0
      %2876 = vmatpush1.msra.mxu0 0.0
      %2877 = vmatprep.subr.mxu0 0.0
      %2878 = vmatpush1.msra.mxu0 0.0
      %2879 = vmatprep.subr.mxu0 0.0
      %2880 = vmatpush1.msra.mxu0 0.0
      %2881 = vmatprep.subr.mxu0 0.0
      %2882 = vmatpush1.msra.mxu0 0.0
      %2883 = vmatprep.subr.mxu0 0.0
      %2884 = vmatpush1.msra.mxu0 0.0
      %2885 = vmatprep.subr.mxu0 0.0
      %2886 = vmatpush1.msra.mxu0 0.0
      %2887 = vmatprep.subr.mxu0 0.0
      %2888 = vmatpush1.msra.mxu0 0.0
      %2889 = vmatprep.subr.mxu0 0.0
      %2890 = vmatpush1.msra.mxu0 0.0
      %2891 = vmatprep.mubr.f32.mxu0 0.0
      %2892 = vmatmul.mubr.f32.gmra.mrb[0].mxu0 %v2807
      %v2893 = vpop.f32.mrb[0].mxu0
      %v2894 = vadd.f32 0.0, %v2893
      %v2895 = vpop.f32.mrb[0].mxu0
      %2896 = vmatprep.mubr.f32.mxu0 0.0
      %2897 = vmatmul.mubr.f32.gmra.mrb[0].mxu0 %v2809
      %v2898 = vpop.f32.mrb[0].mxu0
      %v2899 = vadd.f32 0.0, %v2898
      %v2900 = vpop.f32.mrb[0].mxu0
      %2901 = vmatprep.mubr.f32.mxu0 0.0
      %2902 = vmatmul.mubr.f32.gmra.mrb[0].mxu0 %v2811
      %v2903 = vpop.f32.mrb[0].mxu0
      %v2904 = vadd.f32 0.0, %v2903
      %v2905 = vpop.f32.mrb[0].mxu0
      %2906 = vmatprep.mubr.f32.mxu0 0.0
      %2907 = vmatmul.mubr.f32.gmra.mrb[0].mxu0 %v2813
      %v2908 = vpop.f32.mrb[0].mxu0
      %v2909 = vadd.f32 0.0, %v2908
      %v2910 = vpop.f32.mrb[0].mxu0
      %2911 = vmatprep.mubr.f32.mxu0 0.0
      %2912 = vmatmul.mubr.f32.gmra.mrb[0].mxu0 %v2815
      %v2913 = vpop.f32.mrb[0].mxu0
      %v2914 = vadd.f32 0.0, %v2913
      %v2915 = vpop.f32.mrb[0].mxu0
      %2916 = vmatprep.mubr.f32.mxu0 0.0
      %2917 = vmatmul.mubr.f32.gmra.mrb[0].mxu0 %v2817
      %v2918 = vpop.f32.mrb[0].mxu0
      %v2919 = vadd.f32 0.0, %v2918
      %v2920 = vpop.f32.mrb[0].mxu0
      %2921 = vmatprep.mubr.f32.mxu0 0.0
      %2922 = vmatmul.mubr.f32.gmra.mrb[0].mxu0 %v2819
      %v2923 = vpop.f32.mrb[0].mxu0
      %v2924 = vadd.f32 0.0, %v2923
      %v2925 = vpop.f32.mrb[0].mxu0
      %2926 = vmatprep.mubr.f32.mxu0 0.0
      %2927 = vmatmul.mubr.f32.gmra.mrb[0].mxu0 %v2821
      %v2928 = vpop.f32.mrb[0].mxu0
      %v2929 = vadd.f32 0.0, %v2928
      %v2930 = vpop.f32.mrb[0].mxu0
      %2931 = vmatprep.mubr.f32.mxu0 0.0
      %2932 = vmatmul.mubr.f32.gmra.mrb[0].mxu0 %v2823
      %v2933 = vpop.f32.mrb[0].mxu0
      %v2934 = vadd.f32 0.0, %v2933
      %v2935 = vpop.f32.mrb[0].mxu0
      %2936 = vmatprep.mubr.f32.mxu0 0.0
      %2937 = vmatmul.mubr.f32.gmra.mrb[0].mxu0 %v2825
      %v2938 = vpop.f32.mrb[0].mxu0
      %v2939 = vadd.f32 0.0, %v2938
      %v2940 = vpop.f32.mrb[0].mxu0
      %2941 = vdwg.mxu0
      %s2942 = scalar_lea.vmem %s448, 320
      %2943 = vst.msk [vmem:[%s2942] sm:$0xff] %vm1196, %v2894
      %2944 = vst.msk [vmem:[%s2942 + $0x8] sm:$0xff] %vm1196, %v2899
      %2945 = vst.msk [vmem:[%s2942 + $0x10] sm:$0xff] %vm1196, %v2904
      %2946 = vst.msk [vmem:[%s2942 + $0x18] sm:$0xff] %vm1196, %v2909
      %2947 = vst.msk [vmem:[%s2942 + $0x20] sm:$0xff] %vm1196, %v2914
      %2948 = vst.msk [vmem:[%s2942 + $0x28] sm:$0xff] %vm1196, %v2919
      %2949 = vst.msk [vmem:[%s2942 + $0x30] sm:$0xff] %vm1196, %v2924
      %2950 = vst.msk [vmem:[%s2942 + $0x38] sm:$0xff] %vm1196, %v2929
      %2951 = vst.msk [vmem:[%s2942 + $0x40] sm:$0xff] %vm1196, %v2934
      %2952 = vst.msk [vmem:[%s2942 + $0x48] sm:$0xff] %vm1196, %v2939
      %v2953 = vsel %vm1477, %v2894, 0.0
      %v2954 = vsel %vm1478, %v2899, 0.0
      %v2955 = vsel %vm1479, %v2904, 0.0
      %v2956 = vsel %vm1480, %v2909, 0.0
      %v2957 = vsel %vm1481, %v2914, 0.0
      %v2958 = vsel %vm1482, %v2919, 0.0
      %v2959 = vsel %vm1483, %v2924, 0.0
      %v2960 = vsel %vm1484, %v2929, 0.0
      %v2961 = vsel %vm1485, %v2934, 0.0
      %v2962 = vsel %vm1486, %v2939, 0.0
      %v2963 = vsel %vm1196, %v2953, 0.0
      %v2964 = vsel %vm1196, %v2954, 0.0
      %v2965 = vadd.f32 %v2963, %v2964
      %v2966 = vsel %vm1196, %v2955, 0.0
      %v2967 = vadd.f32 %v2965, %v2966
      %v2968 = vsel %vm1196, %v2956, 0.0
      %v2969 = vadd.f32 %v2967, %v2968
      %v2970 = vsel %vm1196, %v2957, 0.0
      %v2971 = vadd.f32 %v2969, %v2970
      %v2972 = vsel %vm1196, %v2958, 0.0
      %v2973 = vadd.f32 %v2971, %v2972
      %v2974 = vsel %vm1196, %v2959, 0.0
      %v2975 = vadd.f32 %v2973, %v2974
      %v2976 = vsel %vm1196, %v2960, 0.0
      %v2977 = vadd.f32 %v2975, %v2976
      %v2978 = vsel %vm1196, %v2961, 0.0
      %v2979 = vadd.f32 %v2977, %v2978
      %v2980 = vsel %vm1196, %v2962, 0.0
      %v2981 = vadd.f32 %v2979, %v2980
      %v2982 = vrot.slane %v2981, 4
      %v2983 = vadd.f32 %v2981, %v2982
      %v2984 = vrot.slane %v2983, 2
      %v2985 = vadd.f32 %v2983, %v2984
      %v2986 = vrot.slane %v2985, 1
      %v2987 = vadd.f32 %v2985, %v2986
      %v2988 = vadd.f32 %v2349, %v2987
      %v2989 = vmul.f32 %v2953, %v2953
      %v2990 = vmul.f32 %v2954, %v2954
      %v2991 = vmul.f32 %v2955, %v2955
      %v2992 = vmul.f32 %v2956, %v2956
      %v2993 = vmul.f32 %v2957, %v2957
      %v2994 = vmul.f32 %v2958, %v2958
      %v2995 = vmul.f32 %v2959, %v2959
      %v2996 = vmul.f32 %v2960, %v2960
      %v2997 = vmul.f32 %v2961, %v2961
      %v2998 = vmul.f32 %v2962, %v2962
      %v2999 = vsel %vm1196, %v2989, 0.0
      %v3000 = vsel %vm1196, %v2990, 0.0
      %v3001 = vadd.f32 %v2999, %v3000
      %v3002 = vsel %vm1196, %v2991, 0.0
      %v3003 = vadd.f32 %v3001, %v3002
      %v3004 = vsel %vm1196, %v2992, 0.0
      %v3005 = vadd.f32 %v3003, %v3004
      %v3006 = vsel %vm1196, %v2993, 0.0
      %v3007 = vadd.f32 %v3005, %v3006
      %v3008 = vsel %vm1196, %v2994, 0.0
      %v3009 = vadd.f32 %v3007, %v3008
      %v3010 = vsel %vm1196, %v2995, 0.0
      %v3011 = vadd.f32 %v3009, %v3010
      %v3012 = vsel %vm1196, %v2996, 0.0
      %v3013 = vadd.f32 %v3011, %v3012
      %v3014 = vsel %vm1196, %v2997, 0.0
      %v3015 = vadd.f32 %v3013, %v3014
      %v3016 = vsel %vm1196, %v2998, 0.0
      %v3017 = vadd.f32 %v3015, %v3016
      %v3018 = vrot.slane %v3017, 4
      %v3019 = vadd.f32 %v3017, %v3018
      %v3020 = vrot.slane %v3019, 2
      %v3021 = vadd.f32 %v3019, %v3020
      %v3022 = vrot.slane %v3021, 1
      %v3023 = vadd.f32 %v3021, %v3022
      %v3024 = vadd.f32 %v2385, %v3023
      %v3025 = vrot.slane %v632, 5
      %v3026 = vsel %vm938, %v2523, %v3025
      %3027 = vrot.lane.b32.xlu0 %v3026, 24
      %v3028 = vpop.permute.xlu0 %3027
      %3030 = vrot.lane.b32.xlu0 %v1560, 56
      %v3031 = vpop.permute.xlu0 %3030
      %v3033 = vsel %vm1220, %v2711, %v3028
      %v3034 = vsel %vm1232, %v3033, %v2579
      %v3035 = vsel %vm1244, %v3034, %v2612
      %v3036 = vsel %vm1256, %v3035, %v2645
      %v3037 = vsel %vm1268, %v3036, %v3031
      %v3038 = vld [vmem:[%s7] sm:$0xff]
      %v3039 = vld [vmem:[%s7 + $0x8] sm:$0xff]
      %v3040 = vld [vmem:[%s7 + $0x10] sm:$0xff]
      %v3041 = vld [vmem:[%s7 + $0x18] sm:$0xff]
      %v3042 = vld [vmem:[%s7 + $0x20] sm:$0xff]
      %v3043 = vld [vmem:[%s7 + $0x28] sm:$0xff]
      %v3044 = vld [vmem:[%s7 + $0x30] sm:$0xff]
      %v3045 = vld [vmem:[%s7 + $0x38] sm:$0xff]
      %v3047 = vrot.slane %v2756, 4
      %v3048 = vrot.slane %v2757, 4
      %v3049 = vsel %vm1583, %v3047, %v3048
      %v3050 = vrot.slane %v2758, 4
      %v3051 = vsel %vm1583, %v3048, %v3050
      %v3052 = vrot.slane %v2759, 4
      %v3053 = vsel %vm1583, %v3050, %v3052
      %v3054 = vrot.slane %v2760, 4
      %v3055 = vsel %vm1583, %v3052, %v3054
      %v3056 = vrot.slane %v2761, 4
      %v3057 = vsel %vm1583, %v3054, %v3056
      %v3058 = vrot.slane %v2762, 4
      %v3059 = vsel %vm1583, %v3056, %v3058
      %v3060 = vrot.slane %v2763, 4
      %v3061 = vsel %vm1583, %v3058, %v3060
      %v3062 = vrot.slane %v2764, 4
      %v3063 = vsel %vm1583, %v3060, %v3062
      %v3064 = vrot.slane %v2765, 4
      %v3065 = vsel %vm1583, %v3062, %v3064
      %v3066 = vrot.slane %v3037, 4
      %v3067 = vsel %vm1583, %v3064, %v3066
      %v3068 = vsel %vm1321, %v3049, 0
      %v3070 = vsel %vm1321, %v3051, 0
      %v3072 = vsel %vm1321, %v3053, 0
      %v3074 = vsel %vm1321, %v3055, 0
      %v3076 = vsel %vm1321, %v3057, 0
      %v3078 = vsel %vm1321, %v3059, 0
      %v3080 = vsel %vm1321, %v3061, 0
      %v3082 = vsel %vm1321, %v3063, 0
      %v3084 = vsel %vm1321, %v3065, 0
      %v3086 = vsel %vm1321, %v3067, 0
      %3088 = vmatprep.subr.mxu0 0.0
      %3089 = vmatpush1.msra.mxu0 %v3038
      %3090 = vmatprep.subr.mxu0 0.0
      %3091 = vmatpush1.msra.mxu0 %v3039
      %3092 = vmatprep.subr.mxu0 0.0
      %3093 = vmatpush1.msra.mxu0 %v3040
      %3094 = vmatprep.subr.mxu0 0.0
      %3095 = vmatpush1.msra.mxu0 %v3041
      %3096 = vmatprep.subr.mxu0 0.0
      %3097 = vmatpush1.msra.mxu0 %v3042
      %3098 = vmatprep.subr.mxu0 0.0
      %3099 = vmatpush1.msra.mxu0 %v3043
      %3100 = vmatprep.subr.mxu0 0.0
      %3101 = vmatpush1.msra.mxu0 %v3044
      %3102 = vmatprep.subr.mxu0 0.0
      %3103 = vmatpush1.msra.mxu0 %v3045
      %3104 = vmatprep.subr.mxu0 0.0
      %3105 = vmatpush1.msra.mxu0 0.0
      %3106 = vmatprep.subr.mxu0 0.0
      %3107 = vmatpush1.msra.mxu0 0.0
      %3108 = vmatprep.subr.mxu0 0.0
      %3109 = vmatpush1.msra.mxu0 0.0
      %3110 = vmatprep.subr.mxu0 0.0
      %3111 = vmatpush1.msra.mxu0 0.0
      %3112 = vmatprep.subr.mxu0 0.0
      %3113 = vmatpush1.msra.mxu0 0.0
      %3114 = vmatprep.subr.mxu0 0.0
      %3115 = vmatpush1.msra.mxu0 0.0
      %3116 = vmatprep.subr.mxu0 0.0
      %3117 = vmatpush1.msra.mxu0 0.0
      %3118 = vmatprep.subr.mxu0 0.0
      %3119 = vmatpush1.msra.mxu0 0.0
      %3120 = vmatprep.subr.mxu0 0.0
      %3121 = vmatpush1.msra.mxu0 0.0
      %3122 = vmatprep.subr.mxu0 0.0
      %3123 = vmatpush1.msra.mxu0 0.0
      %3124 = vmatprep.subr.mxu0 0.0
      %3125 = vmatpush1.msra.mxu0 0.0
      %3126 = vmatprep.subr.mxu0 0.0
      %3127 = vmatpush1.msra.mxu0 0.0
      %3128 = vmatprep.subr.mxu0 0.0
      %3129 = vmatpush1.msra.mxu0 0.0
      %3130 = vmatprep.subr.mxu0 0.0
      %3131 = vmatpush1.msra.mxu0 0.0
      %3132 = vmatprep.subr.mxu0 0.0
      %3133 = vmatpush1.msra.mxu0 0.0
      %3134 = vmatprep.subr.mxu0 0.0
      %3135 = vmatpush1.msra.mxu0 0.0
      %3136 = vmatprep.subr.mxu0 0.0
      %3137 = vmatpush1.msra.mxu0 0.0
      %3138 = vmatprep.subr.mxu0 0.0
      %3139 = vmatpush1.msra.mxu0 0.0
      %3140 = vmatprep.subr.mxu0 0.0
      %3141 = vmatpush1.msra.mxu0 0.0
      %3142 = vmatprep.subr.mxu0 0.0
      %3143 = vmatpush1.msra.mxu0 0.0
      %3144 = vmatprep.subr.mxu0 0.0
      %3145 = vmatpush1.msra.mxu0 0.0
      %3146 = vmatprep.subr.mxu0 0.0
      %3147 = vmatpush1.msra.mxu0 0.0
      %3148 = vmatprep.subr.mxu0 0.0
      %3149 = vmatpush1.msra.mxu0 0.0
      %3150 = vmatprep.subr.mxu0 0.0
      %3151 = vmatpush1.msra.mxu0 0.0
      %3152 = vmatprep.mubr.f32.mxu0 0.0
      %3153 = vmatmul.mubr.f32.gmra.mrb[0].mxu0 %v3068
      %v3154 = vpop.f32.mrb[0].mxu0
      %v3155 = vadd.f32 0.0, %v3154
      %v3156 = vpop.f32.mrb[0].mxu0
      %3157 = vmatprep.mubr.f32.mxu0 0.0
      %3158 = vmatmul.mubr.f32.gmra.mrb[0].mxu0 %v3070
      %v3159 = vpop.f32.mrb[0].mxu0
      %v3160 = vadd.f32 0.0, %v3159
      %v3161 = vpop.f32.mrb[0].mxu0
      %3162 = vmatprep.mubr.f32.mxu0 0.0
      %3163 = vmatmul.mubr.f32.gmra.mrb[0].mxu0 %v3072
      %v3164 = vpop.f32.mrb[0].mxu0
      %v3165 = vadd.f32 0.0, %v3164
      %v3166 = vpop.f32.mrb[0].mxu0
      %3167 = vmatprep.mubr.f32.mxu0 0.0
      %3168 = vmatmul.mubr.f32.gmra.mrb[0].mxu0 %v3074
      %v3169 = vpop.f32.mrb[0].mxu0
      %v3170 = vadd.f32 0.0, %v3169
      %v3171 = vpop.f32.mrb[0].mxu0
      %3172 = vmatprep.mubr.f32.mxu0 0.0
      %3173 = vmatmul.mubr.f32.gmra.mrb[0].mxu0 %v3076
      %v3174 = vpop.f32.mrb[0].mxu0
      %v3175 = vadd.f32 0.0, %v3174
      %v3176 = vpop.f32.mrb[0].mxu0
      %3177 = vmatprep.mubr.f32.mxu0 0.0
      %3178 = vmatmul.mubr.f32.gmra.mrb[0].mxu0 %v3078
      %v3179 = vpop.f32.mrb[0].mxu0
      %v3180 = vadd.f32 0.0, %v3179
      %v3181 = vpop.f32.mrb[0].mxu0
      %3182 = vmatprep.mubr.f32.mxu0 0.0
      %3183 = vmatmul.mubr.f32.gmra.mrb[0].mxu0 %v3080
      %v3184 = vpop.f32.mrb[0].mxu0
      %v3185 = vadd.f32 0.0, %v3184
      %v3186 = vpop.f32.mrb[0].mxu0
      %3187 = vmatprep.mubr.f32.mxu0 0.0
      %3188 = vmatmul.mubr.f32.gmra.mrb[0].mxu0 %v3082
      %v3189 = vpop.f32.mrb[0].mxu0
      %v3190 = vadd.f32 0.0, %v3189
      %v3191 = vpop.f32.mrb[0].mxu0
      %3192 = vmatprep.mubr.f32.mxu0 0.0
      %3193 = vmatmul.mubr.f32.gmra.mrb[0].mxu0 %v3084
      %v3194 = vpop.f32.mrb[0].mxu0
      %v3195 = vadd.f32 0.0, %v3194
      %v3196 = vpop.f32.mrb[0].mxu0
      %3197 = vmatprep.mubr.f32.mxu0 0.0
      %3198 = vmatmul.mubr.f32.gmra.mrb[0].mxu0 %v3086
      %v3199 = vpop.f32.mrb[0].mxu0
      %v3200 = vadd.f32 0.0, %v3199
      %v3201 = vpop.f32.mrb[0].mxu0
      %3202 = vdwg.mxu0
      %s3203 = scalar_lea.vmem %s448, 400
      %3204 = vst.msk [vmem:[%s3203] sm:$0xff] %vm1196, %v3155
      %3205 = vst.msk [vmem:[%s3203 + $0x8] sm:$0xff] %vm1196, %v3160
      %3206 = vst.msk [vmem:[%s3203 + $0x10] sm:$0xff] %vm1196, %v3165
      %3207 = vst.msk [vmem:[%s3203 + $0x18] sm:$0xff] %vm1196, %v3170
      %3208 = vst.msk [vmem:[%s3203 + $0x20] sm:$0xff] %vm1196, %v3175
      %3209 = vst.msk [vmem:[%s3203 + $0x28] sm:$0xff] %vm1196, %v3180
      %3210 = vst.msk [vmem:[%s3203 + $0x30] sm:$0xff] %vm1196, %v3185
      %3211 = vst.msk [vmem:[%s3203 + $0x38] sm:$0xff] %vm1196, %v3190
      %3212 = vst.msk [vmem:[%s3203 + $0x40] sm:$0xff] %vm1196, %v3195
      %3213 = vst.msk [vmem:[%s3203 + $0x48] sm:$0xff] %vm1196, %v3200
      %v3214 = vsel %vm1477, %v3155, 0.0
      %v3215 = vsel %vm1478, %v3160, 0.0
      %v3216 = vsel %vm1479, %v3165, 0.0
      %v3217 = vsel %vm1480, %v3170, 0.0
      %v3218 = vsel %vm1481, %v3175, 0.0
      %v3219 = vsel %vm1482, %v3180, 0.0
      %v3220 = vsel %vm1483, %v3185, 0.0
      %v3221 = vsel %vm1484, %v3190, 0.0
      %v3222 = vsel %vm1485, %v3195, 0.0
      %v3223 = vsel %vm1486, %v3200, 0.0
      %v3224 = vsel %vm1196, %v3214, 0.0
      %v3225 = vsel %vm1196, %v3215, 0.0
      %v3226 = vadd.f32 %v3224, %v3225
      %v3227 = vsel %vm1196, %v3216, 0.0
      %v3228 = vadd.f32 %v3226, %v3227
      %v3229 = vsel %vm1196, %v3217, 0.0
      %v3230 = vadd.f32 %v3228, %v3229
      %v3231 = vsel %vm1196, %v3218, 0.0
      %v3232 = vadd.f32 %v3230, %v3231
      %v3233 = vsel %vm1196, %v3219, 0.0
      %v3234 = vadd.f32 %v3232, %v3233
      %v3235 = vsel %vm1196, %v3220, 0.0
      %v3236 = vadd.f32 %v3234, %v3235
      %v3237 = vsel %vm1196, %v3221, 0.0
      %v3238 = vadd.f32 %v3236, %v3237
      %v3239 = vsel %vm1196, %v3222, 0.0
      %v3240 = vadd.f32 %v3238, %v3239
      %v3241 = vsel %vm1196, %v3223, 0.0
      %v3242 = vadd.f32 %v3240, %v3241
      %v3243 = vrot.slane %v3242, 4
      %v3244 = vadd.f32 %v3242, %v3243
      %v3245 = vrot.slane %v3244, 2
      %v3246 = vadd.f32 %v3244, %v3245
      %v3247 = vrot.slane %v3246, 1
      %v3248 = vadd.f32 %v3246, %v3247
      %v3249 = vadd.f32 %v2988, %v3248
      %v3250 = vmul.f32 %v3214, %v3214
      %v3251 = vmul.f32 %v3215, %v3215
      %v3252 = vmul.f32 %v3216, %v3216
      %v3253 = vmul.f32 %v3217, %v3217
      %v3254 = vmul.f32 %v3218, %v3218
      %v3255 = vmul.f32 %v3219, %v3219
      %v3256 = vmul.f32 %v3220, %v3220
      %v3257 = vmul.f32 %v3221, %v3221
      %v3258 = vmul.f32 %v3222, %v3222
      %v3259 = vmul.f32 %v3223, %v3223
      %v3260 = vsel %vm1196, %v3250, 0.0
      %v3261 = vsel %vm1196, %v3251, 0.0
      %v3262 = vadd.f32 %v3260, %v3261
      %v3263 = vsel %vm1196, %v3252, 0.0
      %v3264 = vadd.f32 %v3262, %v3263
      %v3265 = vsel %vm1196, %v3253, 0.0
      %v3266 = vadd.f32 %v3264, %v3265
      %v3267 = vsel %vm1196, %v3254, 0.0
      %v3268 = vadd.f32 %v3266, %v3267
      %v3269 = vsel %vm1196, %v3255, 0.0
      %v3270 = vadd.f32 %v3268, %v3269
      %v3271 = vsel %vm1196, %v3256, 0.0
      %v3272 = vadd.f32 %v3270, %v3271
      %v3273 = vsel %vm1196, %v3257, 0.0
      %v3274 = vadd.f32 %v3272, %v3273
      %v3275 = vsel %vm1196, %v3258, 0.0
      %v3276 = vadd.f32 %v3274, %v3275
      %v3277 = vsel %vm1196, %v3259, 0.0
      %v3278 = vadd.f32 %v3276, %v3277
      %v3279 = vrot.slane %v3278, 4
      %v3280 = vadd.f32 %v3278, %v3279
      %v3281 = vrot.slane %v3280, 2
      %v3282 = vadd.f32 %v3280, %v3281
      %v3283 = vrot.slane %v3282, 1
      %v3284 = vadd.f32 %v3282, %v3283
      %v3285 = vadd.f32 %v3024, %v3284
      %v3287 = vrot.slane %v634, 7
      %v3288 = vsel %vm827, %v2416, %v3287
      %3289 = vrot.lane.b32.xlu0 %v2398, 8
      %v3290 = vpop.permute.xlu0 %3289
      %3291 = vrot.lane.b32.xlu0 %v3288, 8
      %v3292 = vpop.permute.xlu0 %3291
      %v3295 = vrot.slane %v633, 6
      %v3296 = vsel %vm883, %v2471, %v3295
      %3297 = vrot.lane.b32.xlu0 %v2453, 16
      %v3298 = vpop.permute.xlu0 %3297
      %3299 = vrot.lane.b32.xlu0 %v3296, 16
      %v3300 = vpop.permute.xlu0 %3299
      %v3303 = vrot.slane %v633, 5
      %v3304 = vsel %vm938, %v3025, %v3303
      %3305 = vrot.lane.b32.xlu0 %v2507, 24
      %v3306 = vpop.permute.xlu0 %3305
      %3307 = vrot.lane.b32.xlu0 %v3304, 24
      %v3308 = vpop.permute.xlu0 %3307
      %3311 = vrot.lane.b32.xlu0 %v579, 32
      %v3312 = vpop.permute.xlu0 %3311
      %3314 = vrot.lane.b32.xlu0 %v829, 40
      %v3315 = vpop.permute.xlu0 %3314
      %3316 = vrot.lane.b32.xlu0 %v1825, 40
      %v3317 = vpop.permute.xlu0 %3316
      %3320 = vrot.lane.b32.xlu0 %v885, 48
      %v3321 = vpop.permute.xlu0 %3320
      %3322 = vrot.lane.b32.xlu0 %v1833, 48
      %v3323 = vpop.permute.xlu0 %3322
      %3326 = vrot.lane.b32.xlu0 %v940, 56
      %v3327 = vpop.permute.xlu0 %3326
      %3328 = vrot.lane.b32.xlu0 %v1841, 56
      %v3329 = vpop.permute.xlu0 %3328
      %v3332 = vsel %vm1196, %v624, %v3290
      %v3333 = vsel %vm1196, %v634, %v3292
      %v3334 = vsel %vm1208, %v3332, %v3298
      %v3335 = vsel %vm1208, %v3333, %v3300
      %v3336 = vsel %vm1220, %v3334, %v3306
      %v3337 = vsel %vm1220, %v3335, %v3308
      %v3338 = vsel %vm1232, %v3336, %v2561
      %v3339 = vsel %vm1232, %v3337, %v3312
      %v3340 = vsel %vm1244, %v3338, %v3315
      %v3341 = vsel %vm1244, %v3339, %v3317
      %v3342 = vsel %vm1256, %v3340, %v3321
      %v3343 = vsel %vm1256, %v3341, %v3323
      %v3344 = vsel %vm1268, %v3342, %v3327
      %v3345 = vsel %vm1268, %v3343, %v3329
      %v3346 = vld [vmem:[%s8] sm:$0xff]
      %v3347 = vld [vmem:[%s8 + $0x8] sm:$0xff]
      %v3348 = vld [vmem:[%s8 + $0x10] sm:$0xff]
      %v3349 = vld [vmem:[%s8 + $0x18] sm:$0xff]
      %v3350 = vld [vmem:[%s8 + $0x20] sm:$0xff]
      %v3351 = vld [vmem:[%s8 + $0x28] sm:$0xff]
      %v3352 = vld [vmem:[%s8 + $0x30] sm:$0xff]
      %v3353 = vld [vmem:[%s8 + $0x38] sm:$0xff]
      %v3356 = vrot.slane %v3344, 5
      %v3357 = vrot.slane %v2758, 5
      %v3358 = vsel %vm938, %v3356, %v3357
      %v3359 = vrot.slane %v2759, 5
      %v3360 = vsel %vm938, %v3357, %v3359
      %v3361 = vrot.slane %v2760, 5
      %v3362 = vsel %vm938, %v3359, %v3361
      %v3363 = vrot.slane %v2761, 5
      %v3364 = vsel %vm938, %v3361, %v3363
      %v3365 = vrot.slane %v2762, 5
      %v3366 = vsel %vm938, %v3363, %v3365
      %v3367 = vrot.slane %v2763, 5
      %v3368 = vsel %vm938, %v3365, %v3367
      %v3369 = vrot.slane %v2764, 5
      %v3370 = vsel %vm938, %v3367, %v3369
      %v3371 = vrot.slane %v2765, 5
      %v3372 = vsel %vm938, %v3369, %v3371
      %v3373 = vrot.slane %v3037, 5
      %v3374 = vsel %vm938, %v3371, %v3373
      %v3375 = vrot.slane %v3345, 5
      %v3376 = vsel %vm938, %v3373, %v3375
      %v3377 = vsel %vm1321, %v3358, 0
      %v3379 = vsel %vm1321, %v3360, 0
      %v3381 = vsel %vm1321, %v3362, 0
      %v3383 = vsel %vm1321, %v3364, 0
      %v3385 = vsel %vm1321, %v3366, 0
      %v3387 = vsel %vm1321, %v3368, 0
      %v3389 = vsel %vm1321, %v3370, 0
      %v3391 = vsel %vm1321, %v3372, 0
      %v3393 = vsel %vm1321, %v3374, 0
      %v3395 = vsel %vm1321, %v3376, 0
      %3397 = vmatprep.subr.mxu0 0.0
      %3398 = vmatpush1.msra.mxu0 %v3346
      %3399 = vmatprep.subr.mxu0 0.0
      %3400 = vmatpush1.msra.mxu0 %v3347
      %3401 = vmatprep.subr.mxu0 0.0
      %3402 = vmatpush1.msra.mxu0 %v3348
      %3403 = vmatprep.subr.mxu0 0.0
      %3404 = vmatpush1.msra.mxu0 %v3349
      %3405 = vmatprep.subr.mxu0 0.0
      %3406 = vmatpush1.msra.mxu0 %v3350
      %3407 = vmatprep.subr.mxu0 0.0
      %3408 = vmatpush1.msra.mxu0 %v3351
      %3409 = vmatprep.subr.mxu0 0.0
      %3410 = vmatpush1.msra.mxu0 %v3352
      %3411 = vmatprep.subr.mxu0 0.0
      %3412 = vmatpush1.msra.mxu0 %v3353
      %3413 = vmatprep.subr.mxu0 0.0
      %3414 = vmatpush1.msra.mxu0 0.0
      %3415 = vmatprep.subr.mxu0 0.0
      %3416 = vmatpush1.msra.mxu0 0.0
      %3417 = vmatprep.subr.mxu0 0.0
      %3418 = vmatpush1.msra.mxu0 0.0
      %3419 = vmatprep.subr.mxu0 0.0
      %3420 = vmatpush1.msra.mxu0 0.0
      %3421 = vmatprep.subr.mxu0 0.0
      %3422 = vmatpush1.msra.mxu0 0.0
      %3423 = vmatprep.subr.mxu0 0.0
      %3424 = vmatpush1.msra.mxu0 0.0
      %3425 = vmatprep.subr.mxu0 0.0
      %3426 = vmatpush1.msra.mxu0 0.0
      %3427 = vmatprep.subr.mxu0 0.0
      %3428 = vmatpush1.msra.mxu0 0.0
      %3429 = vmatprep.subr.mxu0 0.0
      %3430 = vmatpush1.msra.mxu0 0.0
      %3431 = vmatprep.subr.mxu0 0.0
      %3432 = vmatpush1.msra.mxu0 0.0
      %3433 = vmatprep.subr.mxu0 0.0
      %3434 = vmatpush1.msra.mxu0 0.0
      %3435 = vmatprep.subr.mxu0 0.0
      %3436 = vmatpush1.msra.mxu0 0.0
      %3437 = vmatprep.subr.mxu0 0.0
      %3438 = vmatpush1.msra.mxu0 0.0
      %3439 = vmatprep.subr.mxu0 0.0
      %3440 = vmatpush1.msra.mxu0 0.0
      %3441 = vmatprep.subr.mxu0 0.0
      %3442 = vmatpush1.msra.mxu0 0.0
      %3443 = vmatprep.subr.mxu0 0.0
      %3444 = vmatpush1.msra.mxu0 0.0
      %3445 = vmatprep.subr.mxu0 0.0
      %3446 = vmatpush1.msra.mxu0 0.0
      %3447 = vmatprep.subr.mxu0 0.0
      %3448 = vmatpush1.msra.mxu0 0.0
      %3449 = vmatprep.subr.mxu0 0.0
      %3450 = vmatpush1.msra.mxu0 0.0
      %3451 = vmatprep.subr.mxu0 0.0
      %3452 = vmatpush1.msra.mxu0 0.0
      %3453 = vmatprep.subr.mxu0 0.0
      %3454 = vmatpush1.msra.mxu0 0.0
      %3455 = vmatprep.subr.mxu0 0.0
      %3456 = vmatpush1.msra.mxu0 0.0
      %3457 = vmatprep.subr.mxu0 0.0
      %3458 = vmatpush1.msra.mxu0 0.0
      %3459 = vmatprep.subr.mxu0 0.0
      %3460 = vmatpush1.msra.mxu0 0.0
      %3461 = vmatprep.mubr.f32.mxu0 0.0
      %3462 = vmatmul.mubr.f32.gmra.mrb[0].mxu0 %v3377
      %v3463 = vpop.f32.mrb[0].mxu0
      %v3464 = vadd.f32 0.0, %v3463
      %v3465 = vpop.f32.mrb[0].mxu0
      %3466 = vmatprep.mubr.f32.mxu0 0.0
      %3467 = vmatmul.mubr.f32.gmra.mrb[0].mxu0 %v3379
      %v3468 = vpop.f32.mrb[0].mxu0
      %v3469 = vadd.f32 0.0, %v3468
      %v3470 = vpop.f32.mrb[0].mxu0
      %3471 = vmatprep.mubr.f32.mxu0 0.0
      %3472 = vmatmul.mubr.f32.gmra.mrb[0].mxu0 %v3381
      %v3473 = vpop.f32.mrb[0].mxu0
      %v3474 = vadd.f32 0.0, %v3473
      %v3475 = vpop.f32.mrb[0].mxu0
      %3476 = vmatprep.mubr.f32.mxu0 0.0
      %3477 = vmatmul.mubr.f32.gmra.mrb[0].mxu0 %v3383
      %v3478 = vpop.f32.mrb[0].mxu0
      %v3479 = vadd.f32 0.0, %v3478
      %v3480 = vpop.f32.mrb[0].mxu0
      %3481 = vmatprep.mubr.f32.mxu0 0.0
      %3482 = vmatmul.mubr.f32.gmra.mrb[0].mxu0 %v3385
      %v3483 = vpop.f32.mrb[0].mxu0
      %v3484 = vadd.f32 0.0, %v3483
      %v3485 = vpop.f32.mrb[0].mxu0
      %3486 = vmatprep.mubr.f32.mxu0 0.0
      %3487 = vmatmul.mubr.f32.gmra.mrb[0].mxu0 %v3387
      %v3488 = vpop.f32.mrb[0].mxu0
      %v3489 = vadd.f32 0.0, %v3488
      %v3490 = vpop.f32.mrb[0].mxu0
      %3491 = vmatprep.mubr.f32.mxu0 0.0
      %3492 = vmatmul.mubr.f32.gmra.mrb[0].mxu0 %v3389
      %v3493 = vpop.f32.mrb[0].mxu0
      %v3494 = vadd.f32 0.0, %v3493
      %v3495 = vpop.f32.mrb[0].mxu0
      %3496 = vmatprep.mubr.f32.mxu0 0.0
      %3497 = vmatmul.mubr.f32.gmra.mrb[0].mxu0 %v3391
      %v3498 = vpop.f32.mrb[0].mxu0
      %v3499 = vadd.f32 0.0, %v3498
      %v3500 = vpop.f32.mrb[0].mxu0
      %3501 = vmatprep.mubr.f32.mxu0 0.0
      %3502 = vmatmul.mubr.f32.gmra.mrb[0].mxu0 %v3393
      %v3503 = vpop.f32.mrb[0].mxu0
      %v3504 = vadd.f32 0.0, %v3503
      %v3505 = vpop.f32.mrb[0].mxu0
      %3506 = vmatprep.mubr.f32.mxu0 0.0
      %3507 = vmatmul.mubr.f32.gmra.mrb[0].mxu0 %v3395
      %v3508 = vpop.f32.mrb[0].mxu0
      %v3509 = vadd.f32 0.0, %v3508
      %v3510 = vpop.f32.mrb[0].mxu0
      %3511 = vdwg.mxu0
      %s3512 = scalar_lea.vmem %s448, 480
      %3513 = vst.msk [vmem:[%s3512] sm:$0xff] %vm1196, %v3464
      %3514 = vst.msk [vmem:[%s3512 + $0x8] sm:$0xff] %vm1196, %v3469
      %3515 = vst.msk [vmem:[%s3512 + $0x10] sm:$0xff] %vm1196, %v3474
      %3516 = vst.msk [vmem:[%s3512 + $0x18] sm:$0xff] %vm1196, %v3479
      %3517 = vst.msk [vmem:[%s3512 + $0x20] sm:$0xff] %vm1196, %v3484
      %3518 = vst.msk [vmem:[%s3512 + $0x28] sm:$0xff] %vm1196, %v3489
      %3519 = vst.msk [vmem:[%s3512 + $0x30] sm:$0xff] %vm1196, %v3494
      %3520 = vst.msk [vmem:[%s3512 + $0x38] sm:$0xff] %vm1196, %v3499
      %3521 = vst.msk [vmem:[%s3512 + $0x40] sm:$0xff] %vm1196, %v3504
      %3522 = vst.msk [vmem:[%s3512 + $0x48] sm:$0xff] %vm1196, %v3509
      %v3523 = vsel %vm1477, %v3464, 0.0
      %v3524 = vsel %vm1478, %v3469, 0.0
      %v3525 = vsel %vm1479, %v3474, 0.0
      %v3526 = vsel %vm1480, %v3479, 0.0
      %v3527 = vsel %vm1481, %v3484, 0.0
      %v3528 = vsel %vm1482, %v3489, 0.0
      %v3529 = vsel %vm1483, %v3494, 0.0
      %v3530 = vsel %vm1484, %v3499, 0.0
      %v3531 = vsel %vm1485, %v3504, 0.0
      %v3532 = vsel %vm1486, %v3509, 0.0
      %v3533 = vsel %vm1196, %v3523, 0.0
      %v3534 = vsel %vm1196, %v3524, 0.0
      %v3535 = vadd.f32 %v3533, %v3534
      %v3536 = vsel %vm1196, %v3525, 0.0
      %v3537 = vadd.f32 %v3535, %v3536
      %v3538 = vsel %vm1196, %v3526, 0.0
      %v3539 = vadd.f32 %v3537, %v3538
      %v3540 = vsel %vm1196, %v3527, 0.0
      %v3541 = vadd.f32 %v3539, %v3540
      %v3542 = vsel %vm1196, %v3528, 0.0
      %v3543 = vadd.f32 %v3541, %v3542
      %v3544 = vsel %vm1196, %v3529, 0.0
      %v3545 = vadd.f32 %v3543, %v3544
      %v3546 = vsel %vm1196, %v3530, 0.0
      %v3547 = vadd.f32 %v3545, %v3546
      %v3548 = vsel %vm1196, %v3531, 0.0
      %v3549 = vadd.f32 %v3547, %v3548
      %v3550 = vsel %vm1196, %v3532, 0.0
      %v3551 = vadd.f32 %v3549, %v3550
      %v3552 = vrot.slane %v3551, 4
      %v3553 = vadd.f32 %v3551, %v3552
      %v3554 = vrot.slane %v3553, 2
      %v3555 = vadd.f32 %v3553, %v3554
      %v3556 = vrot.slane %v3555, 1
      %v3557 = vadd.f32 %v3555, %v3556
      %v3558 = vadd.f32 %v3249, %v3557
      %v3559 = vmul.f32 %v3523, %v3523
      %v3560 = vmul.f32 %v3524, %v3524
      %v3561 = vmul.f32 %v3525, %v3525
      %v3562 = vmul.f32 %v3526, %v3526
      %v3563 = vmul.f32 %v3527, %v3527
      %v3564 = vmul.f32 %v3528, %v3528
      %v3565 = vmul.f32 %v3529, %v3529
      %v3566 = vmul.f32 %v3530, %v3530
      %v3567 = vmul.f32 %v3531, %v3531
      %v3568 = vmul.f32 %v3532, %v3532
      %v3569 = vsel %vm1196, %v3559, 0.0
      %v3570 = vsel %vm1196, %v3560, 0.0
      %v3571 = vadd.f32 %v3569, %v3570
      %v3572 = vsel %vm1196, %v3561, 0.0
      %v3573 = vadd.f32 %v3571, %v3572
      %v3574 = vsel %vm1196, %v3562, 0.0
      %v3575 = vadd.f32 %v3573, %v3574
      %v3576 = vsel %vm1196, %v3563, 0.0
      %v3577 = vadd.f32 %v3575, %v3576
      %v3578 = vsel %vm1196, %v3564, 0.0
      %v3579 = vadd.f32 %v3577, %v3578
      %v3580 = vsel %vm1196, %v3565, 0.0
      %v3581 = vadd.f32 %v3579, %v3580
      %v3582 = vsel %vm1196, %v3566, 0.0
      %v3583 = vadd.f32 %v3581, %v3582
      %v3584 = vsel %vm1196, %v3567, 0.0
      %v3585 = vadd.f32 %v3583, %v3584
      %v3586 = vsel %vm1196, %v3568, 0.0
      %v3587 = vadd.f32 %v3585, %v3586
      %v3588 = vrot.slane %v3587, 4
      %v3589 = vadd.f32 %v3587, %v3588
      %v3590 = vrot.slane %v3589, 2
      %v3591 = vadd.f32 %v3589, %v3590
      %v3592 = vrot.slane %v3591, 1
      %v3593 = vadd.f32 %v3591, %v3592
      %v3594 = vadd.f32 %v3285, %v3593
      %v3595 = vld [vmem:[%s9] sm:$0xff]
      %v3596 = vld [vmem:[%s9 + $0x8] sm:$0xff]
      %v3597 = vld [vmem:[%s9 + $0x10] sm:$0xff]
      %v3598 = vld [vmem:[%s9 + $0x18] sm:$0xff]
      %v3599 = vld [vmem:[%s9 + $0x20] sm:$0xff]
      %v3600 = vld [vmem:[%s9 + $0x28] sm:$0xff]
      %v3601 = vld [vmem:[%s9 + $0x30] sm:$0xff]
      %v3602 = vld [vmem:[%s9 + $0x38] sm:$0xff]
      %v3603 = vrot.slane %v3344, 6
      %v3604 = vrot.slane %v2758, 6
      %v3605 = vsel %vm883, %v3603, %v3604
      %v3606 = vrot.slane %v2759, 6
      %v3607 = vsel %vm883, %v3604, %v3606
      %v3608 = vrot.slane %v2760, 6
      %v3609 = vsel %vm883, %v3606, %v3608
      %v3610 = vrot.slane %v2761, 6
      %v3611 = vsel %vm883, %v3608, %v3610
      %v3612 = vrot.slane %v2762, 6
      %v3613 = vsel %vm883, %v3610, %v3612
      %v3614 = vrot.slane %v2763, 6
      %v3615 = vsel %vm883, %v3612, %v3614
      %v3616 = vrot.slane %v2764, 6
      %v3617 = vsel %vm883, %v3614, %v3616
      %v3618 = vrot.slane %v2765, 6
      %v3619 = vsel %vm883, %v3616, %v3618
      %v3620 = vrot.slane %v3037, 6
      %v3621 = vsel %vm883, %v3618, %v3620
      %v3622 = vrot.slane %v3345, 6
      %v3623 = vsel %vm883, %v3620, %v3622
      %v3624 = vsel %vm1321, %v3605, 0
      %v3626 = vsel %vm1321, %v3607, 0
      %v3628 = vsel %vm1321, %v3609, 0
      %v3630 = vsel %vm1321, %v3611, 0
      %v3632 = vsel %vm1321, %v3613, 0
      %v3634 = vsel %vm1321, %v3615, 0
      %v3636 = vsel %vm1321, %v3617, 0
      %v3638 = vsel %vm1321, %v3619, 0
      %v3640 = vsel %vm1321, %v3621, 0
      %v3642 = vsel %vm1321, %v3623, 0
      %3644 = vmatprep.subr.mxu0 0.0
      %3645 = vmatpush1.msra.mxu0 %v3595
      %3646 = vmatprep.subr.mxu0 0.0
      %3647 = vmatpush1.msra.mxu0 %v3596
      %3648 = vmatprep.subr.mxu0 0.0
      %3649 = vmatpush1.msra.mxu0 %v3597
      %3650 = vmatprep.subr.mxu0 0.0
      %3651 = vmatpush1.msra.mxu0 %v3598
      %3652 = vmatprep.subr.mxu0 0.0
      %3653 = vmatpush1.msra.mxu0 %v3599
      %3654 = vmatprep.subr.mxu0 0.0
      %3655 = vmatpush1.msra.mxu0 %v3600
      %3656 = vmatprep.subr.mxu0 0.0
      %3657 = vmatpush1.msra.mxu0 %v3601
      %3658 = vmatprep.subr.mxu0 0.0
      %3659 = vmatpush1.msra.mxu0 %v3602
      %3660 = vmatprep.subr.mxu0 0.0
      %3661 = vmatpush1.msra.mxu0 0.0
      %3662 = vmatprep.subr.mxu0 0.0
      %3663 = vmatpush1.msra.mxu0 0.0
      %3664 = vmatprep.subr.mxu0 0.0
      %3665 = vmatpush1.msra.mxu0 0.0
      %3666 = vmatprep.subr.mxu0 0.0
      %3667 = vmatpush1.msra.mxu0 0.0
      %3668 = vmatprep.subr.mxu0 0.0
      %3669 = vmatpush1.msra.mxu0 0.0
      %3670 = vmatprep.subr.mxu0 0.0
      %3671 = vmatpush1.msra.mxu0 0.0
      %3672 = vmatprep.subr.mxu0 0.0
      %3673 = vmatpush1.msra.mxu0 0.0
      %3674 = vmatprep.subr.mxu0 0.0
      %3675 = vmatpush1.msra.mxu0 0.0
      %3676 = vmatprep.subr.mxu0 0.0
      %3677 = vmatpush1.msra.mxu0 0.0
      %3678 = vmatprep.subr.mxu0 0.0
      %3679 = vmatpush1.msra.mxu0 0.0
      %3680 = vmatprep.subr.mxu0 0.0
      %3681 = vmatpush1.msra.mxu0 0.0
      %3682 = vmatprep.subr.mxu0 0.0
      %3683 = vmatpush1.msra.mxu0 0.0
      %3684 = vmatprep.subr.mxu0 0.0
      %3685 = vmatpush1.msra.mxu0 0.0
      %3686 = vmatprep.subr.mxu0 0.0
      %3687 = vmatpush1.msra.mxu0 0.0
      %3688 = vmatprep.subr.mxu0 0.0
      %3689 = vmatpush1.msra.mxu0 0.0
      %3690 = vmatprep.subr.mxu0 0.0
      %3691 = vmatpush1.msra.mxu0 0.0
      %3692 = vmatprep.subr.mxu0 0.0
      %3693 = vmatpush1.msra.mxu0 0.0
      %3694 = vmatprep.subr.mxu0 0.0
      %3695 = vmatpush1.msra.mxu0 0.0
      %3696 = vmatprep.subr.mxu0 0.0
      %3697 = vmatpush1.msra.mxu0 0.0
      %3698 = vmatprep.subr.mxu0 0.0
      %3699 = vmatpush1.msra.mxu0 0.0
      %3700 = vmatprep.subr.mxu0 0.0
      %3701 = vmatpush1.msra.mxu0 0.0
      %3702 = vmatprep.subr.mxu0 0.0
      %3703 = vmatpush1.msra.mxu0 0.0
      %3704 = vmatprep.subr.mxu0 0.0
      %3705 = vmatpush1.msra.mxu0 0.0
      %3706 = vmatprep.subr.mxu0 0.0
      %3707 = vmatpush1.msra.mxu0 0.0
      %3708 = vmatprep.mubr.f32.mxu0 0.0
      %3709 = vmatmul.mubr.f32.gmra.mrb[0].mxu0 %v3624
      %v3710 = vpop.f32.mrb[0].mxu0
      %v3711 = vadd.f32 0.0, %v3710
      %v3712 = vpop.f32.mrb[0].mxu0
      %3713 = vmatprep.mubr.f32.mxu0 0.0
      %3714 = vmatmul.mubr.f32.gmra.mrb[0].mxu0 %v3626
      %v3715 = vpop.f32.mrb[0].mxu0
      %v3716 = vadd.f32 0.0, %v3715
      %v3717 = vpop.f32.mrb[0].mxu0
      %3718 = vmatprep.mubr.f32.mxu0 0.0
      %3719 = vmatmul.mubr.f32.gmra.mrb[0].mxu0 %v3628
      %v3720 = vpop.f32.mrb[0].mxu0
      %v3721 = vadd.f32 0.0, %v3720
      %v3722 = vpop.f32.mrb[0].mxu0
      %3723 = vmatprep.mubr.f32.mxu0 0.0
      %3724 = vmatmul.mubr.f32.gmra.mrb[0].mxu0 %v3630
      %v3725 = vpop.f32.mrb[0].mxu0
      %v3726 = vadd.f32 0.0, %v3725
      %v3727 = vpop.f32.mrb[0].mxu0
      %3728 = vmatprep.mubr.f32.mxu0 0.0
      %3729 = vmatmul.mubr.f32.gmra.mrb[0].mxu0 %v3632
      %v3730 = vpop.f32.mrb[0].mxu0
      %v3731 = vadd.f32 0.0, %v3730
      %v3732 = vpop.f32.mrb[0].mxu0
      %3733 = vmatprep.mubr.f32.mxu0 0.0
      %3734 = vmatmul.mubr.f32.gmra.mrb[0].mxu0 %v3634
      %v3735 = vpop.f32.mrb[0].mxu0
      %v3736 = vadd.f32 0.0, %v3735
      %v3737 = vpop.f32.mrb[0].mxu0
      %3738 = vmatprep.mubr.f32.mxu0 0.0
      %3739 = vmatmul.mubr.f32.gmra.mrb[0].mxu0 %v3636
      %v3740 = vpop.f32.mrb[0].mxu0
      %v3741 = vadd.f32 0.0, %v3740
      %v3742 = vpop.f32.mrb[0].mxu0
      %3743 = vmatprep.mubr.f32.mxu0 0.0
      %3744 = vmatmul.mubr.f32.gmra.mrb[0].mxu0 %v3638
      %v3745 = vpop.f32.mrb[0].mxu0
      %v3746 = vadd.f32 0.0, %v3745
      %v3747 = vpop.f32.mrb[0].mxu0
      %3748 = vmatprep.mubr.f32.mxu0 0.0
      %3749 = vmatmul.mubr.f32.gmra.mrb[0].mxu0 %v3640
      %v3750 = vpop.f32.mrb[0].mxu0
      %v3751 = vadd.f32 0.0, %v3750
      %v3752 = vpop.f32.mrb[0].mxu0
      %3753 = vmatprep.mubr.f32.mxu0 0.0
      %3754 = vmatmul.mubr.f32.gmra.mrb[0].mxu0 %v3642
      %v3755 = vpop.f32.mrb[0].mxu0
      %v3756 = vadd.f32 0.0, %v3755
      %v3757 = vpop.f32.mrb[0].mxu0
      %3758 = vdwg.mxu0
      %s3759 = scalar_lea.vmem %s448, 560
      %3760 = vst.msk [vmem:[%s3759] sm:$0xff] %vm1196, %v3711
      %3761 = vst.msk [vmem:[%s3759 + $0x8] sm:$0xff] %vm1196, %v3716
      %3762 = vst.msk [vmem:[%s3759 + $0x10] sm:$0xff] %vm1196, %v3721
      %3763 = vst.msk [vmem:[%s3759 + $0x18] sm:$0xff] %vm1196, %v3726
      %3764 = vst.msk [vmem:[%s3759 + $0x20] sm:$0xff] %vm1196, %v3731
      %3765 = vst.msk [vmem:[%s3759 + $0x28] sm:$0xff] %vm1196, %v3736
      %3766 = vst.msk [vmem:[%s3759 + $0x30] sm:$0xff] %vm1196, %v3741
      %3767 = vst.msk [vmem:[%s3759 + $0x38] sm:$0xff] %vm1196, %v3746
      %3768 = vst.msk [vmem:[%s3759 + $0x40] sm:$0xff] %vm1196, %v3751
      %3769 = vst.msk [vmem:[%s3759 + $0x48] sm:$0xff] %vm1196, %v3756
      %v3770 = vsel %vm1477, %v3711, 0.0
      %v3771 = vsel %vm1478, %v3716, 0.0
      %v3772 = vsel %vm1479, %v3721, 0.0
      %v3773 = vsel %vm1480, %v3726, 0.0
      %v3774 = vsel %vm1481, %v3731, 0.0
      %v3775 = vsel %vm1482, %v3736, 0.0
      %v3776 = vsel %vm1483, %v3741, 0.0
      %v3777 = vsel %vm1484, %v3746, 0.0
      %v3778 = vsel %vm1485, %v3751, 0.0
      %v3779 = vsel %vm1486, %v3756, 0.0
      %v3780 = vsel %vm1196, %v3770, 0.0
      %v3781 = vsel %vm1196, %v3771, 0.0
      %v3782 = vadd.f32 %v3780, %v3781
      %v3783 = vsel %vm1196, %v3772, 0.0
      %v3784 = vadd.f32 %v3782, %v3783
      %v3785 = vsel %vm1196, %v3773, 0.0
      %v3786 = vadd.f32 %v3784, %v3785
      %v3787 = vsel %vm1196, %v3774, 0.0
      %v3788 = vadd.f32 %v3786, %v3787
      %v3789 = vsel %vm1196, %v3775, 0.0
      %v3790 = vadd.f32 %v3788, %v3789
      %v3791 = vsel %vm1196, %v3776, 0.0
      %v3792 = vadd.f32 %v3790, %v3791
      %v3793 = vsel %vm1196, %v3777, 0.0
      %v3794 = vadd.f32 %v3792, %v3793
      %v3795 = vsel %vm1196, %v3778, 0.0
      %v3796 = vadd.f32 %v3794, %v3795
      %v3797 = vsel %vm1196, %v3779, 0.0
      %v3798 = vadd.f32 %v3796, %v3797
      %v3799 = vrot.slane %v3798, 4
      %v3800 = vadd.f32 %v3798, %v3799
      %v3801 = vrot.slane %v3800, 2
      %v3802 = vadd.f32 %v3800, %v3801
      %v3803 = vrot.slane %v3802, 1
      %v3804 = vadd.f32 %v3802, %v3803
      %v3805 = vadd.f32 %v3558, %v3804
      %v3806 = vmul.f32 %v3770, %v3770
      %v3807 = vmul.f32 %v3771, %v3771
      %v3808 = vmul.f32 %v3772, %v3772
      %v3809 = vmul.f32 %v3773, %v3773
      %v3810 = vmul.f32 %v3774, %v3774
      %v3811 = vmul.f32 %v3775, %v3775
      %v3812 = vmul.f32 %v3776, %v3776
      %v3813 = vmul.f32 %v3777, %v3777
      %v3814 = vmul.f32 %v3778, %v3778
      %v3815 = vmul.f32 %v3779, %v3779
      %v3816 = vsel %vm1196, %v3806, 0.0
      %v3817 = vsel %vm1196, %v3807, 0.0
      %v3818 = vadd.f32 %v3816, %v3817
      %v3819 = vsel %vm1196, %v3808, 0.0
      %v3820 = vadd.f32 %v3818, %v3819
      %v3821 = vsel %vm1196, %v3809, 0.0
      %v3822 = vadd.f32 %v3820, %v3821
      %v3823 = vsel %vm1196, %v3810, 0.0
      %v3824 = vadd.f32 %v3822, %v3823
      %v3825 = vsel %vm1196, %v3811, 0.0
      %v3826 = vadd.f32 %v3824, %v3825
      %v3827 = vsel %vm1196, %v3812, 0.0
      %v3828 = vadd.f32 %v3826, %v3827
      %v3829 = vsel %vm1196, %v3813, 0.0
      %v3830 = vadd.f32 %v3828, %v3829
      %v3831 = vsel %vm1196, %v3814, 0.0
      %v3832 = vadd.f32 %v3830, %v3831
      %v3833 = vsel %vm1196, %v3815, 0.0
      %v3834 = vadd.f32 %v3832, %v3833
      %v3835 = vrot.slane %v3834, 4
      %v3836 = vadd.f32 %v3834, %v3835
      %v3837 = vrot.slane %v3836, 2
      %v3838 = vadd.f32 %v3836, %v3837
      %v3839 = vrot.slane %v3838, 1
      %v3840 = vadd.f32 %v3838, %v3839
      %v3841 = vadd.f32 %v3594, %v3840
      %v3842 = vsel %vm827, %v3805, %v3841
      %vm3843 = vcmask 58368
      %3844 = vst.msk [vmem:[%s456] sm:$0x3] %vm3843, %v3842
      %p3845 = scmp.lt.s32.totalorder %s28, 1
      %s3846 = scalar_select %p3845, %s28, 1
      %p3847 = scmp.lt.s32.totalorder %s29, 7
      %s3848 = scalar_select %p3847, %s29, 7
      %s3849 = smul.addr %s3848, 80
      %s3850 = smul.addr %s3846, 640
      %s3851 = sadd.s32 %s3849, %s3850
      %s3852 = smul.addr %s3851, 8
      %s3853 = scalar_lea.vmem %s11, %s3852
      %p3854 = scmp.lt.s32.totalorder %s28, 1
      %s3855 = scalar_select %p3854, %s28, 1
      %p3856 = scmp.lt.s32.totalorder %s29, 7
      %s3857 = scalar_select %p3856, %s29, 7
      %s3858 = smul.addr %s3855, 8
      %s3859 = sadd.s32 %s3857, %s3858
      %s3860 = smul.addr %s3859, 2
      %s3861 = scalar_lea.vmem %s12, %s3860
      // Predicated region
      $region65: #{deconv_head_forward.4} parent=63 // pred_check
        %p3862 = pneg %p292
      $region66: #{deconv_head_forward.4} parent=63 // pred_check_branch
        %3864 = sbr.rel (%p3862) target = $region68
      $region67: #{deconv_head_forward.4} parent=63 // pred_region
        _
      $region68: #{deconv_head_forward.4} parent=63 // pred_fallthru
        _
      // Predicated region
      $region69: #{deconv_head_forward.4} parent=63 // pred_check
        %p3865 = pneg %p320
      $region70: #{deconv_head_forward.4} parent=63 // pred_check_branch
        %3867 = sbr.rel (%p3865) target = $region72
      $region71: #{deconv_head_forward.4} parent=63 // pred_region
        _
      $region72: #{deconv_head_forward.4} parent=63 // pred_fallthru
        _
    $region64: #{deconv_head_forward.4} parent=5 // pred_fallthru
      _
    %p3868 = scmp.le.s32.totalorder 2, %s19
    // Predicated region
    $region73: #{deconv_head_forward.4} parent=5 // pred_check
      %p3869 = pneg %p3868
    $region74: #{deconv_head_forward.4} parent=5 // pred_check_branch
      %3871 = sbr.rel (%p3869) target = $region76
    $region75: #{deconv_head_forward.4} parent=5 // pred_region
      %s3872 = ssub.s32 %s19, 2
      // Predicated region
      $region77: #{deconv_head_forward.4} parent=75 // pred_check
        %p3873 = pneg %p298
      $region78: #{deconv_head_forward.4} parent=75 // pred_check_branch
        %3875 = sbr.rel (%p3873) target = $region80
      $region79: #{deconv_head_forward.4} parent=75 // pred_region
        %p3876 = scmp.lt.s32.totalorder %s30, 1
        %s3877 = scalar_select %p3876, %s30, 1
        %p3878 = scmp.lt.s32.totalorder %s31, 7
        %s3879 = scalar_select %p3878, %s31, 7
        %s3880 = smul.addr %s3879, 80
        %s3881 = smul.addr %s3877, 640
        %s3882 = sadd.s32 %s3880, %s3881
        %s3883 = smul.addr %s3882, 8
        %s3884 = scalar_lea.vmem %s11, %s3883
      $region80: #{deconv_head_forward.4} parent=75 // pred_fallthru
        _
      // Predicated region
      $region81: #{deconv_head_forward.4} parent=75 // pred_check
        %p3885 = pneg %p326
      $region82: #{deconv_head_forward.4} parent=75 // pred_check_branch
        %3887 = sbr.rel (%p3885) target = $region84
      $region83: #{deconv_head_forward.4} parent=75 // pred_region
        %p3888 = scmp.lt.s32.totalorder %s30, 1
        %s3889 = scalar_select %p3888, %s30, 1
        %p3890 = scmp.lt.s32.totalorder %s31, 7
        %s3891 = scalar_select %p3890, %s31, 7
        %s3892 = smul.addr %s3889, 8
        %s3893 = sadd.s32 %s3891, %s3892
        %s3894 = smul.addr %s3893, 2
        %s3895 = scalar_lea.vmem %s12, %s3894
      $region84: #{deconv_head_forward.4} parent=75 // pred_fallthru
        _
    $region76: #{deconv_head_forward.4} parent=5 // pred_fallthru
      _
  $region6: #{deconv_head_forward.4} parent=0 // loop_footer
    %s23 = sadd.s32 1, %s19
  $region7: #{deconv_head_forward.4} parent=0 // loop_footer_branch
    %18 = sbr.rel target = $region3
  $region8: #{deconv_head_forward.4} parent=0 // loop_exit
    _

// kernel: deconv_head_forward.5
$region0: #{deconv_head_forward.5}
  #allocation0 [shape = 'u32[]', space=smem, size = 0x4, offset = 0x4, fixed_abs, tag = 'smem constant byte address 0x4 - core index']
  #allocation1 [shape = 'u32[144,128]{1,0:T(1,128)}', space=vmem, size = 0x12000, scoped, tag = 'internal scratch']
  %s0 = inlined_call_operand.vmem [shape: f32[8,1], index: 0, kind: input, shape index: {}]
  %s1 = inlined_call_operand.vmem [shape: f32[8,1], index: 1, kind: input, shape index: {}]
  %s2 = inlined_call_operand.vmem [shape: f32[3,8], index: 2, kind: input, shape index: {}]
  %s3 = inlined_call_operand.vmem [shape: f32[3,1], index: 3, kind: input, shape index: {}]
  %s4 = inlined_call_operand.vmem [shape: f32[2,16,8,256], index: 4, kind: input, shape index: {}]
  %s5 = inlined_call_operand.vmem [shape: f32[2,16,3,256], index: 5, kind: output, shape index: {}]
  %s6 = sld [smem:[#allocation0]]
  $region53: #{deconv_head_forward.5} parent=0
    _
  %s8 = ssub.s32 1, %s6
  %s9 = scalar_select 0, %s8, %s6
  loop: start=0, step=1, limit=34
  $region2: #{deconv_head_forward.5} parent=0 // loop_pre_header
    _
  $region3: #{deconv_head_forward.5} parent=0 // loop_header
    %s11 = sphi 0, %s15
    %p12 = scmp.ge.s32.totalorder %s11, 34
    %s18 = sphi 0, %s30
    %s19 = sphi 0, %s26
    %s20 = sphi 0, %s18
    %s21 = sphi 0, %s19
    %s22 = sphi 0, %s20
    %s23 = sphi 0, %s21
    %s31 = sphi 0, %s31
    %s33 = sphi 0, %s31
    %s34 = sphi 0, %s33
    %s48 = sphi 0, %s34
    %s52 = sphi 0, %s52
    %s54 = sphi 0, %s52
    %s55 = sphi 0, %s54
    %s69 = sphi 0, %s55
    %s73 = sphi 0, %s73
    %s75 = sphi 0, %s73
    %s76 = sphi 0, %s75
    %s90 = sphi 0, %s76
    %s94 = sphi 0, %s94
    %s96 = sphi 0, %s94
    %s97 = sphi 0, %s96
    %s111 = sphi 0, %s97
    %s117 = sphi 0, %s119
    %s120 = sphi 0, %s117
    %s121 = sphi 0, %s120
    %s137 = sphi 0, %s121
    %s145 = sphi 0, %s147
    %s148 = sphi 0, %s145
    %s149 = sphi 0, %s148
    %s165 = sphi 0, %s149
  $region4: #{deconv_head_forward.5} parent=0 // loop_header_branch
    %14 = sbr.rel (%p12) target = $region8
  $region5: #{deconv_head_forward.5} parent=0 // loop_body
    %s16 = ssub.s32 %s11, 1
    %s17 = ssub.s32 %s11, 2
    %s24 = sadd.s32 1, %s19
    %p25 = scmp.ge.s32.totalorder %s24, 16
    %s26 = scalar_select %p25, 0, %s24
    %s27 = sadd.s32 1, %s18
    %s28 = scalar_select %p25, %s27, %s18
    %p29 = scmp.ge.s32.totalorder %s28, 2
    %s30 = scalar_select %p29, 0, %s28
    %s32 = sadd.s32 %s31, 1
    %p35 = scmp.eq.s32.totalorder %s11, 31
    %p36 = scmp.ne.s32.totalorder %s31, %s33
    %p37 = scmp.eq.s32.totalorder %s11, 0
    %p38 = por %p36, %p37
    %p39 = scmp.ne.s32.totalorder %s31, %s33
    %p40 = scmp.eq.s32.totalorder %s16, 31
    %p41 = por %p39, %p40
    %p42 = scmp.ne.s32.totalorder %s33, %s34
    %p43 = scmp.eq.s32.totalorder %s16, 0
    %p44 = por %p42, %p43
    %p45 = scmp.ne.s32.totalorder %s33, %s34
    %p46 = scmp.eq.s32.totalorder %s17, 31
    %p47 = por %p45, %p46
    %p49 = scmp.ne.s32.totalorder %s34, %s48
    %p50 = scmp.eq.s32.totalorder %s17, 0
    %p51 = por %p49, %p50
    %s53 = sadd.s32 %s52, 1
    %p56 = scmp.eq.s32.totalorder %s11, 31
    %p57 = scmp.ne.s32.totalorder %s52, %s54
    %p58 = scmp.eq.s32.totalorder %s11, 0
    %p59 = por %p57, %p58
    %p60 = scmp.ne.s32.totalorder %s52, %s54
    %p61 = scmp.eq.s32.totalorder %s16, 31
    %p62 = por %p60, %p61
    %p63 = scmp.ne.s32.totalorder %s54, %s55
    %p64 = scmp.eq.s32.totalorder %s16, 0
    %p65 = por %p63, %p64
    %p66 = scmp.ne.s32.totalorder %s54, %s55
    %p67 = scmp.eq.s32.totalorder %s17, 31
    %p68 = por %p66, %p67
    %p70 = scmp.ne.s32.totalorder %s55, %s69
    %p71 = scmp.eq.s32.totalorder %s17, 0
    %p72 = por %p70, %p71
    %s74 = sadd.s32 %s73, 1
    %p77 = scmp.eq.s32.totalorder %s11, 31
    %p78 = scmp.ne.s32.totalorder %s73, %s75
    %p79 = scmp.eq.s32.totalorder %s11, 0
    %p80 = por %p78, %p79
    %p81 = scmp.ne.s32.totalorder %s73, %s75
    %p82 = scmp.eq.s32.totalorder %s16, 31
    %p83 = por %p81, %p82
    %p84 = scmp.ne.s32.totalorder %s75, %s76
    %p85 = scmp.eq.s32.totalorder %s16, 0
    %p86 = por %p84, %p85
    %p87 = scmp.ne.s32.totalorder %s75, %s76
    %p88 = scmp.eq.s32.totalorder %s17, 31
    %p89 = por %p87, %p88
    %p91 = scmp.ne.s32.totalorder %s76, %s90
    %p92 = scmp.eq.s32.totalorder %s17, 0
    %p93 = por %p91, %p92
    %s95 = sadd.s32 %s94, 1
    %p98 = scmp.eq.s32.totalorder %s11, 31
    %p99 = scmp.ne.s32.totalorder %s94, %s96
    %p100 = scmp.eq.s32.totalorder %s11, 0
    %p101 = por %p99, %p100
    %p102 = scmp.ne.s32.totalorder %s94, %s96
    %p103 = scmp.eq.s32.totalorder %s16, 31
    %p104 = por %p102, %p103
    %p105 = scmp.ne.s32.totalorder %s96, %s97
    %p106 = scmp.eq.s32.totalorder %s16, 0
    %p107 = por %p105, %p106
    %p108 = scmp.ne.s32.totalorder %s96, %s97
    %p109 = scmp.eq.s32.totalorder %s17, 31
    %p110 = por %p108, %p109
    %p112 = scmp.ne.s32.totalorder %s97, %s111
    %p113 = scmp.eq.s32.totalorder %s17, 0
    %p114 = por %p112, %p113
    %s115 = ssub.s32 %s18, %s30
    %p116 = scmp.eq.s32.totalorder %s115, 0
    %s118 = sadd.s32 %s117, 1
    %s119 = scalar_select %p116, %s117, %s118
    %p122 = pneg %p116
    %p123 = scmp.eq.s32.totalorder %s11, 31
    %p124 = por %p122, %p123
    %p125 = scmp.ne.s32.totalorder %s117, %s120
    %p126 = scmp.eq.s32.totalorder %s11, 0
    %p127 = por %p125, %p126
    %p128 = scmp.ne.s32.totalorder %s117, %s120
    %p129 = scmp.eq.s32.totalorder %s16, 31
    %p130 = por %p128, %p129
    %p131 = scmp.ne.s32.totalorder %s120, %s121
    %p132 = scmp.eq.s32.totalorder %s16, 0
    %p133 = por %p131, %p132
    %p134 = scmp.ne.s32.totalorder %s120, %s121
    %p135 = scmp.eq.s32.totalorder %s17, 31
    %p136 = por %p134, %p135
    %p138 = scmp.ne.s32.totalorder %s121, %s137
    %p139 = scmp.eq.s32.totalorder %s17, 0
    %p140 = por %p138, %p139
    %s141 = ssub.s32 %s18, %s30
    %s142 = ssub.s32 %s19, %s26
    %s143 = sor.u32 %s141, %s142
    %p144 = scmp.eq.s32.totalorder %s143, 0
    %s146 = sadd.s32 %s145, 1
    %s147 = scalar_select %p144, %s145, %s146
    %p150 = pneg %p144
    %p151 = scmp.eq.s32.totalorder %s11, 31
    %p152 = por %p150, %p151
    %p153 = scmp.ne.s32.totalorder %s145, %s148
    %p154 = scmp.eq.s32.totalorder %s11, 0
    %p155 = por %p153, %p154
    %p156 = scmp.ne.s32.totalorder %s145, %s148
    %p157 = scmp.eq.s32.totalorder %s16, 31
    %p158 = por %p156, %p157
    %p159 = scmp.ne.s32.totalorder %s148, %s149
    %p160 = scmp.eq.s32.totalorder %s16, 0
    %p161 = por %p159, %p160
    %p162 = scmp.ne.s32.totalorder %s148, %s149
    %p163 = scmp.eq.s32.totalorder %s17, 31
    %p164 = por %p162, %p163
    %p166 = scmp.ne.s32.totalorder %s149, %s165
    %p167 = scmp.eq.s32.totalorder %s17, 0
    %p168 = por %p166, %p167
    %p169 = scmp.le.s32.totalorder 1, %s11
    %p170 = scmp.lt.s32.totalorder %s11, 33
    %p171 = pnand %p169, %p170
    %p172 = pneg %p171
    // Predicated region
    $region9: #{deconv_head_forward.5} parent=5 // pred_check
      _
    $region10: #{deconv_head_forward.5} parent=5 // pred_check_branch
      %174 = sbr.rel (%p171) target = $region12
    $region11: #{deconv_head_forward.5} parent=5 // pred_region
      %s175 = ssub.s32 %s11, 1
      // Predicated region
      $region13: #{deconv_head_forward.5} parent=11 // pred_check
        %p176 = pneg %p44
      $region14: #{deconv_head_forward.5} parent=11 // pred_check_branch
        %178 = sbr.rel (%p176) target = $region16
      $region15: #{deconv_head_forward.5} parent=11 // pred_region
        _
      $region16: #{deconv_head_forward.5} parent=11 // pred_fallthru
        _
      // Predicated region
      $region17: #{deconv_head_forward.5} parent=11 // pred_check
        %p179 = pneg %p65
      $region18: #{deconv_head_forward.5} parent=11 // pred_check_branch
        %181 = sbr.rel (%p179) target = $region20
      $region19: #{deconv_head_forward.5} parent=11 // pred_region
        _
      $region20: #{deconv_head_forward.5} parent=11 // pred_fallthru
        _
      // Predicated region
      $region21: #{deconv_head_forward.5} parent=11 // pred_check
        %p182 = pneg %p86
      $region22: #{deconv_head_forward.5} parent=11 // pred_check_branch
        %184 = sbr.rel (%p182) target = $region24
      $region23: #{deconv_head_forward.5} parent=11 // pred_region
        _
      $region24: #{deconv_head_forward.5} parent=11 // pred_fallthru
        _
      // Predicated region
      $region25: #{deconv_head_forward.5} parent=11 // pred_check
        %p185 = pneg %p107
      $region26: #{deconv_head_forward.5} parent=11 // pred_check_branch
        %187 = sbr.rel (%p185) target = $region28
      $region27: #{deconv_head_forward.5} parent=11 // pred_region
        _
      $region28: #{deconv_head_forward.5} parent=11 // pred_fallthru
        _
    $region12: #{deconv_head_forward.5} parent=5 // pred_fallthru
      _
    %p188 = scmp.lt.s32.totalorder %s11, 32
    // Predicated region
    $region29: #{deconv_head_forward.5} parent=5 // pred_check
      %p189 = pneg %p188
    $region30: #{deconv_head_forward.5} parent=5 // pred_check_branch
      %191 = sbr.rel (%p189) target = $region32
    $region31: #{deconv_head_forward.5} parent=5 // pred_region
      // Predicated region
      $region33: #{deconv_head_forward.5} parent=31 // pred_check
        %p192 = pneg %p127
      $region34: #{deconv_head_forward.5} parent=31 // pred_check_branch
        %194 = sbr.rel (%p192) target = $region36
      $region35: #{deconv_head_forward.5} parent=31 // pred_region
        %p195 = scmp.lt.s32.totalorder %s18, 1
        %s196 = scalar_select %p195, %s18, 1
        %s197 = smul.addr %s196, 32
        %s198 = smul.addr %s197, 8
        %s199 = scalar_lea.vmem %s4, %s198
      $region36: #{deconv_head_forward.5} parent=31 // pred_fallthru
        _
    $region32: #{deconv_head_forward.5} parent=5 // pred_fallthru
      _
    %p200 = scmp.le.s32.totalorder 1, %s11
    %p201 = scmp.lt.s32.totalorder %s11, 33
    %p202 = pnand %p200, %p201
    %p203 = pneg %p202
    // Predicated region
    $region37: #{deconv_head_forward.5} parent=5 // pred_check
      _
    $region38: #{deconv_head_forward.5} parent=5 // pred_check_branch
      %205 = sbr.rel (%p202) target = $region40
    $region39: #{deconv_head_forward.5} parent=5 // pred_region
      %s206 = ssub.s32 %s11, 1
      %p207 = pneg %p44
      %p208 = pneg %p41
      %p209 = pneg %p65
      %p210 = pneg %p62
      %p211 = pneg %p86
      %p212 = pneg %p83
      %p213 = pneg %p107
      %p214 = pneg %p104
      %p215 = scmp.lt.s32.totalorder %s20, 1
      %s216 = scalar_select %p215, %s20, 1
      %s217 = smul.addr %s216, 32
      %s218 = smul.addr %s217, 8
      %s219 = scalar_lea.vmem %s4, %s218
      %p220 = pneg %p133
      %p221 = pneg %p130
      %p222 = pneg %p161
      %p223 = pneg %p158
      %p224 = scmp.lt.s32.totalorder %s20, 1
      %s225 = scalar_select %p224, %s20, 1
      %p226 = scmp.lt.s32.totalorder %s21, 15
      %s227 = scalar_select %p226, %s21, 15
      %s228 = smul.addr %s227, 2
      %s229 = smul.addr %s225, 32
      %s230 = sadd.s32 %s228, %s229
      %s231 = smul.addr %s230, 4
      %s232 = scalar_lea.vmem %s5, %s231
      %p233 = scmp.lt.s32.totalorder %s20, 1
      %s234 = scalar_select %p233, %s20, 1
      %s235 = smul.addr %s234, 32
      %s236 = smul.addr %s235, 8
      %s237 = scalar_lea.vmem %s4, %s236
      %p238 = scmp.lt.s32.totalorder %s20, 1
      %s239 = scalar_select %p238, %s20, 1
      %p240 = scmp.lt.s32.totalorder %s21, 15
      %s241 = scalar_select %p240, %s21, 15
      %s242 = smul.addr %s241, 2
      %s243 = smul.addr %s239, 32
      %s244 = sadd.s32 %s242, %s243
      %s245 = smul.addr %s244, 4
      %s246 = scalar_lea.vmem %s5, %s245
      %v247 = vld [vmem:[%s0] sm:$0xff]
      %v248 = vld [vmem:[%s1] sm:$0xff]
      %s249 = smul.u32 %s21, 2
      %s250 = smul.addr %s249, 8
      %s251 = scalar_lea.vmem %s237, %s250
      %v252 = vld [vmem:[%s251] sm:$0xff]
      %v253 = vld [vmem:[%s251 + $0x8] sm:$0xff]
      %255 = vset.pattern.permute.xlu0 0
      %256 = vperm.xlu0 %255, %v247
      %v257 = vpop.permute.xlu0 %256
      %v259 = vmul.f32 %v252, %v257
      %v260 = vmul.f32 %v253, %v257
      %262 = vset.pattern.permute.xlu0 0
      %263 = vperm.xlu0 %262, %v248
      %v264 = vpop.permute.xlu0 %263
      %v266 = vadd.f32 %v259, %v264
      %v267 = vadd.f32 %v260, %v264
      %v268 = vmax.f32 %v266, 0.0
      %v269 = vmax.f32 %v267, 0.0
      %v270 = vld [vmem:[%s2] sm:$0x7]
      %v271 = vld [vmem:[%s3] sm:$0x7]
      %273 = vset.pattern.permute.xlu0 0
      %274 = vperm.xlu0 %273, %v271
      %v275 = vpop.permute.xlu0 %274
      %vm277 = vcmask 64512
      %v279 = vsel %vm277, %v270, 0
      %281 = vmatprep.subr.mxu0 %v269
      %282 = vmatpush1.msra.mxu0 %v268
      %283 = vmatprep.subr.mxu0 0.0
      %284 = vmatpush1.msra.mxu0 0.0
      %285 = vmatprep.subr.mxu0 0.0
      %286 = vmatpush1.msra.mxu0 0.0
      %287 = vmatprep.subr.mxu0 0.0
      %288 = vmatpush1.msra.mxu0 0.0
      %289 = vmatprep.subr.mxu0 0.0
      %290 = vmatpush1.msra.mxu0 0.0
      %291 = vmatprep.subr.mxu0 0.0
      %292 = vmatpush1.msra.mxu0 0.0
      %293 = vmatprep.subr.mxu0 0.0
      %294 = vmatpush1.msra.mxu0 0.0
      %295 = vmatprep.subr.mxu0 0.0
      %296 = vmatpush1.msra.mxu0 0.0
      %297 = vmatprep.subr.mxu0 0.0
      %298 = vmatpush1.msra.mxu0 0.0
      %299 = vmatprep.subr.mxu0 0.0
      %300 = vmatpush1.msra.mxu0 0.0
      %301 = vmatprep.subr.mxu0 0.0
      %302 = vmatpush1.msra.mxu0 0.0
      %303 = vmatprep.subr.mxu0 0.0
      %304 = vmatpush1.msra.mxu0 0.0
      %305 = vmatprep.subr.mxu0 0.0
      %306 = vmatpush1.msra.mxu0 0.0
      %307 = vmatprep.subr.mxu0 0.0
      %308 = vmatpush1.msra.mxu0 0.0
      %309 = vmatprep.subr.mxu0 0.0
      %310 = vmatpush1.msra.mxu0 0.0
      %311 = vmatprep.subr.mxu0 0.0
      %312 = vmatpush1.msra.mxu0 0.0
      %313 = vmatprep.subr.mxu0 0.0
      %314 = vmatpush1.msra.mxu0 0.0
      %315 = vmatprep.subr.mxu0 0.0
      %316 = vmatpush1.msra.mxu0 0.0
      %317 = vmatprep.subr.mxu0 0.0
      %318 = vmatpush1.msra.mxu0 0.0
      %319 = vmatprep.subr.mxu0 0.0
      %320 = vmatpush1.msra.mxu0 0.0
      %321 = vmatprep.subr.mxu0 0.0
      %322 = vmatpush1.msra.mxu0 0.0
      %323 = vmatprep.subr.mxu0 0.0
      %324 = vmatpush1.msra.mxu0 0.0
      %325 = vmatprep.subr.mxu0 0.0
      %326 = vmatpush1.msra.mxu0 0.0
      %327 = vmatprep.subr.mxu0 0.0
      %328 = vmatpush1.msra.mxu0 0.0
      %329 = vmatprep.subr.mxu0 0.0
      %330 = vmatpush1.msra.mxu0 0.0
      %331 = vmatprep.subr.mxu0 0.0
      %332 = vmatpush1.msra.mxu0 0.0
      %333 = vmatprep.subr.mxu0 0.0
      %334 = vmatpush1.msra.mxu0 0.0
      %335 = vmatprep.subr.mxu0 0.0
      %336 = vmatpush1.msra.mxu0 0.0
      %337 = vmatprep.subr.mxu0 0.0
      %338 = vmatpush1.msra.mxu0 0.0
      %339 = vmatprep.subr.mxu0 0.0
      %340 = vmatpush1.msra.mxu0 0.0
      %341 = vmatprep.subr.mxu0 0.0
      %342 = vmatpush1.msra.mxu0 0.0
      %343 = vmatprep.subr.mxu0 0.0
      %344 = vmatpush1.msra.mxu0 0.0
      %345 = vmatprep.mubr.f32.mxu0 0.0
      %346 = vmatmul.mubr.f32.gmra.mrb[0].mxu0 %v279
      %v347 = vpop.f32.mrb[0].mxu0
      %v348 = vadd.f32 %v275, %v347
      %v349 = vpop.f32.mrb[0].mxu0
      %v350 = vadd.f32 %v275, %v349
      %351 = vdwg.mxu0
      %v354 = vcombine.low %v348, %v350
      %356 = vst [vmem:[%s246] sm:$0x77] %v354
      %p357 = scmp.lt.s32.totalorder %s20, 1
      %s358 = scalar_select %p357, %s20, 1
      %p359 = scmp.lt.s32.totalorder %s21, 15
      %s360 = scalar_select %p359, %s21, 15
      %s361 = smul.addr %s360, 2
      %s362 = smul.addr %s358, 32
      %s363 = sadd.s32 %s361, %s362
      %s364 = smul.addr %s363, 4
      %s365 = scalar_lea.vmem %s5, %s364
      // Predicated region
      $region41: #{deconv_head_forward.5} parent=39 // pred_check
        %p366 = pneg %p158
      $region42: #{deconv_head_forward.5} parent=39 // pred_check_branch
        %368 = sbr.rel (%p366) target = $region44
      $region43: #{deconv_head_forward.5} parent=39 // pred_region
        _
      $region44: #{deconv_head_forward.5} parent=39 // pred_fallthru
        _
    $region40: #{deconv_head_forward.5} parent=5 // pred_fallthru
      _
    %p369 = scmp.le.s32.totalorder 2, %s11
    // Predicated region
    $region45: #{deconv_head_forward.5} parent=5 // pred_check
      %p370 = pneg %p369
    $region46: #{deconv_head_forward.5} parent=5 // pred_check_branch
      %372 = sbr.rel (%p370) target = $region48
    $region47: #{deconv_head_forward.5} parent=5 // pred_region
      %s373 = ssub.s32 %s11, 2
      // Predicated region
      $region49: #{deconv_head_forward.5} parent=47 // pred_check
        %p374 = pneg %p164
      $region50: #{deconv_head_forward.5} parent=47 // pred_check_branch
        %376 = sbr.rel (%p374) target = $region52
      $region51: #{deconv_head_forward.5} parent=47 // pred_region
        %p377 = scmp.lt.s32.totalorder %s22, 1
        %s378 = scalar_select %p377, %s22, 1
        %p379 = scmp.lt.s32.totalorder %s23, 15
        %s380 = scalar_select %p379, %s23, 15
        %s381 = smul.addr %s380, 2
        %s382 = smul.addr %s378, 32
        %s383 = sadd.s32 %s381, %s382
        %s384 = smul.addr %s383, 4
        %s385 = scalar_lea.vmem %s5, %s384
      $region52: #{deconv_head_forward.5} parent=47 // pred_fallthru
        _
    $region48: #{deconv_head_forward.5} parent=5 // pred_fallthru
      _
  $region6: #{deconv_head_forward.5} parent=0 // loop_footer
    %s15 = sadd.s32 1, %s11
  $region7: #{deconv_head_forward.5} parent=0 // loop_footer_branch
    %10 = sbr.rel target = $region3
  $region8: #{deconv_head_forward.5} parent=0 // loop_exit
    _

</llo_original>
